<compile_context>
chip_gen: v7x
topology: tpu7x:2x2x1
jax: 0.10.0
libtpu: 0.0.40
codegen_flags: <defaults>
</compile_context>

<pallas_src>
import functools

import jax
import jax.numpy as jnp
from jax.experimental import pallas as pl
from jax.experimental.pallas import tpu as pltpu

PAD_N = 128    # lane-padded width of the fused head output slab
PAD_C3 = 128   # lane-padded width of the folded conv3 output (real width = 64)
NEG = -1e30    # finite "-inf" fill for masked softmax lanes


# ----------------------------- fused Pallas kernel -----------------------------

def _fused_kernel(x_ref, c3w_ref, c3b_ref, fc1w_ref, fc1b_ref,
                  w1_ref, b1_ref,
                  w2a_ref, w2c_ref, w2x_ref,
                  b2a_ref, b2c_ref, b2x_ref,
                  w3_ref, b3_ref, o_ref, *, n_actions):
    """conv3(as dense) + fc1 + (actor|critic|aux) heads + log_softmax, fused.

    Output slab layout (lane axis, width 128):
      [0, n_actions)                 : actor log-probs
      [n_actions]                    : critic value
      [n_actions+1, 2*n_actions+1)   : aux log-probs
      rest                           : exactly 0 (padded weight cols / bias are 0)
    """
    f32 = jnp.float32
    bf16 = jnp.bfloat16
    H = w2a_ref.shape[0]  # hidden width (512)

    # activation cast folded into the kernel (input arrives as f32)
    x = x_ref[...].astype(bf16)                                          # (B, 576)

    # conv3 folded as a dense layer, lane-padded to 128 outputs
    h0 = jnp.dot(x, c3w_ref[...], preferred_element_type=f32)
    h0 = jnp.maximum(h0 + c3b_ref[...], 0.0).astype(bf16)               # (B, 128)

    # fc1 + ReLU
    feat = jnp.dot(h0, fc1w_ref[...], preferred_element_type=f32)
    feat = jnp.maximum(feat + fc1b_ref[...], 0.0).astype(bf16)          # (B, 512)

    # heads layer 1 (all three heads in one matmul): (B,512) @ (512,1536)
    h1 = jnp.dot(feat, w1_ref[...], preferred_element_type=f32)
    h1 = jnp.maximum(h1 + b1_ref[...], 0.0).astype(bf16)                # (B, 1536)

    def layer2(h_slice, w_ref, b_ref):
        h = jnp.dot(h_slice, w_ref[...], preferred_element_type=f32)
        return jnp.maximum(h + b_ref[...], 0.0).astype(bf16)

    h2a = layer2(h1[:, 0:H],         w2a_ref, b2a_ref)   # actor
    h2c = layer2(h1[:, H:2 * H],     w2c_ref, b2c_ref)   # critic
    h2x = layer2(h1[:, 2 * H:3 * H], w2x_ref, b2x_ref)   # aux
    h2 = jnp.concatenate([h2a, h2c, h2x], axis=-1)       # (B, 1536), tile-aligned

    # heads layer 3: ONE matmul into a single lane-dense (B, 128) slab
    out = jnp.dot(h2, w3_ref[...], preferred_element_type=f32) + b3_ref[...]

    lanes = jax.lax.broadcasted_iota(jnp.int32, out.shape, 1)
    actor_mask = lanes < n_actions
    aux_mask = (lanes >= n_actions + 1) & (lanes < 2 * n_actions + 1)

    def masked_log_softmax(logits, mask):
        m = jnp.max(jnp.where(mask, logits, NEG), axis=-1, keepdims=True)
        # masked lanes never feed garbage into exp (fill underflows to 0)
        p = jnp.exp(jnp.where(mask, logits - m, NEG))
        lse = jnp.log(jnp.sum(p, axis=-1, keepdims=True))
        return logits - m - lse

    a_lp = masked_log_softmax(out, actor_mask)
    x_lp = masked_log_softmax(out, aux_mask)
    o_ref[...] = jnp.where(actor_mask, a_lp, jnp.where(aux_mask, x_lp, out))


def _full_block(shape):
    nd = len(shape)
    return pl.BlockSpec(tuple(shape), lambda *_: (0,) * nd)


def fused_heads_call(x_flat_f32, p, n_actions):
    """Single pallas_call: conv3(dense) + fc1 + 3 decoder heads + 2 log_softmax."""
    B = x_flat_f32.shape[0]
    args = (x_flat_f32, p["c3_w"], p["c3_b"], p["fc1_w"], p["fc1_b"],
            p["w1_cat"], p["b1_cat"],
            p["w2_a"], p["w2_c"], p["w2_x"],
            p["b2_a"], p["b2_c"], p["b2_x"],
            p["w3_cat"], p["b3_pad"])
    in_specs = [_full_block(a.shape) for a in args]
    return pl.pallas_call(
        functools.partial(_fused_kernel, n_actions=n_actions),
        grid=(1,),
        in_specs=in_specs,
        out_specs=pl.BlockSpec((B, PAD_N), lambda i: (0, 0)),
        out_shape=jax.ShapeDtypeStruct((B, PAD_N), jnp.float32),
        compiler_params=pltpu.CompilerParams(dimension_semantics=("arbitrary",)),
    )(*args)


# ------------------------------ conv trunk (XLA) ------------------------------

def conv_trunk(params, image_nchw):
    """conv1+ReLU, conv2+ReLU, then NCHW flatten (conv3 is folded into the kernel)."""
    x = image_nchw.astype(jnp.float32)
    for name, stride in (("conv1", 4), ("conv2", 2)):
        w, b = params[name]            # w: OIHW f32, b: (1, O, 1, 1) f32
        x = jax.lax.conv_general_dilated(
            x, w, window_strides=(stride, stride), padding="VALID",
            dimension_numbers=("NCHW", "OIHW", "NCHW"))
        x = jnp.maximum(x + b, 0.0)
    return x.reshape(x.shape[0], -1)   # (B, 64*h2*w2) in (c, h, w) order


# ------------------------------ parameters ------------------------------

def init_params(key, c, h, w, n_actions, hidden=512):
    """nn.Conv2d / nn.Linear default init, pre-packed ONCE into kernel layout.

    Returns (packed, raw): `packed` feeds the kernel, `raw` is an unpacked copy
    (linear / conv3 weights bf16-rounded to match the kernel) for the reference.
    """
    keys = jax.random.split(key, 7)
    bf16 = jnp.bfloat16

    def conv_init(k, o, i, kh, kw):
        kw_, kb_ = jax.random.split(k)
        s = 1.0 / float(i * kh * kw) ** 0.5
        wgt = jax.random.uniform(kw_, (o, i, kh, kw), jnp.float32, -s, s)
        b = jax.random.uniform(kb_, (o,), jnp.float32, -s, s)
        return wgt, b

    def lin_init(k, fi, fo):
        kw_, kb_ = jax.random.split(k)
        s = 1.0 / float(fi) ** 0.5
        wgt = jax.random.uniform(kw_, (fi, fo), jnp.float32, -s, s)
        b = jax.random.uniform(kb_, (fo,), jnp.float32, -s, s)
        return wgt, b

    def head_init(k, in_c, hid, out_c):
        k1, k2, k3 = jax.random.split(k, 3)
        return lin_init(k1, in_c, hid), lin_init(k2, hid, hid), lin_init(k3, hid, out_c)

    def out_dim(s, kk, st):
        return (s - kk) // st + 1

    h1d, w1d = out_dim(h, 8, 4), out_dim(w, 8, 4)
    h2d, w2d = out_dim(h1d, 4, 2), out_dim(w1d, 4, 2)
    h3d, w3d = out_dim(h2d, 3, 1), out_dim(w2d, 3, 1)
    # conv3-as-matmul fold needs conv3's receptive field == whole conv2 output.
    assert h3d == 1 and w3d == 1, "conv3 fold requires 1x1 conv3 output (use 40x40 input)"
    # TODO(synk): generalize the conv3 fold (im2col) for inputs where conv3 output > 1x1.
    conv3_in = 64 * h2d * w2d      # 576
    conv_out = 64 * h3d * w3d      # 64

    conv1 = conv_init(keys[0], 32, c, 8, 8)
    conv2 = conv_init(keys[1], 64, 32, 4, 4)
    conv3 = conv_init(keys[2], 64, 64, 3, 3)
    fc1 = lin_init(keys[3], conv_out, hidden)
    actor = head_init(keys[4], hidden, hidden, n_actions)
    critic = head_init(keys[5], hidden, hidden, 1)
    aux = head_init(keys[6], hidden, hidden, n_actions)

    # ---- pre-pack (transposes / concats / padding happen here, never per-forward)
    packed = {}
    for name, (cw, cb) in (("conv1", conv1), ("conv2", conv2)):
        packed[name] = (cw, cb.reshape(1, -1, 1, 1))

    c3w, c3b = conv3
    c3_dense = c3w.reshape(64, conv3_in).T          # (576, 64), rows in (i, kh, kw) order
    packed["c3_w"] = (jnp.zeros((conv3_in, PAD_C3), jnp.float32)
                      .at[:, :64].set(c3_dense).astype(bf16))
    packed["c3_b"] = jnp.zeros((1, PAD_C3), jnp.float32).at[0, :64].set(c3b)

    fw, fb = fc1
    packed["fc1_w"] = (jnp.zeros((PAD_C3, hidden), jnp.float32)
                       .at[:conv_out, :].set(fw).astype(bf16))
    packed["fc1_b"] = fb[None, :]

    (a1w, a1b), (a2w, a2b), (a3w, a3b) = actor
    (cr1w, cr1b), (cr2w, cr2b), (cr3w, cr3b) = critic
    (x1w, x1b), (x2w, x2b), (x3w, x3b) = aux

    packed["w1_cat"] = jnp.concatenate([a1w, cr1w, x1w], axis=1).astype(bf16)  # (512,1536)
    packed["b1_cat"] = jnp.concatenate([a1b, cr1b, x1b])[None, :]              # (1,1536)

    packed["w2_a"] = a2w.astype(bf16)
    packed["w2_c"] = cr2w.astype(bf16)
    packed["w2_x"] = x2w.astype(bf16)
    packed["b2_a"] = a2b[None, :]
    packed["b2_c"] = cr2b[None, :]
    packed["b2_x"] = x2b[None, :]

    def pad_cols(wgt, col0):
        buf = jnp.zeros((wgt.shape[0], PAD_N), jnp.float32)
        return buf.at[:, col0:col0 + wgt.shape[1]].set(wgt)

    # single stacked layer-3 matrix: rows [actor | critic | aux], lane-padded cols
    packed["w3_cat"] = jnp.concatenate(
        [pad_cols(a3w, 0), pad_cols(cr3w, n_actions), pad_cols(x3w, n_actions + 1)],
        axis=0).astype(bf16)                                                    # (1536,128)
    b3 = jnp.zeros((1, PAD_N), jnp.float32)
    b3 = b3.at[0, 0:n_actions].set(a3b)
    b3 = b3.at[0, n_actions].set(cr3b[0])
    b3 = b3.at[0, n_actions + 1:2 * n_actions + 1].set(x3b)
    packed["b3_pad"] = b3

    # ---- raw (reference) copy, bf16-rounded where the kernel uses bf16
    rt = lambda a: a.astype(bf16).astype(jnp.float32)
    raw = dict(
        conv1=conv1, conv2=conv2, conv3=(rt(c3w), c3b), fc1=(rt(fw), fb),
        actor=((rt(a1w), a1b), (rt(a2w), a2b), (rt(a3w), a3b)),
        critic=((rt(cr1w), cr1b), (rt(cr2w), cr2b), (rt(cr3w), cr3b)),
        aux=((rt(x1w), x1b), (rt(x2w), x2b), (rt(x3w), x3b)),
    )
    return packed, raw


# ------------------------------ forward pass ------------------------------

def advisor_policy_forward(params, image_nchw, *, n_actions):
    """Returns (actor_log_probs, value, aux_log_probs); the Categorical dists are
    represented by their normalized log-probabilities."""
    x_flat = conv_trunk(params, image_nchw)                 # (B, 576) f32
    out = fused_heads_call(x_flat, params, n_actions)       # (B, 128) f32
    actor_lp = out[:, :n_actions]
    value = out[:, n_actions]
    aux_lp = out[:, n_actions + 1:2 * n_actions + 1]
    return actor_lp, value, aux_lp


# ------------------------------ pure-JAX reference ------------------------------

def reference_forward(raw, image_nchw, n_actions):
    """f32 reference with the original (unpacked) module structure."""
    x = image_nchw.astype(jnp.float32)
    for (w, b), stride in ((raw["conv1"], 4), (raw["conv2"], 2), (raw["conv3"], 1)):
        x = jax.lax.conv_general_dilated(
            x, w, window_strides=(stride, stride), padding="VALID",
            dimension_numbers=("NCHW", "OIHW", "NCHW"))
        x = jnp.maximum(x + b.reshape(1, -1, 1, 1), 0.0)
    x = x.reshape(x.shape[0], -1)
    fw, fb = raw["fc1"]
    feat = jnp.maximum(x @ fw + fb, 0.0)

    def head(h, layers):
        (w1, b1), (w2, b2), (w3, b3) = layers
        h = jnp.maximum(h @ w1 + b1, 0.0)
        h = jnp.maximum(h @ w2 + b2, 0.0)
        return h @ w3 + b3

    a = head(feat, raw["actor"])
    v = head(feat, raw["critic"])
    xx = head(feat, raw["aux"])
    return (jax.nn.log_softmax(a, axis=-1), v[:, 0], jax.nn.log_softmax(xx, axis=-1))


# ------------------------------ main ------------------------------

if __name__ == "__main__":
    B, C, H, W = 2, 3, 40, 40      # 40x40 -> conv2 output 64x3x3, conv3 output 64x1x1
    N_ACTIONS = 7

    key = jax.random.PRNGKey(0)
    k_img, k_params = jax.random.split(key)
    image = jax.random.uniform(k_img, (B, C, H, W), dtype=jnp.float32)
    packed, raw = init_params(k_params, C, H, W, N_ACTIONS)

    fwd = jax.jit(functools.partial(advisor_policy_forward, n_actions=N_ACTIONS))
    actor_lp, value, aux_lp = jax.block_until_ready(fwd(packed, image))

    # shape checks
    assert actor_lp.shape == (B, N_ACTIONS)
    assert value.shape == (B,)
    assert aux_lp.shape == (B, N_ACTIONS)

    # log_softmax rows must normalize to 1 in prob space
    assert bool(jnp.all(jnp.abs(jnp.sum(jnp.exp(actor_lp), axis=-1) - 1.0) < 1e-4))
    assert bool(jnp.all(jnp.abs(jnp.sum(jnp.exp(aux_lp), axis=-1) - 1.0) < 1e-4))

    # compare against the pure-JAX f32 reference (original module structure,
    # same bf16-rounded weights) -- validates both the packing and the kernel
    ref_a, ref_v, ref_x = reference_forward(raw, image, N_ACTIONS)
    assert bool(jnp.max(jnp.abs(actor_lp - ref_a)) < 5e-2)
    assert bool(jnp.max(jnp.abs(value - ref_v)) < 5e-2)
    assert bool(jnp.max(jnp.abs(aux_lp - ref_x)) < 5e-2)

    print("KERNEL_OK")
</pallas_src>

<mosaic_0001>
module attributes {stable_mosaic.version = 11 : i64} {
  func.func @_fused_kernel(%arg0: i32, %arg1: memref<2x576xf32, #tpu.memory_space<vmem>>, %arg2: memref<576x128xbf16, #tpu.memory_space<vmem>>, %arg3: memref<1x128xf32, #tpu.memory_space<vmem>>, %arg4: memref<128x512xbf16, #tpu.memory_space<vmem>>, %arg5: memref<1x512xf32, #tpu.memory_space<vmem>>, %arg6: memref<512x1536xbf16, #tpu.memory_space<vmem>>, %arg7: memref<1x1536xf32, #tpu.memory_space<vmem>>, %arg8: memref<512x512xbf16, #tpu.memory_space<vmem>>, %arg9: memref<512x512xbf16, #tpu.memory_space<vmem>>, %arg10: memref<512x512xbf16, #tpu.memory_space<vmem>>, %arg11: memref<1x512xf32, #tpu.memory_space<vmem>>, %arg12: memref<1x512xf32, #tpu.memory_space<vmem>>, %arg13: memref<1x512xf32, #tpu.memory_space<vmem>>, %arg14: memref<1536x128xbf16, #tpu.memory_space<vmem>>, %arg15: memref<1x128xf32, #tpu.memory_space<vmem>>, %arg16: memref<2x128xf32, #tpu.memory_space<vmem>>) attributes {dimension_semantics = [#tpu.dimension_semantics<arbitrary>], iteration_bounds = array<i64: 1>, scalar_prefetch = 0 : i64, scratch_operands = 0 : i64, tpu.core_type = #tpu.core_type<tc>, window_params = [{pipeline_mode = #tpu.pipeline_mode<synchronous>, transform_indices = @transform_0, window_bounds = array<i64: 2, 576>}, {pipeline_mode = #tpu.pipeline_mode<synchronous>, transform_indices = @transform_1, window_bounds = array<i64: 576, 128>}, {pipeline_mode = #tpu.pipeline_mode<synchronous>, transform_indices = @transform_2, window_bounds = array<i64: 1, 128>}, {pipeline_mode = #tpu.pipeline_mode<synchronous>, transform_indices = @transform_3, window_bounds = array<i64: 128, 512>}, {pipeline_mode = #tpu.pipeline_mode<synchronous>, transform_indices = @transform_4, window_bounds = array<i64: 1, 512>}, {pipeline_mode = #tpu.pipeline_mode<synchronous>, transform_indices = @transform_5, window_bounds = array<i64: 512, 1536>}, {pipeline_mode = #tpu.pipeline_mode<synchronous>, transform_indices = @transform_6, window_bounds = array<i64: 1, 1536>}, {pipeline_mode = #tpu.pipeline_mode<synchronous>, transform_indices = @transform_7, window_bounds = array<i64: 512, 512>}, {pipeline_mode = #tpu.pipeline_mode<synchronous>, transform_indices = @transform_8, window_bounds = array<i64: 512, 512>}, {pipeline_mode = #tpu.pipeline_mode<synchronous>, transform_indices = @transform_9, window_bounds = array<i64: 512, 512>}, {pipeline_mode = #tpu.pipeline_mode<synchronous>, transform_indices = @transform_10, window_bounds = array<i64: 1, 512>}, {pipeline_mode = #tpu.pipeline_mode<synchronous>, transform_indices = @transform_11, window_bounds = array<i64: 1, 512>}, {pipeline_mode = #tpu.pipeline_mode<synchronous>, transform_indices = @transform_12, window_bounds = array<i64: 1, 512>}, {pipeline_mode = #tpu.pipeline_mode<synchronous>, transform_indices = @transform_13, window_bounds = array<i64: 1536, 128>}, {pipeline_mode = #tpu.pipeline_mode<synchronous>, transform_indices = @transform_14, window_bounds = array<i64: 1, 128>}, {pipeline_mode = #tpu.pipeline_mode<synchronous>, transform_indices = @transform_15, window_bounds = array<i64: 2, 128>}]} {
    %c0 = arith.constant 0 : index
    %c0_0 = arith.constant 0 : index
    %0 = vector.load %arg1[%c0, %c0_0] : memref<2x576xf32, #tpu.memory_space<vmem>>, vector<2x576xf32>
    %1 = arith.truncf %0 : vector<2x576xf32> to vector<2x576xbf16>
    %c0_1 = arith.constant 0 : index
    %c0_2 = arith.constant 0 : index
    %2 = vector.load %arg2[%c0_1, %c0_2] : memref<576x128xbf16, #tpu.memory_space<vmem>>, vector<576x128xbf16>
    %cst = arith.constant dense<0.000000e+00> : vector<2x128xf32>
    %3 = tpu.matmul %1, %2, %cst {dimension_numbers = #tpu.dot_dimension_numbers<[1], [0], [0], [1], [0, 0, 1, 1], [], []>} : vector<2x576xbf16>, vector<576x128xbf16>, vector<2x128xf32> -> vector<2x128xf32>
    %c0_3 = arith.constant 0 : index
    %c0_4 = arith.constant 0 : index
    %4 = vector.load %arg3[%c0_3, %c0_4] : memref<1x128xf32, #tpu.memory_space<vmem>>, vector<1x128xf32>
    %5 = vector.broadcast %4 : vector<1x128xf32> to vector<2x128xf32>
    %6 = arith.addf %3, %5 : vector<2x128xf32>
    %cst_5 = arith.constant 0.000000e+00 : f32
    %7 = vector.broadcast %cst_5 : f32 to vector<2x128xf32>
    %8 = arith.maximumf %6, %7 : vector<2x128xf32>
    %9 = arith.truncf %8 : vector<2x128xf32> to vector<2x128xbf16>
    %c0_6 = arith.constant 0 : index
    %c0_7 = arith.constant 0 : index
    %10 = vector.load %arg4[%c0_6, %c0_7] : memref<128x512xbf16, #tpu.memory_space<vmem>>, vector<128x512xbf16>
    %cst_8 = arith.constant dense<0.000000e+00> : vector<2x512xf32>
    %11 = tpu.matmul %9, %10, %cst_8 {dimension_numbers = #tpu.dot_dimension_numbers<[1], [0], [0], [1], [0, 0, 1, 1], [], []>} : vector<2x128xbf16>, vector<128x512xbf16>, vector<2x512xf32> -> vector<2x512xf32>
    %c0_9 = arith.constant 0 : index
    %c0_10 = arith.constant 0 : index
    %12 = vector.load %arg5[%c0_9, %c0_10] : memref<1x512xf32, #tpu.memory_space<vmem>>, vector<1x512xf32>
    %13 = vector.broadcast %12 : vector<1x512xf32> to vector<2x512xf32>
    %14 = arith.addf %11, %13 : vector<2x512xf32>
    %cst_11 = arith.constant 0.000000e+00 : f32
    %15 = vector.broadcast %cst_11 : f32 to vector<2x512xf32>
    %16 = arith.maximumf %14, %15 : vector<2x512xf32>
    %17 = arith.truncf %16 : vector<2x512xf32> to vector<2x512xbf16>
    %c0_12 = arith.constant 0 : index
    %c0_13 = arith.constant 0 : index
    %18 = vector.load %arg6[%c0_12, %c0_13] : memref<512x1536xbf16, #tpu.memory_space<vmem>>, vector<512x1536xbf16>
    %cst_14 = arith.constant dense<0.000000e+00> : vector<2x1536xf32>
    %19 = tpu.matmul %17, %18, %cst_14 {dimension_numbers = #tpu.dot_dimension_numbers<[1], [0], [0], [1], [0, 0, 1, 1], [], []>} : vector<2x512xbf16>, vector<512x1536xbf16>, vector<2x1536xf32> -> vector<2x1536xf32>
    %c0_15 = arith.constant 0 : index
    %c0_16 = arith.constant 0 : index
    %20 = vector.load %arg7[%c0_15, %c0_16] : memref<1x1536xf32, #tpu.memory_space<vmem>>, vector<1x1536xf32>
    %21 = vector.broadcast %20 : vector<1x1536xf32> to vector<2x1536xf32>
    %22 = arith.addf %19, %21 : vector<2x1536xf32>
    %cst_17 = arith.constant 0.000000e+00 : f32
    %23 = vector.broadcast %cst_17 : f32 to vector<2x1536xf32>
    %24 = arith.maximumf %22, %23 : vector<2x1536xf32>
    %25 = arith.truncf %24 : vector<2x1536xf32> to vector<2x1536xbf16>
    %26 = vector.extract_strided_slice %25 {offsets = [0, 0], sizes = [2, 512], strides = [1, 1]} : vector<2x1536xbf16> to vector<2x512xbf16>
    %c0_18 = arith.constant 0 : index
    %c0_19 = arith.constant 0 : index
    %27 = vector.load %arg8[%c0_18, %c0_19] : memref<512x512xbf16, #tpu.memory_space<vmem>>, vector<512x512xbf16>
    %cst_20 = arith.constant dense<0.000000e+00> : vector<2x512xf32>
    %28 = tpu.matmul %26, %27, %cst_20 {dimension_numbers = #tpu.dot_dimension_numbers<[1], [0], [0], [1], [0, 0, 1, 1], [], []>} : vector<2x512xbf16>, vector<512x512xbf16>, vector<2x512xf32> -> vector<2x512xf32>
    %c0_21 = arith.constant 0 : index
    %c0_22 = arith.constant 0 : index
    %29 = vector.load %arg11[%c0_21, %c0_22] : memref<1x512xf32, #tpu.memory_space<vmem>>, vector<1x512xf32>
    %30 = vector.broadcast %29 : vector<1x512xf32> to vector<2x512xf32>
    %31 = arith.addf %28, %30 : vector<2x512xf32>
    %cst_23 = arith.constant 0.000000e+00 : f32
    %32 = vector.broadcast %cst_23 : f32 to vector<2x512xf32>
    %33 = arith.maximumf %31, %32 : vector<2x512xf32>
    %34 = arith.truncf %33 : vector<2x512xf32> to vector<2x512xbf16>
    %35 = vector.extract_strided_slice %25 {offsets = [0, 512], sizes = [2, 512], strides = [1, 1]} : vector<2x1536xbf16> to vector<2x512xbf16>
    %c0_24 = arith.constant 0 : index
    %c0_25 = arith.constant 0 : index
    %36 = vector.load %arg9[%c0_24, %c0_25] : memref<512x512xbf16, #tpu.memory_space<vmem>>, vector<512x512xbf16>
    %cst_26 = arith.constant dense<0.000000e+00> : vector<2x512xf32>
    %37 = tpu.matmul %35, %36, %cst_26 {dimension_numbers = #tpu.dot_dimension_numbers<[1], [0], [0], [1], [0, 0, 1, 1], [], []>} : vector<2x512xbf16>, vector<512x512xbf16>, vector<2x512xf32> -> vector<2x512xf32>
    %c0_27 = arith.constant 0 : index
    %c0_28 = arith.constant 0 : index
    %38 = vector.load %arg12[%c0_27, %c0_28] : memref<1x512xf32, #tpu.memory_space<vmem>>, vector<1x512xf32>
    %39 = vector.broadcast %38 : vector<1x512xf32> to vector<2x512xf32>
    %40 = arith.addf %37, %39 : vector<2x512xf32>
    %cst_29 = arith.constant 0.000000e+00 : f32
    %41 = vector.broadcast %cst_29 : f32 to vector<2x512xf32>
    %42 = arith.maximumf %40, %41 : vector<2x512xf32>
    %43 = arith.truncf %42 : vector<2x512xf32> to vector<2x512xbf16>
    %44 = vector.extract_strided_slice %25 {offsets = [0, 1024], sizes = [2, 512], strides = [1, 1]} : vector<2x1536xbf16> to vector<2x512xbf16>
    %c0_30 = arith.constant 0 : index
    %c0_31 = arith.constant 0 : index
    %45 = vector.load %arg10[%c0_30, %c0_31] : memref<512x512xbf16, #tpu.memory_space<vmem>>, vector<512x512xbf16>
    %cst_32 = arith.constant dense<0.000000e+00> : vector<2x512xf32>
    %46 = tpu.matmul %44, %45, %cst_32 {dimension_numbers = #tpu.dot_dimension_numbers<[1], [0], [0], [1], [0, 0, 1, 1], [], []>} : vector<2x512xbf16>, vector<512x512xbf16>, vector<2x512xf32> -> vector<2x512xf32>
    %c0_33 = arith.constant 0 : index
    %c0_34 = arith.constant 0 : index
    %47 = vector.load %arg13[%c0_33, %c0_34] : memref<1x512xf32, #tpu.memory_space<vmem>>, vector<1x512xf32>
    %48 = vector.broadcast %47 : vector<1x512xf32> to vector<2x512xf32>
    %49 = arith.addf %46, %48 : vector<2x512xf32>
    %cst_35 = arith.constant 0.000000e+00 : f32
    %50 = vector.broadcast %cst_35 : f32 to vector<2x512xf32>
    %51 = arith.maximumf %49, %50 : vector<2x512xf32>
    %52 = arith.truncf %51 : vector<2x512xf32> to vector<2x512xbf16>
    %53 = tpu.concatenate %34, %43, %52 in 1 : vector<2x512xbf16>, vector<2x512xbf16>, vector<2x512xbf16> -> vector<2x1536xbf16>
    %c0_36 = arith.constant 0 : index
    %c0_37 = arith.constant 0 : index
    %54 = vector.load %arg14[%c0_36, %c0_37] : memref<1536x128xbf16, #tpu.memory_space<vmem>>, vector<1536x128xbf16>
    %cst_38 = arith.constant dense<0.000000e+00> : vector<2x128xf32>
    %55 = tpu.matmul %53, %54, %cst_38 {dimension_numbers = #tpu.dot_dimension_numbers<[1], [0], [0], [1], [0, 0, 1, 1], [], []>} : vector<2x1536xbf16>, vector<1536x128xbf16>, vector<2x128xf32> -> vector<2x128xf32>
    %c0_39 = arith.constant 0 : index
    %c0_40 = arith.constant 0 : index
    %56 = vector.load %arg15[%c0_39, %c0_40] : memref<1x128xf32, #tpu.memory_space<vmem>>, vector<1x128xf32>
    %57 = vector.broadcast %56 : vector<1x128xf32> to vector<2x128xf32>
    %58 = arith.addf %55, %57 : vector<2x128xf32>
    %59 = tpu.iota {dimensions = array<i32: 1>} : vector<2x128xi32>
    %c7_i32 = arith.constant 7 : i32
    %60 = vector.broadcast %c7_i32 : i32 to vector<2x128xi32>
    %61 = arith.cmpi slt, %59, %60 : vector<2x128xi32>
    %c8_i32 = arith.constant 8 : i32
    %62 = vector.broadcast %c8_i32 : i32 to vector<2x128xi32>
    %63 = arith.cmpi sge, %59, %62 : vector<2x128xi32>
    %c15_i32 = arith.constant 15 : i32
    %64 = vector.broadcast %c15_i32 : i32 to vector<2x128xi32>
    %65 = arith.cmpi slt, %59, %64 : vector<2x128xi32>
    %66 = arith.andi %63, %65 : vector<2x128xi1>
    %cst_41 = arith.constant -1.000000e+30 : f32
    %67 = vector.broadcast %cst_41 : f32 to vector<2x128xf32>
    %68 = arith.select %61, %58, %67 : vector<2x128xi1>, vector<2x128xf32>
    %cst_42 = arith.constant dense<0xFF800000> : vector<2xf32>
    %69 = vector.multi_reduction <maximumf>, %68, %cst_42 [1] : vector<2x128xf32> to vector<2xf32>
    %70 = vector.shape_cast %69 : vector<2xf32> to vector<2x1xf32>
    %71 = vector.broadcast %70 : vector<2x1xf32> to vector<2x128xf32>
    %72 = arith.subf %58, %71 : vector<2x128xf32>
    %cst_43 = arith.constant -1.000000e+30 : f32
    %73 = vector.broadcast %cst_43 : f32 to vector<2x128xf32>
    %74 = arith.select %61, %72, %73 : vector<2x128xi1>, vector<2x128xf32>
    %75 = math.exp %74 : vector<2x128xf32>
    %cst_44 = arith.constant dense<0.000000e+00> : vector<2xf32>
    %76 = vector.multi_reduction <add>, %75, %cst_44 [1] : vector<2x128xf32> to vector<2xf32>
    %77 = vector.shape_cast %76 : vector<2xf32> to vector<2x1xf32>
    %78 = math.log %77 : vector<2x1xf32>
    %79 = vector.broadcast %70 : vector<2x1xf32> to vector<2x128xf32>
    %80 = arith.subf %58, %79 : vector<2x128xf32>
    %81 = vector.broadcast %78 : vector<2x1xf32> to vector<2x128xf32>
    %82 = arith.subf %80, %81 : vector<2x128xf32>
    %cst_45 = arith.constant -1.000000e+30 : f32
    %83 = vector.broadcast %cst_45 : f32 to vector<2x128xf32>
    %84 = arith.select %66, %58, %83 : vector<2x128xi1>, vector<2x128xf32>
    %cst_46 = arith.constant dense<0xFF800000> : vector<2xf32>
    %85 = vector.multi_reduction <maximumf>, %84, %cst_46 [1] : vector<2x128xf32> to vector<2xf32>
    %86 = vector.shape_cast %85 : vector<2xf32> to vector<2x1xf32>
    %87 = vector.broadcast %86 : vector<2x1xf32> to vector<2x128xf32>
    %88 = arith.subf %58, %87 : vector<2x128xf32>
    %cst_47 = arith.constant -1.000000e+30 : f32
    %89 = vector.broadcast %cst_47 : f32 to vector<2x128xf32>
    %90 = arith.select %66, %88, %89 : vector<2x128xi1>, vector<2x128xf32>
    %91 = math.exp %90 : vector<2x128xf32>
    %cst_48 = arith.constant dense<0.000000e+00> : vector<2xf32>
    %92 = vector.multi_reduction <add>, %91, %cst_48 [1] : vector<2x128xf32> to vector<2xf32>
    %93 = vector.shape_cast %92 : vector<2xf32> to vector<2x1xf32>
    %94 = math.log %93 : vector<2x1xf32>
    %95 = vector.broadcast %86 : vector<2x1xf32> to vector<2x128xf32>
    %96 = arith.subf %58, %95 : vector<2x128xf32>
    %97 = vector.broadcast %94 : vector<2x1xf32> to vector<2x128xf32>
    %98 = arith.subf %96, %97 : vector<2x128xf32>
    %99 = arith.select %66, %98, %58 : vector<2x128xi1>, vector<2x128xf32>
    %100 = arith.select %61, %82, %99 : vector<2x128xi1>, vector<2x128xf32>
    %c0_49 = arith.constant 0 : index
    %c0_50 = arith.constant 0 : index
    %101 = vector.load %arg16[%c0_49, %c0_50] : memref<2x128xf32, #tpu.memory_space<vmem>>, vector<2x128xf32>
    tpu.vector_store %arg16[%c0_49, %c0_50], %100 {strides = array<i32>} : memref<2x128xf32, #tpu.memory_space<vmem>>, vector<2x128xf32>,
    return
  }
  func.func @transform_0(%arg0: i32) -> (i32, i32) {
    %c0_i32 = arith.constant 0 : i32
    %c0_i32_0 = arith.constant 0 : i32
    %c0_i32_1 = arith.constant 0 : i32
    return %c0_i32, %c0_i32_0 : i32, i32
  }
  func.func @transform_1(%arg0: i32) -> (i32, i32) {
    %c0_i32 = arith.constant 0 : i32
    %c0_i32_0 = arith.constant 0 : i32
    %c0_i32_1 = arith.constant 0 : i32
    return %c0_i32, %c0_i32_0 : i32, i32
  }
  func.func @transform_2(%arg0: i32) -> (i32, i32) {
    %c0_i32 = arith.constant 0 : i32
    %c0_i32_0 = arith.constant 0 : i32
    %c0_i32_1 = arith.constant 0 : i32
    return %c0_i32, %c0_i32_0 : i32, i32
  }
  func.func @transform_3(%arg0: i32) -> (i32, i32) {
    %c0_i32 = arith.constant 0 : i32
    %c0_i32_0 = arith.constant 0 : i32
    %c0_i32_1 = arith.constant 0 : i32
    return %c0_i32, %c0_i32_0 : i32, i32
  }
  func.func @transform_4(%arg0: i32) -> (i32, i32) {
    %c0_i32 = arith.constant 0 : i32
    %c0_i32_0 = arith.constant 0 : i32
    %c0_i32_1 = arith.constant 0 : i32
    return %c0_i32, %c0_i32_0 : i32, i32
  }
  func.func @transform_5(%arg0: i32) -> (i32, i32) {
    %c0_i32 = arith.constant 0 : i32
    %c0_i32_0 = arith.constant 0 : i32
    %c0_i32_1 = arith.constant 0 : i32
    return %c0_i32, %c0_i32_0 : i32, i32
  }
  func.func @transform_6(%arg0: i32) -> (i32, i32) {
    %c0_i32 = arith.constant 0 : i32
    %c0_i32_0 = arith.constant 0 : i32
    %c0_i32_1 = arith.constant 0 : i32
    return %c0_i32, %c0_i32_0 : i32, i32
  }
  func.func @transform_7(%arg0: i32) -> (i32, i32) {
    %c0_i32 = arith.constant 0 : i32
    %c0_i32_0 = arith.constant 0 : i32
    %c0_i32_1 = arith.constant 0 : i32
    return %c0_i32, %c0_i32_0 : i32, i32
  }
  func.func @transform_8(%arg0: i32) -> (i32, i32) {
    %c0_i32 = arith.constant 0 : i32
    %c0_i32_0 = arith.constant 0 : i32
    %c0_i32_1 = arith.constant 0 : i32
    return %c0_i32, %c0_i32_0 : i32, i32
  }
  func.func @transform_9(%arg0: i32) -> (i32, i32) {
    %c0_i32 = arith.constant 0 : i32
    %c0_i32_0 = arith.constant 0 : i32
    %c0_i32_1 = arith.constant 0 : i32
    return %c0_i32, %c0_i32_0 : i32, i32
  }
  func.func @transform_10(%arg0: i32) -> (i32, i32) {
    %c0_i32 = arith.constant 0 : i32
    %c0_i32_0 = arith.constant 0 : i32
    %c0_i32_1 = arith.constant 0 : i32
    return %c0_i32, %c0_i32_0 : i32, i32
  }
  func.func @transform_11(%arg0: i32) -> (i32, i32) {
    %c0_i32 = arith.constant 0 : i32
    %c0_i32_0 = arith.constant 0 : i32
    %c0_i32_1 = arith.constant 0 : i32
    return %c0_i32, %c0_i32_0 : i32, i32
  }
  func.func @transform_12(%arg0: i32) -> (i32, i32) {
    %c0_i32 = arith.constant 0 : i32
    %c0_i32_0 = arith.constant 0 : i32
    %c0_i32_1 = arith.constant 0 : i32
    return %c0_i32, %c0_i32_0 : i32, i32
  }
  func.func @transform_13(%arg0: i32) -> (i32, i32) {
    %c0_i32 = arith.constant 0 : i32
    %c0_i32_0 = arith.constant 0 : i32
    %c0_i32_1 = arith.constant 0 : i32
    return %c0_i32, %c0_i32_0 : i32, i32
  }
  func.func @transform_14(%arg0: i32) -> (i32, i32) {
    %c0_i32 = arith.constant 0 : i32
    %c0_i32_0 = arith.constant 0 : i32
    %c0_i32_1 = arith.constant 0 : i32
    return %c0_i32, %c0_i32_0 : i32, i32
  }
  func.func @transform_15(%arg0: i32) -> (i32, i32) {
    %c0_i32 = arith.constant 0 : i32
    %c0_i32_0 = arith.constant 0 : i32
    %c0_i32_1 = arith.constant 0 : i32
    return %c0_i32, %c0_i32_0 : i32, i32
  }
}

</mosaic_0001>

<llo_original>
// kernel: advisor_policy_forward.1
$region0: #{advisor_policy_forward.1}
  #allocation0 [shape = 'u32[]', space=smem, size = 0x4, offset = 0x4, fixed_abs, tag = 'smem constant byte address 0x4 - core index']
  #allocation1 [shape = 'u32[144,128]{1,0:T(1,128)}', space=vmem, size = 0x12000, scoped, tag = 'internal scratch']
  %s0 = inlined_call_operand.vmem [shape: f32[2,576], index: 0, kind: input, shape index: {}]
  %s1 = inlined_call_operand.vmem [shape: bf16[576,128], index: 1, kind: input, shape index: {}]
  %s2 = inlined_call_operand.vmem [shape: f32[1,128], index: 2, kind: input, shape index: {}]
  %s3 = inlined_call_operand.vmem [shape: bf16[128,512], index: 3, kind: input, shape index: {}]
  %s4 = inlined_call_operand.vmem [shape: f32[1,512], index: 4, kind: input, shape index: {}]
  %s5 = inlined_call_operand.vmem [shape: bf16[512,1536], index: 5, kind: input, shape index: {}]
  %s6 = inlined_call_operand.vmem [shape: f32[1,1536], index: 6, kind: input, shape index: {}]
  %s7 = inlined_call_operand.vmem [shape: bf16[512,512], index: 7, kind: input, shape index: {}]
  %s8 = inlined_call_operand.vmem [shape: bf16[512,512], index: 8, kind: input, shape index: {}]
  %s9 = inlined_call_operand.vmem [shape: bf16[512,512], index: 9, kind: input, shape index: {}]
  %s10 = inlined_call_operand.vmem [shape: f32[1,512], index: 10, kind: input, shape index: {}]
  %s11 = inlined_call_operand.vmem [shape: f32[1,512], index: 11, kind: input, shape index: {}]
  %s12 = inlined_call_operand.vmem [shape: f32[1,512], index: 12, kind: input, shape index: {}]
  %s13 = inlined_call_operand.vmem [shape: bf16[1536,128], index: 13, kind: input, shape index: {}]
  %s14 = inlined_call_operand.vmem [shape: f32[1,128], index: 14, kind: input, shape index: {}]
  %s15 = inlined_call_operand.vmem [shape: f32[2,128], index: 15, kind: output, shape index: {}]
  %s16 = sld [smem:[#allocation0]]
  $region70: #{advisor_policy_forward.1} parent=0
    _
  %s18 = ssub.s32 1, %s16
  %s19 = scalar_select 0, %s18, %s16
  // Predicated region
  $region2: #{advisor_policy_forward.1} parent=0 // pred_check
    _
  $region3: #{advisor_policy_forward.1} parent=0 // pred_check_branch
    %21 = sbr.rel (0) target = $region5
  $region4: #{advisor_policy_forward.1} parent=0 // pred_region
    _
  $region5: #{advisor_policy_forward.1} parent=0 // pred_fallthru
    _
  // Predicated region
  $region6: #{advisor_policy_forward.1} parent=0 // pred_check
    _
  $region7: #{advisor_policy_forward.1} parent=0 // pred_check_branch
    %23 = sbr.rel (0) target = $region9
  $region8: #{advisor_policy_forward.1} parent=0 // pred_region
    _
  $region9: #{advisor_policy_forward.1} parent=0 // pred_fallthru
    _
  // Predicated region
  $region10: #{advisor_policy_forward.1} parent=0 // pred_check
    _
  $region11: #{advisor_policy_forward.1} parent=0 // pred_check_branch
    %25 = sbr.rel (0) target = $region13
  $region12: #{advisor_policy_forward.1} parent=0 // pred_region
    _
  $region13: #{advisor_policy_forward.1} parent=0 // pred_fallthru
    _
  // Predicated region
  $region14: #{advisor_policy_forward.1} parent=0 // pred_check
    _
  $region15: #{advisor_policy_forward.1} parent=0 // pred_check_branch
    %27 = sbr.rel (0) target = $region17
  $region16: #{advisor_policy_forward.1} parent=0 // pred_region
    _
  $region17: #{advisor_policy_forward.1} parent=0 // pred_fallthru
    _
  // Predicated region
  $region18: #{advisor_policy_forward.1} parent=0 // pred_check
    _
  $region19: #{advisor_policy_forward.1} parent=0 // pred_check_branch
    %29 = sbr.rel (0) target = $region21
  $region20: #{advisor_policy_forward.1} parent=0 // pred_region
    _
  $region21: #{advisor_policy_forward.1} parent=0 // pred_fallthru
    _
  // Predicated region
  $region22: #{advisor_policy_forward.1} parent=0 // pred_check
    _
  $region23: #{advisor_policy_forward.1} parent=0 // pred_check_branch
    %31 = sbr.rel (0) target = $region25
  $region24: #{advisor_policy_forward.1} parent=0 // pred_region
    _
  $region25: #{advisor_policy_forward.1} parent=0 // pred_fallthru
    _
  // Predicated region
  $region26: #{advisor_policy_forward.1} parent=0 // pred_check
    _
  $region27: #{advisor_policy_forward.1} parent=0 // pred_check_branch
    %33 = sbr.rel (0) target = $region29
  $region28: #{advisor_policy_forward.1} parent=0 // pred_region
    _
  $region29: #{advisor_policy_forward.1} parent=0 // pred_fallthru
    _
  // Predicated region
  $region30: #{advisor_policy_forward.1} parent=0 // pred_check
    _
  $region31: #{advisor_policy_forward.1} parent=0 // pred_check_branch
    %35 = sbr.rel (0) target = $region33
  $region32: #{advisor_policy_forward.1} parent=0 // pred_region
    _
  $region33: #{advisor_policy_forward.1} parent=0 // pred_fallthru
    _
  // Predicated region
  $region34: #{advisor_policy_forward.1} parent=0 // pred_check
    _
  $region35: #{advisor_policy_forward.1} parent=0 // pred_check_branch
    %37 = sbr.rel (0) target = $region37
  $region36: #{advisor_policy_forward.1} parent=0 // pred_region
    _
  $region37: #{advisor_policy_forward.1} parent=0 // pred_fallthru
    _
  // Predicated region
  $region38: #{advisor_policy_forward.1} parent=0 // pred_check
    _
  $region39: #{advisor_policy_forward.1} parent=0 // pred_check_branch
    %39 = sbr.rel (0) target = $region41
  $region40: #{advisor_policy_forward.1} parent=0 // pred_region
    _
  $region41: #{advisor_policy_forward.1} parent=0 // pred_fallthru
    _
  // Predicated region
  $region42: #{advisor_policy_forward.1} parent=0 // pred_check
    _
  $region43: #{advisor_policy_forward.1} parent=0 // pred_check_branch
    %41 = sbr.rel (0) target = $region45
  $region44: #{advisor_policy_forward.1} parent=0 // pred_region
    _
  $region45: #{advisor_policy_forward.1} parent=0 // pred_fallthru
    _
  // Predicated region
  $region46: #{advisor_policy_forward.1} parent=0 // pred_check
    _
  $region47: #{advisor_policy_forward.1} parent=0 // pred_check_branch
    %43 = sbr.rel (0) target = $region49
  $region48: #{advisor_policy_forward.1} parent=0 // pred_region
    _
  $region49: #{advisor_policy_forward.1} parent=0 // pred_fallthru
    _
  // Predicated region
  $region50: #{advisor_policy_forward.1} parent=0 // pred_check
    _
  $region51: #{advisor_policy_forward.1} parent=0 // pred_check_branch
    %45 = sbr.rel (0) target = $region53
  $region52: #{advisor_policy_forward.1} parent=0 // pred_region
    _
  $region53: #{advisor_policy_forward.1} parent=0 // pred_fallthru
    _
  // Predicated region
  $region54: #{advisor_policy_forward.1} parent=0 // pred_check
    _
  $region55: #{advisor_policy_forward.1} parent=0 // pred_check_branch
    %47 = sbr.rel (0) target = $region57
  $region56: #{advisor_policy_forward.1} parent=0 // pred_region
    _
  $region57: #{advisor_policy_forward.1} parent=0 // pred_fallthru
    _
  // Predicated region
  $region58: #{advisor_policy_forward.1} parent=0 // pred_check
    _
  $region59: #{advisor_policy_forward.1} parent=0 // pred_check_branch
    %49 = sbr.rel (0) target = $region61
  $region60: #{advisor_policy_forward.1} parent=0 // pred_region
    _
  $region61: #{advisor_policy_forward.1} parent=0 // pred_fallthru
    _
  %v51 = vld [vmem:[%s0] sm:$0xff]
  %v52 = vld [vmem:[%s0 + $0x8] sm:$0x3]
  %v55 = vcombine.high %v51, %v51
  %v57 = vunpack.c.l.s4 1983009808
  %v58 = vunpack.c.0.s8 %v57
  %v59 = vlaneseq
  %v60 = vshrl.u32 %v59, 7
  %v61 = vsub.s32 %v58, %v60
  %v62 = vrot.slane %v51, %v61
  %v64 = vunpack.c.l.s4 1983009808
  %v65 = vunpack.c.0.s8 %v64
  %v66 = vlaneseq
  %v67 = vshrl.u32 %v66, 7
  %v68 = vsub.s32 %v65, %v67
  %v69 = vrot.slane %v55, %v68
  %v70 = vcombine.high %v62, %v62
  %v71 = vcombine.high %v69, %v69
  %v73 = vunpack.c.l.s4 1983009808
  %v74 = vunpack.c.0.s8 %v73
  %v75 = vlaneseq
  %v76 = vshrl.u32 %v75, 7
  %v77 = vsub.s32 %v74, %v76
  %v78 = vrot.slane %v52, %v77
  %v84 = vpack.c.bf16 %v62, %v62
  %v85 = vpack.c.bf16 %v70, %v70
  %v86 = vpack.c.bf16 %v69, %v69
  %v87 = vpack.c.bf16 %v71, %v71
  %v88 = vpack.c.bf16 %v78, %v78
  %v89 = vld [vmem:[%s1] sm:$0xf]
  %v90 = vld [vmem:[%s1 + $0x4] sm:$0xf]
  %v91 = vld [vmem:[%s1 + $0x8] sm:$0xf]
  %v92 = vld [vmem:[%s1 + $0xc] sm:$0xf]
  %v93 = vld [vmem:[%s1 + $0x10] sm:$0xf]
  %v94 = vld [vmem:[%s1 + $0x14] sm:$0xf]
  %v95 = vld [vmem:[%s1 + $0x18] sm:$0xf]
  %v96 = vld [vmem:[%s1 + $0x1c] sm:$0xf]
  %v97 = vld [vmem:[%s1 + $0x20] sm:$0xf]
  %v98 = vld [vmem:[%s1 + $0x24] sm:$0xf]
  %v99 = vld [vmem:[%s1 + $0x28] sm:$0xf]
  %v100 = vld [vmem:[%s1 + $0x2c] sm:$0xf]
  %v101 = vld [vmem:[%s1 + $0x30] sm:$0xf]
  %v102 = vld [vmem:[%s1 + $0x34] sm:$0xf]
  %v103 = vld [vmem:[%s1 + $0x38] sm:$0xf]
  %v104 = vld [vmem:[%s1 + $0x3c] sm:$0xf]
  %v105 = vld [vmem:[%s1 + $0x40] sm:$0xf]
  %v106 = vld [vmem:[%s1 + $0x44] sm:$0xf]
  %v107 = vld [vmem:[%s1 + $0x48] sm:$0xf]
  %v108 = vld [vmem:[%s1 + $0x4c] sm:$0xf]
  %v109 = vld [vmem:[%s1 + $0x50] sm:$0xf]
  %v110 = vld [vmem:[%s1 + $0x54] sm:$0xf]
  %v111 = vld [vmem:[%s1 + $0x58] sm:$0xf]
  %v112 = vld [vmem:[%s1 + $0x5c] sm:$0xf]
  %v113 = vld [vmem:[%s1 + $0x60] sm:$0xf]
  %v114 = vld [vmem:[%s1 + $0x64] sm:$0xf]
  %v115 = vld [vmem:[%s1 + $0x68] sm:$0xf]
  %v116 = vld [vmem:[%s1 + $0x6c] sm:$0xf]
  %v117 = vld [vmem:[%s1 + $0x70] sm:$0xf]
  %v118 = vld [vmem:[%s1 + $0x74] sm:$0xf]
  %v119 = vld [vmem:[%s1 + $0x78] sm:$0xf]
  %v120 = vld [vmem:[%s1 + $0x7c] sm:$0xf]
  %v121 = vld [vmem:[%s1 + $0x80] sm:$0xf]
  %v122 = vld [vmem:[%s1 + $0x84] sm:$0xf]
  %v123 = vld [vmem:[%s1 + $0x88] sm:$0xf]
  %v124 = vld [vmem:[%s1 + $0x8c] sm:$0xf]
  %v125 = vld [vmem:[%s1 + $0x90] sm:$0xf]
  %v126 = vld [vmem:[%s1 + $0x94] sm:$0xf]
  %v127 = vld [vmem:[%s1 + $0x98] sm:$0xf]
  %v128 = vld [vmem:[%s1 + $0x9c] sm:$0xf]
  %v129 = vld [vmem:[%s1 + $0xa0] sm:$0xf]
  %v130 = vld [vmem:[%s1 + $0xa4] sm:$0xf]
  %v131 = vld [vmem:[%s1 + $0xa8] sm:$0xf]
  %v132 = vld [vmem:[%s1 + $0xac] sm:$0xf]
  %v133 = vld [vmem:[%s1 + $0xb0] sm:$0xf]
  %v134 = vld [vmem:[%s1 + $0xb4] sm:$0xf]
  %v135 = vld [vmem:[%s1 + $0xb8] sm:$0xf]
  %v136 = vld [vmem:[%s1 + $0xbc] sm:$0xf]
  %v137 = vld [vmem:[%s1 + $0xc0] sm:$0xf]
  %v138 = vld [vmem:[%s1 + $0xc4] sm:$0xf]
  %v139 = vld [vmem:[%s1 + $0xc8] sm:$0xf]
  %v140 = vld [vmem:[%s1 + $0xcc] sm:$0xf]
  %v141 = vld [vmem:[%s1 + $0xd0] sm:$0xf]
  %v142 = vld [vmem:[%s1 + $0xd4] sm:$0xf]
  %v143 = vld [vmem:[%s1 + $0xd8] sm:$0xf]
  %v144 = vld [vmem:[%s1 + $0xdc] sm:$0xf]
  %v145 = vld [vmem:[%s1 + $0xe0] sm:$0xf]
  %v146 = vld [vmem:[%s1 + $0xe4] sm:$0xf]
  %v147 = vld [vmem:[%s1 + $0xe8] sm:$0xf]
  %v148 = vld [vmem:[%s1 + $0xec] sm:$0xf]
  %v149 = vld [vmem:[%s1 + $0xf0] sm:$0xf]
  %v150 = vld [vmem:[%s1 + $0xf4] sm:$0xf]
  %v151 = vld [vmem:[%s1 + $0xf8] sm:$0xf]
  %v152 = vld [vmem:[%s1 + $0xfc] sm:$0xf]
  %v153 = vld [vmem:[%s1 + $0x100] sm:$0xf]
  %v154 = vld [vmem:[%s1 + $0x104] sm:$0xf]
  %v155 = vld [vmem:[%s1 + $0x108] sm:$0xf]
  %v156 = vld [vmem:[%s1 + $0x10c] sm:$0xf]
  %v157 = vld [vmem:[%s1 + $0x110] sm:$0xf]
  %v158 = vld [vmem:[%s1 + $0x114] sm:$0xf]
  %v159 = vld [vmem:[%s1 + $0x118] sm:$0xf]
  %v160 = vld [vmem:[%s1 + $0x11c] sm:$0xf]
  %v161 = vld [vmem:[%s2] sm:$0x1]
  %v163 = vlaneseq
  %v164 = vshrl.u32 %v163, 7
  %v165 = vsub.s32 0, %v164
  %v166 = vrot.slane %v161, %v165
  %v240 = vunpack.c.l.b16 %v89
  %v241 = vunpack.c.l.b16 %v90
  %v242 = vunpack.c.l.b16 %v91
  %v243 = vunpack.c.l.b16 %v92
  %v244 = vunpack.c.l.b16 %v93
  %v245 = vunpack.c.l.b16 %v94
  %v246 = vunpack.c.l.b16 %v95
  %v247 = vunpack.c.l.b16 %v96
  %v248 = vunpack.c.l.b16 %v97
  %v249 = vunpack.c.l.b16 %v98
  %v250 = vunpack.c.l.b16 %v99
  %v251 = vunpack.c.l.b16 %v100
  %v252 = vunpack.c.l.b16 %v101
  %v253 = vunpack.c.l.b16 %v102
  %v254 = vunpack.c.l.b16 %v103
  %v255 = vunpack.c.l.b16 %v104
  %v256 = vunpack.c.l.b16 %v105
  %v257 = vunpack.c.l.b16 %v106
  %v258 = vunpack.c.l.b16 %v107
  %v259 = vunpack.c.l.b16 %v108
  %v260 = vunpack.c.l.b16 %v109
  %v261 = vunpack.c.l.b16 %v110
  %v262 = vunpack.c.l.b16 %v111
  %v263 = vunpack.c.l.b16 %v112
  %v264 = vunpack.c.l.b16 %v113
  %v265 = vunpack.c.l.b16 %v114
  %v266 = vunpack.c.l.b16 %v115
  %v267 = vunpack.c.l.b16 %v116
  %v268 = vunpack.c.l.b16 %v117
  %v269 = vunpack.c.l.b16 %v118
  %v270 = vunpack.c.l.b16 %v119
  %v271 = vunpack.c.l.b16 %v120
  %v272 = vunpack.c.l.b16 %v121
  %v273 = vunpack.c.l.b16 %v122
  %v274 = vunpack.c.l.b16 %v123
  %v275 = vunpack.c.l.b16 %v124
  %v276 = vunpack.c.l.b16 %v125
  %v277 = vunpack.c.l.b16 %v126
  %v278 = vunpack.c.l.b16 %v127
  %v279 = vunpack.c.l.b16 %v128
  %v280 = vunpack.c.l.b16 %v129
  %v281 = vunpack.c.l.b16 %v130
  %v282 = vunpack.c.l.b16 %v131
  %v283 = vunpack.c.l.b16 %v132
  %v284 = vunpack.c.l.b16 %v133
  %v285 = vunpack.c.l.b16 %v134
  %v286 = vunpack.c.l.b16 %v135
  %v287 = vunpack.c.l.b16 %v136
  %v288 = vunpack.c.l.b16 %v137
  %v289 = vunpack.c.l.b16 %v138
  %v290 = vunpack.c.l.b16 %v139
  %v291 = vunpack.c.l.b16 %v140
  %v292 = vunpack.c.l.b16 %v141
  %v293 = vunpack.c.l.b16 %v142
  %v294 = vunpack.c.l.b16 %v143
  %v295 = vunpack.c.l.b16 %v144
  %v296 = vunpack.c.l.b16 %v145
  %v297 = vunpack.c.l.b16 %v146
  %v298 = vunpack.c.l.b16 %v147
  %v299 = vunpack.c.l.b16 %v148
  %v300 = vunpack.c.l.b16 %v149
  %v301 = vunpack.c.l.b16 %v150
  %v302 = vunpack.c.l.b16 %v151
  %v303 = vunpack.c.l.b16 %v152
  %v304 = vunpack.c.l.b16 %v153
  %v305 = vunpack.c.l.b16 %v154
  %v306 = vunpack.c.l.b16 %v155
  %v307 = vunpack.c.l.b16 %v156
  %v308 = vunpack.c.l.b16 %v157
  %v309 = vunpack.c.l.b16 %v158
  %v310 = vunpack.c.l.b16 %v159
  %v311 = vunpack.c.l.b16 %v160
  %v312 = vpack.c.b16 %v241, %v240
  %v313 = vpack.c.b16 %v243, %v242
  %v314 = vpack.c.b16 %v245, %v244
  %v315 = vpack.c.b16 %v247, %v246
  %v316 = vpack.c.b16 %v249, %v248
  %v317 = vpack.c.b16 %v251, %v250
  %v318 = vpack.c.b16 %v253, %v252
  %v319 = vpack.c.b16 %v255, %v254
  %v320 = vpack.c.b16 %v257, %v256
  %v321 = vpack.c.b16 %v259, %v258
  %v322 = vpack.c.b16 %v261, %v260
  %v323 = vpack.c.b16 %v263, %v262
  %v324 = vpack.c.b16 %v265, %v264
  %v325 = vpack.c.b16 %v267, %v266
  %v326 = vpack.c.b16 %v269, %v268
  %v327 = vpack.c.b16 %v271, %v270
  %v328 = vpack.c.b16 %v273, %v272
  %v329 = vpack.c.b16 %v275, %v274
  %v330 = vpack.c.b16 %v277, %v276
  %v331 = vpack.c.b16 %v279, %v278
  %v332 = vpack.c.b16 %v281, %v280
  %v333 = vpack.c.b16 %v283, %v282
  %v334 = vpack.c.b16 %v285, %v284
  %v335 = vpack.c.b16 %v287, %v286
  %v336 = vpack.c.b16 %v289, %v288
  %v337 = vpack.c.b16 %v291, %v290
  %v338 = vpack.c.b16 %v293, %v292
  %v339 = vpack.c.b16 %v295, %v294
  %v340 = vpack.c.b16 %v297, %v296
  %v341 = vpack.c.b16 %v299, %v298
  %v342 = vpack.c.b16 %v301, %v300
  %v343 = vpack.c.b16 %v303, %v302
  %v344 = vpack.c.b16 %v305, %v304
  %v345 = vpack.c.b16 %v307, %v306
  %v346 = vpack.c.b16 %v309, %v308
  %v347 = vpack.c.b16 %v311, %v310
  %vm384 = vcmask 523264
  %v386 = vsel %vm384, %v88, 0
  %388 = vmatprep.subr.bf16.mxu0 0
  %389 = vmatpush1.bf16.msra.mxu0 %v312
  %390 = vmatprep.subr.bf16.mxu0 0
  %391 = vmatpush1.bf16.msra.mxu0 %v313
  %392 = vmatprep.subr.bf16.mxu0 0
  %393 = vmatpush1.bf16.msra.mxu0 %v314
  %394 = vmatprep.subr.bf16.mxu0 0
  %395 = vmatpush1.bf16.msra.mxu0 %v315
  %396 = vmatprep.subr.bf16.mxu0 0
  %397 = vmatpush1.bf16.msra.mxu0 %v316
  %398 = vmatprep.subr.bf16.mxu0 0
  %399 = vmatpush1.bf16.msra.mxu0 %v317
  %400 = vmatprep.subr.bf16.mxu0 0
  %401 = vmatpush1.bf16.msra.mxu0 %v318
  %402 = vmatprep.subr.bf16.mxu0 0
  %403 = vmatpush1.bf16.msra.mxu0 %v319
  %404 = vmatprep.subr.bf16.mxu0 0
  %405 = vmatpush1.bf16.msra.mxu0 %v320
  %406 = vmatprep.subr.bf16.mxu0 0
  %407 = vmatpush1.bf16.msra.mxu0 %v321
  %408 = vmatprep.subr.bf16.mxu0 0
  %409 = vmatpush1.bf16.msra.mxu0 %v322
  %410 = vmatprep.subr.bf16.mxu0 0
  %411 = vmatpush1.bf16.msra.mxu0 %v323
  %412 = vmatprep.subr.bf16.mxu0 0
  %413 = vmatpush1.bf16.msra.mxu0 %v324
  %414 = vmatprep.subr.bf16.mxu0 0
  %415 = vmatpush1.bf16.msra.mxu0 %v325
  %416 = vmatprep.subr.bf16.mxu0 0
  %417 = vmatpush1.bf16.msra.mxu0 %v326
  %418 = vmatprep.subr.bf16.mxu0 0
  %419 = vmatpush1.bf16.msra.mxu0 %v327
  %420 = vmatprep.mubr.bf16.mxu0 %v85
  %421 = vmatmul.mubr.bf16.gmra.mrb[0].mxu0 %v84
  %v422 = vpop.f32.mrb[0].mxu0
  %v423 = vadd.f32 %v166, %v422
  %v424 = vpop.f32.mrb[0].mxu0
  %v425 = vpop.f32.mrb[0].mxu0
  %v426 = vpop.f32.mrb[0].mxu0
  %427 = vdwg.mxu0
  %428 = vmatprep.subr.bf16.mxu0 0
  %429 = vmatpush1.bf16.msra.mxu0 %v328
  %430 = vmatprep.subr.bf16.mxu0 0
  %431 = vmatpush1.bf16.msra.mxu0 %v329
  %432 = vmatprep.subr.bf16.mxu0 0
  %433 = vmatpush1.bf16.msra.mxu0 %v330
  %434 = vmatprep.subr.bf16.mxu0 0
  %435 = vmatpush1.bf16.msra.mxu0 %v331
  %436 = vmatprep.subr.bf16.mxu0 0
  %437 = vmatpush1.bf16.msra.mxu0 %v332
  %438 = vmatprep.subr.bf16.mxu0 0
  %439 = vmatpush1.bf16.msra.mxu0 %v333
  %440 = vmatprep.subr.bf16.mxu0 0
  %441 = vmatpush1.bf16.msra.mxu0 %v334
  %442 = vmatprep.subr.bf16.mxu0 0
  %443 = vmatpush1.bf16.msra.mxu0 %v335
  %444 = vmatprep.subr.bf16.mxu0 0
  %445 = vmatpush1.bf16.msra.mxu0 %v336
  %446 = vmatprep.subr.bf16.mxu0 0
  %447 = vmatpush1.bf16.msra.mxu0 %v337
  %448 = vmatprep.subr.bf16.mxu0 0
  %449 = vmatpush1.bf16.msra.mxu0 %v338
  %450 = vmatprep.subr.bf16.mxu0 0
  %451 = vmatpush1.bf16.msra.mxu0 %v339
  %452 = vmatprep.subr.bf16.mxu0 0
  %453 = vmatpush1.bf16.msra.mxu0 %v340
  %454 = vmatprep.subr.bf16.mxu0 0
  %455 = vmatpush1.bf16.msra.mxu0 %v341
  %456 = vmatprep.subr.bf16.mxu0 0
  %457 = vmatpush1.bf16.msra.mxu0 %v342
  %458 = vmatprep.subr.bf16.mxu0 0
  %459 = vmatpush1.bf16.msra.mxu0 %v343
  %460 = vmatprep.mubr.bf16.mxu0 %v87
  %461 = vmatmul.mubr.bf16.gmra.mrb[0].mxu0 %v86
  %v462 = vpop.f32.mrb[0].mxu0
  %v463 = vadd.f32 %v423, %v462
  %v464 = vpop.f32.mrb[0].mxu0
  %v465 = vpop.f32.mrb[0].mxu0
  %v466 = vpop.f32.mrb[0].mxu0
  %467 = vdwg.mxu0
  %468 = vmatprep.subr.bf16.mxu0 0
  %469 = vmatpush1.bf16.msra.mxu0 %v344
  %470 = vmatprep.subr.bf16.mxu0 0
  %471 = vmatpush1.bf16.msra.mxu0 %v345
  %472 = vmatprep.subr.bf16.mxu0 0
  %473 = vmatpush1.bf16.msra.mxu0 %v346
  %474 = vmatprep.subr.bf16.mxu0 0
  %475 = vmatpush1.bf16.msra.mxu0 %v347
  %476 = vmatprep.subr.bf16.mxu0 0
  %477 = vmatpush1.bf16.msra.mxu0 0
  %478 = vmatprep.subr.bf16.mxu0 0
  %479 = vmatpush1.bf16.msra.mxu0 0
  %480 = vmatprep.subr.bf16.mxu0 0
  %481 = vmatpush1.bf16.msra.mxu0 0
  %482 = vmatprep.subr.bf16.mxu0 0
  %483 = vmatpush1.bf16.msra.mxu0 0
  %484 = vmatprep.subr.bf16.mxu0 0
  %485 = vmatpush1.bf16.msra.mxu0 0
  %486 = vmatprep.subr.bf16.mxu0 0
  %487 = vmatpush1.bf16.msra.mxu0 0
  %488 = vmatprep.subr.bf16.mxu0 0
  %489 = vmatpush1.bf16.msra.mxu0 0
  %490 = vmatprep.subr.bf16.mxu0 0
  %491 = vmatpush1.bf16.msra.mxu0 0
  %492 = vmatprep.subr.bf16.mxu0 0
  %493 = vmatpush1.bf16.msra.mxu0 0
  %494 = vmatprep.subr.bf16.mxu0 0
  %495 = vmatpush1.bf16.msra.mxu0 0
  %496 = vmatprep.subr.bf16.mxu0 0
  %497 = vmatpush1.bf16.msra.mxu0 0
  %498 = vmatprep.subr.bf16.mxu0 0
  %499 = vmatpush1.bf16.msra.mxu0 0
  %500 = vmatprep.mubr.bf16.mxu0 0
  %501 = vmatmul.mubr.bf16.gmra.mrb[0].mxu0 %v386
  %v502 = vpop.f32.mrb[0].mxu0
  %v503 = vadd.f32 %v463, %v502
  %v504 = vpop.f32.mrb[0].mxu0
  %v505 = vpop.f32.mrb[0].mxu0
  %v506 = vpop.f32.mrb[0].mxu0
  %507 = vdwg.mxu0
  %v508 = vmax.f32 %v503, 0.0
  %v509 = vpack.c.bf16 %v508, %v508
  %v510 = vld [vmem:[%s3] sm:$0xff]
  %v511 = vld [vmem:[%s3 + $0x8] sm:$0xff]
  %v512 = vld [vmem:[%s3 + $0x10] sm:$0xff]
  %v513 = vld [vmem:[%s3 + $0x18] sm:$0xff]
  %v514 = vld [vmem:[%s3 + $0x20] sm:$0xff]
  %v515 = vld [vmem:[%s3 + $0x28] sm:$0xff]
  %v516 = vld [vmem:[%s3 + $0x30] sm:$0xff]
  %v517 = vld [vmem:[%s3 + $0x38] sm:$0xff]
  %v518 = vld [vmem:[%s3 + $0x40] sm:$0xff]
  %v519 = vld [vmem:[%s3 + $0x48] sm:$0xff]
  %v520 = vld [vmem:[%s3 + $0x50] sm:$0xff]
  %v521 = vld [vmem:[%s3 + $0x58] sm:$0xff]
  %v522 = vld [vmem:[%s3 + $0x60] sm:$0xff]
  %v523 = vld [vmem:[%s3 + $0x68] sm:$0xff]
  %v524 = vld [vmem:[%s3 + $0x70] sm:$0xff]
  %v525 = vld [vmem:[%s3 + $0x78] sm:$0xff]
  %v526 = vld [vmem:[%s3 + $0x80] sm:$0xff]
  %v527 = vld [vmem:[%s3 + $0x88] sm:$0xff]
  %v528 = vld [vmem:[%s3 + $0x90] sm:$0xff]
  %v529 = vld [vmem:[%s3 + $0x98] sm:$0xff]
  %v530 = vld [vmem:[%s3 + $0xa0] sm:$0xff]
  %v531 = vld [vmem:[%s3 + $0xa8] sm:$0xff]
  %v532 = vld [vmem:[%s3 + $0xb0] sm:$0xff]
  %v533 = vld [vmem:[%s3 + $0xb8] sm:$0xff]
  %v534 = vld [vmem:[%s3 + $0xc0] sm:$0xff]
  %v535 = vld [vmem:[%s3 + $0xc8] sm:$0xff]
  %v536 = vld [vmem:[%s3 + $0xd0] sm:$0xff]
  %v537 = vld [vmem:[%s3 + $0xd8] sm:$0xff]
  %v538 = vld [vmem:[%s3 + $0xe0] sm:$0xff]
  %v539 = vld [vmem:[%s3 + $0xe8] sm:$0xff]
  %v540 = vld [vmem:[%s3 + $0xf0] sm:$0xff]
  %v541 = vld [vmem:[%s3 + $0xf8] sm:$0xff]
  %v542 = vld [vmem:[%s4] sm:$0xf]
  %v544 = vlaneseq
  %v545 = vshrl.u32 %v544, 7
  %v546 = vsub.s32 0, %v545
  %v547 = vrot.slane %v542, %v546
  %v548 = vlaneseq
  %v549 = vshrl.u32 %v548, 7
  %v550 = vsub.s32 1, %v549
  %v551 = vrot.slane %v542, %v550
  %v552 = vlaneseq
  %v553 = vshrl.u32 %v552, 7
  %v554 = vsub.s32 2, %v553
  %v555 = vrot.slane %v542, %v554
  %v556 = vlaneseq
  %v557 = vshrl.u32 %v556, 7
  %v558 = vsub.s32 3, %v557
  %v559 = vrot.slane %v542, %v558
  %v596 = vunpack.c.l.b16 %v510
  %v597 = vunpack.c.h.b16 %v510
  %v598 = vunpack.c.l.b16 %v511
  %v599 = vunpack.c.h.b16 %v511
  %v600 = vunpack.c.l.b16 %v512
  %v601 = vunpack.c.h.b16 %v512
  %v602 = vunpack.c.l.b16 %v513
  %v603 = vunpack.c.h.b16 %v513
  %v604 = vunpack.c.l.b16 %v514
  %v605 = vunpack.c.h.b16 %v514
  %v606 = vunpack.c.l.b16 %v515
  %v607 = vunpack.c.h.b16 %v515
  %v608 = vunpack.c.l.b16 %v516
  %v609 = vunpack.c.h.b16 %v516
  %v610 = vunpack.c.l.b16 %v517
  %v611 = vunpack.c.h.b16 %v517
  %v612 = vunpack.c.l.b16 %v518
  %v613 = vunpack.c.h.b16 %v518
  %v614 = vunpack.c.l.b16 %v519
  %v615 = vunpack.c.h.b16 %v519
  %v616 = vunpack.c.l.b16 %v520
  %v617 = vunpack.c.h.b16 %v520
  %v618 = vunpack.c.l.b16 %v521
  %v619 = vunpack.c.h.b16 %v521
  %v620 = vunpack.c.l.b16 %v522
  %v621 = vunpack.c.h.b16 %v522
  %v622 = vunpack.c.l.b16 %v523
  %v623 = vunpack.c.h.b16 %v523
  %v624 = vunpack.c.l.b16 %v524
  %v625 = vunpack.c.h.b16 %v524
  %v626 = vunpack.c.l.b16 %v525
  %v627 = vunpack.c.h.b16 %v525
  %v628 = vunpack.c.l.b16 %v526
  %v629 = vunpack.c.h.b16 %v526
  %v630 = vunpack.c.l.b16 %v527
  %v631 = vunpack.c.h.b16 %v527
  %v632 = vunpack.c.l.b16 %v528
  %v633 = vunpack.c.h.b16 %v528
  %v634 = vunpack.c.l.b16 %v529
  %v635 = vunpack.c.h.b16 %v529
  %v636 = vunpack.c.l.b16 %v530
  %v637 = vunpack.c.h.b16 %v530
  %v638 = vunpack.c.l.b16 %v531
  %v639 = vunpack.c.h.b16 %v531
  %v640 = vunpack.c.l.b16 %v532
  %v641 = vunpack.c.h.b16 %v532
  %v642 = vunpack.c.l.b16 %v533
  %v643 = vunpack.c.h.b16 %v533
  %v644 = vunpack.c.l.b16 %v534
  %v645 = vunpack.c.h.b16 %v534
  %v646 = vunpack.c.l.b16 %v535
  %v647 = vunpack.c.h.b16 %v535
  %v648 = vunpack.c.l.b16 %v536
  %v649 = vunpack.c.h.b16 %v536
  %v650 = vunpack.c.l.b16 %v537
  %v651 = vunpack.c.h.b16 %v537
  %v652 = vunpack.c.l.b16 %v538
  %v653 = vunpack.c.h.b16 %v538
  %v654 = vunpack.c.l.b16 %v539
  %v655 = vunpack.c.h.b16 %v539
  %v656 = vunpack.c.l.b16 %v540
  %v657 = vunpack.c.h.b16 %v540
  %v658 = vunpack.c.l.b16 %v541
  %v659 = vunpack.c.h.b16 %v541
  %v660 = vpack.c.b16 %v600, %v596
  %v661 = vpack.c.b16 %v601, %v597
  %v662 = vpack.c.b16 %v602, %v598
  %v663 = vpack.c.b16 %v603, %v599
  %v664 = vpack.c.b16 %v608, %v604
  %v665 = vpack.c.b16 %v609, %v605
  %v666 = vpack.c.b16 %v610, %v606
  %v667 = vpack.c.b16 %v611, %v607
  %v668 = vpack.c.b16 %v616, %v612
  %v669 = vpack.c.b16 %v617, %v613
  %v670 = vpack.c.b16 %v618, %v614
  %v671 = vpack.c.b16 %v619, %v615
  %v672 = vpack.c.b16 %v624, %v620
  %v673 = vpack.c.b16 %v625, %v621
  %v674 = vpack.c.b16 %v626, %v622
  %v675 = vpack.c.b16 %v627, %v623
  %v676 = vpack.c.b16 %v632, %v628
  %v677 = vpack.c.b16 %v633, %v629
  %v678 = vpack.c.b16 %v634, %v630
  %v679 = vpack.c.b16 %v635, %v631
  %v680 = vpack.c.b16 %v640, %v636
  %v681 = vpack.c.b16 %v641, %v637
  %v682 = vpack.c.b16 %v642, %v638
  %v683 = vpack.c.b16 %v643, %v639
  %v684 = vpack.c.b16 %v648, %v644
  %v685 = vpack.c.b16 %v649, %v645
  %v686 = vpack.c.b16 %v650, %v646
  %v687 = vpack.c.b16 %v651, %v647
  %v688 = vpack.c.b16 %v656, %v652
  %v689 = vpack.c.b16 %v657, %v653
  %v690 = vpack.c.b16 %v658, %v654
  %v691 = vpack.c.b16 %v659, %v655
  %724 = vmatprep.subr.bf16.mxu0 %v661
  %725 = vmatpush1.bf16.msra.mxu0 %v660
  %726 = vmatprep.subr.bf16.mxu0 %v665
  %727 = vmatpush1.bf16.msra.mxu0 %v664
  %728 = vmatprep.subr.bf16.mxu0 %v669
  %729 = vmatpush1.bf16.msra.mxu0 %v668
  %730 = vmatprep.subr.bf16.mxu0 %v673
  %731 = vmatpush1.bf16.msra.mxu0 %v672
  %732 = vmatprep.subr.bf16.mxu0 %v677
  %733 = vmatpush1.bf16.msra.mxu0 %v676
  %734 = vmatprep.subr.bf16.mxu0 %v681
  %735 = vmatpush1.bf16.msra.mxu0 %v680
  %736 = vmatprep.subr.bf16.mxu0 %v685
  %737 = vmatpush1.bf16.msra.mxu0 %v684
  %738 = vmatprep.subr.bf16.mxu0 %v689
  %739 = vmatpush1.bf16.msra.mxu0 %v688
  %740 = vmatprep.subr.bf16.mxu0 0
  %741 = vmatpush1.bf16.msra.mxu0 0
  %742 = vmatprep.subr.bf16.mxu0 0
  %743 = vmatpush1.bf16.msra.mxu0 0
  %744 = vmatprep.subr.bf16.mxu0 0
  %745 = vmatpush1.bf16.msra.mxu0 0
  %746 = vmatprep.subr.bf16.mxu0 0
  %747 = vmatpush1.bf16.msra.mxu0 0
  %748 = vmatprep.subr.bf16.mxu0 0
  %749 = vmatpush1.bf16.msra.mxu0 0
  %750 = vmatprep.subr.bf16.mxu0 0
  %751 = vmatpush1.bf16.msra.mxu0 0
  %752 = vmatprep.subr.bf16.mxu0 0
  %753 = vmatpush1.bf16.msra.mxu0 0
  %754 = vmatprep.subr.bf16.mxu0 0
  %755 = vmatpush1.bf16.msra.mxu0 0
  %756 = vmatprep.mubr.bf16.mxu0 0
  %757 = vmatmul.mubr.bf16.gmra.mrb[0].mxu0 %v509
  %v758 = vpop.f32.mrb[0].mxu0
  %v759 = vadd.f32 %v547, %v758
  %v760 = vpop.f32.mrb[0].mxu0
  %v761 = vadd.f32 %v551, %v760
  %v762 = vpop.f32.mrb[0].mxu0
  %v763 = vpop.f32.mrb[0].mxu0
  %764 = vdwg.mxu0
  %765 = vmatprep.subr.bf16.mxu0 %v663
  %766 = vmatpush1.bf16.msra.mxu0 %v662
  %767 = vmatprep.subr.bf16.mxu0 %v667
  %768 = vmatpush1.bf16.msra.mxu0 %v666
  %769 = vmatprep.subr.bf16.mxu0 %v671
  %770 = vmatpush1.bf16.msra.mxu0 %v670
  %771 = vmatprep.subr.bf16.mxu0 %v675
  %772 = vmatpush1.bf16.msra.mxu0 %v674
  %773 = vmatprep.subr.bf16.mxu0 %v679
  %774 = vmatpush1.bf16.msra.mxu0 %v678
  %775 = vmatprep.subr.bf16.mxu0 %v683
  %776 = vmatpush1.bf16.msra.mxu0 %v682
  %777 = vmatprep.subr.bf16.mxu0 %v687
  %778 = vmatpush1.bf16.msra.mxu0 %v686
  %779 = vmatprep.subr.bf16.mxu0 %v691
  %780 = vmatpush1.bf16.msra.mxu0 %v690
  %781 = vmatprep.subr.bf16.mxu0 0
  %782 = vmatpush1.bf16.msra.mxu0 0
  %783 = vmatprep.subr.bf16.mxu0 0
  %784 = vmatpush1.bf16.msra.mxu0 0
  %785 = vmatprep.subr.bf16.mxu0 0
  %786 = vmatpush1.bf16.msra.mxu0 0
  %787 = vmatprep.subr.bf16.mxu0 0
  %788 = vmatpush1.bf16.msra.mxu0 0
  %789 = vmatprep.subr.bf16.mxu0 0
  %790 = vmatpush1.bf16.msra.mxu0 0
  %791 = vmatprep.subr.bf16.mxu0 0
  %792 = vmatpush1.bf16.msra.mxu0 0
  %793 = vmatprep.subr.bf16.mxu0 0
  %794 = vmatpush1.bf16.msra.mxu0 0
  %795 = vmatprep.subr.bf16.mxu0 0
  %796 = vmatpush1.bf16.msra.mxu0 0
  %797 = vmatprep.mubr.bf16.mxu0 0
  %798 = vmatmul.mubr.bf16.gmra.mrb[0].mxu0 %v509
  %v799 = vpop.f32.mrb[0].mxu0
  %v800 = vadd.f32 %v555, %v799
  %v801 = vpop.f32.mrb[0].mxu0
  %v802 = vadd.f32 %v559, %v801
  %v803 = vpop.f32.mrb[0].mxu0
  %v804 = vpop.f32.mrb[0].mxu0
  %805 = vdwg.mxu0
  %v806 = vmax.f32 %v759, 0.0
  %v807 = vmax.f32 %v761, 0.0
  %v808 = vmax.f32 %v800, 0.0
  %v809 = vmax.f32 %v802, 0.0
  %v810 = vpack.c.bf16 %v806, %v806
  %v811 = vpack.c.bf16 %v807, %v807
  %v812 = vpack.c.bf16 %v808, %v808
  %v813 = vpack.c.bf16 %v809, %v809
  %v814 = vld [vmem:[%s5] sm:$0xff]
  %v815 = vld [vmem:[%s5 + $0x8] sm:$0xff]
  %v816 = vld [vmem:[%s5 + $0x10] sm:$0xff]
  %v817 = vld [vmem:[%s5 + $0x18] sm:$0xff]
  %v818 = vld [vmem:[%s5 + $0x20] sm:$0xff]
  %v819 = vld [vmem:[%s5 + $0x28] sm:$0xff]
  %v820 = vld [vmem:[%s5 + $0x30] sm:$0xff]
  %v821 = vld [vmem:[%s5 + $0x38] sm:$0xff]
  %v822 = vld [vmem:[%s5 + $0x40] sm:$0xff]
  %v823 = vld [vmem:[%s5 + $0x48] sm:$0xff]
  %v824 = vld [vmem:[%s5 + $0x50] sm:$0xff]
  %v825 = vld [vmem:[%s5 + $0x58] sm:$0xff]
  %v826 = vld [vmem:[%s5 + $0x60] sm:$0xff]
  %v827 = vld [vmem:[%s5 + $0x68] sm:$0xff]
  %v828 = vld [vmem:[%s5 + $0x70] sm:$0xff]
  %v829 = vld [vmem:[%s5 + $0x78] sm:$0xff]
  %v830 = vld [vmem:[%s5 + $0x80] sm:$0xff]
  %v831 = vld [vmem:[%s5 + $0x88] sm:$0xff]
  %v832 = vld [vmem:[%s5 + $0x90] sm:$0xff]
  %v833 = vld [vmem:[%s5 + $0x98] sm:$0xff]
  %v834 = vld [vmem:[%s5 + $0xa0] sm:$0xff]
  %v835 = vld [vmem:[%s5 + $0xa8] sm:$0xff]
  %v836 = vld [vmem:[%s5 + $0xb0] sm:$0xff]
  %v837 = vld [vmem:[%s5 + $0xb8] sm:$0xff]
  %v838 = vld [vmem:[%s5 + $0xc0] sm:$0xff]
  %v839 = vld [vmem:[%s5 + $0xc8] sm:$0xff]
  %v840 = vld [vmem:[%s5 + $0xd0] sm:$0xff]
  %v841 = vld [vmem:[%s5 + $0xd8] sm:$0xff]
  %v842 = vld [vmem:[%s5 + $0xe0] sm:$0xff]
  %v843 = vld [vmem:[%s5 + $0xe8] sm:$0xff]
  %v844 = vld [vmem:[%s5 + $0xf0] sm:$0xff]
  %v845 = vld [vmem:[%s5 + $0xf8] sm:$0xff]
  %v846 = vld [vmem:[%s5 + $0x100] sm:$0xff]
  %v847 = vld [vmem:[%s5 + $0x108] sm:$0xff]
  %v848 = vld [vmem:[%s5 + $0x110] sm:$0xff]
  %v849 = vld [vmem:[%s5 + $0x118] sm:$0xff]
  %v850 = vld [vmem:[%s5 + $0x120] sm:$0xff]
  %v851 = vld [vmem:[%s5 + $0x128] sm:$0xff]
  %v852 = vld [vmem:[%s5 + $0x130] sm:$0xff]
  %v853 = vld [vmem:[%s5 + $0x138] sm:$0xff]
  %v854 = vld [vmem:[%s5 + $0x140] sm:$0xff]
  %v855 = vld [vmem:[%s5 + $0x148] sm:$0xff]
  %v856 = vld [vmem:[%s5 + $0x150] sm:$0xff]
  %v857 = vld [vmem:[%s5 + $0x158] sm:$0xff]
  %v858 = vld [vmem:[%s5 + $0x160] sm:$0xff]
  %v859 = vld [vmem:[%s5 + $0x168] sm:$0xff]
  %v860 = vld [vmem:[%s5 + $0x170] sm:$0xff]
  %v861 = vld [vmem:[%s5 + $0x178] sm:$0xff]
  %v862 = vld [vmem:[%s5 + $0x180] sm:$0xff]
  %v863 = vld [vmem:[%s5 + $0x188] sm:$0xff]
  %v864 = vld [vmem:[%s5 + $0x190] sm:$0xff]
  %v865 = vld [vmem:[%s5 + $0x198] sm:$0xff]
  %v866 = vld [vmem:[%s5 + $0x1a0] sm:$0xff]
  %v867 = vld [vmem:[%s5 + $0x1a8] sm:$0xff]
  %v868 = vld [vmem:[%s5 + $0x1b0] sm:$0xff]
  %v869 = vld [vmem:[%s5 + $0x1b8] sm:$0xff]
  %v870 = vld [vmem:[%s5 + $0x1c0] sm:$0xff]
  %v871 = vld [vmem:[%s5 + $0x1c8] sm:$0xff]
  %v872 = vld [vmem:[%s5 + $0x1d0] sm:$0xff]
  %v873 = vld [vmem:[%s5 + $0x1d8] sm:$0xff]
  %v874 = vld [vmem:[%s5 + $0x1e0] sm:$0xff]
  %v875 = vld [vmem:[%s5 + $0x1e8] sm:$0xff]
  %v876 = vld [vmem:[%s5 + $0x1f0] sm:$0xff]
  %v877 = vld [vmem:[%s5 + $0x1f8] sm:$0xff]
  %v878 = vld [vmem:[%s5 + $0x200] sm:$0xff]
  %v879 = vld [vmem:[%s5 + $0x208] sm:$0xff]
  %v880 = vld [vmem:[%s5 + $0x210] sm:$0xff]
  %v881 = vld [vmem:[%s5 + $0x218] sm:$0xff]
  %v882 = vld [vmem:[%s5 + $0x220] sm:$0xff]
  %v883 = vld [vmem:[%s5 + $0x228] sm:$0xff]
  %v884 = vld [vmem:[%s5 + $0x230] sm:$0xff]
  %v885 = vld [vmem:[%s5 + $0x238] sm:$0xff]
  %v886 = vld [vmem:[%s5 + $0x240] sm:$0xff]
  %v887 = vld [vmem:[%s5 + $0x248] sm:$0xff]
  %v888 = vld [vmem:[%s5 + $0x250] sm:$0xff]
  %v889 = vld [vmem:[%s5 + $0x258] sm:$0xff]
  %v890 = vld [vmem:[%s5 + $0x260] sm:$0xff]
  %v891 = vld [vmem:[%s5 + $0x268] sm:$0xff]
  %v892 = vld [vmem:[%s5 + $0x270] sm:$0xff]
  %v893 = vld [vmem:[%s5 + $0x278] sm:$0xff]
  %v894 = vld [vmem:[%s5 + $0x280] sm:$0xff]
  %v895 = vld [vmem:[%s5 + $0x288] sm:$0xff]
  %v896 = vld [vmem:[%s5 + $0x290] sm:$0xff]
  %v897 = vld [vmem:[%s5 + $0x298] sm:$0xff]
  %v898 = vld [vmem:[%s5 + $0x2a0] sm:$0xff]
  %v899 = vld [vmem:[%s5 + $0x2a8] sm:$0xff]
  %v900 = vld [vmem:[%s5 + $0x2b0] sm:$0xff]
  %v901 = vld [vmem:[%s5 + $0x2b8] sm:$0xff]
  %v902 = vld [vmem:[%s5 + $0x2c0] sm:$0xff]
  %v903 = vld [vmem:[%s5 + $0x2c8] sm:$0xff]
  %v904 = vld [vmem:[%s5 + $0x2d0] sm:$0xff]
  %v905 = vld [vmem:[%s5 + $0x2d8] sm:$0xff]
  %v906 = vld [vmem:[%s5 + $0x2e0] sm:$0xff]
  %v907 = vld [vmem:[%s5 + $0x2e8] sm:$0xff]
  %v908 = vld [vmem:[%s5 + $0x2f0] sm:$0xff]
  %v909 = vld [vmem:[%s5 + $0x2f8] sm:$0xff]
  %v910 = vld [vmem:[%s5 + $0x300] sm:$0xff]
  %v911 = vld [vmem:[%s5 + $0x308] sm:$0xff]
  %v912 = vld [vmem:[%s5 + $0x310] sm:$0xff]
  %v913 = vld [vmem:[%s5 + $0x318] sm:$0xff]
  %v914 = vld [vmem:[%s5 + $0x320] sm:$0xff]
  %v915 = vld [vmem:[%s5 + $0x328] sm:$0xff]
  %v916 = vld [vmem:[%s5 + $0x330] sm:$0xff]
  %v917 = vld [vmem:[%s5 + $0x338] sm:$0xff]
  %v918 = vld [vmem:[%s5 + $0x340] sm:$0xff]
  %v919 = vld [vmem:[%s5 + $0x348] sm:$0xff]
  %v920 = vld [vmem:[%s5 + $0x350] sm:$0xff]
  %v921 = vld [vmem:[%s5 + $0x358] sm:$0xff]
  %v922 = vld [vmem:[%s5 + $0x360] sm:$0xff]
  %v923 = vld [vmem:[%s5 + $0x368] sm:$0xff]
  %v924 = vld [vmem:[%s5 + $0x370] sm:$0xff]
  %v925 = vld [vmem:[%s5 + $0x378] sm:$0xff]
  %v926 = vld [vmem:[%s5 + $0x380] sm:$0xff]
  %v927 = vld [vmem:[%s5 + $0x388] sm:$0xff]
  %v928 = vld [vmem:[%s5 + $0x390] sm:$0xff]
  %v929 = vld [vmem:[%s5 + $0x398] sm:$0xff]
  %v930 = vld [vmem:[%s5 + $0x3a0] sm:$0xff]
  %v931 = vld [vmem:[%s5 + $0x3a8] sm:$0xff]
  %v932 = vld [vmem:[%s5 + $0x3b0] sm:$0xff]
  %v933 = vld [vmem:[%s5 + $0x3b8] sm:$0xff]
  %v934 = vld [vmem:[%s5 + $0x3c0] sm:$0xff]
  %v935 = vld [vmem:[%s5 + $0x3c8] sm:$0xff]
  %v936 = vld [vmem:[%s5 + $0x3d0] sm:$0xff]
  %v937 = vld [vmem:[%s5 + $0x3d8] sm:$0xff]
  %v938 = vld [vmem:[%s5 + $0x3e0] sm:$0xff]
  %v939 = vld [vmem:[%s5 + $0x3e8] sm:$0xff]
  %v940 = vld [vmem:[%s5 + $0x3f0] sm:$0xff]
  %v941 = vld [vmem:[%s5 + $0x3f8] sm:$0xff]
  %v942 = vld [vmem:[%s5 + $0x400] sm:$0xff]
  %v943 = vld [vmem:[%s5 + $0x408] sm:$0xff]
  %v944 = vld [vmem:[%s5 + $0x410] sm:$0xff]
  %v945 = vld [vmem:[%s5 + $0x418] sm:$0xff]
  %v946 = vld [vmem:[%s5 + $0x420] sm:$0xff]
  %v947 = vld [vmem:[%s5 + $0x428] sm:$0xff]
  %v948 = vld [vmem:[%s5 + $0x430] sm:$0xff]
  %v949 = vld [vmem:[%s5 + $0x438] sm:$0xff]
  %v950 = vld [vmem:[%s5 + $0x440] sm:$0xff]
  %v951 = vld [vmem:[%s5 + $0x448] sm:$0xff]
  %v952 = vld [vmem:[%s5 + $0x450] sm:$0xff]
  %v953 = vld [vmem:[%s5 + $0x458] sm:$0xff]
  %v954 = vld [vmem:[%s5 + $0x460] sm:$0xff]
  %v955 = vld [vmem:[%s5 + $0x468] sm:$0xff]
  %v956 = vld [vmem:[%s5 + $0x470] sm:$0xff]
  %v957 = vld [vmem:[%s5 + $0x478] sm:$0xff]
  %v958 = vld [vmem:[%s5 + $0x480] sm:$0xff]
  %v959 = vld [vmem:[%s5 + $0x488] sm:$0xff]
  %v960 = vld [vmem:[%s5 + $0x490] sm:$0xff]
  %v961 = vld [vmem:[%s5 + $0x498] sm:$0xff]
  %v962 = vld [vmem:[%s5 + $0x4a0] sm:$0xff]
  %v963 = vld [vmem:[%s5 + $0x4a8] sm:$0xff]
  %v964 = vld [vmem:[%s5 + $0x4b0] sm:$0xff]
  %v965 = vld [vmem:[%s5 + $0x4b8] sm:$0xff]
  %v966 = vld [vmem:[%s5 + $0x4c0] sm:$0xff]
  %v967 = vld [vmem:[%s5 + $0x4c8] sm:$0xff]
  %v968 = vld [vmem:[%s5 + $0x4d0] sm:$0xff]
  %v969 = vld [vmem:[%s5 + $0x4d8] sm:$0xff]
  %v970 = vld [vmem:[%s5 + $0x4e0] sm:$0xff]
  %v971 = vld [vmem:[%s5 + $0x4e8] sm:$0xff]
  %v972 = vld [vmem:[%s5 + $0x4f0] sm:$0xff]
  %v973 = vld [vmem:[%s5 + $0x4f8] sm:$0xff]
  %v974 = vld [vmem:[%s5 + $0x500] sm:$0xff]
  %v975 = vld [vmem:[%s5 + $0x508] sm:$0xff]
  %v976 = vld [vmem:[%s5 + $0x510] sm:$0xff]
  %v977 = vld [vmem:[%s5 + $0x518] sm:$0xff]
  %v978 = vld [vmem:[%s5 + $0x520] sm:$0xff]
  %v979 = vld [vmem:[%s5 + $0x528] sm:$0xff]
  %v980 = vld [vmem:[%s5 + $0x530] sm:$0xff]
  %v981 = vld [vmem:[%s5 + $0x538] sm:$0xff]
  %v982 = vld [vmem:[%s5 + $0x540] sm:$0xff]
  %v983 = vld [vmem:[%s5 + $0x548] sm:$0xff]
  %v984 = vld [vmem:[%s5 + $0x550] sm:$0xff]
  %v985 = vld [vmem:[%s5 + $0x558] sm:$0xff]
  %v986 = vld [vmem:[%s5 + $0x560] sm:$0xff]
  %v987 = vld [vmem:[%s5 + $0x568] sm:$0xff]
  %v988 = vld [vmem:[%s5 + $0x570] sm:$0xff]
  %v989 = vld [vmem:[%s5 + $0x578] sm:$0xff]
  %v990 = vld [vmem:[%s5 + $0x580] sm:$0xff]
  %v991 = vld [vmem:[%s5 + $0x588] sm:$0xff]
  %v992 = vld [vmem:[%s5 + $0x590] sm:$0xff]
  %v993 = vld [vmem:[%s5 + $0x598] sm:$0xff]
  %v994 = vld [vmem:[%s5 + $0x5a0] sm:$0xff]
  %v995 = vld [vmem:[%s5 + $0x5a8] sm:$0xff]
  %v996 = vld [vmem:[%s5 + $0x5b0] sm:$0xff]
  %v997 = vld [vmem:[%s5 + $0x5b8] sm:$0xff]
  %v998 = vld [vmem:[%s5 + $0x5c0] sm:$0xff]
  %v999 = vld [vmem:[%s5 + $0x5c8] sm:$0xff]
  %v1000 = vld [vmem:[%s5 + $0x5d0] sm:$0xff]
  %v1001 = vld [vmem:[%s5 + $0x5d8] sm:$0xff]
  %v1002 = vld [vmem:[%s5 + $0x5e0] sm:$0xff]
  %v1003 = vld [vmem:[%s5 + $0x5e8] sm:$0xff]
  %v1004 = vld [vmem:[%s5 + $0x5f0] sm:$0xff]
  %v1005 = vld [vmem:[%s5 + $0x5f8] sm:$0xff]
  %v1006 = vld [vmem:[%s5 + $0x600] sm:$0xff]
  %v1007 = vld [vmem:[%s5 + $0x608] sm:$0xff]
  %v1008 = vld [vmem:[%s5 + $0x610] sm:$0xff]
  %v1009 = vld [vmem:[%s5 + $0x618] sm:$0xff]
  %v1010 = vld [vmem:[%s5 + $0x620] sm:$0xff]
  %v1011 = vld [vmem:[%s5 + $0x628] sm:$0xff]
  %v1012 = vld [vmem:[%s5 + $0x630] sm:$0xff]
  %v1013 = vld [vmem:[%s5 + $0x638] sm:$0xff]
  %v1014 = vld [vmem:[%s5 + $0x640] sm:$0xff]
  %v1015 = vld [vmem:[%s5 + $0x648] sm:$0xff]
  %v1016 = vld [vmem:[%s5 + $0x650] sm:$0xff]
  %v1017 = vld [vmem:[%s5 + $0x658] sm:$0xff]
  %v1018 = vld [vmem:[%s5 + $0x660] sm:$0xff]
  %v1019 = vld [vmem:[%s5 + $0x668] sm:$0xff]
  %v1020 = vld [vmem:[%s5 + $0x670] sm:$0xff]
  %v1021 = vld [vmem:[%s5 + $0x678] sm:$0xff]
  %v1022 = vld [vmem:[%s5 + $0x680] sm:$0xff]
  %v1023 = vld [vmem:[%s5 + $0x688] sm:$0xff]
  %v1024 = vld [vmem:[%s5 + $0x690] sm:$0xff]
  %v1025 = vld [vmem:[%s5 + $0x698] sm:$0xff]
  %v1026 = vld [vmem:[%s5 + $0x6a0] sm:$0xff]
  %v1027 = vld [vmem:[%s5 + $0x6a8] sm:$0xff]
  %v1028 = vld [vmem:[%s5 + $0x6b0] sm:$0xff]
  %v1029 = vld [vmem:[%s5 + $0x6b8] sm:$0xff]
  %v1030 = vld [vmem:[%s5 + $0x6c0] sm:$0xff]
  %v1031 = vld [vmem:[%s5 + $0x6c8] sm:$0xff]
  %v1032 = vld [vmem:[%s5 + $0x6d0] sm:$0xff]
  %v1033 = vld [vmem:[%s5 + $0x6d8] sm:$0xff]
  %v1034 = vld [vmem:[%s5 + $0x6e0] sm:$0xff]
  %v1035 = vld [vmem:[%s5 + $0x6e8] sm:$0xff]
  %v1036 = vld [vmem:[%s5 + $0x6f0] sm:$0xff]
  %v1037 = vld [vmem:[%s5 + $0x6f8] sm:$0xff]
  %v1038 = vld [vmem:[%s5 + $0x700] sm:$0xff]
  %v1039 = vld [vmem:[%s5 + $0x708] sm:$0xff]
  %v1040 = vld [vmem:[%s5 + $0x710] sm:$0xff]
  %v1041 = vld [vmem:[%s5 + $0x718] sm:$0xff]
  %v1042 = vld [vmem:[%s5 + $0x720] sm:$0xff]
  %v1043 = vld [vmem:[%s5 + $0x728] sm:$0xff]
  %v1044 = vld [vmem:[%s5 + $0x730] sm:$0xff]
  %v1045 = vld [vmem:[%s5 + $0x738] sm:$0xff]
  %v1046 = vld [vmem:[%s5 + $0x740] sm:$0xff]
  %v1047 = vld [vmem:[%s5 + $0x748] sm:$0xff]
  %v1048 = vld [vmem:[%s5 + $0x750] sm:$0xff]
  %v1049 = vld [vmem:[%s5 + $0x758] sm:$0xff]
  %v1050 = vld [vmem:[%s5 + $0x760] sm:$0xff]
  %v1051 = vld [vmem:[%s5 + $0x768] sm:$0xff]
  %v1052 = vld [vmem:[%s5 + $0x770] sm:$0xff]
  %v1053 = vld [vmem:[%s5 + $0x778] sm:$0xff]
  %v1054 = vld [vmem:[%s5 + $0x780] sm:$0xff]
  %v1055 = vld [vmem:[%s5 + $0x788] sm:$0xff]
  %v1056 = vld [vmem:[%s5 + $0x790] sm:$0xff]
  %v1057 = vld [vmem:[%s5 + $0x798] sm:$0xff]
  %v1058 = vld [vmem:[%s5 + $0x7a0] sm:$0xff]
  %v1059 = vld [vmem:[%s5 + $0x7a8] sm:$0xff]
  %v1060 = vld [vmem:[%s5 + $0x7b0] sm:$0xff]
  %v1061 = vld [vmem:[%s5 + $0x7b8] sm:$0xff]
  %v1062 = vld [vmem:[%s5 + $0x7c0] sm:$0xff]
  %v1063 = vld [vmem:[%s5 + $0x7c8] sm:$0xff]
  %v1064 = vld [vmem:[%s5 + $0x7d0] sm:$0xff]
  %v1065 = vld [vmem:[%s5 + $0x7d8] sm:$0xff]
  %v1066 = vld [vmem:[%s5 + $0x7e0] sm:$0xff]
  %v1067 = vld [vmem:[%s5 + $0x7e8] sm:$0xff]
  %v1068 = vld [vmem:[%s5 + $0x7f0] sm:$0xff]
  %v1069 = vld [vmem:[%s5 + $0x7f8] sm:$0xff]
  %v1070 = vld [vmem:[%s5 + $0x800] sm:$0xff]
  %v1071 = vld [vmem:[%s5 + $0x808] sm:$0xff]
  %v1072 = vld [vmem:[%s5 + $0x810] sm:$0xff]
  %v1073 = vld [vmem:[%s5 + $0x818] sm:$0xff]
  %v1074 = vld [vmem:[%s5 + $0x820] sm:$0xff]
  %v1075 = vld [vmem:[%s5 + $0x828] sm:$0xff]
  %v1076 = vld [vmem:[%s5 + $0x830] sm:$0xff]
  %v1077 = vld [vmem:[%s5 + $0x838] sm:$0xff]
  %v1078 = vld [vmem:[%s5 + $0x840] sm:$0xff]
  %v1079 = vld [vmem:[%s5 + $0x848] sm:$0xff]
  %v1080 = vld [vmem:[%s5 + $0x850] sm:$0xff]
  %v1081 = vld [vmem:[%s5 + $0x858] sm:$0xff]
  %v1082 = vld [vmem:[%s5 + $0x860] sm:$0xff]
  %v1083 = vld [vmem:[%s5 + $0x868] sm:$0xff]
  %v1084 = vld [vmem:[%s5 + $0x870] sm:$0xff]
  %v1085 = vld [vmem:[%s5 + $0x878] sm:$0xff]
  %v1086 = vld [vmem:[%s5 + $0x880] sm:$0xff]
  %v1087 = vld [vmem:[%s5 + $0x888] sm:$0xff]
  %v1088 = vld [vmem:[%s5 + $0x890] sm:$0xff]
  %v1089 = vld [vmem:[%s5 + $0x898] sm:$0xff]
  %v1090 = vld [vmem:[%s5 + $0x8a0] sm:$0xff]
  %v1091 = vld [vmem:[%s5 + $0x8a8] sm:$0xff]
  %v1092 = vld [vmem:[%s5 + $0x8b0] sm:$0xff]
  %v1093 = vld [vmem:[%s5 + $0x8b8] sm:$0xff]
  %v1094 = vld [vmem:[%s5 + $0x8c0] sm:$0xff]
  %v1095 = vld [vmem:[%s5 + $0x8c8] sm:$0xff]
  %v1096 = vld [vmem:[%s5 + $0x8d0] sm:$0xff]
  %v1097 = vld [vmem:[%s5 + $0x8d8] sm:$0xff]
  %v1098 = vld [vmem:[%s5 + $0x8e0] sm:$0xff]
  %v1099 = vld [vmem:[%s5 + $0x8e8] sm:$0xff]
  %v1100 = vld [vmem:[%s5 + $0x8f0] sm:$0xff]
  %v1101 = vld [vmem:[%s5 + $0x8f8] sm:$0xff]
  %v1102 = vld [vmem:[%s5 + $0x900] sm:$0xff]
  %v1103 = vld [vmem:[%s5 + $0x908] sm:$0xff]
  %v1104 = vld [vmem:[%s5 + $0x910] sm:$0xff]
  %v1105 = vld [vmem:[%s5 + $0x918] sm:$0xff]
  %v1106 = vld [vmem:[%s5 + $0x920] sm:$0xff]
  %v1107 = vld [vmem:[%s5 + $0x928] sm:$0xff]
  %v1108 = vld [vmem:[%s5 + $0x930] sm:$0xff]
  %v1109 = vld [vmem:[%s5 + $0x938] sm:$0xff]
  %v1110 = vld [vmem:[%s5 + $0x940] sm:$0xff]
  %v1111 = vld [vmem:[%s5 + $0x948] sm:$0xff]
  %v1112 = vld [vmem:[%s5 + $0x950] sm:$0xff]
  %v1113 = vld [vmem:[%s5 + $0x958] sm:$0xff]
  %v1114 = vld [vmem:[%s5 + $0x960] sm:$0xff]
  %v1115 = vld [vmem:[%s5 + $0x968] sm:$0xff]
  %v1116 = vld [vmem:[%s5 + $0x970] sm:$0xff]
  %v1117 = vld [vmem:[%s5 + $0x978] sm:$0xff]
  %v1118 = vld [vmem:[%s5 + $0x980] sm:$0xff]
  %v1119 = vld [vmem:[%s5 + $0x988] sm:$0xff]
  %v1120 = vld [vmem:[%s5 + $0x990] sm:$0xff]
  %v1121 = vld [vmem:[%s5 + $0x998] sm:$0xff]
  %v1122 = vld [vmem:[%s5 + $0x9a0] sm:$0xff]
  %v1123 = vld [vmem:[%s5 + $0x9a8] sm:$0xff]
  %v1124 = vld [vmem:[%s5 + $0x9b0] sm:$0xff]
  %v1125 = vld [vmem:[%s5 + $0x9b8] sm:$0xff]
  %v1126 = vld [vmem:[%s5 + $0x9c0] sm:$0xff]
  %v1127 = vld [vmem:[%s5 + $0x9c8] sm:$0xff]
  %v1128 = vld [vmem:[%s5 + $0x9d0] sm:$0xff]
  %v1129 = vld [vmem:[%s5 + $0x9d8] sm:$0xff]
  %v1130 = vld [vmem:[%s5 + $0x9e0] sm:$0xff]
  %v1131 = vld [vmem:[%s5 + $0x9e8] sm:$0xff]
  %v1132 = vld [vmem:[%s5 + $0x9f0] sm:$0xff]
  %v1133 = vld [vmem:[%s5 + $0x9f8] sm:$0xff]
  %v1134 = vld [vmem:[%s5 + $0xa00] sm:$0xff]
  %v1135 = vld [vmem:[%s5 + $0xa08] sm:$0xff]
  %v1136 = vld [vmem:[%s5 + $0xa10] sm:$0xff]
  %v1137 = vld [vmem:[%s5 + $0xa18] sm:$0xff]
  %v1138 = vld [vmem:[%s5 + $0xa20] sm:$0xff]
  %v1139 = vld [vmem:[%s5 + $0xa28] sm:$0xff]
  %v1140 = vld [vmem:[%s5 + $0xa30] sm:$0xff]
  %v1141 = vld [vmem:[%s5 + $0xa38] sm:$0xff]
  %v1142 = vld [vmem:[%s5 + $0xa40] sm:$0xff]
  %v1143 = vld [vmem:[%s5 + $0xa48] sm:$0xff]
  %v1144 = vld [vmem:[%s5 + $0xa50] sm:$0xff]
  %v1145 = vld [vmem:[%s5 + $0xa58] sm:$0xff]
  %v1146 = vld [vmem:[%s5 + $0xa60] sm:$0xff]
  %v1147 = vld [vmem:[%s5 + $0xa68] sm:$0xff]
  %v1148 = vld [vmem:[%s5 + $0xa70] sm:$0xff]
  %v1149 = vld [vmem:[%s5 + $0xa78] sm:$0xff]
  %v1150 = vld [vmem:[%s5 + $0xa80] sm:$0xff]
  %v1151 = vld [vmem:[%s5 + $0xa88] sm:$0xff]
  %v1152 = vld [vmem:[%s5 + $0xa90] sm:$0xff]
  %v1153 = vld [vmem:[%s5 + $0xa98] sm:$0xff]
  %v1154 = vld [vmem:[%s5 + $0xaa0] sm:$0xff]
  %v1155 = vld [vmem:[%s5 + $0xaa8] sm:$0xff]
  %v1156 = vld [vmem:[%s5 + $0xab0] sm:$0xff]
  %v1157 = vld [vmem:[%s5 + $0xab8] sm:$0xff]
  %v1158 = vld [vmem:[%s5 + $0xac0] sm:$0xff]
  %v1159 = vld [vmem:[%s5 + $0xac8] sm:$0xff]
  %v1160 = vld [vmem:[%s5 + $0xad0] sm:$0xff]
  %v1161 = vld [vmem:[%s5 + $0xad8] sm:$0xff]
  %v1162 = vld [vmem:[%s5 + $0xae0] sm:$0xff]
  %v1163 = vld [vmem:[%s5 + $0xae8] sm:$0xff]
  %v1164 = vld [vmem:[%s5 + $0xaf0] sm:$0xff]
  %v1165 = vld [vmem:[%s5 + $0xaf8] sm:$0xff]
  %v1166 = vld [vmem:[%s5 + $0xb00] sm:$0xff]
  %v1167 = vld [vmem:[%s5 + $0xb08] sm:$0xff]
  %v1168 = vld [vmem:[%s5 + $0xb10] sm:$0xff]
  %v1169 = vld [vmem:[%s5 + $0xb18] sm:$0xff]
  %v1170 = vld [vmem:[%s5 + $0xb20] sm:$0xff]
  %v1171 = vld [vmem:[%s5 + $0xb28] sm:$0xff]
  %v1172 = vld [vmem:[%s5 + $0xb30] sm:$0xff]
  %v1173 = vld [vmem:[%s5 + $0xb38] sm:$0xff]
  %v1174 = vld [vmem:[%s5 + $0xb40] sm:$0xff]
  %v1175 = vld [vmem:[%s5 + $0xb48] sm:$0xff]
  %v1176 = vld [vmem:[%s5 + $0xb50] sm:$0xff]
  %v1177 = vld [vmem:[%s5 + $0xb58] sm:$0xff]
  %v1178 = vld [vmem:[%s5 + $0xb60] sm:$0xff]
  %v1179 = vld [vmem:[%s5 + $0xb68] sm:$0xff]
  %v1180 = vld [vmem:[%s5 + $0xb70] sm:$0xff]
  %v1181 = vld [vmem:[%s5 + $0xb78] sm:$0xff]
  %v1182 = vld [vmem:[%s5 + $0xb80] sm:$0xff]
  %v1183 = vld [vmem:[%s5 + $0xb88] sm:$0xff]
  %v1184 = vld [vmem:[%s5 + $0xb90] sm:$0xff]
  %v1185 = vld [vmem:[%s5 + $0xb98] sm:$0xff]
  %v1186 = vld [vmem:[%s5 + $0xba0] sm:$0xff]
  %v1187 = vld [vmem:[%s5 + $0xba8] sm:$0xff]
  %v1188 = vld [vmem:[%s5 + $0xbb0] sm:$0xff]
  %v1189 = vld [vmem:[%s5 + $0xbb8] sm:$0xff]
  %v1190 = vld [vmem:[%s5 + $0xbc0] sm:$0xff]
  %v1191 = vld [vmem:[%s5 + $0xbc8] sm:$0xff]
  %v1192 = vld [vmem:[%s5 + $0xbd0] sm:$0xff]
  %v1193 = vld [vmem:[%s5 + $0xbd8] sm:$0xff]
  %v1194 = vld [vmem:[%s5 + $0xbe0] sm:$0xff]
  %v1195 = vld [vmem:[%s5 + $0xbe8] sm:$0xff]
  %v1196 = vld [vmem:[%s5 + $0xbf0] sm:$0xff]
  %v1197 = vld [vmem:[%s5 + $0xbf8] sm:$0xff]
  %v1198 = vld [vmem:[%s6] sm:$0xff]
  %v1199 = vld [vmem:[%s6 + $0x8] sm:$0xf]
  %v1202 = vlaneseq
  %v1203 = vshrl.u32 %v1202, 7
  %v1204 = vsub.s32 0, %v1203
  %v1205 = vrot.slane %v1198, %v1204
  %v1206 = vlaneseq
  %v1207 = vshrl.u32 %v1206, 7
  %v1208 = vsub.s32 1, %v1207
  %v1209 = vrot.slane %v1198, %v1208
  %v1210 = vlaneseq
  %v1211 = vshrl.u32 %v1210, 7
  %v1212 = vsub.s32 2, %v1211
  %v1213 = vrot.slane %v1198, %v1212
  %v1214 = vlaneseq
  %v1215 = vshrl.u32 %v1214, 7
  %v1216 = vsub.s32 3, %v1215
  %v1217 = vrot.slane %v1198, %v1216
  %v1218 = vlaneseq
  %v1219 = vshrl.u32 %v1218, 7
  %v1220 = vsub.s32 4, %v1219
  %v1221 = vrot.slane %v1198, %v1220
  %v1222 = vlaneseq
  %v1223 = vshrl.u32 %v1222, 7
  %v1224 = vsub.s32 5, %v1223
  %v1225 = vrot.slane %v1198, %v1224
  %v1226 = vlaneseq
  %v1227 = vshrl.u32 %v1226, 7
  %v1228 = vsub.s32 6, %v1227
  %v1229 = vrot.slane %v1198, %v1228
  %v1230 = vlaneseq
  %v1231 = vshrl.u32 %v1230, 7
  %v1232 = vsub.s32 7, %v1231
  %v1233 = vrot.slane %v1198, %v1232
  %v1234 = vlaneseq
  %v1235 = vshrl.u32 %v1234, 7
  %v1236 = vsub.s32 0, %v1235
  %v1237 = vrot.slane %v1199, %v1236
  %v1238 = vlaneseq
  %v1239 = vshrl.u32 %v1238, 7
  %v1240 = vsub.s32 1, %v1239
  %v1241 = vrot.slane %v1199, %v1240
  %v1242 = vlaneseq
  %v1243 = vshrl.u32 %v1242, 7
  %v1244 = vsub.s32 2, %v1243
  %v1245 = vrot.slane %v1199, %v1244
  %v1246 = vlaneseq
  %v1247 = vshrl.u32 %v1246, 7
  %v1248 = vsub.s32 3, %v1247
  %v1249 = vrot.slane %v1199, %v1248
  %v1646 = vunpack.c.l.b16 %v814
  %v1647 = vunpack.c.h.b16 %v814
  %v1648 = vunpack.c.l.b16 %v815
  %v1649 = vunpack.c.h.b16 %v815
  %v1650 = vunpack.c.l.b16 %v816
  %v1651 = vunpack.c.h.b16 %v816
  %v1652 = vunpack.c.l.b16 %v817
  %v1653 = vunpack.c.h.b16 %v817
  %v1654 = vunpack.c.l.b16 %v818
  %v1655 = vunpack.c.h.b16 %v818
  %v1656 = vunpack.c.l.b16 %v819
  %v1657 = vunpack.c.h.b16 %v819
  %v1658 = vunpack.c.l.b16 %v820
  %v1659 = vunpack.c.h.b16 %v820
  %v1660 = vunpack.c.l.b16 %v821
  %v1661 = vunpack.c.h.b16 %v821
  %v1662 = vunpack.c.l.b16 %v822
  %v1663 = vunpack.c.h.b16 %v822
  %v1664 = vunpack.c.l.b16 %v823
  %v1665 = vunpack.c.h.b16 %v823
  %v1666 = vunpack.c.l.b16 %v824
  %v1667 = vunpack.c.h.b16 %v824
  %v1668 = vunpack.c.l.b16 %v825
  %v1669 = vunpack.c.h.b16 %v825
  %v1670 = vunpack.c.l.b16 %v826
  %v1671 = vunpack.c.h.b16 %v826
  %v1672 = vunpack.c.l.b16 %v827
  %v1673 = vunpack.c.h.b16 %v827
  %v1674 = vunpack.c.l.b16 %v828
  %v1675 = vunpack.c.h.b16 %v828
  %v1676 = vunpack.c.l.b16 %v829
  %v1677 = vunpack.c.h.b16 %v829
  %v1678 = vunpack.c.l.b16 %v830
  %v1679 = vunpack.c.h.b16 %v830
  %v1680 = vunpack.c.l.b16 %v831
  %v1681 = vunpack.c.h.b16 %v831
  %v1682 = vunpack.c.l.b16 %v832
  %v1683 = vunpack.c.h.b16 %v832
  %v1684 = vunpack.c.l.b16 %v833
  %v1685 = vunpack.c.h.b16 %v833
  %v1686 = vunpack.c.l.b16 %v834
  %v1687 = vunpack.c.h.b16 %v834
  %v1688 = vunpack.c.l.b16 %v835
  %v1689 = vunpack.c.h.b16 %v835
  %v1690 = vunpack.c.l.b16 %v836
  %v1691 = vunpack.c.h.b16 %v836
  %v1692 = vunpack.c.l.b16 %v837
  %v1693 = vunpack.c.h.b16 %v837
  %v1694 = vunpack.c.l.b16 %v838
  %v1695 = vunpack.c.h.b16 %v838
  %v1696 = vunpack.c.l.b16 %v839
  %v1697 = vunpack.c.h.b16 %v839
  %v1698 = vunpack.c.l.b16 %v840
  %v1699 = vunpack.c.h.b16 %v840
  %v1700 = vunpack.c.l.b16 %v841
  %v1701 = vunpack.c.h.b16 %v841
  %v1702 = vunpack.c.l.b16 %v842
  %v1703 = vunpack.c.h.b16 %v842
  %v1704 = vunpack.c.l.b16 %v843
  %v1705 = vunpack.c.h.b16 %v843
  %v1706 = vunpack.c.l.b16 %v844
  %v1707 = vunpack.c.h.b16 %v844
  %v1708 = vunpack.c.l.b16 %v845
  %v1709 = vunpack.c.h.b16 %v845
  %v1710 = vunpack.c.l.b16 %v846
  %v1711 = vunpack.c.h.b16 %v846
  %v1712 = vunpack.c.l.b16 %v847
  %v1713 = vunpack.c.h.b16 %v847
  %v1714 = vunpack.c.l.b16 %v848
  %v1715 = vunpack.c.h.b16 %v848
  %v1716 = vunpack.c.l.b16 %v849
  %v1717 = vunpack.c.h.b16 %v849
  %v1718 = vunpack.c.l.b16 %v850
  %v1719 = vunpack.c.h.b16 %v850
  %v1720 = vunpack.c.l.b16 %v851
  %v1721 = vunpack.c.h.b16 %v851
  %v1722 = vunpack.c.l.b16 %v852
  %v1723 = vunpack.c.h.b16 %v852
  %v1724 = vunpack.c.l.b16 %v853
  %v1725 = vunpack.c.h.b16 %v853
  %v1726 = vunpack.c.l.b16 %v854
  %v1727 = vunpack.c.h.b16 %v854
  %v1728 = vunpack.c.l.b16 %v855
  %v1729 = vunpack.c.h.b16 %v855
  %v1730 = vunpack.c.l.b16 %v856
  %v1731 = vunpack.c.h.b16 %v856
  %v1732 = vunpack.c.l.b16 %v857
  %v1733 = vunpack.c.h.b16 %v857
  %v1734 = vunpack.c.l.b16 %v858
  %v1735 = vunpack.c.h.b16 %v858
  %v1736 = vunpack.c.l.b16 %v859
  %v1737 = vunpack.c.h.b16 %v859
  %v1738 = vunpack.c.l.b16 %v860
  %v1739 = vunpack.c.h.b16 %v860
  %v1740 = vunpack.c.l.b16 %v861
  %v1741 = vunpack.c.h.b16 %v861
  %v1742 = vunpack.c.l.b16 %v862
  %v1743 = vunpack.c.h.b16 %v862
  %v1744 = vunpack.c.l.b16 %v863
  %v1745 = vunpack.c.h.b16 %v863
  %v1746 = vunpack.c.l.b16 %v864
  %v1747 = vunpack.c.h.b16 %v864
  %v1748 = vunpack.c.l.b16 %v865
  %v1749 = vunpack.c.h.b16 %v865
  %v1750 = vunpack.c.l.b16 %v866
  %v1751 = vunpack.c.h.b16 %v866
  %v1752 = vunpack.c.l.b16 %v867
  %v1753 = vunpack.c.h.b16 %v867
  %v1754 = vunpack.c.l.b16 %v868
  %v1755 = vunpack.c.h.b16 %v868
  %v1756 = vunpack.c.l.b16 %v869
  %v1757 = vunpack.c.h.b16 %v869
  %v1758 = vunpack.c.l.b16 %v870
  %v1759 = vunpack.c.h.b16 %v870
  %v1760 = vunpack.c.l.b16 %v871
  %v1761 = vunpack.c.h.b16 %v871
  %v1762 = vunpack.c.l.b16 %v872
  %v1763 = vunpack.c.h.b16 %v872
  %v1764 = vunpack.c.l.b16 %v873
  %v1765 = vunpack.c.h.b16 %v873
  %v1766 = vunpack.c.l.b16 %v874
  %v1767 = vunpack.c.h.b16 %v874
  %v1768 = vunpack.c.l.b16 %v875
  %v1769 = vunpack.c.h.b16 %v875
  %v1770 = vunpack.c.l.b16 %v876
  %v1771 = vunpack.c.h.b16 %v876
  %v1772 = vunpack.c.l.b16 %v877
  %v1773 = vunpack.c.h.b16 %v877
  %v1774 = vunpack.c.l.b16 %v878
  %v1775 = vunpack.c.h.b16 %v878
  %v1776 = vunpack.c.l.b16 %v879
  %v1777 = vunpack.c.h.b16 %v879
  %v1778 = vunpack.c.l.b16 %v880
  %v1779 = vunpack.c.h.b16 %v880
  %v1780 = vunpack.c.l.b16 %v881
  %v1781 = vunpack.c.h.b16 %v881
  %v1782 = vunpack.c.l.b16 %v882
  %v1783 = vunpack.c.h.b16 %v882
  %v1784 = vunpack.c.l.b16 %v883
  %v1785 = vunpack.c.h.b16 %v883
  %v1786 = vunpack.c.l.b16 %v884
  %v1787 = vunpack.c.h.b16 %v884
  %v1788 = vunpack.c.l.b16 %v885
  %v1789 = vunpack.c.h.b16 %v885
  %v1790 = vunpack.c.l.b16 %v886
  %v1791 = vunpack.c.h.b16 %v886
  %v1792 = vunpack.c.l.b16 %v887
  %v1793 = vunpack.c.h.b16 %v887
  %v1794 = vunpack.c.l.b16 %v888
  %v1795 = vunpack.c.h.b16 %v888
  %v1796 = vunpack.c.l.b16 %v889
  %v1797 = vunpack.c.h.b16 %v889
  %v1798 = vunpack.c.l.b16 %v890
  %v1799 = vunpack.c.h.b16 %v890
  %v1800 = vunpack.c.l.b16 %v891
  %v1801 = vunpack.c.h.b16 %v891
  %v1802 = vunpack.c.l.b16 %v892
  %v1803 = vunpack.c.h.b16 %v892
  %v1804 = vunpack.c.l.b16 %v893
  %v1805 = vunpack.c.h.b16 %v893
  %v1806 = vunpack.c.l.b16 %v894
  %v1807 = vunpack.c.h.b16 %v894
  %v1808 = vunpack.c.l.b16 %v895
  %v1809 = vunpack.c.h.b16 %v895
  %v1810 = vunpack.c.l.b16 %v896
  %v1811 = vunpack.c.h.b16 %v896
  %v1812 = vunpack.c.l.b16 %v897
  %v1813 = vunpack.c.h.b16 %v897
  %v1814 = vunpack.c.l.b16 %v898
  %v1815 = vunpack.c.h.b16 %v898
  %v1816 = vunpack.c.l.b16 %v899
  %v1817 = vunpack.c.h.b16 %v899
  %v1818 = vunpack.c.l.b16 %v900
  %v1819 = vunpack.c.h.b16 %v900
  %v1820 = vunpack.c.l.b16 %v901
  %v1821 = vunpack.c.h.b16 %v901
  %v1822 = vunpack.c.l.b16 %v902
  %v1823 = vunpack.c.h.b16 %v902
  %v1824 = vunpack.c.l.b16 %v903
  %v1825 = vunpack.c.h.b16 %v903
  %v1826 = vunpack.c.l.b16 %v904
  %v1827 = vunpack.c.h.b16 %v904
  %v1828 = vunpack.c.l.b16 %v905
  %v1829 = vunpack.c.h.b16 %v905
  %v1830 = vunpack.c.l.b16 %v906
  %v1831 = vunpack.c.h.b16 %v906
  %v1832 = vunpack.c.l.b16 %v907
  %v1833 = vunpack.c.h.b16 %v907
  %v1834 = vunpack.c.l.b16 %v908
  %v1835 = vunpack.c.h.b16 %v908
  %v1836 = vunpack.c.l.b16 %v909
  %v1837 = vunpack.c.h.b16 %v909
  %v1838 = vunpack.c.l.b16 %v910
  %v1839 = vunpack.c.h.b16 %v910
  %v1840 = vunpack.c.l.b16 %v911
  %v1841 = vunpack.c.h.b16 %v911
  %v1842 = vunpack.c.l.b16 %v912
  %v1843 = vunpack.c.h.b16 %v912
  %v1844 = vunpack.c.l.b16 %v913
  %v1845 = vunpack.c.h.b16 %v913
  %v1846 = vunpack.c.l.b16 %v914
  %v1847 = vunpack.c.h.b16 %v914
  %v1848 = vunpack.c.l.b16 %v915
  %v1849 = vunpack.c.h.b16 %v915
  %v1850 = vunpack.c.l.b16 %v916
  %v1851 = vunpack.c.h.b16 %v916
  %v1852 = vunpack.c.l.b16 %v917
  %v1853 = vunpack.c.h.b16 %v917
  %v1854 = vunpack.c.l.b16 %v918
  %v1855 = vunpack.c.h.b16 %v918
  %v1856 = vunpack.c.l.b16 %v919
  %v1857 = vunpack.c.h.b16 %v919
  %v1858 = vunpack.c.l.b16 %v920
  %v1859 = vunpack.c.h.b16 %v920
  %v1860 = vunpack.c.l.b16 %v921
  %v1861 = vunpack.c.h.b16 %v921
  %v1862 = vunpack.c.l.b16 %v922
  %v1863 = vunpack.c.h.b16 %v922
  %v1864 = vunpack.c.l.b16 %v923
  %v1865 = vunpack.c.h.b16 %v923
  %v1866 = vunpack.c.l.b16 %v924
  %v1867 = vunpack.c.h.b16 %v924
  %v1868 = vunpack.c.l.b16 %v925
  %v1869 = vunpack.c.h.b16 %v925
  %v1870 = vunpack.c.l.b16 %v926
  %v1871 = vunpack.c.h.b16 %v926
  %v1872 = vunpack.c.l.b16 %v927
  %v1873 = vunpack.c.h.b16 %v927
  %v1874 = vunpack.c.l.b16 %v928
  %v1875 = vunpack.c.h.b16 %v928
  %v1876 = vunpack.c.l.b16 %v929
  %v1877 = vunpack.c.h.b16 %v929
  %v1878 = vunpack.c.l.b16 %v930
  %v1879 = vunpack.c.h.b16 %v930
  %v1880 = vunpack.c.l.b16 %v931
  %v1881 = vunpack.c.h.b16 %v931
  %v1882 = vunpack.c.l.b16 %v932
  %v1883 = vunpack.c.h.b16 %v932
  %v1884 = vunpack.c.l.b16 %v933
  %v1885 = vunpack.c.h.b16 %v933
  %v1886 = vunpack.c.l.b16 %v934
  %v1887 = vunpack.c.h.b16 %v934
  %v1888 = vunpack.c.l.b16 %v935
  %v1889 = vunpack.c.h.b16 %v935
  %v1890 = vunpack.c.l.b16 %v936
  %v1891 = vunpack.c.h.b16 %v936
  %v1892 = vunpack.c.l.b16 %v937
  %v1893 = vunpack.c.h.b16 %v937
  %v1894 = vunpack.c.l.b16 %v938
  %v1895 = vunpack.c.h.b16 %v938
  %v1896 = vunpack.c.l.b16 %v939
  %v1897 = vunpack.c.h.b16 %v939
  %v1898 = vunpack.c.l.b16 %v940
  %v1899 = vunpack.c.h.b16 %v940
  %v1900 = vunpack.c.l.b16 %v941
  %v1901 = vunpack.c.h.b16 %v941
  %v1902 = vunpack.c.l.b16 %v942
  %v1903 = vunpack.c.h.b16 %v942
  %v1904 = vunpack.c.l.b16 %v943
  %v1905 = vunpack.c.h.b16 %v943
  %v1906 = vunpack.c.l.b16 %v944
  %v1907 = vunpack.c.h.b16 %v944
  %v1908 = vunpack.c.l.b16 %v945
  %v1909 = vunpack.c.h.b16 %v945
  %v1910 = vunpack.c.l.b16 %v946
  %v1911 = vunpack.c.h.b16 %v946
  %v1912 = vunpack.c.l.b16 %v947
  %v1913 = vunpack.c.h.b16 %v947
  %v1914 = vunpack.c.l.b16 %v948
  %v1915 = vunpack.c.h.b16 %v948
  %v1916 = vunpack.c.l.b16 %v949
  %v1917 = vunpack.c.h.b16 %v949
  %v1918 = vunpack.c.l.b16 %v950
  %v1919 = vunpack.c.h.b16 %v950
  %v1920 = vunpack.c.l.b16 %v951
  %v1921 = vunpack.c.h.b16 %v951
  %v1922 = vunpack.c.l.b16 %v952
  %v1923 = vunpack.c.h.b16 %v952
  %v1924 = vunpack.c.l.b16 %v953
  %v1925 = vunpack.c.h.b16 %v953
  %v1926 = vunpack.c.l.b16 %v954
  %v1927 = vunpack.c.h.b16 %v954
  %v1928 = vunpack.c.l.b16 %v955
  %v1929 = vunpack.c.h.b16 %v955
  %v1930 = vunpack.c.l.b16 %v956
  %v1931 = vunpack.c.h.b16 %v956
  %v1932 = vunpack.c.l.b16 %v957
  %v1933 = vunpack.c.h.b16 %v957
  %v1934 = vunpack.c.l.b16 %v958
  %v1935 = vunpack.c.h.b16 %v958
  %v1936 = vunpack.c.l.b16 %v959
  %v1937 = vunpack.c.h.b16 %v959
  %v1938 = vunpack.c.l.b16 %v960
  %v1939 = vunpack.c.h.b16 %v960
  %v1940 = vunpack.c.l.b16 %v961
  %v1941 = vunpack.c.h.b16 %v961
  %v1942 = vunpack.c.l.b16 %v962
  %v1943 = vunpack.c.h.b16 %v962
  %v1944 = vunpack.c.l.b16 %v963
  %v1945 = vunpack.c.h.b16 %v963
  %v1946 = vunpack.c.l.b16 %v964
  %v1947 = vunpack.c.h.b16 %v964
  %v1948 = vunpack.c.l.b16 %v965
  %v1949 = vunpack.c.h.b16 %v965
  %v1950 = vunpack.c.l.b16 %v966
  %v1951 = vunpack.c.h.b16 %v966
  %v1952 = vunpack.c.l.b16 %v967
  %v1953 = vunpack.c.h.b16 %v967
  %v1954 = vunpack.c.l.b16 %v968
  %v1955 = vunpack.c.h.b16 %v968
  %v1956 = vunpack.c.l.b16 %v969
  %v1957 = vunpack.c.h.b16 %v969
  %v1958 = vunpack.c.l.b16 %v970
  %v1959 = vunpack.c.h.b16 %v970
  %v1960 = vunpack.c.l.b16 %v971
  %v1961 = vunpack.c.h.b16 %v971
  %v1962 = vunpack.c.l.b16 %v972
  %v1963 = vunpack.c.h.b16 %v972
  %v1964 = vunpack.c.l.b16 %v973
  %v1965 = vunpack.c.h.b16 %v973
  %v1966 = vunpack.c.l.b16 %v974
  %v1967 = vunpack.c.h.b16 %v974
  %v1968 = vunpack.c.l.b16 %v975
  %v1969 = vunpack.c.h.b16 %v975
  %v1970 = vunpack.c.l.b16 %v976
  %v1971 = vunpack.c.h.b16 %v976
  %v1972 = vunpack.c.l.b16 %v977
  %v1973 = vunpack.c.h.b16 %v977
  %v1974 = vunpack.c.l.b16 %v978
  %v1975 = vunpack.c.h.b16 %v978
  %v1976 = vunpack.c.l.b16 %v979
  %v1977 = vunpack.c.h.b16 %v979
  %v1978 = vunpack.c.l.b16 %v980
  %v1979 = vunpack.c.h.b16 %v980
  %v1980 = vunpack.c.l.b16 %v981
  %v1981 = vunpack.c.h.b16 %v981
  %v1982 = vunpack.c.l.b16 %v982
  %v1983 = vunpack.c.h.b16 %v982
  %v1984 = vunpack.c.l.b16 %v983
  %v1985 = vunpack.c.h.b16 %v983
  %v1986 = vunpack.c.l.b16 %v984
  %v1987 = vunpack.c.h.b16 %v984
  %v1988 = vunpack.c.l.b16 %v985
  %v1989 = vunpack.c.h.b16 %v985
  %v1990 = vunpack.c.l.b16 %v986
  %v1991 = vunpack.c.h.b16 %v986
  %v1992 = vunpack.c.l.b16 %v987
  %v1993 = vunpack.c.h.b16 %v987
  %v1994 = vunpack.c.l.b16 %v988
  %v1995 = vunpack.c.h.b16 %v988
  %v1996 = vunpack.c.l.b16 %v989
  %v1997 = vunpack.c.h.b16 %v989
  %v1998 = vunpack.c.l.b16 %v990
  %v1999 = vunpack.c.h.b16 %v990
  %v2000 = vunpack.c.l.b16 %v991
  %v2001 = vunpack.c.h.b16 %v991
  %v2002 = vunpack.c.l.b16 %v992
  %v2003 = vunpack.c.h.b16 %v992
  %v2004 = vunpack.c.l.b16 %v993
  %v2005 = vunpack.c.h.b16 %v993
  %v2006 = vunpack.c.l.b16 %v994
  %v2007 = vunpack.c.h.b16 %v994
  %v2008 = vunpack.c.l.b16 %v995
  %v2009 = vunpack.c.h.b16 %v995
  %v2010 = vunpack.c.l.b16 %v996
  %v2011 = vunpack.c.h.b16 %v996
  %v2012 = vunpack.c.l.b16 %v997
  %v2013 = vunpack.c.h.b16 %v997
  %v2014 = vunpack.c.l.b16 %v998
  %v2015 = vunpack.c.h.b16 %v998
  %v2016 = vunpack.c.l.b16 %v999
  %v2017 = vunpack.c.h.b16 %v999
  %v2018 = vunpack.c.l.b16 %v1000
  %v2019 = vunpack.c.h.b16 %v1000
  %v2020 = vunpack.c.l.b16 %v1001
  %v2021 = vunpack.c.h.b16 %v1001
  %v2022 = vunpack.c.l.b16 %v1002
  %v2023 = vunpack.c.h.b16 %v1002
  %v2024 = vunpack.c.l.b16 %v1003
  %v2025 = vunpack.c.h.b16 %v1003
  %v2026 = vunpack.c.l.b16 %v1004
  %v2027 = vunpack.c.h.b16 %v1004
  %v2028 = vunpack.c.l.b16 %v1005
  %v2029 = vunpack.c.h.b16 %v1005
  %v2030 = vunpack.c.l.b16 %v1006
  %v2031 = vunpack.c.h.b16 %v1006
  %v2032 = vunpack.c.l.b16 %v1007
  %v2033 = vunpack.c.h.b16 %v1007
  %v2034 = vunpack.c.l.b16 %v1008
  %v2035 = vunpack.c.h.b16 %v1008
  %v2036 = vunpack.c.l.b16 %v1009
  %v2037 = vunpack.c.h.b16 %v1009
  %v2038 = vunpack.c.l.b16 %v1010
  %v2039 = vunpack.c.h.b16 %v1010
  %v2040 = vunpack.c.l.b16 %v1011
  %v2041 = vunpack.c.h.b16 %v1011
  %v2042 = vunpack.c.l.b16 %v1012
  %v2043 = vunpack.c.h.b16 %v1012
  %v2044 = vunpack.c.l.b16 %v1013
  %v2045 = vunpack.c.h.b16 %v1013
  %v2046 = vunpack.c.l.b16 %v1014
  %v2047 = vunpack.c.h.b16 %v1014
  %v2048 = vunpack.c.l.b16 %v1015
  %v2049 = vunpack.c.h.b16 %v1015
  %v2050 = vunpack.c.l.b16 %v1016
  %v2051 = vunpack.c.h.b16 %v1016
  %v2052 = vunpack.c.l.b16 %v1017
  %v2053 = vunpack.c.h.b16 %v1017
  %v2054 = vunpack.c.l.b16 %v1018
  %v2055 = vunpack.c.h.b16 %v1018
  %v2056 = vunpack.c.l.b16 %v1019
  %v2057 = vunpack.c.h.b16 %v1019
  %v2058 = vunpack.c.l.b16 %v1020
  %v2059 = vunpack.c.h.b16 %v1020
  %v2060 = vunpack.c.l.b16 %v1021
  %v2061 = vunpack.c.h.b16 %v1021
  %v2062 = vunpack.c.l.b16 %v1022
  %v2063 = vunpack.c.h.b16 %v1022
  %v2064 = vunpack.c.l.b16 %v1023
  %v2065 = vunpack.c.h.b16 %v1023
  %v2066 = vunpack.c.l.b16 %v1024
  %v2067 = vunpack.c.h.b16 %v1024
  %v2068 = vunpack.c.l.b16 %v1025
  %v2069 = vunpack.c.h.b16 %v1025
  %v2070 = vunpack.c.l.b16 %v1026
  %v2071 = vunpack.c.h.b16 %v1026
  %v2072 = vunpack.c.l.b16 %v1027
  %v2073 = vunpack.c.h.b16 %v1027
  %v2074 = vunpack.c.l.b16 %v1028
  %v2075 = vunpack.c.h.b16 %v1028
  %v2076 = vunpack.c.l.b16 %v1029
  %v2077 = vunpack.c.h.b16 %v1029
  %v2078 = vunpack.c.l.b16 %v1030
  %v2079 = vunpack.c.h.b16 %v1030
  %v2080 = vunpack.c.l.b16 %v1031
  %v2081 = vunpack.c.h.b16 %v1031
  %v2082 = vunpack.c.l.b16 %v1032
  %v2083 = vunpack.c.h.b16 %v1032
  %v2084 = vunpack.c.l.b16 %v1033
  %v2085 = vunpack.c.h.b16 %v1033
  %v2086 = vunpack.c.l.b16 %v1034
  %v2087 = vunpack.c.h.b16 %v1034
  %v2088 = vunpack.c.l.b16 %v1035
  %v2089 = vunpack.c.h.b16 %v1035
  %v2090 = vunpack.c.l.b16 %v1036
  %v2091 = vunpack.c.h.b16 %v1036
  %v2092 = vunpack.c.l.b16 %v1037
  %v2093 = vunpack.c.h.b16 %v1037
  %v2094 = vunpack.c.l.b16 %v1038
  %v2095 = vunpack.c.h.b16 %v1038
  %v2096 = vunpack.c.l.b16 %v1039
  %v2097 = vunpack.c.h.b16 %v1039
  %v2098 = vunpack.c.l.b16 %v1040
  %v2099 = vunpack.c.h.b16 %v1040
  %v2100 = vunpack.c.l.b16 %v1041
  %v2101 = vunpack.c.h.b16 %v1041
  %v2102 = vunpack.c.l.b16 %v1042
  %v2103 = vunpack.c.h.b16 %v1042
  %v2104 = vunpack.c.l.b16 %v1043
  %v2105 = vunpack.c.h.b16 %v1043
  %v2106 = vunpack.c.l.b16 %v1044
  %v2107 = vunpack.c.h.b16 %v1044
  %v2108 = vunpack.c.l.b16 %v1045
  %v2109 = vunpack.c.h.b16 %v1045
  %v2110 = vunpack.c.l.b16 %v1046
  %v2111 = vunpack.c.h.b16 %v1046
  %v2112 = vunpack.c.l.b16 %v1047
  %v2113 = vunpack.c.h.b16 %v1047
  %v2114 = vunpack.c.l.b16 %v1048
  %v2115 = vunpack.c.h.b16 %v1048
  %v2116 = vunpack.c.l.b16 %v1049
  %v2117 = vunpack.c.h.b16 %v1049
  %v2118 = vunpack.c.l.b16 %v1050
  %v2119 = vunpack.c.h.b16 %v1050
  %v2120 = vunpack.c.l.b16 %v1051
  %v2121 = vunpack.c.h.b16 %v1051
  %v2122 = vunpack.c.l.b16 %v1052
  %v2123 = vunpack.c.h.b16 %v1052
  %v2124 = vunpack.c.l.b16 %v1053
  %v2125 = vunpack.c.h.b16 %v1053
  %v2126 = vunpack.c.l.b16 %v1054
  %v2127 = vunpack.c.h.b16 %v1054
  %v2128 = vunpack.c.l.b16 %v1055
  %v2129 = vunpack.c.h.b16 %v1055
  %v2130 = vunpack.c.l.b16 %v1056
  %v2131 = vunpack.c.h.b16 %v1056
  %v2132 = vunpack.c.l.b16 %v1057
  %v2133 = vunpack.c.h.b16 %v1057
  %v2134 = vunpack.c.l.b16 %v1058
  %v2135 = vunpack.c.h.b16 %v1058
  %v2136 = vunpack.c.l.b16 %v1059
  %v2137 = vunpack.c.h.b16 %v1059
  %v2138 = vunpack.c.l.b16 %v1060
  %v2139 = vunpack.c.h.b16 %v1060
  %v2140 = vunpack.c.l.b16 %v1061
  %v2141 = vunpack.c.h.b16 %v1061
  %v2142 = vunpack.c.l.b16 %v1062
  %v2143 = vunpack.c.h.b16 %v1062
  %v2144 = vunpack.c.l.b16 %v1063
  %v2145 = vunpack.c.h.b16 %v1063
  %v2146 = vunpack.c.l.b16 %v1064
  %v2147 = vunpack.c.h.b16 %v1064
  %v2148 = vunpack.c.l.b16 %v1065
  %v2149 = vunpack.c.h.b16 %v1065
  %v2150 = vunpack.c.l.b16 %v1066
  %v2151 = vunpack.c.h.b16 %v1066
  %v2152 = vunpack.c.l.b16 %v1067
  %v2153 = vunpack.c.h.b16 %v1067
  %v2154 = vunpack.c.l.b16 %v1068
  %v2155 = vunpack.c.h.b16 %v1068
  %v2156 = vunpack.c.l.b16 %v1069
  %v2157 = vunpack.c.h.b16 %v1069
  %v2158 = vunpack.c.l.b16 %v1070
  %v2159 = vunpack.c.h.b16 %v1070
  %v2160 = vunpack.c.l.b16 %v1071
  %v2161 = vunpack.c.h.b16 %v1071
  %v2162 = vunpack.c.l.b16 %v1072
  %v2163 = vunpack.c.h.b16 %v1072
  %v2164 = vunpack.c.l.b16 %v1073
  %v2165 = vunpack.c.h.b16 %v1073
  %v2166 = vunpack.c.l.b16 %v1074
  %v2167 = vunpack.c.h.b16 %v1074
  %v2168 = vunpack.c.l.b16 %v1075
  %v2169 = vunpack.c.h.b16 %v1075
  %v2170 = vunpack.c.l.b16 %v1076
  %v2171 = vunpack.c.h.b16 %v1076
  %v2172 = vunpack.c.l.b16 %v1077
  %v2173 = vunpack.c.h.b16 %v1077
  %v2174 = vunpack.c.l.b16 %v1078
  %v2175 = vunpack.c.h.b16 %v1078
  %v2176 = vunpack.c.l.b16 %v1079
  %v2177 = vunpack.c.h.b16 %v1079
  %v2178 = vunpack.c.l.b16 %v1080
  %v2179 = vunpack.c.h.b16 %v1080
  %v2180 = vunpack.c.l.b16 %v1081
  %v2181 = vunpack.c.h.b16 %v1081
  %v2182 = vunpack.c.l.b16 %v1082
  %v2183 = vunpack.c.h.b16 %v1082
  %v2184 = vunpack.c.l.b16 %v1083
  %v2185 = vunpack.c.h.b16 %v1083
  %v2186 = vunpack.c.l.b16 %v1084
  %v2187 = vunpack.c.h.b16 %v1084
  %v2188 = vunpack.c.l.b16 %v1085
  %v2189 = vunpack.c.h.b16 %v1085
  %v2190 = vunpack.c.l.b16 %v1086
  %v2191 = vunpack.c.h.b16 %v1086
  %v2192 = vunpack.c.l.b16 %v1087
  %v2193 = vunpack.c.h.b16 %v1087
  %v2194 = vunpack.c.l.b16 %v1088
  %v2195 = vunpack.c.h.b16 %v1088
  %v2196 = vunpack.c.l.b16 %v1089
  %v2197 = vunpack.c.h.b16 %v1089
  %v2198 = vunpack.c.l.b16 %v1090
  %v2199 = vunpack.c.h.b16 %v1090
  %v2200 = vunpack.c.l.b16 %v1091
  %v2201 = vunpack.c.h.b16 %v1091
  %v2202 = vunpack.c.l.b16 %v1092
  %v2203 = vunpack.c.h.b16 %v1092
  %v2204 = vunpack.c.l.b16 %v1093
  %v2205 = vunpack.c.h.b16 %v1093
  %v2206 = vunpack.c.l.b16 %v1094
  %v2207 = vunpack.c.h.b16 %v1094
  %v2208 = vunpack.c.l.b16 %v1095
  %v2209 = vunpack.c.h.b16 %v1095
  %v2210 = vunpack.c.l.b16 %v1096
  %v2211 = vunpack.c.h.b16 %v1096
  %v2212 = vunpack.c.l.b16 %v1097
  %v2213 = vunpack.c.h.b16 %v1097
  %v2214 = vunpack.c.l.b16 %v1098
  %v2215 = vunpack.c.h.b16 %v1098
  %v2216 = vunpack.c.l.b16 %v1099
  %v2217 = vunpack.c.h.b16 %v1099
  %v2218 = vunpack.c.l.b16 %v1100
  %v2219 = vunpack.c.h.b16 %v1100
  %v2220 = vunpack.c.l.b16 %v1101
  %v2221 = vunpack.c.h.b16 %v1101
  %v2222 = vunpack.c.l.b16 %v1102
  %v2223 = vunpack.c.h.b16 %v1102
  %v2224 = vunpack.c.l.b16 %v1103
  %v2225 = vunpack.c.h.b16 %v1103
  %v2226 = vunpack.c.l.b16 %v1104
  %v2227 = vunpack.c.h.b16 %v1104
  %v2228 = vunpack.c.l.b16 %v1105
  %v2229 = vunpack.c.h.b16 %v1105
  %v2230 = vunpack.c.l.b16 %v1106
  %v2231 = vunpack.c.h.b16 %v1106
  %v2232 = vunpack.c.l.b16 %v1107
  %v2233 = vunpack.c.h.b16 %v1107
  %v2234 = vunpack.c.l.b16 %v1108
  %v2235 = vunpack.c.h.b16 %v1108
  %v2236 = vunpack.c.l.b16 %v1109
  %v2237 = vunpack.c.h.b16 %v1109
  %v2238 = vunpack.c.l.b16 %v1110
  %v2239 = vunpack.c.h.b16 %v1110
  %v2240 = vunpack.c.l.b16 %v1111
  %v2241 = vunpack.c.h.b16 %v1111
  %v2242 = vunpack.c.l.b16 %v1112
  %v2243 = vunpack.c.h.b16 %v1112
  %v2244 = vunpack.c.l.b16 %v1113
  %v2245 = vunpack.c.h.b16 %v1113
  %v2246 = vunpack.c.l.b16 %v1114
  %v2247 = vunpack.c.h.b16 %v1114
  %v2248 = vunpack.c.l.b16 %v1115
  %v2249 = vunpack.c.h.b16 %v1115
  %v2250 = vunpack.c.l.b16 %v1116
  %v2251 = vunpack.c.h.b16 %v1116
  %v2252 = vunpack.c.l.b16 %v1117
  %v2253 = vunpack.c.h.b16 %v1117
  %v2254 = vunpack.c.l.b16 %v1118
  %v2255 = vunpack.c.h.b16 %v1118
  %v2256 = vunpack.c.l.b16 %v1119
  %v2257 = vunpack.c.h.b16 %v1119
  %v2258 = vunpack.c.l.b16 %v1120
  %v2259 = vunpack.c.h.b16 %v1120
  %v2260 = vunpack.c.l.b16 %v1121
  %v2261 = vunpack.c.h.b16 %v1121
  %v2262 = vunpack.c.l.b16 %v1122
  %v2263 = vunpack.c.h.b16 %v1122
  %v2264 = vunpack.c.l.b16 %v1123
  %v2265 = vunpack.c.h.b16 %v1123
  %v2266 = vunpack.c.l.b16 %v1124
  %v2267 = vunpack.c.h.b16 %v1124
  %v2268 = vunpack.c.l.b16 %v1125
  %v2269 = vunpack.c.h.b16 %v1125
  %v2270 = vunpack.c.l.b16 %v1126
  %v2271 = vunpack.c.h.b16 %v1126
  %v2272 = vunpack.c.l.b16 %v1127
  %v2273 = vunpack.c.h.b16 %v1127
  %v2274 = vunpack.c.l.b16 %v1128
  %v2275 = vunpack.c.h.b16 %v1128
  %v2276 = vunpack.c.l.b16 %v1129
  %v2277 = vunpack.c.h.b16 %v1129
  %v2278 = vunpack.c.l.b16 %v1130
  %v2279 = vunpack.c.h.b16 %v1130
  %v2280 = vunpack.c.l.b16 %v1131
  %v2281 = vunpack.c.h.b16 %v1131
  %v2282 = vunpack.c.l.b16 %v1132
  %v2283 = vunpack.c.h.b16 %v1132
  %v2284 = vunpack.c.l.b16 %v1133
  %v2285 = vunpack.c.h.b16 %v1133
  %v2286 = vunpack.c.l.b16 %v1134
  %v2287 = vunpack.c.h.b16 %v1134
  %v2288 = vunpack.c.l.b16 %v1135
  %v2289 = vunpack.c.h.b16 %v1135
  %v2290 = vunpack.c.l.b16 %v1136
  %v2291 = vunpack.c.h.b16 %v1136
  %v2292 = vunpack.c.l.b16 %v1137
  %v2293 = vunpack.c.h.b16 %v1137
  %v2294 = vunpack.c.l.b16 %v1138
  %v2295 = vunpack.c.h.b16 %v1138
  %v2296 = vunpack.c.l.b16 %v1139
  %v2297 = vunpack.c.h.b16 %v1139
  %v2298 = vunpack.c.l.b16 %v1140
  %v2299 = vunpack.c.h.b16 %v1140
  %v2300 = vunpack.c.l.b16 %v1141
  %v2301 = vunpack.c.h.b16 %v1141
  %v2302 = vunpack.c.l.b16 %v1142
  %v2303 = vunpack.c.h.b16 %v1142
  %v2304 = vunpack.c.l.b16 %v1143
  %v2305 = vunpack.c.h.b16 %v1143
  %v2306 = vunpack.c.l.b16 %v1144
  %v2307 = vunpack.c.h.b16 %v1144
  %v2308 = vunpack.c.l.b16 %v1145
  %v2309 = vunpack.c.h.b16 %v1145
  %v2310 = vunpack.c.l.b16 %v1146
  %v2311 = vunpack.c.h.b16 %v1146
  %v2312 = vunpack.c.l.b16 %v1147
  %v2313 = vunpack.c.h.b16 %v1147
  %v2314 = vunpack.c.l.b16 %v1148
  %v2315 = vunpack.c.h.b16 %v1148
  %v2316 = vunpack.c.l.b16 %v1149
  %v2317 = vunpack.c.h.b16 %v1149
  %v2318 = vunpack.c.l.b16 %v1150
  %v2319 = vunpack.c.h.b16 %v1150
  %v2320 = vunpack.c.l.b16 %v1151
  %v2321 = vunpack.c.h.b16 %v1151
  %v2322 = vunpack.c.l.b16 %v1152
  %v2323 = vunpack.c.h.b16 %v1152
  %v2324 = vunpack.c.l.b16 %v1153
  %v2325 = vunpack.c.h.b16 %v1153
  %v2326 = vunpack.c.l.b16 %v1154
  %v2327 = vunpack.c.h.b16 %v1154
  %v2328 = vunpack.c.l.b16 %v1155
  %v2329 = vunpack.c.h.b16 %v1155
  %v2330 = vunpack.c.l.b16 %v1156
  %v2331 = vunpack.c.h.b16 %v1156
  %v2332 = vunpack.c.l.b16 %v1157
  %v2333 = vunpack.c.h.b16 %v1157
  %v2334 = vunpack.c.l.b16 %v1158
  %v2335 = vunpack.c.h.b16 %v1158
  %v2336 = vunpack.c.l.b16 %v1159
  %v2337 = vunpack.c.h.b16 %v1159
  %v2338 = vunpack.c.l.b16 %v1160
  %v2339 = vunpack.c.h.b16 %v1160
  %v2340 = vunpack.c.l.b16 %v1161
  %v2341 = vunpack.c.h.b16 %v1161
  %v2342 = vunpack.c.l.b16 %v1162
  %v2343 = vunpack.c.h.b16 %v1162
  %v2344 = vunpack.c.l.b16 %v1163
  %v2345 = vunpack.c.h.b16 %v1163
  %v2346 = vunpack.c.l.b16 %v1164
  %v2347 = vunpack.c.h.b16 %v1164
  %v2348 = vunpack.c.l.b16 %v1165
  %v2349 = vunpack.c.h.b16 %v1165
  %v2350 = vunpack.c.l.b16 %v1166
  %v2351 = vunpack.c.h.b16 %v1166
  %v2352 = vunpack.c.l.b16 %v1167
  %v2353 = vunpack.c.h.b16 %v1167
  %v2354 = vunpack.c.l.b16 %v1168
  %v2355 = vunpack.c.h.b16 %v1168
  %v2356 = vunpack.c.l.b16 %v1169
  %v2357 = vunpack.c.h.b16 %v1169
  %v2358 = vunpack.c.l.b16 %v1170
  %v2359 = vunpack.c.h.b16 %v1170
  %v2360 = vunpack.c.l.b16 %v1171
  %v2361 = vunpack.c.h.b16 %v1171
  %v2362 = vunpack.c.l.b16 %v1172
  %v2363 = vunpack.c.h.b16 %v1172
  %v2364 = vunpack.c.l.b16 %v1173
  %v2365 = vunpack.c.h.b16 %v1173
  %v2366 = vunpack.c.l.b16 %v1174
  %v2367 = vunpack.c.h.b16 %v1174
  %v2368 = vunpack.c.l.b16 %v1175
  %v2369 = vunpack.c.h.b16 %v1175
  %v2370 = vunpack.c.l.b16 %v1176
  %v2371 = vunpack.c.h.b16 %v1176
  %v2372 = vunpack.c.l.b16 %v1177
  %v2373 = vunpack.c.h.b16 %v1177
  %v2374 = vunpack.c.l.b16 %v1178
  %v2375 = vunpack.c.h.b16 %v1178
  %v2376 = vunpack.c.l.b16 %v1179
  %v2377 = vunpack.c.h.b16 %v1179
  %v2378 = vunpack.c.l.b16 %v1180
  %v2379 = vunpack.c.h.b16 %v1180
  %v2380 = vunpack.c.l.b16 %v1181
  %v2381 = vunpack.c.h.b16 %v1181
  %v2382 = vunpack.c.l.b16 %v1182
  %v2383 = vunpack.c.h.b16 %v1182
  %v2384 = vunpack.c.l.b16 %v1183
  %v2385 = vunpack.c.h.b16 %v1183
  %v2386 = vunpack.c.l.b16 %v1184
  %v2387 = vunpack.c.h.b16 %v1184
  %v2388 = vunpack.c.l.b16 %v1185
  %v2389 = vunpack.c.h.b16 %v1185
  %v2390 = vunpack.c.l.b16 %v1186
  %v2391 = vunpack.c.h.b16 %v1186
  %v2392 = vunpack.c.l.b16 %v1187
  %v2393 = vunpack.c.h.b16 %v1187
  %v2394 = vunpack.c.l.b16 %v1188
  %v2395 = vunpack.c.h.b16 %v1188
  %v2396 = vunpack.c.l.b16 %v1189
  %v2397 = vunpack.c.h.b16 %v1189
  %v2398 = vunpack.c.l.b16 %v1190
  %v2399 = vunpack.c.h.b16 %v1190
  %v2400 = vunpack.c.l.b16 %v1191
  %v2401 = vunpack.c.h.b16 %v1191
  %v2402 = vunpack.c.l.b16 %v1192
  %v2403 = vunpack.c.h.b16 %v1192
  %v2404 = vunpack.c.l.b16 %v1193
  %v2405 = vunpack.c.h.b16 %v1193
  %v2406 = vunpack.c.l.b16 %v1194
  %v2407 = vunpack.c.h.b16 %v1194
  %v2408 = vunpack.c.l.b16 %v1195
  %v2409 = vunpack.c.h.b16 %v1195
  %v2410 = vunpack.c.l.b16 %v1196
  %v2411 = vunpack.c.h.b16 %v1196
  %v2412 = vunpack.c.l.b16 %v1197
  %v2413 = vunpack.c.h.b16 %v1197
  %v2414 = vpack.c.b16 %v1658, %v1646
  %v2415 = vpack.c.b16 %v1659, %v1647
  %v2416 = vpack.c.b16 %v1660, %v1648
  %v2417 = vpack.c.b16 %v1661, %v1649
  %v2418 = vpack.c.b16 %v1662, %v1650
  %v2419 = vpack.c.b16 %v1663, %v1651
  %v2420 = vpack.c.b16 %v1664, %v1652
  %v2421 = vpack.c.b16 %v1665, %v1653
  %v2422 = vpack.c.b16 %v1666, %v1654
  %v2423 = vpack.c.b16 %v1667, %v1655
  %v2424 = vpack.c.b16 %v1668, %v1656
  %v2425 = vpack.c.b16 %v1669, %v1657
  %v2426 = vpack.c.b16 %v1682, %v1670
  %v2427 = vpack.c.b16 %v1683, %v1671
  %v2428 = vpack.c.b16 %v1684, %v1672
  %v2429 = vpack.c.b16 %v1685, %v1673
  %v2430 = vpack.c.b16 %v1686, %v1674
  %v2431 = vpack.c.b16 %v1687, %v1675
  %v2432 = vpack.c.b16 %v1688, %v1676
  %v2433 = vpack.c.b16 %v1689, %v1677
  %v2434 = vpack.c.b16 %v1690, %v1678
  %v2435 = vpack.c.b16 %v1691, %v1679
  %v2436 = vpack.c.b16 %v1692, %v1680
  %v2437 = vpack.c.b16 %v1693, %v1681
  %v2438 = vpack.c.b16 %v1706, %v1694
  %v2439 = vpack.c.b16 %v1707, %v1695
  %v2440 = vpack.c.b16 %v1708, %v1696
  %v2441 = vpack.c.b16 %v1709, %v1697
  %v2442 = vpack.c.b16 %v1710, %v1698
  %v2443 = vpack.c.b16 %v1711, %v1699
  %v2444 = vpack.c.b16 %v1712, %v1700
  %v2445 = vpack.c.b16 %v1713, %v1701
  %v2446 = vpack.c.b16 %v1714, %v1702
  %v2447 = vpack.c.b16 %v1715, %v1703
  %v2448 = vpack.c.b16 %v1716, %v1704
  %v2449 = vpack.c.b16 %v1717, %v1705
  %v2450 = vpack.c.b16 %v1730, %v1718
  %v2451 = vpack.c.b16 %v1731, %v1719
  %v2452 = vpack.c.b16 %v1732, %v1720
  %v2453 = vpack.c.b16 %v1733, %v1721
  %v2454 = vpack.c.b16 %v1734, %v1722
  %v2455 = vpack.c.b16 %v1735, %v1723
  %v2456 = vpack.c.b16 %v1736, %v1724
  %v2457 = vpack.c.b16 %v1737, %v1725
  %v2458 = vpack.c.b16 %v1738, %v1726
  %v2459 = vpack.c.b16 %v1739, %v1727
  %v2460 = vpack.c.b16 %v1740, %v1728
  %v2461 = vpack.c.b16 %v1741, %v1729
  %v2462 = vpack.c.b16 %v1754, %v1742
  %v2463 = vpack.c.b16 %v1755, %v1743
  %v2464 = vpack.c.b16 %v1756, %v1744
  %v2465 = vpack.c.b16 %v1757, %v1745
  %v2466 = vpack.c.b16 %v1758, %v1746
  %v2467 = vpack.c.b16 %v1759, %v1747
  %v2468 = vpack.c.b16 %v1760, %v1748
  %v2469 = vpack.c.b16 %v1761, %v1749
  %v2470 = vpack.c.b16 %v1762, %v1750
  %v2471 = vpack.c.b16 %v1763, %v1751
  %v2472 = vpack.c.b16 %v1764, %v1752
  %v2473 = vpack.c.b16 %v1765, %v1753
  %v2474 = vpack.c.b16 %v1778, %v1766
  %v2475 = vpack.c.b16 %v1779, %v1767
  %v2476 = vpack.c.b16 %v1780, %v1768
  %v2477 = vpack.c.b16 %v1781, %v1769
  %v2478 = vpack.c.b16 %v1782, %v1770
  %v2479 = vpack.c.b16 %v1783, %v1771
  %v2480 = vpack.c.b16 %v1784, %v1772
  %v2481 = vpack.c.b16 %v1785, %v1773
  %v2482 = vpack.c.b16 %v1786, %v1774
  %v2483 = vpack.c.b16 %v1787, %v1775
  %v2484 = vpack.c.b16 %v1788, %v1776
  %v2485 = vpack.c.b16 %v1789, %v1777
  %v2486 = vpack.c.b16 %v1802, %v1790
  %v2487 = vpack.c.b16 %v1803, %v1791
  %v2488 = vpack.c.b16 %v1804, %v1792
  %v2489 = vpack.c.b16 %v1805, %v1793
  %v2490 = vpack.c.b16 %v1806, %v1794
  %v2491 = vpack.c.b16 %v1807, %v1795
  %v2492 = vpack.c.b16 %v1808, %v1796
  %v2493 = vpack.c.b16 %v1809, %v1797
  %v2494 = vpack.c.b16 %v1810, %v1798
  %v2495 = vpack.c.b16 %v1811, %v1799
  %v2496 = vpack.c.b16 %v1812, %v1800
  %v2497 = vpack.c.b16 %v1813, %v1801
  %v2498 = vpack.c.b16 %v1826, %v1814
  %v2499 = vpack.c.b16 %v1827, %v1815
  %v2500 = vpack.c.b16 %v1828, %v1816
  %v2501 = vpack.c.b16 %v1829, %v1817
  %v2502 = vpack.c.b16 %v1830, %v1818
  %v2503 = vpack.c.b16 %v1831, %v1819
  %v2504 = vpack.c.b16 %v1832, %v1820
  %v2505 = vpack.c.b16 %v1833, %v1821
  %v2506 = vpack.c.b16 %v1834, %v1822
  %v2507 = vpack.c.b16 %v1835, %v1823
  %v2508 = vpack.c.b16 %v1836, %v1824
  %v2509 = vpack.c.b16 %v1837, %v1825
  %v2510 = vpack.c.b16 %v1850, %v1838
  %v2511 = vpack.c.b16 %v1851, %v1839
  %v2512 = vpack.c.b16 %v1852, %v1840
  %v2513 = vpack.c.b16 %v1853, %v1841
  %v2514 = vpack.c.b16 %v1854, %v1842
  %v2515 = vpack.c.b16 %v1855, %v1843
  %v2516 = vpack.c.b16 %v1856, %v1844
  %v2517 = vpack.c.b16 %v1857, %v1845
  %v2518 = vpack.c.b16 %v1858, %v1846
  %v2519 = vpack.c.b16 %v1859, %v1847
  %v2520 = vpack.c.b16 %v1860, %v1848
  %v2521 = vpack.c.b16 %v1861, %v1849
  %v2522 = vpack.c.b16 %v1874, %v1862
  %v2523 = vpack.c.b16 %v1875, %v1863
  %v2524 = vpack.c.b16 %v1876, %v1864
  %v2525 = vpack.c.b16 %v1877, %v1865
  %v2526 = vpack.c.b16 %v1878, %v1866
  %v2527 = vpack.c.b16 %v1879, %v1867
  %v2528 = vpack.c.b16 %v1880, %v1868
  %v2529 = vpack.c.b16 %v1881, %v1869
  %v2530 = vpack.c.b16 %v1882, %v1870
  %v2531 = vpack.c.b16 %v1883, %v1871
  %v2532 = vpack.c.b16 %v1884, %v1872
  %v2533 = vpack.c.b16 %v1885, %v1873
  %v2534 = vpack.c.b16 %v1898, %v1886
  %v2535 = vpack.c.b16 %v1899, %v1887
  %v2536 = vpack.c.b16 %v1900, %v1888
  %v2537 = vpack.c.b16 %v1901, %v1889
  %v2538 = vpack.c.b16 %v1902, %v1890
  %v2539 = vpack.c.b16 %v1903, %v1891
  %v2540 = vpack.c.b16 %v1904, %v1892
  %v2541 = vpack.c.b16 %v1905, %v1893
  %v2542 = vpack.c.b16 %v1906, %v1894
  %v2543 = vpack.c.b16 %v1907, %v1895
  %v2544 = vpack.c.b16 %v1908, %v1896
  %v2545 = vpack.c.b16 %v1909, %v1897
  %v2546 = vpack.c.b16 %v1922, %v1910
  %v2547 = vpack.c.b16 %v1923, %v1911
  %v2548 = vpack.c.b16 %v1924, %v1912
  %v2549 = vpack.c.b16 %v1925, %v1913
  %v2550 = vpack.c.b16 %v1926, %v1914
  %v2551 = vpack.c.b16 %v1927, %v1915
  %v2552 = vpack.c.b16 %v1928, %v1916
  %v2553 = vpack.c.b16 %v1929, %v1917
  %v2554 = vpack.c.b16 %v1930, %v1918
  %v2555 = vpack.c.b16 %v1931, %v1919
  %v2556 = vpack.c.b16 %v1932, %v1920
  %v2557 = vpack.c.b16 %v1933, %v1921
  %v2558 = vpack.c.b16 %v1946, %v1934
  %v2559 = vpack.c.b16 %v1947, %v1935
  %v2560 = vpack.c.b16 %v1948, %v1936
  %v2561 = vpack.c.b16 %v1949, %v1937
  %v2562 = vpack.c.b16 %v1950, %v1938
  %v2563 = vpack.c.b16 %v1951, %v1939
  %v2564 = vpack.c.b16 %v1952, %v1940
  %v2565 = vpack.c.b16 %v1953, %v1941
  %v2566 = vpack.c.b16 %v1954, %v1942
  %v2567 = vpack.c.b16 %v1955, %v1943
  %v2568 = vpack.c.b16 %v1956, %v1944
  %v2569 = vpack.c.b16 %v1957, %v1945
  %v2570 = vpack.c.b16 %v1970, %v1958
  %v2571 = vpack.c.b16 %v1971, %v1959
  %v2572 = vpack.c.b16 %v1972, %v1960
  %v2573 = vpack.c.b16 %v1973, %v1961
  %v2574 = vpack.c.b16 %v1974, %v1962
  %v2575 = vpack.c.b16 %v1975, %v1963
  %v2576 = vpack.c.b16 %v1976, %v1964
  %v2577 = vpack.c.b16 %v1977, %v1965
  %v2578 = vpack.c.b16 %v1978, %v1966
  %v2579 = vpack.c.b16 %v1979, %v1967
  %v2580 = vpack.c.b16 %v1980, %v1968
  %v2581 = vpack.c.b16 %v1981, %v1969
  %v2582 = vpack.c.b16 %v1994, %v1982
  %v2583 = vpack.c.b16 %v1995, %v1983
  %v2584 = vpack.c.b16 %v1996, %v1984
  %v2585 = vpack.c.b16 %v1997, %v1985
  %v2586 = vpack.c.b16 %v1998, %v1986
  %v2587 = vpack.c.b16 %v1999, %v1987
  %v2588 = vpack.c.b16 %v2000, %v1988
  %v2589 = vpack.c.b16 %v2001, %v1989
  %v2590 = vpack.c.b16 %v2002, %v1990
  %v2591 = vpack.c.b16 %v2003, %v1991
  %v2592 = vpack.c.b16 %v2004, %v1992
  %v2593 = vpack.c.b16 %v2005, %v1993
  %v2594 = vpack.c.b16 %v2018, %v2006
  %v2595 = vpack.c.b16 %v2019, %v2007
  %v2596 = vpack.c.b16 %v2020, %v2008
  %v2597 = vpack.c.b16 %v2021, %v2009
  %v2598 = vpack.c.b16 %v2022, %v2010
  %v2599 = vpack.c.b16 %v2023, %v2011
  %v2600 = vpack.c.b16 %v2024, %v2012
  %v2601 = vpack.c.b16 %v2025, %v2013
  %v2602 = vpack.c.b16 %v2026, %v2014
  %v2603 = vpack.c.b16 %v2027, %v2015
  %v2604 = vpack.c.b16 %v2028, %v2016
  %v2605 = vpack.c.b16 %v2029, %v2017
  %v2606 = vpack.c.b16 %v2042, %v2030
  %v2607 = vpack.c.b16 %v2043, %v2031
  %v2608 = vpack.c.b16 %v2044, %v2032
  %v2609 = vpack.c.b16 %v2045, %v2033
  %v2610 = vpack.c.b16 %v2046, %v2034
  %v2611 = vpack.c.b16 %v2047, %v2035
  %v2612 = vpack.c.b16 %v2048, %v2036
  %v2613 = vpack.c.b16 %v2049, %v2037
  %v2614 = vpack.c.b16 %v2050, %v2038
  %v2615 = vpack.c.b16 %v2051, %v2039
  %v2616 = vpack.c.b16 %v2052, %v2040
  %v2617 = vpack.c.b16 %v2053, %v2041
  %v2618 = vpack.c.b16 %v2066, %v2054
  %v2619 = vpack.c.b16 %v2067, %v2055
  %v2620 = vpack.c.b16 %v2068, %v2056
  %v2621 = vpack.c.b16 %v2069, %v2057
  %v2622 = vpack.c.b16 %v2070, %v2058
  %v2623 = vpack.c.b16 %v2071, %v2059
  %v2624 = vpack.c.b16 %v2072, %v2060
  %v2625 = vpack.c.b16 %v2073, %v2061
  %v2626 = vpack.c.b16 %v2074, %v2062
  %v2627 = vpack.c.b16 %v2075, %v2063
  %v2628 = vpack.c.b16 %v2076, %v2064
  %v2629 = vpack.c.b16 %v2077, %v2065
  %v2630 = vpack.c.b16 %v2090, %v2078
  %v2631 = vpack.c.b16 %v2091, %v2079
  %v2632 = vpack.c.b16 %v2092, %v2080
  %v2633 = vpack.c.b16 %v2093, %v2081
  %v2634 = vpack.c.b16 %v2094, %v2082
  %v2635 = vpack.c.b16 %v2095, %v2083
  %v2636 = vpack.c.b16 %v2096, %v2084
  %v2637 = vpack.c.b16 %v2097, %v2085
  %v2638 = vpack.c.b16 %v2098, %v2086
  %v2639 = vpack.c.b16 %v2099, %v2087
  %v2640 = vpack.c.b16 %v2100, %v2088
  %v2641 = vpack.c.b16 %v2101, %v2089
  %v2642 = vpack.c.b16 %v2114, %v2102
  %v2643 = vpack.c.b16 %v2115, %v2103
  %v2644 = vpack.c.b16 %v2116, %v2104
  %v2645 = vpack.c.b16 %v2117, %v2105
  %v2646 = vpack.c.b16 %v2118, %v2106
  %v2647 = vpack.c.b16 %v2119, %v2107
  %v2648 = vpack.c.b16 %v2120, %v2108
  %v2649 = vpack.c.b16 %v2121, %v2109
  %v2650 = vpack.c.b16 %v2122, %v2110
  %v2651 = vpack.c.b16 %v2123, %v2111
  %v2652 = vpack.c.b16 %v2124, %v2112
  %v2653 = vpack.c.b16 %v2125, %v2113
  %v2654 = vpack.c.b16 %v2138, %v2126
  %v2655 = vpack.c.b16 %v2139, %v2127
  %v2656 = vpack.c.b16 %v2140, %v2128
  %v2657 = vpack.c.b16 %v2141, %v2129
  %v2658 = vpack.c.b16 %v2142, %v2130
  %v2659 = vpack.c.b16 %v2143, %v2131
  %v2660 = vpack.c.b16 %v2144, %v2132
  %v2661 = vpack.c.b16 %v2145, %v2133
  %v2662 = vpack.c.b16 %v2146, %v2134
  %v2663 = vpack.c.b16 %v2147, %v2135
  %v2664 = vpack.c.b16 %v2148, %v2136
  %v2665 = vpack.c.b16 %v2149, %v2137
  %v2666 = vpack.c.b16 %v2162, %v2150
  %v2667 = vpack.c.b16 %v2163, %v2151
  %v2668 = vpack.c.b16 %v2164, %v2152
  %v2669 = vpack.c.b16 %v2165, %v2153
  %v2670 = vpack.c.b16 %v2166, %v2154
  %v2671 = vpack.c.b16 %v2167, %v2155
  %v2672 = vpack.c.b16 %v2168, %v2156
  %v2673 = vpack.c.b16 %v2169, %v2157
  %v2674 = vpack.c.b16 %v2170, %v2158
  %v2675 = vpack.c.b16 %v2171, %v2159
  %v2676 = vpack.c.b16 %v2172, %v2160
  %v2677 = vpack.c.b16 %v2173, %v2161
  %v2678 = vpack.c.b16 %v2186, %v2174
  %v2679 = vpack.c.b16 %v2187, %v2175
  %v2680 = vpack.c.b16 %v2188, %v2176
  %v2681 = vpack.c.b16 %v2189, %v2177
  %v2682 = vpack.c.b16 %v2190, %v2178
  %v2683 = vpack.c.b16 %v2191, %v2179
  %v2684 = vpack.c.b16 %v2192, %v2180
  %v2685 = vpack.c.b16 %v2193, %v2181
  %v2686 = vpack.c.b16 %v2194, %v2182
  %v2687 = vpack.c.b16 %v2195, %v2183
  %v2688 = vpack.c.b16 %v2196, %v2184
  %v2689 = vpack.c.b16 %v2197, %v2185
  %v2690 = vpack.c.b16 %v2210, %v2198
  %v2691 = vpack.c.b16 %v2211, %v2199
  %v2692 = vpack.c.b16 %v2212, %v2200
  %v2693 = vpack.c.b16 %v2213, %v2201
  %v2694 = vpack.c.b16 %v2214, %v2202
  %v2695 = vpack.c.b16 %v2215, %v2203
  %v2696 = vpack.c.b16 %v2216, %v2204
  %v2697 = vpack.c.b16 %v2217, %v2205
  %v2698 = vpack.c.b16 %v2218, %v2206
  %v2699 = vpack.c.b16 %v2219, %v2207
  %v2700 = vpack.c.b16 %v2220, %v2208
  %v2701 = vpack.c.b16 %v2221, %v2209
  %v2702 = vpack.c.b16 %v2234, %v2222
  %v2703 = vpack.c.b16 %v2235, %v2223
  %v2704 = vpack.c.b16 %v2236, %v2224
  %v2705 = vpack.c.b16 %v2237, %v2225
  %v2706 = vpack.c.b16 %v2238, %v2226
  %v2707 = vpack.c.b16 %v2239, %v2227
  %v2708 = vpack.c.b16 %v2240, %v2228
  %v2709 = vpack.c.b16 %v2241, %v2229
  %v2710 = vpack.c.b16 %v2242, %v2230
  %v2711 = vpack.c.b16 %v2243, %v2231
  %v2712 = vpack.c.b16 %v2244, %v2232
  %v2713 = vpack.c.b16 %v2245, %v2233
  %v2714 = vpack.c.b16 %v2258, %v2246
  %v2715 = vpack.c.b16 %v2259, %v2247
  %v2716 = vpack.c.b16 %v2260, %v2248
  %v2717 = vpack.c.b16 %v2261, %v2249
  %v2718 = vpack.c.b16 %v2262, %v2250
  %v2719 = vpack.c.b16 %v2263, %v2251
  %v2720 = vpack.c.b16 %v2264, %v2252
  %v2721 = vpack.c.b16 %v2265, %v2253
  %v2722 = vpack.c.b16 %v2266, %v2254
  %v2723 = vpack.c.b16 %v2267, %v2255
  %v2724 = vpack.c.b16 %v2268, %v2256
  %v2725 = vpack.c.b16 %v2269, %v2257
  %v2726 = vpack.c.b16 %v2282, %v2270
  %v2727 = vpack.c.b16 %v2283, %v2271
  %v2728 = vpack.c.b16 %v2284, %v2272
  %v2729 = vpack.c.b16 %v2285, %v2273
  %v2730 = vpack.c.b16 %v2286, %v2274
  %v2731 = vpack.c.b16 %v2287, %v2275
  %v2732 = vpack.c.b16 %v2288, %v2276
  %v2733 = vpack.c.b16 %v2289, %v2277
  %v2734 = vpack.c.b16 %v2290, %v2278
  %v2735 = vpack.c.b16 %v2291, %v2279
  %v2736 = vpack.c.b16 %v2292, %v2280
  %v2737 = vpack.c.b16 %v2293, %v2281
  %v2738 = vpack.c.b16 %v2306, %v2294
  %v2739 = vpack.c.b16 %v2307, %v2295
  %v2740 = vpack.c.b16 %v2308, %v2296
  %v2741 = vpack.c.b16 %v2309, %v2297
  %v2742 = vpack.c.b16 %v2310, %v2298
  %v2743 = vpack.c.b16 %v2311, %v2299
  %v2744 = vpack.c.b16 %v2312, %v2300
  %v2745 = vpack.c.b16 %v2313, %v2301
  %v2746 = vpack.c.b16 %v2314, %v2302
  %v2747 = vpack.c.b16 %v2315, %v2303
  %v2748 = vpack.c.b16 %v2316, %v2304
  %v2749 = vpack.c.b16 %v2317, %v2305
  %v2750 = vpack.c.b16 %v2330, %v2318
  %v2751 = vpack.c.b16 %v2331, %v2319
  %v2752 = vpack.c.b16 %v2332, %v2320
  %v2753 = vpack.c.b16 %v2333, %v2321
  %v2754 = vpack.c.b16 %v2334, %v2322
  %v2755 = vpack.c.b16 %v2335, %v2323
  %v2756 = vpack.c.b16 %v2336, %v2324
  %v2757 = vpack.c.b16 %v2337, %v2325
  %v2758 = vpack.c.b16 %v2338, %v2326
  %v2759 = vpack.c.b16 %v2339, %v2327
  %v2760 = vpack.c.b16 %v2340, %v2328
  %v2761 = vpack.c.b16 %v2341, %v2329
  %v2762 = vpack.c.b16 %v2354, %v2342
  %v2763 = vpack.c.b16 %v2355, %v2343
  %v2764 = vpack.c.b16 %v2356, %v2344
  %v2765 = vpack.c.b16 %v2357, %v2345
  %v2766 = vpack.c.b16 %v2358, %v2346
  %v2767 = vpack.c.b16 %v2359, %v2347
  %v2768 = vpack.c.b16 %v2360, %v2348
  %v2769 = vpack.c.b16 %v2361, %v2349
  %v2770 = vpack.c.b16 %v2362, %v2350
  %v2771 = vpack.c.b16 %v2363, %v2351
  %v2772 = vpack.c.b16 %v2364, %v2352
  %v2773 = vpack.c.b16 %v2365, %v2353
  %v2774 = vpack.c.b16 %v2378, %v2366
  %v2775 = vpack.c.b16 %v2379, %v2367
  %v2776 = vpack.c.b16 %v2380, %v2368
  %v2777 = vpack.c.b16 %v2381, %v2369
  %v2778 = vpack.c.b16 %v2382, %v2370
  %v2779 = vpack.c.b16 %v2383, %v2371
  %v2780 = vpack.c.b16 %v2384, %v2372
  %v2781 = vpack.c.b16 %v2385, %v2373
  %v2782 = vpack.c.b16 %v2386, %v2374
  %v2783 = vpack.c.b16 %v2387, %v2375
  %v2784 = vpack.c.b16 %v2388, %v2376
  %v2785 = vpack.c.b16 %v2389, %v2377
  %v2786 = vpack.c.b16 %v2402, %v2390
  %v2787 = vpack.c.b16 %v2403, %v2391
  %v2788 = vpack.c.b16 %v2404, %v2392
  %v2789 = vpack.c.b16 %v2405, %v2393
  %v2790 = vpack.c.b16 %v2406, %v2394
  %v2791 = vpack.c.b16 %v2407, %v2395
  %v2792 = vpack.c.b16 %v2408, %v2396
  %v2793 = vpack.c.b16 %v2409, %v2397
  %v2794 = vpack.c.b16 %v2410, %v2398
  %v2795 = vpack.c.b16 %v2411, %v2399
  %v2796 = vpack.c.b16 %v2412, %v2400
  %v2797 = vpack.c.b16 %v2413, %v2401
  %3182 = vmatprep.subr.bf16.mxu0 %v2415
  %3183 = vmatpush1.bf16.msra.mxu0 %v2414
  %3184 = vmatprep.subr.bf16.mxu0 %v2427
  %3185 = vmatpush1.bf16.msra.mxu0 %v2426
  %3186 = vmatprep.subr.bf16.mxu0 %v2439
  %3187 = vmatpush1.bf16.msra.mxu0 %v2438
  %3188 = vmatprep.subr.bf16.mxu0 %v2451
  %3189 = vmatpush1.bf16.msra.mxu0 %v2450
  %3190 = vmatprep.subr.bf16.mxu0 %v2463
  %3191 = vmatpush1.bf16.msra.mxu0 %v2462
  %3192 = vmatprep.subr.bf16.mxu0 %v2475
  %3193 = vmatpush1.bf16.msra.mxu0 %v2474
  %3194 = vmatprep.subr.bf16.mxu0 %v2487
  %3195 = vmatpush1.bf16.msra.mxu0 %v2486
  %3196 = vmatprep.subr.bf16.mxu0 %v2499
  %3197 = vmatpush1.bf16.msra.mxu0 %v2498
  %3198 = vmatprep.subr.bf16.mxu0 %v2511
  %3199 = vmatpush1.bf16.msra.mxu0 %v2510
  %3200 = vmatprep.subr.bf16.mxu0 %v2523
  %3201 = vmatpush1.bf16.msra.mxu0 %v2522
  %3202 = vmatprep.subr.bf16.mxu0 %v2535
  %3203 = vmatpush1.bf16.msra.mxu0 %v2534
  %3204 = vmatprep.subr.bf16.mxu0 %v2547
  %3205 = vmatpush1.bf16.msra.mxu0 %v2546
  %3206 = vmatprep.subr.bf16.mxu0 %v2559
  %3207 = vmatpush1.bf16.msra.mxu0 %v2558
  %3208 = vmatprep.subr.bf16.mxu0 %v2571
  %3209 = vmatpush1.bf16.msra.mxu0 %v2570
  %3210 = vmatprep.subr.bf16.mxu0 %v2583
  %3211 = vmatpush1.bf16.msra.mxu0 %v2582
  %3212 = vmatprep.subr.bf16.mxu0 %v2595
  %3213 = vmatpush1.bf16.msra.mxu0 %v2594
  %3214 = vmatprep.mubr.bf16.mxu0 %v811
  %3215 = vmatmul.mubr.bf16.gmra.mrb[0].mxu0 %v810
  %v3216 = vpop.f32.mrb[0].mxu0
  %v3217 = vadd.f32 %v1205, %v3216
  %v3218 = vpop.f32.mrb[0].mxu0
  %v3219 = vadd.f32 %v1209, %v3218
  %v3220 = vpop.f32.mrb[0].mxu0
  %v3221 = vpop.f32.mrb[0].mxu0
  %3222 = vdwg.mxu0
  %3223 = vmatprep.subr.bf16.mxu0 %v2607
  %3224 = vmatpush1.bf16.msra.mxu0 %v2606
  %3225 = vmatprep.subr.bf16.mxu0 %v2619
  %3226 = vmatpush1.bf16.msra.mxu0 %v2618
  %3227 = vmatprep.subr.bf16.mxu0 %v2631
  %3228 = vmatpush1.bf16.msra.mxu0 %v2630
  %3229 = vmatprep.subr.bf16.mxu0 %v2643
  %3230 = vmatpush1.bf16.msra.mxu0 %v2642
  %3231 = vmatprep.subr.bf16.mxu0 %v2655
  %3232 = vmatpush1.bf16.msra.mxu0 %v2654
  %3233 = vmatprep.subr.bf16.mxu0 %v2667
  %3234 = vmatpush1.bf16.msra.mxu0 %v2666
  %3235 = vmatprep.subr.bf16.mxu0 %v2679
  %3236 = vmatpush1.bf16.msra.mxu0 %v2678
  %3237 = vmatprep.subr.bf16.mxu0 %v2691
  %3238 = vmatpush1.bf16.msra.mxu0 %v2690
  %3239 = vmatprep.subr.bf16.mxu0 %v2703
  %3240 = vmatpush1.bf16.msra.mxu0 %v2702
  %3241 = vmatprep.subr.bf16.mxu0 %v2715
  %3242 = vmatpush1.bf16.msra.mxu0 %v2714
  %3243 = vmatprep.subr.bf16.mxu0 %v2727
  %3244 = vmatpush1.bf16.msra.mxu0 %v2726
  %3245 = vmatprep.subr.bf16.mxu0 %v2739
  %3246 = vmatpush1.bf16.msra.mxu0 %v2738
  %3247 = vmatprep.subr.bf16.mxu0 %v2751
  %3248 = vmatpush1.bf16.msra.mxu0 %v2750
  %3249 = vmatprep.subr.bf16.mxu0 %v2763
  %3250 = vmatpush1.bf16.msra.mxu0 %v2762
  %3251 = vmatprep.subr.bf16.mxu0 %v2775
  %3252 = vmatpush1.bf16.msra.mxu0 %v2774
  %3253 = vmatprep.subr.bf16.mxu0 %v2787
  %3254 = vmatpush1.bf16.msra.mxu0 %v2786
  %3255 = vmatprep.mubr.bf16.mxu0 %v813
  %3256 = vmatmul.mubr.bf16.gmra.mrb[0].mxu0 %v812
  %v3257 = vpop.f32.mrb[0].mxu0
  %v3258 = vadd.f32 %v3217, %v3257
  %v3259 = vpop.f32.mrb[0].mxu0
  %v3260 = vadd.f32 %v3219, %v3259
  %v3261 = vpop.f32.mrb[0].mxu0
  %v3262 = vpop.f32.mrb[0].mxu0
  %3263 = vdwg.mxu0
  %3264 = vmatprep.subr.bf16.mxu0 %v2417
  %3265 = vmatpush1.bf16.msra.mxu0 %v2416
  %3266 = vmatprep.subr.bf16.mxu0 %v2429
  %3267 = vmatpush1.bf16.msra.mxu0 %v2428
  %3268 = vmatprep.subr.bf16.mxu0 %v2441
  %3269 = vmatpush1.bf16.msra.mxu0 %v2440
  %3270 = vmatprep.subr.bf16.mxu0 %v2453
  %3271 = vmatpush1.bf16.msra.mxu0 %v2452
  %3272 = vmatprep.subr.bf16.mxu0 %v2465
  %3273 = vmatpush1.bf16.msra.mxu0 %v2464
  %3274 = vmatprep.subr.bf16.mxu0 %v2477
  %3275 = vmatpush1.bf16.msra.mxu0 %v2476
  %3276 = vmatprep.subr.bf16.mxu0 %v2489
  %3277 = vmatpush1.bf16.msra.mxu0 %v2488
  %3278 = vmatprep.subr.bf16.mxu0 %v2501
  %3279 = vmatpush1.bf16.msra.mxu0 %v2500
  %3280 = vmatprep.subr.bf16.mxu0 %v2513
  %3281 = vmatpush1.bf16.msra.mxu0 %v2512
  %3282 = vmatprep.subr.bf16.mxu0 %v2525
  %3283 = vmatpush1.bf16.msra.mxu0 %v2524
  %3284 = vmatprep.subr.bf16.mxu0 %v2537
  %3285 = vmatpush1.bf16.msra.mxu0 %v2536
  %3286 = vmatprep.subr.bf16.mxu0 %v2549
  %3287 = vmatpush1.bf16.msra.mxu0 %v2548
  %3288 = vmatprep.subr.bf16.mxu0 %v2561
  %3289 = vmatpush1.bf16.msra.mxu0 %v2560
  %3290 = vmatprep.subr.bf16.mxu0 %v2573
  %3291 = vmatpush1.bf16.msra.mxu0 %v2572
  %3292 = vmatprep.subr.bf16.mxu0 %v2585
  %3293 = vmatpush1.bf16.msra.mxu0 %v2584
  %3294 = vmatprep.subr.bf16.mxu0 %v2597
  %3295 = vmatpush1.bf16.msra.mxu0 %v2596
  %3296 = vmatprep.mubr.bf16.mxu0 %v811
  %3297 = vmatmul.mubr.bf16.gmra.mrb[0].mxu0 %v810
  %v3298 = vpop.f32.mrb[0].mxu0
  %v3299 = vadd.f32 %v1213, %v3298
  %v3300 = vpop.f32.mrb[0].mxu0
  %v3301 = vadd.f32 %v1217, %v3300
  %v3302 = vpop.f32.mrb[0].mxu0
  %v3303 = vpop.f32.mrb[0].mxu0
  %3304 = vdwg.mxu0
  %3305 = vmatprep.subr.bf16.mxu0 %v2609
  %3306 = vmatpush1.bf16.msra.mxu0 %v2608
  %3307 = vmatprep.subr.bf16.mxu0 %v2621
  %3308 = vmatpush1.bf16.msra.mxu0 %v2620
  %3309 = vmatprep.subr.bf16.mxu0 %v2633
  %3310 = vmatpush1.bf16.msra.mxu0 %v2632
  %3311 = vmatprep.subr.bf16.mxu0 %v2645
  %3312 = vmatpush1.bf16.msra.mxu0 %v2644
  %3313 = vmatprep.subr.bf16.mxu0 %v2657
  %3314 = vmatpush1.bf16.msra.mxu0 %v2656
  %3315 = vmatprep.subr.bf16.mxu0 %v2669
  %3316 = vmatpush1.bf16.msra.mxu0 %v2668
  %3317 = vmatprep.subr.bf16.mxu0 %v2681
  %3318 = vmatpush1.bf16.msra.mxu0 %v2680
  %3319 = vmatprep.subr.bf16.mxu0 %v2693
  %3320 = vmatpush1.bf16.msra.mxu0 %v2692
  %3321 = vmatprep.subr.bf16.mxu0 %v2705
  %3322 = vmatpush1.bf16.msra.mxu0 %v2704
  %3323 = vmatprep.subr.bf16.mxu0 %v2717
  %3324 = vmatpush1.bf16.msra.mxu0 %v2716
  %3325 = vmatprep.subr.bf16.mxu0 %v2729
  %3326 = vmatpush1.bf16.msra.mxu0 %v2728
  %3327 = vmatprep.subr.bf16.mxu0 %v2741
  %3328 = vmatpush1.bf16.msra.mxu0 %v2740
  %3329 = vmatprep.subr.bf16.mxu0 %v2753
  %3330 = vmatpush1.bf16.msra.mxu0 %v2752
  %3331 = vmatprep.subr.bf16.mxu0 %v2765
  %3332 = vmatpush1.bf16.msra.mxu0 %v2764
  %3333 = vmatprep.subr.bf16.mxu0 %v2777
  %3334 = vmatpush1.bf16.msra.mxu0 %v2776
  %3335 = vmatprep.subr.bf16.mxu0 %v2789
  %3336 = vmatpush1.bf16.msra.mxu0 %v2788
  %3337 = vmatprep.mubr.bf16.mxu0 %v813
  %3338 = vmatmul.mubr.bf16.gmra.mrb[0].mxu0 %v812
  %v3339 = vpop.f32.mrb[0].mxu0
  %v3340 = vadd.f32 %v3299, %v3339
  %v3341 = vpop.f32.mrb[0].mxu0
  %v3342 = vadd.f32 %v3301, %v3341
  %v3343 = vpop.f32.mrb[0].mxu0
  %v3344 = vpop.f32.mrb[0].mxu0
  %3345 = vdwg.mxu0
  %3346 = vmatprep.subr.bf16.mxu0 %v2419
  %3347 = vmatpush1.bf16.msra.mxu0 %v2418
  %3348 = vmatprep.subr.bf16.mxu0 %v2431
  %3349 = vmatpush1.bf16.msra.mxu0 %v2430
  %3350 = vmatprep.subr.bf16.mxu0 %v2443
  %3351 = vmatpush1.bf16.msra.mxu0 %v2442
  %3352 = vmatprep.subr.bf16.mxu0 %v2455
  %3353 = vmatpush1.bf16.msra.mxu0 %v2454
  %3354 = vmatprep.subr.bf16.mxu0 %v2467
  %3355 = vmatpush1.bf16.msra.mxu0 %v2466
  %3356 = vmatprep.subr.bf16.mxu0 %v2479
  %3357 = vmatpush1.bf16.msra.mxu0 %v2478
  %3358 = vmatprep.subr.bf16.mxu0 %v2491
  %3359 = vmatpush1.bf16.msra.mxu0 %v2490
  %3360 = vmatprep.subr.bf16.mxu0 %v2503
  %3361 = vmatpush1.bf16.msra.mxu0 %v2502
  %3362 = vmatprep.subr.bf16.mxu0 %v2515
  %3363 = vmatpush1.bf16.msra.mxu0 %v2514
  %3364 = vmatprep.subr.bf16.mxu0 %v2527
  %3365 = vmatpush1.bf16.msra.mxu0 %v2526
  %3366 = vmatprep.subr.bf16.mxu0 %v2539
  %3367 = vmatpush1.bf16.msra.mxu0 %v2538
  %3368 = vmatprep.subr.bf16.mxu0 %v2551
  %3369 = vmatpush1.bf16.msra.mxu0 %v2550
  %3370 = vmatprep.subr.bf16.mxu0 %v2563
  %3371 = vmatpush1.bf16.msra.mxu0 %v2562
  %3372 = vmatprep.subr.bf16.mxu0 %v2575
  %3373 = vmatpush1.bf16.msra.mxu0 %v2574
  %3374 = vmatprep.subr.bf16.mxu0 %v2587
  %3375 = vmatpush1.bf16.msra.mxu0 %v2586
  %3376 = vmatprep.subr.bf16.mxu0 %v2599
  %3377 = vmatpush1.bf16.msra.mxu0 %v2598
  %3378 = vmatprep.mubr.bf16.mxu0 %v811
  %3379 = vmatmul.mubr.bf16.gmra.mrb[0].mxu0 %v810
  %v3380 = vpop.f32.mrb[0].mxu0
  %v3381 = vadd.f32 %v1221, %v3380
  %v3382 = vpop.f32.mrb[0].mxu0
  %v3383 = vadd.f32 %v1225, %v3382
  %v3384 = vpop.f32.mrb[0].mxu0
  %v3385 = vpop.f32.mrb[0].mxu0
  %3386 = vdwg.mxu0
  %3387 = vmatprep.subr.bf16.mxu0 %v2611
  %3388 = vmatpush1.bf16.msra.mxu0 %v2610
  %3389 = vmatprep.subr.bf16.mxu0 %v2623
  %3390 = vmatpush1.bf16.msra.mxu0 %v2622
  %3391 = vmatprep.subr.bf16.mxu0 %v2635
  %3392 = vmatpush1.bf16.msra.mxu0 %v2634
  %3393 = vmatprep.subr.bf16.mxu0 %v2647
  %3394 = vmatpush1.bf16.msra.mxu0 %v2646
  %3395 = vmatprep.subr.bf16.mxu0 %v2659
  %3396 = vmatpush1.bf16.msra.mxu0 %v2658
  %3397 = vmatprep.subr.bf16.mxu0 %v2671
  %3398 = vmatpush1.bf16.msra.mxu0 %v2670
  %3399 = vmatprep.subr.bf16.mxu0 %v2683
  %3400 = vmatpush1.bf16.msra.mxu0 %v2682
  %3401 = vmatprep.subr.bf16.mxu0 %v2695
  %3402 = vmatpush1.bf16.msra.mxu0 %v2694
  %3403 = vmatprep.subr.bf16.mxu0 %v2707
  %3404 = vmatpush1.bf16.msra.mxu0 %v2706
  %3405 = vmatprep.subr.bf16.mxu0 %v2719
  %3406 = vmatpush1.bf16.msra.mxu0 %v2718
  %3407 = vmatprep.subr.bf16.mxu0 %v2731
  %3408 = vmatpush1.bf16.msra.mxu0 %v2730
  %3409 = vmatprep.subr.bf16.mxu0 %v2743
  %3410 = vmatpush1.bf16.msra.mxu0 %v2742
  %3411 = vmatprep.subr.bf16.mxu0 %v2755
  %3412 = vmatpush1.bf16.msra.mxu0 %v2754
  %3413 = vmatprep.subr.bf16.mxu0 %v2767
  %3414 = vmatpush1.bf16.msra.mxu0 %v2766
  %3415 = vmatprep.subr.bf16.mxu0 %v2779
  %3416 = vmatpush1.bf16.msra.mxu0 %v2778
  %3417 = vmatprep.subr.bf16.mxu0 %v2791
  %3418 = vmatpush1.bf16.msra.mxu0 %v2790
  %3419 = vmatprep.mubr.bf16.mxu0 %v813
  %3420 = vmatmul.mubr.bf16.gmra.mrb[0].mxu0 %v812
  %v3421 = vpop.f32.mrb[0].mxu0
  %v3422 = vadd.f32 %v3381, %v3421
  %v3423 = vpop.f32.mrb[0].mxu0
  %v3424 = vadd.f32 %v3383, %v3423
  %v3425 = vpop.f32.mrb[0].mxu0
  %v3426 = vpop.f32.mrb[0].mxu0
  %3427 = vdwg.mxu0
  %3428 = vmatprep.subr.bf16.mxu0 %v2421
  %3429 = vmatpush1.bf16.msra.mxu0 %v2420
  %3430 = vmatprep.subr.bf16.mxu0 %v2433
  %3431 = vmatpush1.bf16.msra.mxu0 %v2432
  %3432 = vmatprep.subr.bf16.mxu0 %v2445
  %3433 = vmatpush1.bf16.msra.mxu0 %v2444
  %3434 = vmatprep.subr.bf16.mxu0 %v2457
  %3435 = vmatpush1.bf16.msra.mxu0 %v2456
  %3436 = vmatprep.subr.bf16.mxu0 %v2469
  %3437 = vmatpush1.bf16.msra.mxu0 %v2468
  %3438 = vmatprep.subr.bf16.mxu0 %v2481
  %3439 = vmatpush1.bf16.msra.mxu0 %v2480
  %3440 = vmatprep.subr.bf16.mxu0 %v2493
  %3441 = vmatpush1.bf16.msra.mxu0 %v2492
  %3442 = vmatprep.subr.bf16.mxu0 %v2505
  %3443 = vmatpush1.bf16.msra.mxu0 %v2504
  %3444 = vmatprep.subr.bf16.mxu0 %v2517
  %3445 = vmatpush1.bf16.msra.mxu0 %v2516
  %3446 = vmatprep.subr.bf16.mxu0 %v2529
  %3447 = vmatpush1.bf16.msra.mxu0 %v2528
  %3448 = vmatprep.subr.bf16.mxu0 %v2541
  %3449 = vmatpush1.bf16.msra.mxu0 %v2540
  %3450 = vmatprep.subr.bf16.mxu0 %v2553
  %3451 = vmatpush1.bf16.msra.mxu0 %v2552
  %3452 = vmatprep.subr.bf16.mxu0 %v2565
  %3453 = vmatpush1.bf16.msra.mxu0 %v2564
  %3454 = vmatprep.subr.bf16.mxu0 %v2577
  %3455 = vmatpush1.bf16.msra.mxu0 %v2576
  %3456 = vmatprep.subr.bf16.mxu0 %v2589
  %3457 = vmatpush1.bf16.msra.mxu0 %v2588
  %3458 = vmatprep.subr.bf16.mxu0 %v2601
  %3459 = vmatpush1.bf16.msra.mxu0 %v2600
  %3460 = vmatprep.mubr.bf16.mxu0 %v811
  %3461 = vmatmul.mubr.bf16.gmra.mrb[0].mxu0 %v810
  %v3462 = vpop.f32.mrb[0].mxu0
  %v3463 = vadd.f32 %v1229, %v3462
  %v3464 = vpop.f32.mrb[0].mxu0
  %v3465 = vadd.f32 %v1233, %v3464
  %v3466 = vpop.f32.mrb[0].mxu0
  %v3467 = vpop.f32.mrb[0].mxu0
  %3468 = vdwg.mxu0
  %3469 = vmatprep.subr.bf16.mxu0 %v2613
  %3470 = vmatpush1.bf16.msra.mxu0 %v2612
  %3471 = vmatprep.subr.bf16.mxu0 %v2625
  %3472 = vmatpush1.bf16.msra.mxu0 %v2624
  %3473 = vmatprep.subr.bf16.mxu0 %v2637
  %3474 = vmatpush1.bf16.msra.mxu0 %v2636
  %3475 = vmatprep.subr.bf16.mxu0 %v2649
  %3476 = vmatpush1.bf16.msra.mxu0 %v2648
  %3477 = vmatprep.subr.bf16.mxu0 %v2661
  %3478 = vmatpush1.bf16.msra.mxu0 %v2660
  %3479 = vmatprep.subr.bf16.mxu0 %v2673
  %3480 = vmatpush1.bf16.msra.mxu0 %v2672
  %3481 = vmatprep.subr.bf16.mxu0 %v2685
  %3482 = vmatpush1.bf16.msra.mxu0 %v2684
  %3483 = vmatprep.subr.bf16.mxu0 %v2697
  %3484 = vmatpush1.bf16.msra.mxu0 %v2696
  %3485 = vmatprep.subr.bf16.mxu0 %v2709
  %3486 = vmatpush1.bf16.msra.mxu0 %v2708
  %3487 = vmatprep.subr.bf16.mxu0 %v2721
  %3488 = vmatpush1.bf16.msra.mxu0 %v2720
  %3489 = vmatprep.subr.bf16.mxu0 %v2733
  %3490 = vmatpush1.bf16.msra.mxu0 %v2732
  %3491 = vmatprep.subr.bf16.mxu0 %v2745
  %3492 = vmatpush1.bf16.msra.mxu0 %v2744
  %3493 = vmatprep.subr.bf16.mxu0 %v2757
  %3494 = vmatpush1.bf16.msra.mxu0 %v2756
  %3495 = vmatprep.subr.bf16.mxu0 %v2769
  %3496 = vmatpush1.bf16.msra.mxu0 %v2768
  %3497 = vmatprep.subr.bf16.mxu0 %v2781
  %3498 = vmatpush1.bf16.msra.mxu0 %v2780
  %3499 = vmatprep.subr.bf16.mxu0 %v2793
  %3500 = vmatpush1.bf16.msra.mxu0 %v2792
  %3501 = vmatprep.mubr.bf16.mxu0 %v813
  %3502 = vmatmul.mubr.bf16.gmra.mrb[0].mxu0 %v812
  %v3503 = vpop.f32.mrb[0].mxu0
  %v3504 = vadd.f32 %v3463, %v3503
  %v3505 = vpop.f32.mrb[0].mxu0
  %v3506 = vadd.f32 %v3465, %v3505
  %v3507 = vpop.f32.mrb[0].mxu0
  %v3508 = vpop.f32.mrb[0].mxu0
  %3509 = vdwg.mxu0
  %3510 = vmatprep.subr.bf16.mxu0 %v2423
  %3511 = vmatpush1.bf16.msra.mxu0 %v2422
  %3512 = vmatprep.subr.bf16.mxu0 %v2435
  %3513 = vmatpush1.bf16.msra.mxu0 %v2434
  %3514 = vmatprep.subr.bf16.mxu0 %v2447
  %3515 = vmatpush1.bf16.msra.mxu0 %v2446
  %3516 = vmatprep.subr.bf16.mxu0 %v2459
  %3517 = vmatpush1.bf16.msra.mxu0 %v2458
  %3518 = vmatprep.subr.bf16.mxu0 %v2471
  %3519 = vmatpush1.bf16.msra.mxu0 %v2470
  %3520 = vmatprep.subr.bf16.mxu0 %v2483
  %3521 = vmatpush1.bf16.msra.mxu0 %v2482
  %3522 = vmatprep.subr.bf16.mxu0 %v2495
  %3523 = vmatpush1.bf16.msra.mxu0 %v2494
  %3524 = vmatprep.subr.bf16.mxu0 %v2507
  %3525 = vmatpush1.bf16.msra.mxu0 %v2506
  %3526 = vmatprep.subr.bf16.mxu0 %v2519
  %3527 = vmatpush1.bf16.msra.mxu0 %v2518
  %3528 = vmatprep.subr.bf16.mxu0 %v2531
  %3529 = vmatpush1.bf16.msra.mxu0 %v2530
  %3530 = vmatprep.subr.bf16.mxu0 %v2543
  %3531 = vmatpush1.bf16.msra.mxu0 %v2542
  %3532 = vmatprep.subr.bf16.mxu0 %v2555
  %3533 = vmatpush1.bf16.msra.mxu0 %v2554
  %3534 = vmatprep.subr.bf16.mxu0 %v2567
  %3535 = vmatpush1.bf16.msra.mxu0 %v2566
  %3536 = vmatprep.subr.bf16.mxu0 %v2579
  %3537 = vmatpush1.bf16.msra.mxu0 %v2578
  %3538 = vmatprep.subr.bf16.mxu0 %v2591
  %3539 = vmatpush1.bf16.msra.mxu0 %v2590
  %3540 = vmatprep.subr.bf16.mxu0 %v2603
  %3541 = vmatpush1.bf16.msra.mxu0 %v2602
  %3542 = vmatprep.mubr.bf16.mxu0 %v811
  %3543 = vmatmul.mubr.bf16.gmra.mrb[0].mxu0 %v810
  %v3544 = vpop.f32.mrb[0].mxu0
  %v3545 = vadd.f32 %v1237, %v3544
  %v3546 = vpop.f32.mrb[0].mxu0
  %v3547 = vadd.f32 %v1241, %v3546
  %v3548 = vpop.f32.mrb[0].mxu0
  %v3549 = vpop.f32.mrb[0].mxu0
  %3550 = vdwg.mxu0
  %3551 = vmatprep.subr.bf16.mxu0 %v2615
  %3552 = vmatpush1.bf16.msra.mxu0 %v2614
  %3553 = vmatprep.subr.bf16.mxu0 %v2627
  %3554 = vmatpush1.bf16.msra.mxu0 %v2626
  %3555 = vmatprep.subr.bf16.mxu0 %v2639
  %3556 = vmatpush1.bf16.msra.mxu0 %v2638
  %3557 = vmatprep.subr.bf16.mxu0 %v2651
  %3558 = vmatpush1.bf16.msra.mxu0 %v2650
  %3559 = vmatprep.subr.bf16.mxu0 %v2663
  %3560 = vmatpush1.bf16.msra.mxu0 %v2662
  %3561 = vmatprep.subr.bf16.mxu0 %v2675
  %3562 = vmatpush1.bf16.msra.mxu0 %v2674
  %3563 = vmatprep.subr.bf16.mxu0 %v2687
  %3564 = vmatpush1.bf16.msra.mxu0 %v2686
  %3565 = vmatprep.subr.bf16.mxu0 %v2699
  %3566 = vmatpush1.bf16.msra.mxu0 %v2698
  %3567 = vmatprep.subr.bf16.mxu0 %v2711
  %3568 = vmatpush1.bf16.msra.mxu0 %v2710
  %3569 = vmatprep.subr.bf16.mxu0 %v2723
  %3570 = vmatpush1.bf16.msra.mxu0 %v2722
  %3571 = vmatprep.subr.bf16.mxu0 %v2735
  %3572 = vmatpush1.bf16.msra.mxu0 %v2734
  %3573 = vmatprep.subr.bf16.mxu0 %v2747
  %3574 = vmatpush1.bf16.msra.mxu0 %v2746
  %3575 = vmatprep.subr.bf16.mxu0 %v2759
  %3576 = vmatpush1.bf16.msra.mxu0 %v2758
  %3577 = vmatprep.subr.bf16.mxu0 %v2771
  %3578 = vmatpush1.bf16.msra.mxu0 %v2770
  %3579 = vmatprep.subr.bf16.mxu0 %v2783
  %3580 = vmatpush1.bf16.msra.mxu0 %v2782
  %3581 = vmatprep.subr.bf16.mxu0 %v2795
  %3582 = vmatpush1.bf16.msra.mxu0 %v2794
  %3583 = vmatprep.mubr.bf16.mxu0 %v813
  %3584 = vmatmul.mubr.bf16.gmra.mrb[0].mxu0 %v812
  %v3585 = vpop.f32.mrb[0].mxu0
  %v3586 = vadd.f32 %v3545, %v3585
  %v3587 = vpop.f32.mrb[0].mxu0
  %v3588 = vadd.f32 %v3547, %v3587
  %v3589 = vpop.f32.mrb[0].mxu0
  %v3590 = vpop.f32.mrb[0].mxu0
  %3591 = vdwg.mxu0
  %3592 = vmatprep.subr.bf16.mxu0 %v2425
  %3593 = vmatpush1.bf16.msra.mxu0 %v2424
  %3594 = vmatprep.subr.bf16.mxu0 %v2437
  %3595 = vmatpush1.bf16.msra.mxu0 %v2436
  %3596 = vmatprep.subr.bf16.mxu0 %v2449
  %3597 = vmatpush1.bf16.msra.mxu0 %v2448
  %3598 = vmatprep.subr.bf16.mxu0 %v2461
  %3599 = vmatpush1.bf16.msra.mxu0 %v2460
  %3600 = vmatprep.subr.bf16.mxu0 %v2473
  %3601 = vmatpush1.bf16.msra.mxu0 %v2472
  %3602 = vmatprep.subr.bf16.mxu0 %v2485
  %3603 = vmatpush1.bf16.msra.mxu0 %v2484
  %3604 = vmatprep.subr.bf16.mxu0 %v2497
  %3605 = vmatpush1.bf16.msra.mxu0 %v2496
  %3606 = vmatprep.subr.bf16.mxu0 %v2509
  %3607 = vmatpush1.bf16.msra.mxu0 %v2508
  %3608 = vmatprep.subr.bf16.mxu0 %v2521
  %3609 = vmatpush1.bf16.msra.mxu0 %v2520
  %3610 = vmatprep.subr.bf16.mxu0 %v2533
  %3611 = vmatpush1.bf16.msra.mxu0 %v2532
  %3612 = vmatprep.subr.bf16.mxu0 %v2545
  %3613 = vmatpush1.bf16.msra.mxu0 %v2544
  %3614 = vmatprep.subr.bf16.mxu0 %v2557
  %3615 = vmatpush1.bf16.msra.mxu0 %v2556
  %3616 = vmatprep.subr.bf16.mxu0 %v2569
  %3617 = vmatpush1.bf16.msra.mxu0 %v2568
  %3618 = vmatprep.subr.bf16.mxu0 %v2581
  %3619 = vmatpush1.bf16.msra.mxu0 %v2580
  %3620 = vmatprep.subr.bf16.mxu0 %v2593
  %3621 = vmatpush1.bf16.msra.mxu0 %v2592
  %3622 = vmatprep.subr.bf16.mxu0 %v2605
  %3623 = vmatpush1.bf16.msra.mxu0 %v2604
  %3624 = vmatprep.mubr.bf16.mxu0 %v811
  %3625 = vmatmul.mubr.bf16.gmra.mrb[0].mxu0 %v810
  %v3626 = vpop.f32.mrb[0].mxu0
  %v3627 = vadd.f32 %v1245, %v3626
  %v3628 = vpop.f32.mrb[0].mxu0
  %v3629 = vadd.f32 %v1249, %v3628
  %v3630 = vpop.f32.mrb[0].mxu0
  %v3631 = vpop.f32.mrb[0].mxu0
  %3632 = vdwg.mxu0
  %3633 = vmatprep.subr.bf16.mxu0 %v2617
  %3634 = vmatpush1.bf16.msra.mxu0 %v2616
  %3635 = vmatprep.subr.bf16.mxu0 %v2629
  %3636 = vmatpush1.bf16.msra.mxu0 %v2628
  %3637 = vmatprep.subr.bf16.mxu0 %v2641
  %3638 = vmatpush1.bf16.msra.mxu0 %v2640
  %3639 = vmatprep.subr.bf16.mxu0 %v2653
  %3640 = vmatpush1.bf16.msra.mxu0 %v2652
  %3641 = vmatprep.subr.bf16.mxu0 %v2665
  %3642 = vmatpush1.bf16.msra.mxu0 %v2664
  %3643 = vmatprep.subr.bf16.mxu0 %v2677
  %3644 = vmatpush1.bf16.msra.mxu0 %v2676
  %3645 = vmatprep.subr.bf16.mxu0 %v2689
  %3646 = vmatpush1.bf16.msra.mxu0 %v2688
  %3647 = vmatprep.subr.bf16.mxu0 %v2701
  %3648 = vmatpush1.bf16.msra.mxu0 %v2700
  %3649 = vmatprep.subr.bf16.mxu0 %v2713
  %3650 = vmatpush1.bf16.msra.mxu0 %v2712
  %3651 = vmatprep.subr.bf16.mxu0 %v2725
  %3652 = vmatpush1.bf16.msra.mxu0 %v2724
  %3653 = vmatprep.subr.bf16.mxu0 %v2737
  %3654 = vmatpush1.bf16.msra.mxu0 %v2736
  %3655 = vmatprep.subr.bf16.mxu0 %v2749
  %3656 = vmatpush1.bf16.msra.mxu0 %v2748
  %3657 = vmatprep.subr.bf16.mxu0 %v2761
  %3658 = vmatpush1.bf16.msra.mxu0 %v2760
  %3659 = vmatprep.subr.bf16.mxu0 %v2773
  %3660 = vmatpush1.bf16.msra.mxu0 %v2772
  %3661 = vmatprep.subr.bf16.mxu0 %v2785
  %3662 = vmatpush1.bf16.msra.mxu0 %v2784
  %3663 = vmatprep.subr.bf16.mxu0 %v2797
  %3664 = vmatpush1.bf16.msra.mxu0 %v2796
  %3665 = vmatprep.mubr.bf16.mxu0 %v813
  %3666 = vmatmul.mubr.bf16.gmra.mrb[0].mxu0 %v812
  %v3667 = vpop.f32.mrb[0].mxu0
  %v3668 = vadd.f32 %v3627, %v3667
  %v3669 = vpop.f32.mrb[0].mxu0
  %v3670 = vadd.f32 %v3629, %v3669
  %v3671 = vpop.f32.mrb[0].mxu0
  %v3672 = vpop.f32.mrb[0].mxu0
  %3673 = vdwg.mxu0
  %v3674 = vmax.f32 %v3258, 0.0
  %v3675 = vmax.f32 %v3260, 0.0
  %v3676 = vmax.f32 %v3340, 0.0
  %v3677 = vmax.f32 %v3342, 0.0
  %v3678 = vmax.f32 %v3422, 0.0
  %v3679 = vmax.f32 %v3424, 0.0
  %v3680 = vmax.f32 %v3504, 0.0
  %v3681 = vmax.f32 %v3506, 0.0
  %v3682 = vmax.f32 %v3586, 0.0
  %v3683 = vmax.f32 %v3588, 0.0
  %v3684 = vmax.f32 %v3668, 0.0
  %v3685 = vmax.f32 %v3670, 0.0
  %v3686 = vpack.c.bf16 %v3674, %v3674
  %v3687 = vpack.c.bf16 %v3675, %v3675
  %v3688 = vpack.c.bf16 %v3676, %v3676
  %v3689 = vpack.c.bf16 %v3677, %v3677
  %v3690 = vpack.c.bf16 %v3678, %v3678
  %v3691 = vpack.c.bf16 %v3679, %v3679
  %v3692 = vpack.c.bf16 %v3680, %v3680
  %v3693 = vpack.c.bf16 %v3681, %v3681
  %v3694 = vpack.c.bf16 %v3682, %v3682
  %v3695 = vpack.c.bf16 %v3683, %v3683
  %v3696 = vpack.c.bf16 %v3684, %v3684
  %v3697 = vpack.c.bf16 %v3685, %v3685
  %v3698 = vld [vmem:[%s7] sm:$0xff]
  %v3699 = vld [vmem:[%s7 + $0x8] sm:$0xff]
  %v3700 = vld [vmem:[%s7 + $0x10] sm:$0xff]
  %v3701 = vld [vmem:[%s7 + $0x18] sm:$0xff]
  %v3702 = vld [vmem:[%s7 + $0x20] sm:$0xff]
  %v3703 = vld [vmem:[%s7 + $0x28] sm:$0xff]
  %v3704 = vld [vmem:[%s7 + $0x30] sm:$0xff]
  %v3705 = vld [vmem:[%s7 + $0x38] sm:$0xff]
  %v3706 = vld [vmem:[%s7 + $0x40] sm:$0xff]
  %v3707 = vld [vmem:[%s7 + $0x48] sm:$0xff]
  %v3708 = vld [vmem:[%s7 + $0x50] sm:$0xff]
  %v3709 = vld [vmem:[%s7 + $0x58] sm:$0xff]
  %v3710 = vld [vmem:[%s7 + $0x60] sm:$0xff]
  %v3711 = vld [vmem:[%s7 + $0x68] sm:$0xff]
  %v3712 = vld [vmem:[%s7 + $0x70] sm:$0xff]
  %v3713 = vld [vmem:[%s7 + $0x78] sm:$0xff]
  %v3714 = vld [vmem:[%s7 + $0x80] sm:$0xff]
  %v3715 = vld [vmem:[%s7 + $0x88] sm:$0xff]
  %v3716 = vld [vmem:[%s7 + $0x90] sm:$0xff]
  %v3717 = vld [vmem:[%s7 + $0x98] sm:$0xff]
  %v3718 = vld [vmem:[%s7 + $0xa0] sm:$0xff]
  %v3719 = vld [vmem:[%s7 + $0xa8] sm:$0xff]
  %v3720 = vld [vmem:[%s7 + $0xb0] sm:$0xff]
  %v3721 = vld [vmem:[%s7 + $0xb8] sm:$0xff]
  %v3722 = vld [vmem:[%s7 + $0xc0] sm:$0xff]
  %v3723 = vld [vmem:[%s7 + $0xc8] sm:$0xff]
  %v3724 = vld [vmem:[%s7 + $0xd0] sm:$0xff]
  %v3725 = vld [vmem:[%s7 + $0xd8] sm:$0xff]
  %v3726 = vld [vmem:[%s7 + $0xe0] sm:$0xff]
  %v3727 = vld [vmem:[%s7 + $0xe8] sm:$0xff]
  %v3728 = vld [vmem:[%s7 + $0xf0] sm:$0xff]
  %v3729 = vld [vmem:[%s7 + $0xf8] sm:$0xff]
  %v3730 = vld [vmem:[%s7 + $0x100] sm:$0xff]
  %v3731 = vld [vmem:[%s7 + $0x108] sm:$0xff]
  %v3732 = vld [vmem:[%s7 + $0x110] sm:$0xff]
  %v3733 = vld [vmem:[%s7 + $0x118] sm:$0xff]
  %v3734 = vld [vmem:[%s7 + $0x120] sm:$0xff]
  %v3735 = vld [vmem:[%s7 + $0x128] sm:$0xff]
  %v3736 = vld [vmem:[%s7 + $0x130] sm:$0xff]
  %v3737 = vld [vmem:[%s7 + $0x138] sm:$0xff]
  %v3738 = vld [vmem:[%s7 + $0x140] sm:$0xff]
  %v3739 = vld [vmem:[%s7 + $0x148] sm:$0xff]
  %v3740 = vld [vmem:[%s7 + $0x150] sm:$0xff]
  %v3741 = vld [vmem:[%s7 + $0x158] sm:$0xff]
  %v3742 = vld [vmem:[%s7 + $0x160] sm:$0xff]
  %v3743 = vld [vmem:[%s7 + $0x168] sm:$0xff]
  %v3744 = vld [vmem:[%s7 + $0x170] sm:$0xff]
  %v3745 = vld [vmem:[%s7 + $0x178] sm:$0xff]
  %v3746 = vld [vmem:[%s7 + $0x180] sm:$0xff]
  %v3747 = vld [vmem:[%s7 + $0x188] sm:$0xff]
  %v3748 = vld [vmem:[%s7 + $0x190] sm:$0xff]
  %v3749 = vld [vmem:[%s7 + $0x198] sm:$0xff]
  %v3750 = vld [vmem:[%s7 + $0x1a0] sm:$0xff]
  %v3751 = vld [vmem:[%s7 + $0x1a8] sm:$0xff]
  %v3752 = vld [vmem:[%s7 + $0x1b0] sm:$0xff]
  %v3753 = vld [vmem:[%s7 + $0x1b8] sm:$0xff]
  %v3754 = vld [vmem:[%s7 + $0x1c0] sm:$0xff]
  %v3755 = vld [vmem:[%s7 + $0x1c8] sm:$0xff]
  %v3756 = vld [vmem:[%s7 + $0x1d0] sm:$0xff]
  %v3757 = vld [vmem:[%s7 + $0x1d8] sm:$0xff]
  %v3758 = vld [vmem:[%s7 + $0x1e0] sm:$0xff]
  %v3759 = vld [vmem:[%s7 + $0x1e8] sm:$0xff]
  %v3760 = vld [vmem:[%s7 + $0x1f0] sm:$0xff]
  %v3761 = vld [vmem:[%s7 + $0x1f8] sm:$0xff]
  %v3762 = vld [vmem:[%s7 + $0x200] sm:$0xff]
  %v3763 = vld [vmem:[%s7 + $0x208] sm:$0xff]
  %v3764 = vld [vmem:[%s7 + $0x210] sm:$0xff]
  %v3765 = vld [vmem:[%s7 + $0x218] sm:$0xff]
  %v3766 = vld [vmem:[%s7 + $0x220] sm:$0xff]
  %v3767 = vld [vmem:[%s7 + $0x228] sm:$0xff]
  %v3768 = vld [vmem:[%s7 + $0x230] sm:$0xff]
  %v3769 = vld [vmem:[%s7 + $0x238] sm:$0xff]
  %v3770 = vld [vmem:[%s7 + $0x240] sm:$0xff]
  %v3771 = vld [vmem:[%s7 + $0x248] sm:$0xff]
  %v3772 = vld [vmem:[%s7 + $0x250] sm:$0xff]
  %v3773 = vld [vmem:[%s7 + $0x258] sm:$0xff]
  %v3774 = vld [vmem:[%s7 + $0x260] sm:$0xff]
  %v3775 = vld [vmem:[%s7 + $0x268] sm:$0xff]
  %v3776 = vld [vmem:[%s7 + $0x270] sm:$0xff]
  %v3777 = vld [vmem:[%s7 + $0x278] sm:$0xff]
  %v3778 = vld [vmem:[%s7 + $0x280] sm:$0xff]
  %v3779 = vld [vmem:[%s7 + $0x288] sm:$0xff]
  %v3780 = vld [vmem:[%s7 + $0x290] sm:$0xff]
  %v3781 = vld [vmem:[%s7 + $0x298] sm:$0xff]
  %v3782 = vld [vmem:[%s7 + $0x2a0] sm:$0xff]
  %v3783 = vld [vmem:[%s7 + $0x2a8] sm:$0xff]
  %v3784 = vld [vmem:[%s7 + $0x2b0] sm:$0xff]
  %v3785 = vld [vmem:[%s7 + $0x2b8] sm:$0xff]
  %v3786 = vld [vmem:[%s7 + $0x2c0] sm:$0xff]
  %v3787 = vld [vmem:[%s7 + $0x2c8] sm:$0xff]
  %v3788 = vld [vmem:[%s7 + $0x2d0] sm:$0xff]
  %v3789 = vld [vmem:[%s7 + $0x2d8] sm:$0xff]
  %v3790 = vld [vmem:[%s7 + $0x2e0] sm:$0xff]
  %v3791 = vld [vmem:[%s7 + $0x2e8] sm:$0xff]
  %v3792 = vld [vmem:[%s7 + $0x2f0] sm:$0xff]
  %v3793 = vld [vmem:[%s7 + $0x2f8] sm:$0xff]
  %v3794 = vld [vmem:[%s7 + $0x300] sm:$0xff]
  %v3795 = vld [vmem:[%s7 + $0x308] sm:$0xff]
  %v3796 = vld [vmem:[%s7 + $0x310] sm:$0xff]
  %v3797 = vld [vmem:[%s7 + $0x318] sm:$0xff]
  %v3798 = vld [vmem:[%s7 + $0x320] sm:$0xff]
  %v3799 = vld [vmem:[%s7 + $0x328] sm:$0xff]
  %v3800 = vld [vmem:[%s7 + $0x330] sm:$0xff]
  %v3801 = vld [vmem:[%s7 + $0x338] sm:$0xff]
  %v3802 = vld [vmem:[%s7 + $0x340] sm:$0xff]
  %v3803 = vld [vmem:[%s7 + $0x348] sm:$0xff]
  %v3804 = vld [vmem:[%s7 + $0x350] sm:$0xff]
  %v3805 = vld [vmem:[%s7 + $0x358] sm:$0xff]
  %v3806 = vld [vmem:[%s7 + $0x360] sm:$0xff]
  %v3807 = vld [vmem:[%s7 + $0x368] sm:$0xff]
  %v3808 = vld [vmem:[%s7 + $0x370] sm:$0xff]
  %v3809 = vld [vmem:[%s7 + $0x378] sm:$0xff]
  %v3810 = vld [vmem:[%s7 + $0x380] sm:$0xff]
  %v3811 = vld [vmem:[%s7 + $0x388] sm:$0xff]
  %v3812 = vld [vmem:[%s7 + $0x390] sm:$0xff]
  %v3813 = vld [vmem:[%s7 + $0x398] sm:$0xff]
  %v3814 = vld [vmem:[%s7 + $0x3a0] sm:$0xff]
  %v3815 = vld [vmem:[%s7 + $0x3a8] sm:$0xff]
  %v3816 = vld [vmem:[%s7 + $0x3b0] sm:$0xff]
  %v3817 = vld [vmem:[%s7 + $0x3b8] sm:$0xff]
  %v3818 = vld [vmem:[%s7 + $0x3c0] sm:$0xff]
  %v3819 = vld [vmem:[%s7 + $0x3c8] sm:$0xff]
  %v3820 = vld [vmem:[%s7 + $0x3d0] sm:$0xff]
  %v3821 = vld [vmem:[%s7 + $0x3d8] sm:$0xff]
  %v3822 = vld [vmem:[%s7 + $0x3e0] sm:$0xff]
  %v3823 = vld [vmem:[%s7 + $0x3e8] sm:$0xff]
  %v3824 = vld [vmem:[%s7 + $0x3f0] sm:$0xff]
  %v3825 = vld [vmem:[%s7 + $0x3f8] sm:$0xff]
  %v3826 = vld [vmem:[%s10] sm:$0xf]
  %v3828 = vlaneseq
  %v3829 = vshrl.u32 %v3828, 7
  %v3830 = vsub.s32 0, %v3829
  %v3831 = vrot.slane %v3826, %v3830
  %v3832 = vlaneseq
  %v3833 = vshrl.u32 %v3832, 7
  %v3834 = vsub.s32 1, %v3833
  %v3835 = vrot.slane %v3826, %v3834
  %v3836 = vlaneseq
  %v3837 = vshrl.u32 %v3836, 7
  %v3838 = vsub.s32 2, %v3837
  %v3839 = vrot.slane %v3826, %v3838
  %v3840 = vlaneseq
  %v3841 = vshrl.u32 %v3840, 7
  %v3842 = vsub.s32 3, %v3841
  %v3843 = vrot.slane %v3826, %v3842
  %v3976 = vunpack.c.l.b16 %v3698
  %v3977 = vunpack.c.h.b16 %v3698
  %v3978 = vunpack.c.l.b16 %v3699
  %v3979 = vunpack.c.h.b16 %v3699
  %v3980 = vunpack.c.l.b16 %v3700
  %v3981 = vunpack.c.h.b16 %v3700
  %v3982 = vunpack.c.l.b16 %v3701
  %v3983 = vunpack.c.h.b16 %v3701
  %v3984 = vunpack.c.l.b16 %v3702
  %v3985 = vunpack.c.h.b16 %v3702
  %v3986 = vunpack.c.l.b16 %v3703
  %v3987 = vunpack.c.h.b16 %v3703
  %v3988 = vunpack.c.l.b16 %v3704
  %v3989 = vunpack.c.h.b16 %v3704
  %v3990 = vunpack.c.l.b16 %v3705
  %v3991 = vunpack.c.h.b16 %v3705
  %v3992 = vunpack.c.l.b16 %v3706
  %v3993 = vunpack.c.h.b16 %v3706
  %v3994 = vunpack.c.l.b16 %v3707
  %v3995 = vunpack.c.h.b16 %v3707
  %v3996 = vunpack.c.l.b16 %v3708
  %v3997 = vunpack.c.h.b16 %v3708
  %v3998 = vunpack.c.l.b16 %v3709
  %v3999 = vunpack.c.h.b16 %v3709
  %v4000 = vunpack.c.l.b16 %v3710
  %v4001 = vunpack.c.h.b16 %v3710
  %v4002 = vunpack.c.l.b16 %v3711
  %v4003 = vunpack.c.h.b16 %v3711
  %v4004 = vunpack.c.l.b16 %v3712
  %v4005 = vunpack.c.h.b16 %v3712
  %v4006 = vunpack.c.l.b16 %v3713
  %v4007 = vunpack.c.h.b16 %v3713
  %v4008 = vunpack.c.l.b16 %v3714
  %v4009 = vunpack.c.h.b16 %v3714
  %v4010 = vunpack.c.l.b16 %v3715
  %v4011 = vunpack.c.h.b16 %v3715
  %v4012 = vunpack.c.l.b16 %v3716
  %v4013 = vunpack.c.h.b16 %v3716
  %v4014 = vunpack.c.l.b16 %v3717
  %v4015 = vunpack.c.h.b16 %v3717
  %v4016 = vunpack.c.l.b16 %v3718
  %v4017 = vunpack.c.h.b16 %v3718
  %v4018 = vunpack.c.l.b16 %v3719
  %v4019 = vunpack.c.h.b16 %v3719
  %v4020 = vunpack.c.l.b16 %v3720
  %v4021 = vunpack.c.h.b16 %v3720
  %v4022 = vunpack.c.l.b16 %v3721
  %v4023 = vunpack.c.h.b16 %v3721
  %v4024 = vunpack.c.l.b16 %v3722
  %v4025 = vunpack.c.h.b16 %v3722
  %v4026 = vunpack.c.l.b16 %v3723
  %v4027 = vunpack.c.h.b16 %v3723
  %v4028 = vunpack.c.l.b16 %v3724
  %v4029 = vunpack.c.h.b16 %v3724
  %v4030 = vunpack.c.l.b16 %v3725
  %v4031 = vunpack.c.h.b16 %v3725
  %v4032 = vunpack.c.l.b16 %v3726
  %v4033 = vunpack.c.h.b16 %v3726
  %v4034 = vunpack.c.l.b16 %v3727
  %v4035 = vunpack.c.h.b16 %v3727
  %v4036 = vunpack.c.l.b16 %v3728
  %v4037 = vunpack.c.h.b16 %v3728
  %v4038 = vunpack.c.l.b16 %v3729
  %v4039 = vunpack.c.h.b16 %v3729
  %v4040 = vunpack.c.l.b16 %v3730
  %v4041 = vunpack.c.h.b16 %v3730
  %v4042 = vunpack.c.l.b16 %v3731
  %v4043 = vunpack.c.h.b16 %v3731
  %v4044 = vunpack.c.l.b16 %v3732
  %v4045 = vunpack.c.h.b16 %v3732
  %v4046 = vunpack.c.l.b16 %v3733
  %v4047 = vunpack.c.h.b16 %v3733
  %v4048 = vunpack.c.l.b16 %v3734
  %v4049 = vunpack.c.h.b16 %v3734
  %v4050 = vunpack.c.l.b16 %v3735
  %v4051 = vunpack.c.h.b16 %v3735
  %v4052 = vunpack.c.l.b16 %v3736
  %v4053 = vunpack.c.h.b16 %v3736
  %v4054 = vunpack.c.l.b16 %v3737
  %v4055 = vunpack.c.h.b16 %v3737
  %v4056 = vunpack.c.l.b16 %v3738
  %v4057 = vunpack.c.h.b16 %v3738
  %v4058 = vunpack.c.l.b16 %v3739
  %v4059 = vunpack.c.h.b16 %v3739
  %v4060 = vunpack.c.l.b16 %v3740
  %v4061 = vunpack.c.h.b16 %v3740
  %v4062 = vunpack.c.l.b16 %v3741
  %v4063 = vunpack.c.h.b16 %v3741
  %v4064 = vunpack.c.l.b16 %v3742
  %v4065 = vunpack.c.h.b16 %v3742
  %v4066 = vunpack.c.l.b16 %v3743
  %v4067 = vunpack.c.h.b16 %v3743
  %v4068 = vunpack.c.l.b16 %v3744
  %v4069 = vunpack.c.h.b16 %v3744
  %v4070 = vunpack.c.l.b16 %v3745
  %v4071 = vunpack.c.h.b16 %v3745
  %v4072 = vunpack.c.l.b16 %v3746
  %v4073 = vunpack.c.h.b16 %v3746
  %v4074 = vunpack.c.l.b16 %v3747
  %v4075 = vunpack.c.h.b16 %v3747
  %v4076 = vunpack.c.l.b16 %v3748
  %v4077 = vunpack.c.h.b16 %v3748
  %v4078 = vunpack.c.l.b16 %v3749
  %v4079 = vunpack.c.h.b16 %v3749
  %v4080 = vunpack.c.l.b16 %v3750
  %v4081 = vunpack.c.h.b16 %v3750
  %v4082 = vunpack.c.l.b16 %v3751
  %v4083 = vunpack.c.h.b16 %v3751
  %v4084 = vunpack.c.l.b16 %v3752
  %v4085 = vunpack.c.h.b16 %v3752
  %v4086 = vunpack.c.l.b16 %v3753
  %v4087 = vunpack.c.h.b16 %v3753
  %v4088 = vunpack.c.l.b16 %v3754
  %v4089 = vunpack.c.h.b16 %v3754
  %v4090 = vunpack.c.l.b16 %v3755
  %v4091 = vunpack.c.h.b16 %v3755
  %v4092 = vunpack.c.l.b16 %v3756
  %v4093 = vunpack.c.h.b16 %v3756
  %v4094 = vunpack.c.l.b16 %v3757
  %v4095 = vunpack.c.h.b16 %v3757
  %v4096 = vunpack.c.l.b16 %v3758
  %v4097 = vunpack.c.h.b16 %v3758
  %v4098 = vunpack.c.l.b16 %v3759
  %v4099 = vunpack.c.h.b16 %v3759
  %v4100 = vunpack.c.l.b16 %v3760
  %v4101 = vunpack.c.h.b16 %v3760
  %v4102 = vunpack.c.l.b16 %v3761
  %v4103 = vunpack.c.h.b16 %v3761
  %v4104 = vunpack.c.l.b16 %v3762
  %v4105 = vunpack.c.h.b16 %v3762
  %v4106 = vunpack.c.l.b16 %v3763
  %v4107 = vunpack.c.h.b16 %v3763
  %v4108 = vunpack.c.l.b16 %v3764
  %v4109 = vunpack.c.h.b16 %v3764
  %v4110 = vunpack.c.l.b16 %v3765
  %v4111 = vunpack.c.h.b16 %v3765
  %v4112 = vunpack.c.l.b16 %v3766
  %v4113 = vunpack.c.h.b16 %v3766
  %v4114 = vunpack.c.l.b16 %v3767
  %v4115 = vunpack.c.h.b16 %v3767
  %v4116 = vunpack.c.l.b16 %v3768
  %v4117 = vunpack.c.h.b16 %v3768
  %v4118 = vunpack.c.l.b16 %v3769
  %v4119 = vunpack.c.h.b16 %v3769
  %v4120 = vunpack.c.l.b16 %v3770
  %v4121 = vunpack.c.h.b16 %v3770
  %v4122 = vunpack.c.l.b16 %v3771
  %v4123 = vunpack.c.h.b16 %v3771
  %v4124 = vunpack.c.l.b16 %v3772
  %v4125 = vunpack.c.h.b16 %v3772
  %v4126 = vunpack.c.l.b16 %v3773
  %v4127 = vunpack.c.h.b16 %v3773
  %v4128 = vunpack.c.l.b16 %v3774
  %v4129 = vunpack.c.h.b16 %v3774
  %v4130 = vunpack.c.l.b16 %v3775
  %v4131 = vunpack.c.h.b16 %v3775
  %v4132 = vunpack.c.l.b16 %v3776
  %v4133 = vunpack.c.h.b16 %v3776
  %v4134 = vunpack.c.l.b16 %v3777
  %v4135 = vunpack.c.h.b16 %v3777
  %v4136 = vunpack.c.l.b16 %v3778
  %v4137 = vunpack.c.h.b16 %v3778
  %v4138 = vunpack.c.l.b16 %v3779
  %v4139 = vunpack.c.h.b16 %v3779
  %v4140 = vunpack.c.l.b16 %v3780
  %v4141 = vunpack.c.h.b16 %v3780
  %v4142 = vunpack.c.l.b16 %v3781
  %v4143 = vunpack.c.h.b16 %v3781
  %v4144 = vunpack.c.l.b16 %v3782
  %v4145 = vunpack.c.h.b16 %v3782
  %v4146 = vunpack.c.l.b16 %v3783
  %v4147 = vunpack.c.h.b16 %v3783
  %v4148 = vunpack.c.l.b16 %v3784
  %v4149 = vunpack.c.h.b16 %v3784
  %v4150 = vunpack.c.l.b16 %v3785
  %v4151 = vunpack.c.h.b16 %v3785
  %v4152 = vunpack.c.l.b16 %v3786
  %v4153 = vunpack.c.h.b16 %v3786
  %v4154 = vunpack.c.l.b16 %v3787
  %v4155 = vunpack.c.h.b16 %v3787
  %v4156 = vunpack.c.l.b16 %v3788
  %v4157 = vunpack.c.h.b16 %v3788
  %v4158 = vunpack.c.l.b16 %v3789
  %v4159 = vunpack.c.h.b16 %v3789
  %v4160 = vunpack.c.l.b16 %v3790
  %v4161 = vunpack.c.h.b16 %v3790
  %v4162 = vunpack.c.l.b16 %v3791
  %v4163 = vunpack.c.h.b16 %v3791
  %v4164 = vunpack.c.l.b16 %v3792
  %v4165 = vunpack.c.h.b16 %v3792
  %v4166 = vunpack.c.l.b16 %v3793
  %v4167 = vunpack.c.h.b16 %v3793
  %v4168 = vunpack.c.l.b16 %v3794
  %v4169 = vunpack.c.h.b16 %v3794
  %v4170 = vunpack.c.l.b16 %v3795
  %v4171 = vunpack.c.h.b16 %v3795
  %v4172 = vunpack.c.l.b16 %v3796
  %v4173 = vunpack.c.h.b16 %v3796
  %v4174 = vunpack.c.l.b16 %v3797
  %v4175 = vunpack.c.h.b16 %v3797
  %v4176 = vunpack.c.l.b16 %v3798
  %v4177 = vunpack.c.h.b16 %v3798
  %v4178 = vunpack.c.l.b16 %v3799
  %v4179 = vunpack.c.h.b16 %v3799
  %v4180 = vunpack.c.l.b16 %v3800
  %v4181 = vunpack.c.h.b16 %v3800
  %v4182 = vunpack.c.l.b16 %v3801
  %v4183 = vunpack.c.h.b16 %v3801
  %v4184 = vunpack.c.l.b16 %v3802
  %v4185 = vunpack.c.h.b16 %v3802
  %v4186 = vunpack.c.l.b16 %v3803
  %v4187 = vunpack.c.h.b16 %v3803
  %v4188 = vunpack.c.l.b16 %v3804
  %v4189 = vunpack.c.h.b16 %v3804
  %v4190 = vunpack.c.l.b16 %v3805
  %v4191 = vunpack.c.h.b16 %v3805
  %v4192 = vunpack.c.l.b16 %v3806
  %v4193 = vunpack.c.h.b16 %v3806
  %v4194 = vunpack.c.l.b16 %v3807
  %v4195 = vunpack.c.h.b16 %v3807
  %v4196 = vunpack.c.l.b16 %v3808
  %v4197 = vunpack.c.h.b16 %v3808
  %v4198 = vunpack.c.l.b16 %v3809
  %v4199 = vunpack.c.h.b16 %v3809
  %v4200 = vunpack.c.l.b16 %v3810
  %v4201 = vunpack.c.h.b16 %v3810
  %v4202 = vunpack.c.l.b16 %v3811
  %v4203 = vunpack.c.h.b16 %v3811
  %v4204 = vunpack.c.l.b16 %v3812
  %v4205 = vunpack.c.h.b16 %v3812
  %v4206 = vunpack.c.l.b16 %v3813
  %v4207 = vunpack.c.h.b16 %v3813
  %v4208 = vunpack.c.l.b16 %v3814
  %v4209 = vunpack.c.h.b16 %v3814
  %v4210 = vunpack.c.l.b16 %v3815
  %v4211 = vunpack.c.h.b16 %v3815
  %v4212 = vunpack.c.l.b16 %v3816
  %v4213 = vunpack.c.h.b16 %v3816
  %v4214 = vunpack.c.l.b16 %v3817
  %v4215 = vunpack.c.h.b16 %v3817
  %v4216 = vunpack.c.l.b16 %v3818
  %v4217 = vunpack.c.h.b16 %v3818
  %v4218 = vunpack.c.l.b16 %v3819
  %v4219 = vunpack.c.h.b16 %v3819
  %v4220 = vunpack.c.l.b16 %v3820
  %v4221 = vunpack.c.h.b16 %v3820
  %v4222 = vunpack.c.l.b16 %v3821
  %v4223 = vunpack.c.h.b16 %v3821
  %v4224 = vunpack.c.l.b16 %v3822
  %v4225 = vunpack.c.h.b16 %v3822
  %v4226 = vunpack.c.l.b16 %v3823
  %v4227 = vunpack.c.h.b16 %v3823
  %v4228 = vunpack.c.l.b16 %v3824
  %v4229 = vunpack.c.h.b16 %v3824
  %v4230 = vunpack.c.l.b16 %v3825
  %v4231 = vunpack.c.h.b16 %v3825
  %v4232 = vpack.c.b16 %v3980, %v3976
  %v4233 = vpack.c.b16 %v3981, %v3977
  %v4234 = vpack.c.b16 %v3982, %v3978
  %v4235 = vpack.c.b16 %v3983, %v3979
  %v4236 = vpack.c.b16 %v3988, %v3984
  %v4237 = vpack.c.b16 %v3989, %v3985
  %v4238 = vpack.c.b16 %v3990, %v3986
  %v4239 = vpack.c.b16 %v3991, %v3987
  %v4240 = vpack.c.b16 %v3996, %v3992
  %v4241 = vpack.c.b16 %v3997, %v3993
  %v4242 = vpack.c.b16 %v3998, %v3994
  %v4243 = vpack.c.b16 %v3999, %v3995
  %v4244 = vpack.c.b16 %v4004, %v4000
  %v4245 = vpack.c.b16 %v4005, %v4001
  %v4246 = vpack.c.b16 %v4006, %v4002
  %v4247 = vpack.c.b16 %v4007, %v4003
  %v4248 = vpack.c.b16 %v4012, %v4008
  %v4249 = vpack.c.b16 %v4013, %v4009
  %v4250 = vpack.c.b16 %v4014, %v4010
  %v4251 = vpack.c.b16 %v4015, %v4011
  %v4252 = vpack.c.b16 %v4020, %v4016
  %v4253 = vpack.c.b16 %v4021, %v4017
  %v4254 = vpack.c.b16 %v4022, %v4018
  %v4255 = vpack.c.b16 %v4023, %v4019
  %v4256 = vpack.c.b16 %v4028, %v4024
  %v4257 = vpack.c.b16 %v4029, %v4025
  %v4258 = vpack.c.b16 %v4030, %v4026
  %v4259 = vpack.c.b16 %v4031, %v4027
  %v4260 = vpack.c.b16 %v4036, %v4032
  %v4261 = vpack.c.b16 %v4037, %v4033
  %v4262 = vpack.c.b16 %v4038, %v4034
  %v4263 = vpack.c.b16 %v4039, %v4035
  %v4264 = vpack.c.b16 %v4044, %v4040
  %v4265 = vpack.c.b16 %v4045, %v4041
  %v4266 = vpack.c.b16 %v4046, %v4042
  %v4267 = vpack.c.b16 %v4047, %v4043
  %v4268 = vpack.c.b16 %v4052, %v4048
  %v4269 = vpack.c.b16 %v4053, %v4049
  %v4270 = vpack.c.b16 %v4054, %v4050
  %v4271 = vpack.c.b16 %v4055, %v4051
  %v4272 = vpack.c.b16 %v4060, %v4056
  %v4273 = vpack.c.b16 %v4061, %v4057
  %v4274 = vpack.c.b16 %v4062, %v4058
  %v4275 = vpack.c.b16 %v4063, %v4059
  %v4276 = vpack.c.b16 %v4068, %v4064
  %v4277 = vpack.c.b16 %v4069, %v4065
  %v4278 = vpack.c.b16 %v4070, %v4066
  %v4279 = vpack.c.b16 %v4071, %v4067
  %v4280 = vpack.c.b16 %v4076, %v4072
  %v4281 = vpack.c.b16 %v4077, %v4073
  %v4282 = vpack.c.b16 %v4078, %v4074
  %v4283 = vpack.c.b16 %v4079, %v4075
  %v4284 = vpack.c.b16 %v4084, %v4080
  %v4285 = vpack.c.b16 %v4085, %v4081
  %v4286 = vpack.c.b16 %v4086, %v4082
  %v4287 = vpack.c.b16 %v4087, %v4083
  %v4288 = vpack.c.b16 %v4092, %v4088
  %v4289 = vpack.c.b16 %v4093, %v4089
  %v4290 = vpack.c.b16 %v4094, %v4090
  %v4291 = vpack.c.b16 %v4095, %v4091
  %v4292 = vpack.c.b16 %v4100, %v4096
  %v4293 = vpack.c.b16 %v4101, %v4097
  %v4294 = vpack.c.b16 %v4102, %v4098
  %v4295 = vpack.c.b16 %v4103, %v4099
  %v4296 = vpack.c.b16 %v4108, %v4104
  %v4297 = vpack.c.b16 %v4109, %v4105
  %v4298 = vpack.c.b16 %v4110, %v4106
  %v4299 = vpack.c.b16 %v4111, %v4107
  %v4300 = vpack.c.b16 %v4116, %v4112
  %v4301 = vpack.c.b16 %v4117, %v4113
  %v4302 = vpack.c.b16 %v4118, %v4114
  %v4303 = vpack.c.b16 %v4119, %v4115
  %v4304 = vpack.c.b16 %v4124, %v4120
  %v4305 = vpack.c.b16 %v4125, %v4121
  %v4306 = vpack.c.b16 %v4126, %v4122
  %v4307 = vpack.c.b16 %v4127, %v4123
  %v4308 = vpack.c.b16 %v4132, %v4128
  %v4309 = vpack.c.b16 %v4133, %v4129
  %v4310 = vpack.c.b16 %v4134, %v4130
  %v4311 = vpack.c.b16 %v4135, %v4131
  %v4312 = vpack.c.b16 %v4140, %v4136
  %v4313 = vpack.c.b16 %v4141, %v4137
  %v4314 = vpack.c.b16 %v4142, %v4138
  %v4315 = vpack.c.b16 %v4143, %v4139
  %v4316 = vpack.c.b16 %v4148, %v4144
  %v4317 = vpack.c.b16 %v4149, %v4145
  %v4318 = vpack.c.b16 %v4150, %v4146
  %v4319 = vpack.c.b16 %v4151, %v4147
  %v4320 = vpack.c.b16 %v4156, %v4152
  %v4321 = vpack.c.b16 %v4157, %v4153
  %v4322 = vpack.c.b16 %v4158, %v4154
  %v4323 = vpack.c.b16 %v4159, %v4155
  %v4324 = vpack.c.b16 %v4164, %v4160
  %v4325 = vpack.c.b16 %v4165, %v4161
  %v4326 = vpack.c.b16 %v4166, %v4162
  %v4327 = vpack.c.b16 %v4167, %v4163
  %v4328 = vpack.c.b16 %v4172, %v4168
  %v4329 = vpack.c.b16 %v4173, %v4169
  %v4330 = vpack.c.b16 %v4174, %v4170
  %v4331 = vpack.c.b16 %v4175, %v4171
  %v4332 = vpack.c.b16 %v4180, %v4176
  %v4333 = vpack.c.b16 %v4181, %v4177
  %v4334 = vpack.c.b16 %v4182, %v4178
  %v4335 = vpack.c.b16 %v4183, %v4179
  %v4336 = vpack.c.b16 %v4188, %v4184
  %v4337 = vpack.c.b16 %v4189, %v4185
  %v4338 = vpack.c.b16 %v4190, %v4186
  %v4339 = vpack.c.b16 %v4191, %v4187
  %v4340 = vpack.c.b16 %v4196, %v4192
  %v4341 = vpack.c.b16 %v4197, %v4193
  %v4342 = vpack.c.b16 %v4198, %v4194
  %v4343 = vpack.c.b16 %v4199, %v4195
  %v4344 = vpack.c.b16 %v4204, %v4200
  %v4345 = vpack.c.b16 %v4205, %v4201
  %v4346 = vpack.c.b16 %v4206, %v4202
  %v4347 = vpack.c.b16 %v4207, %v4203
  %v4348 = vpack.c.b16 %v4212, %v4208
  %v4349 = vpack.c.b16 %v4213, %v4209
  %v4350 = vpack.c.b16 %v4214, %v4210
  %v4351 = vpack.c.b16 %v4215, %v4211
  %v4352 = vpack.c.b16 %v4220, %v4216
  %v4353 = vpack.c.b16 %v4221, %v4217
  %v4354 = vpack.c.b16 %v4222, %v4218
  %v4355 = vpack.c.b16 %v4223, %v4219
  %v4356 = vpack.c.b16 %v4228, %v4224
  %v4357 = vpack.c.b16 %v4229, %v4225
  %v4358 = vpack.c.b16 %v4230, %v4226
  %v4359 = vpack.c.b16 %v4231, %v4227
  %4488 = vmatprep.subr.bf16.mxu0 %v4233
  %4489 = vmatpush1.bf16.msra.mxu0 %v4232
  %4490 = vmatprep.subr.bf16.mxu0 %v4237
  %4491 = vmatpush1.bf16.msra.mxu0 %v4236
  %4492 = vmatprep.subr.bf16.mxu0 %v4241
  %4493 = vmatpush1.bf16.msra.mxu0 %v4240
  %4494 = vmatprep.subr.bf16.mxu0 %v4245
  %4495 = vmatpush1.bf16.msra.mxu0 %v4244
  %4496 = vmatprep.subr.bf16.mxu0 %v4249
  %4497 = vmatpush1.bf16.msra.mxu0 %v4248
  %4498 = vmatprep.subr.bf16.mxu0 %v4253
  %4499 = vmatpush1.bf16.msra.mxu0 %v4252
  %4500 = vmatprep.subr.bf16.mxu0 %v4257
  %4501 = vmatpush1.bf16.msra.mxu0 %v4256
  %4502 = vmatprep.subr.bf16.mxu0 %v4261
  %4503 = vmatpush1.bf16.msra.mxu0 %v4260
  %4504 = vmatprep.subr.bf16.mxu0 %v4265
  %4505 = vmatpush1.bf16.msra.mxu0 %v4264
  %4506 = vmatprep.subr.bf16.mxu0 %v4269
  %4507 = vmatpush1.bf16.msra.mxu0 %v4268
  %4508 = vmatprep.subr.bf16.mxu0 %v4273
  %4509 = vmatpush1.bf16.msra.mxu0 %v4272
  %4510 = vmatprep.subr.bf16.mxu0 %v4277
  %4511 = vmatpush1.bf16.msra.mxu0 %v4276
  %4512 = vmatprep.subr.bf16.mxu0 %v4281
  %4513 = vmatpush1.bf16.msra.mxu0 %v4280
  %4514 = vmatprep.subr.bf16.mxu0 %v4285
  %4515 = vmatpush1.bf16.msra.mxu0 %v4284
  %4516 = vmatprep.subr.bf16.mxu0 %v4289
  %4517 = vmatpush1.bf16.msra.mxu0 %v4288
  %4518 = vmatprep.subr.bf16.mxu0 %v4293
  %4519 = vmatpush1.bf16.msra.mxu0 %v4292
  %4520 = vmatprep.mubr.bf16.mxu0 %v3687
  %4521 = vmatmul.mubr.bf16.gmra.mrb[0].mxu0 %v3686
  %v4522 = vpop.f32.mrb[0].mxu0
  %v4523 = vadd.f32 %v3831, %v4522
  %v4524 = vpop.f32.mrb[0].mxu0
  %v4525 = vadd.f32 %v3835, %v4524
  %v4526 = vpop.f32.mrb[0].mxu0
  %v4527 = vpop.f32.mrb[0].mxu0
  %4528 = vdwg.mxu0
  %4529 = vmatprep.subr.bf16.mxu0 %v4297
  %4530 = vmatpush1.bf16.msra.mxu0 %v4296
  %4531 = vmatprep.subr.bf16.mxu0 %v4301
  %4532 = vmatpush1.bf16.msra.mxu0 %v4300
  %4533 = vmatprep.subr.bf16.mxu0 %v4305
  %4534 = vmatpush1.bf16.msra.mxu0 %v4304
  %4535 = vmatprep.subr.bf16.mxu0 %v4309
  %4536 = vmatpush1.bf16.msra.mxu0 %v4308
  %4537 = vmatprep.subr.bf16.mxu0 %v4313
  %4538 = vmatpush1.bf16.msra.mxu0 %v4312
  %4539 = vmatprep.subr.bf16.mxu0 %v4317
  %4540 = vmatpush1.bf16.msra.mxu0 %v4316
  %4541 = vmatprep.subr.bf16.mxu0 %v4321
  %4542 = vmatpush1.bf16.msra.mxu0 %v4320
  %4543 = vmatprep.subr.bf16.mxu0 %v4325
  %4544 = vmatpush1.bf16.msra.mxu0 %v4324
  %4545 = vmatprep.subr.bf16.mxu0 %v4329
  %4546 = vmatpush1.bf16.msra.mxu0 %v4328
  %4547 = vmatprep.subr.bf16.mxu0 %v4333
  %4548 = vmatpush1.bf16.msra.mxu0 %v4332
  %4549 = vmatprep.subr.bf16.mxu0 %v4337
  %4550 = vmatpush1.bf16.msra.mxu0 %v4336
  %4551 = vmatprep.subr.bf16.mxu0 %v4341
  %4552 = vmatpush1.bf16.msra.mxu0 %v4340
  %4553 = vmatprep.subr.bf16.mxu0 %v4345
  %4554 = vmatpush1.bf16.msra.mxu0 %v4344
  %4555 = vmatprep.subr.bf16.mxu0 %v4349
  %4556 = vmatpush1.bf16.msra.mxu0 %v4348
  %4557 = vmatprep.subr.bf16.mxu0 %v4353
  %4558 = vmatpush1.bf16.msra.mxu0 %v4352
  %4559 = vmatprep.subr.bf16.mxu0 %v4357
  %4560 = vmatpush1.bf16.msra.mxu0 %v4356
  %4561 = vmatprep.mubr.bf16.mxu0 %v3689
  %4562 = vmatmul.mubr.bf16.gmra.mrb[0].mxu0 %v3688
  %v4563 = vpop.f32.mrb[0].mxu0
  %v4564 = vadd.f32 %v4523, %v4563
  %v4565 = vpop.f32.mrb[0].mxu0
  %v4566 = vadd.f32 %v4525, %v4565
  %v4567 = vpop.f32.mrb[0].mxu0
  %v4568 = vpop.f32.mrb[0].mxu0
  %4569 = vdwg.mxu0
  %4570 = vmatprep.subr.bf16.mxu0 %v4235
  %4571 = vmatpush1.bf16.msra.mxu0 %v4234
  %4572 = vmatprep.subr.bf16.mxu0 %v4239
  %4573 = vmatpush1.bf16.msra.mxu0 %v4238
  %4574 = vmatprep.subr.bf16.mxu0 %v4243
  %4575 = vmatpush1.bf16.msra.mxu0 %v4242
  %4576 = vmatprep.subr.bf16.mxu0 %v4247
  %4577 = vmatpush1.bf16.msra.mxu0 %v4246
  %4578 = vmatprep.subr.bf16.mxu0 %v4251
  %4579 = vmatpush1.bf16.msra.mxu0 %v4250
  %4580 = vmatprep.subr.bf16.mxu0 %v4255
  %4581 = vmatpush1.bf16.msra.mxu0 %v4254
  %4582 = vmatprep.subr.bf16.mxu0 %v4259
  %4583 = vmatpush1.bf16.msra.mxu0 %v4258
  %4584 = vmatprep.subr.bf16.mxu0 %v4263
  %4585 = vmatpush1.bf16.msra.mxu0 %v4262
  %4586 = vmatprep.subr.bf16.mxu0 %v4267
  %4587 = vmatpush1.bf16.msra.mxu0 %v4266
  %4588 = vmatprep.subr.bf16.mxu0 %v4271
  %4589 = vmatpush1.bf16.msra.mxu0 %v4270
  %4590 = vmatprep.subr.bf16.mxu0 %v4275
  %4591 = vmatpush1.bf16.msra.mxu0 %v4274
  %4592 = vmatprep.subr.bf16.mxu0 %v4279
  %4593 = vmatpush1.bf16.msra.mxu0 %v4278
  %4594 = vmatprep.subr.bf16.mxu0 %v4283
  %4595 = vmatpush1.bf16.msra.mxu0 %v4282
  %4596 = vmatprep.subr.bf16.mxu0 %v4287
  %4597 = vmatpush1.bf16.msra.mxu0 %v4286
  %4598 = vmatprep.subr.bf16.mxu0 %v4291
  %4599 = vmatpush1.bf16.msra.mxu0 %v4290
  %4600 = vmatprep.subr.bf16.mxu0 %v4295
  %4601 = vmatpush1.bf16.msra.mxu0 %v4294
  %4602 = vmatprep.mubr.bf16.mxu0 %v3687
  %4603 = vmatmul.mubr.bf16.gmra.mrb[0].mxu0 %v3686
  %v4604 = vpop.f32.mrb[0].mxu0
  %v4605 = vadd.f32 %v3839, %v4604
  %v4606 = vpop.f32.mrb[0].mxu0
  %v4607 = vadd.f32 %v3843, %v4606
  %v4608 = vpop.f32.mrb[0].mxu0
  %v4609 = vpop.f32.mrb[0].mxu0
  %4610 = vdwg.mxu0
  %4611 = vmatprep.subr.bf16.mxu0 %v4299
  %4612 = vmatpush1.bf16.msra.mxu0 %v4298
  %4613 = vmatprep.subr.bf16.mxu0 %v4303
  %4614 = vmatpush1.bf16.msra.mxu0 %v4302
  %4615 = vmatprep.subr.bf16.mxu0 %v4307
  %4616 = vmatpush1.bf16.msra.mxu0 %v4306
  %4617 = vmatprep.subr.bf16.mxu0 %v4311
  %4618 = vmatpush1.bf16.msra.mxu0 %v4310
  %4619 = vmatprep.subr.bf16.mxu0 %v4315
  %4620 = vmatpush1.bf16.msra.mxu0 %v4314
  %4621 = vmatprep.subr.bf16.mxu0 %v4319
  %4622 = vmatpush1.bf16.msra.mxu0 %v4318
  %4623 = vmatprep.subr.bf16.mxu0 %v4323
  %4624 = vmatpush1.bf16.msra.mxu0 %v4322
  %4625 = vmatprep.subr.bf16.mxu0 %v4327
  %4626 = vmatpush1.bf16.msra.mxu0 %v4326
  %4627 = vmatprep.subr.bf16.mxu0 %v4331
  %4628 = vmatpush1.bf16.msra.mxu0 %v4330
  %4629 = vmatprep.subr.bf16.mxu0 %v4335
  %4630 = vmatpush1.bf16.msra.mxu0 %v4334
  %4631 = vmatprep.subr.bf16.mxu0 %v4339
  %4632 = vmatpush1.bf16.msra.mxu0 %v4338
  %4633 = vmatprep.subr.bf16.mxu0 %v4343
  %4634 = vmatpush1.bf16.msra.mxu0 %v4342
  %4635 = vmatprep.subr.bf16.mxu0 %v4347
  %4636 = vmatpush1.bf16.msra.mxu0 %v4346
  %4637 = vmatprep.subr.bf16.mxu0 %v4351
  %4638 = vmatpush1.bf16.msra.mxu0 %v4350
  %4639 = vmatprep.subr.bf16.mxu0 %v4355
  %4640 = vmatpush1.bf16.msra.mxu0 %v4354
  %4641 = vmatprep.subr.bf16.mxu0 %v4359
  %4642 = vmatpush1.bf16.msra.mxu0 %v4358
  %4643 = vmatprep.mubr.bf16.mxu0 %v3689
  %4644 = vmatmul.mubr.bf16.gmra.mrb[0].mxu0 %v3688
  %v4645 = vpop.f32.mrb[0].mxu0
  %v4646 = vadd.f32 %v4605, %v4645
  %v4647 = vpop.f32.mrb[0].mxu0
  %v4648 = vadd.f32 %v4607, %v4647
  %v4649 = vpop.f32.mrb[0].mxu0
  %v4650 = vpop.f32.mrb[0].mxu0
  %4651 = vdwg.mxu0
  %v4652 = vmax.f32 %v4564, 0.0
  %v4653 = vmax.f32 %v4566, 0.0
  %v4654 = vmax.f32 %v4646, 0.0
  %v4655 = vmax.f32 %v4648, 0.0
  %v4656 = vpack.c.bf16 %v4652, %v4652
  %v4657 = vpack.c.bf16 %v4653, %v4653
  %v4658 = vpack.c.bf16 %v4654, %v4654
  %v4659 = vpack.c.bf16 %v4655, %v4655
  %v4660 = vld [vmem:[%s8] sm:$0xff]
  %v4661 = vld [vmem:[%s8 + $0x8] sm:$0xff]
  %v4662 = vld [vmem:[%s8 + $0x10] sm:$0xff]
  %v4663 = vld [vmem:[%s8 + $0x18] sm:$0xff]
  %v4664 = vld [vmem:[%s8 + $0x20] sm:$0xff]
  %v4665 = vld [vmem:[%s8 + $0x28] sm:$0xff]
  %v4666 = vld [vmem:[%s8 + $0x30] sm:$0xff]
  %v4667 = vld [vmem:[%s8 + $0x38] sm:$0xff]
  %v4668 = vld [vmem:[%s8 + $0x40] sm:$0xff]
  %v4669 = vld [vmem:[%s8 + $0x48] sm:$0xff]
  %v4670 = vld [vmem:[%s8 + $0x50] sm:$0xff]
  %v4671 = vld [vmem:[%s8 + $0x58] sm:$0xff]
  %v4672 = vld [vmem:[%s8 + $0x60] sm:$0xff]
  %v4673 = vld [vmem:[%s8 + $0x68] sm:$0xff]
  %v4674 = vld [vmem:[%s8 + $0x70] sm:$0xff]
  %v4675 = vld [vmem:[%s8 + $0x78] sm:$0xff]
  %v4676 = vld [vmem:[%s8 + $0x80] sm:$0xff]
  %v4677 = vld [vmem:[%s8 + $0x88] sm:$0xff]
  %v4678 = vld [vmem:[%s8 + $0x90] sm:$0xff]
  %v4679 = vld [vmem:[%s8 + $0x98] sm:$0xff]
  %v4680 = vld [vmem:[%s8 + $0xa0] sm:$0xff]
  %v4681 = vld [vmem:[%s8 + $0xa8] sm:$0xff]
  %v4682 = vld [vmem:[%s8 + $0xb0] sm:$0xff]
  %v4683 = vld [vmem:[%s8 + $0xb8] sm:$0xff]
  %v4684 = vld [vmem:[%s8 + $0xc0] sm:$0xff]
  %v4685 = vld [vmem:[%s8 + $0xc8] sm:$0xff]
  %v4686 = vld [vmem:[%s8 + $0xd0] sm:$0xff]
  %v4687 = vld [vmem:[%s8 + $0xd8] sm:$0xff]
  %v4688 = vld [vmem:[%s8 + $0xe0] sm:$0xff]
  %v4689 = vld [vmem:[%s8 + $0xe8] sm:$0xff]
  %v4690 = vld [vmem:[%s8 + $0xf0] sm:$0xff]
  %v4691 = vld [vmem:[%s8 + $0xf8] sm:$0xff]
  %v4692 = vld [vmem:[%s8 + $0x100] sm:$0xff]
  %v4693 = vld [vmem:[%s8 + $0x108] sm:$0xff]
  %v4694 = vld [vmem:[%s8 + $0x110] sm:$0xff]
  %v4695 = vld [vmem:[%s8 + $0x118] sm:$0xff]
  %v4696 = vld [vmem:[%s8 + $0x120] sm:$0xff]
  %v4697 = vld [vmem:[%s8 + $0x128] sm:$0xff]
  %v4698 = vld [vmem:[%s8 + $0x130] sm:$0xff]
  %v4699 = vld [vmem:[%s8 + $0x138] sm:$0xff]
  %v4700 = vld [vmem:[%s8 + $0x140] sm:$0xff]
  %v4701 = vld [vmem:[%s8 + $0x148] sm:$0xff]
  %v4702 = vld [vmem:[%s8 + $0x150] sm:$0xff]
  %v4703 = vld [vmem:[%s8 + $0x158] sm:$0xff]
  %v4704 = vld [vmem:[%s8 + $0x160] sm:$0xff]
  %v4705 = vld [vmem:[%s8 + $0x168] sm:$0xff]
  %v4706 = vld [vmem:[%s8 + $0x170] sm:$0xff]
  %v4707 = vld [vmem:[%s8 + $0x178] sm:$0xff]
  %v4708 = vld [vmem:[%s8 + $0x180] sm:$0xff]
  %v4709 = vld [vmem:[%s8 + $0x188] sm:$0xff]
  %v4710 = vld [vmem:[%s8 + $0x190] sm:$0xff]
  %v4711 = vld [vmem:[%s8 + $0x198] sm:$0xff]
  %v4712 = vld [vmem:[%s8 + $0x1a0] sm:$0xff]
  %v4713 = vld [vmem:[%s8 + $0x1a8] sm:$0xff]
  %v4714 = vld [vmem:[%s8 + $0x1b0] sm:$0xff]
  %v4715 = vld [vmem:[%s8 + $0x1b8] sm:$0xff]
  %v4716 = vld [vmem:[%s8 + $0x1c0] sm:$0xff]
  %v4717 = vld [vmem:[%s8 + $0x1c8] sm:$0xff]
  %v4718 = vld [vmem:[%s8 + $0x1d0] sm:$0xff]
  %v4719 = vld [vmem:[%s8 + $0x1d8] sm:$0xff]
  %v4720 = vld [vmem:[%s8 + $0x1e0] sm:$0xff]
  %v4721 = vld [vmem:[%s8 + $0x1e8] sm:$0xff]
  %v4722 = vld [vmem:[%s8 + $0x1f0] sm:$0xff]
  %v4723 = vld [vmem:[%s8 + $0x1f8] sm:$0xff]
  %v4724 = vld [vmem:[%s8 + $0x200] sm:$0xff]
  %v4725 = vld [vmem:[%s8 + $0x208] sm:$0xff]
  %v4726 = vld [vmem:[%s8 + $0x210] sm:$0xff]
  %v4727 = vld [vmem:[%s8 + $0x218] sm:$0xff]
  %v4728 = vld [vmem:[%s8 + $0x220] sm:$0xff]
  %v4729 = vld [vmem:[%s8 + $0x228] sm:$0xff]
  %v4730 = vld [vmem:[%s8 + $0x230] sm:$0xff]
  %v4731 = vld [vmem:[%s8 + $0x238] sm:$0xff]
  %v4732 = vld [vmem:[%s8 + $0x240] sm:$0xff]
  %v4733 = vld [vmem:[%s8 + $0x248] sm:$0xff]
  %v4734 = vld [vmem:[%s8 + $0x250] sm:$0xff]
  %v4735 = vld [vmem:[%s8 + $0x258] sm:$0xff]
  %v4736 = vld [vmem:[%s8 + $0x260] sm:$0xff]
  %v4737 = vld [vmem:[%s8 + $0x268] sm:$0xff]
  %v4738 = vld [vmem:[%s8 + $0x270] sm:$0xff]
  %v4739 = vld [vmem:[%s8 + $0x278] sm:$0xff]
  %v4740 = vld [vmem:[%s8 + $0x280] sm:$0xff]
  %v4741 = vld [vmem:[%s8 + $0x288] sm:$0xff]
  %v4742 = vld [vmem:[%s8 + $0x290] sm:$0xff]
  %v4743 = vld [vmem:[%s8 + $0x298] sm:$0xff]
  %v4744 = vld [vmem:[%s8 + $0x2a0] sm:$0xff]
  %v4745 = vld [vmem:[%s8 + $0x2a8] sm:$0xff]
  %v4746 = vld [vmem:[%s8 + $0x2b0] sm:$0xff]
  %v4747 = vld [vmem:[%s8 + $0x2b8] sm:$0xff]
  %v4748 = vld [vmem:[%s8 + $0x2c0] sm:$0xff]
  %v4749 = vld [vmem:[%s8 + $0x2c8] sm:$0xff]
  %v4750 = vld [vmem:[%s8 + $0x2d0] sm:$0xff]
  %v4751 = vld [vmem:[%s8 + $0x2d8] sm:$0xff]
  %v4752 = vld [vmem:[%s8 + $0x2e0] sm:$0xff]
  %v4753 = vld [vmem:[%s8 + $0x2e8] sm:$0xff]
  %v4754 = vld [vmem:[%s8 + $0x2f0] sm:$0xff]
  %v4755 = vld [vmem:[%s8 + $0x2f8] sm:$0xff]
  %v4756 = vld [vmem:[%s8 + $0x300] sm:$0xff]
  %v4757 = vld [vmem:[%s8 + $0x308] sm:$0xff]
  %v4758 = vld [vmem:[%s8 + $0x310] sm:$0xff]
  %v4759 = vld [vmem:[%s8 + $0x318] sm:$0xff]
  %v4760 = vld [vmem:[%s8 + $0x320] sm:$0xff]
  %v4761 = vld [vmem:[%s8 + $0x328] sm:$0xff]
  %v4762 = vld [vmem:[%s8 + $0x330] sm:$0xff]
  %v4763 = vld [vmem:[%s8 + $0x338] sm:$0xff]
  %v4764 = vld [vmem:[%s8 + $0x340] sm:$0xff]
  %v4765 = vld [vmem:[%s8 + $0x348] sm:$0xff]
  %v4766 = vld [vmem:[%s8 + $0x350] sm:$0xff]
  %v4767 = vld [vmem:[%s8 + $0x358] sm:$0xff]
  %v4768 = vld [vmem:[%s8 + $0x360] sm:$0xff]
  %v4769 = vld [vmem:[%s8 + $0x368] sm:$0xff]
  %v4770 = vld [vmem:[%s8 + $0x370] sm:$0xff]
  %v4771 = vld [vmem:[%s8 + $0x378] sm:$0xff]
  %v4772 = vld [vmem:[%s8 + $0x380] sm:$0xff]
  %v4773 = vld [vmem:[%s8 + $0x388] sm:$0xff]
  %v4774 = vld [vmem:[%s8 + $0x390] sm:$0xff]
  %v4775 = vld [vmem:[%s8 + $0x398] sm:$0xff]
  %v4776 = vld [vmem:[%s8 + $0x3a0] sm:$0xff]
  %v4777 = vld [vmem:[%s8 + $0x3a8] sm:$0xff]
  %v4778 = vld [vmem:[%s8 + $0x3b0] sm:$0xff]
  %v4779 = vld [vmem:[%s8 + $0x3b8] sm:$0xff]
  %v4780 = vld [vmem:[%s8 + $0x3c0] sm:$0xff]
  %v4781 = vld [vmem:[%s8 + $0x3c8] sm:$0xff]
  %v4782 = vld [vmem:[%s8 + $0x3d0] sm:$0xff]
  %v4783 = vld [vmem:[%s8 + $0x3d8] sm:$0xff]
  %v4784 = vld [vmem:[%s8 + $0x3e0] sm:$0xff]
  %v4785 = vld [vmem:[%s8 + $0x3e8] sm:$0xff]
  %v4786 = vld [vmem:[%s8 + $0x3f0] sm:$0xff]
  %v4787 = vld [vmem:[%s8 + $0x3f8] sm:$0xff]
  %v4788 = vld [vmem:[%s11] sm:$0xf]
  %v4790 = vlaneseq
  %v4791 = vshrl.u32 %v4790, 7
  %v4792 = vsub.s32 0, %v4791
  %v4793 = vrot.slane %v4788, %v4792
  %v4794 = vlaneseq
  %v4795 = vshrl.u32 %v4794, 7
  %v4796 = vsub.s32 1, %v4795
  %v4797 = vrot.slane %v4788, %v4796
  %v4798 = vlaneseq
  %v4799 = vshrl.u32 %v4798, 7
  %v4800 = vsub.s32 2, %v4799
  %v4801 = vrot.slane %v4788, %v4800
  %v4802 = vlaneseq
  %v4803 = vshrl.u32 %v4802, 7
  %v4804 = vsub.s32 3, %v4803
  %v4805 = vrot.slane %v4788, %v4804
  %v4938 = vunpack.c.l.b16 %v4660
  %v4939 = vunpack.c.h.b16 %v4660
  %v4940 = vunpack.c.l.b16 %v4661
  %v4941 = vunpack.c.h.b16 %v4661
  %v4942 = vunpack.c.l.b16 %v4662
  %v4943 = vunpack.c.h.b16 %v4662
  %v4944 = vunpack.c.l.b16 %v4663
  %v4945 = vunpack.c.h.b16 %v4663
  %v4946 = vunpack.c.l.b16 %v4664
  %v4947 = vunpack.c.h.b16 %v4664
  %v4948 = vunpack.c.l.b16 %v4665
  %v4949 = vunpack.c.h.b16 %v4665
  %v4950 = vunpack.c.l.b16 %v4666
  %v4951 = vunpack.c.h.b16 %v4666
  %v4952 = vunpack.c.l.b16 %v4667
  %v4953 = vunpack.c.h.b16 %v4667
  %v4954 = vunpack.c.l.b16 %v4668
  %v4955 = vunpack.c.h.b16 %v4668
  %v4956 = vunpack.c.l.b16 %v4669
  %v4957 = vunpack.c.h.b16 %v4669
  %v4958 = vunpack.c.l.b16 %v4670
  %v4959 = vunpack.c.h.b16 %v4670
  %v4960 = vunpack.c.l.b16 %v4671
  %v4961 = vunpack.c.h.b16 %v4671
  %v4962 = vunpack.c.l.b16 %v4672
  %v4963 = vunpack.c.h.b16 %v4672
  %v4964 = vunpack.c.l.b16 %v4673
  %v4965 = vunpack.c.h.b16 %v4673
  %v4966 = vunpack.c.l.b16 %v4674
  %v4967 = vunpack.c.h.b16 %v4674
  %v4968 = vunpack.c.l.b16 %v4675
  %v4969 = vunpack.c.h.b16 %v4675
  %v4970 = vunpack.c.l.b16 %v4676
  %v4971 = vunpack.c.h.b16 %v4676
  %v4972 = vunpack.c.l.b16 %v4677
  %v4973 = vunpack.c.h.b16 %v4677
  %v4974 = vunpack.c.l.b16 %v4678
  %v4975 = vunpack.c.h.b16 %v4678
  %v4976 = vunpack.c.l.b16 %v4679
  %v4977 = vunpack.c.h.b16 %v4679
  %v4978 = vunpack.c.l.b16 %v4680
  %v4979 = vunpack.c.h.b16 %v4680
  %v4980 = vunpack.c.l.b16 %v4681
  %v4981 = vunpack.c.h.b16 %v4681
  %v4982 = vunpack.c.l.b16 %v4682
  %v4983 = vunpack.c.h.b16 %v4682
  %v4984 = vunpack.c.l.b16 %v4683
  %v4985 = vunpack.c.h.b16 %v4683
  %v4986 = vunpack.c.l.b16 %v4684
  %v4987 = vunpack.c.h.b16 %v4684
  %v4988 = vunpack.c.l.b16 %v4685
  %v4989 = vunpack.c.h.b16 %v4685
  %v4990 = vunpack.c.l.b16 %v4686
  %v4991 = vunpack.c.h.b16 %v4686
  %v4992 = vunpack.c.l.b16 %v4687
  %v4993 = vunpack.c.h.b16 %v4687
  %v4994 = vunpack.c.l.b16 %v4688
  %v4995 = vunpack.c.h.b16 %v4688
  %v4996 = vunpack.c.l.b16 %v4689
  %v4997 = vunpack.c.h.b16 %v4689
  %v4998 = vunpack.c.l.b16 %v4690
  %v4999 = vunpack.c.h.b16 %v4690
  %v5000 = vunpack.c.l.b16 %v4691
  %v5001 = vunpack.c.h.b16 %v4691
  %v5002 = vunpack.c.l.b16 %v4692
  %v5003 = vunpack.c.h.b16 %v4692
  %v5004 = vunpack.c.l.b16 %v4693
  %v5005 = vunpack.c.h.b16 %v4693
  %v5006 = vunpack.c.l.b16 %v4694
  %v5007 = vunpack.c.h.b16 %v4694
  %v5008 = vunpack.c.l.b16 %v4695
  %v5009 = vunpack.c.h.b16 %v4695
  %v5010 = vunpack.c.l.b16 %v4696
  %v5011 = vunpack.c.h.b16 %v4696
  %v5012 = vunpack.c.l.b16 %v4697
  %v5013 = vunpack.c.h.b16 %v4697
  %v5014 = vunpack.c.l.b16 %v4698
  %v5015 = vunpack.c.h.b16 %v4698
  %v5016 = vunpack.c.l.b16 %v4699
  %v5017 = vunpack.c.h.b16 %v4699
  %v5018 = vunpack.c.l.b16 %v4700
  %v5019 = vunpack.c.h.b16 %v4700
  %v5020 = vunpack.c.l.b16 %v4701
  %v5021 = vunpack.c.h.b16 %v4701
  %v5022 = vunpack.c.l.b16 %v4702
  %v5023 = vunpack.c.h.b16 %v4702
  %v5024 = vunpack.c.l.b16 %v4703
  %v5025 = vunpack.c.h.b16 %v4703
  %v5026 = vunpack.c.l.b16 %v4704
  %v5027 = vunpack.c.h.b16 %v4704
  %v5028 = vunpack.c.l.b16 %v4705
  %v5029 = vunpack.c.h.b16 %v4705
  %v5030 = vunpack.c.l.b16 %v4706
  %v5031 = vunpack.c.h.b16 %v4706
  %v5032 = vunpack.c.l.b16 %v4707
  %v5033 = vunpack.c.h.b16 %v4707
  %v5034 = vunpack.c.l.b16 %v4708
  %v5035 = vunpack.c.h.b16 %v4708
  %v5036 = vunpack.c.l.b16 %v4709
  %v5037 = vunpack.c.h.b16 %v4709
  %v5038 = vunpack.c.l.b16 %v4710
  %v5039 = vunpack.c.h.b16 %v4710
  %v5040 = vunpack.c.l.b16 %v4711
  %v5041 = vunpack.c.h.b16 %v4711
  %v5042 = vunpack.c.l.b16 %v4712
  %v5043 = vunpack.c.h.b16 %v4712
  %v5044 = vunpack.c.l.b16 %v4713
  %v5045 = vunpack.c.h.b16 %v4713
  %v5046 = vunpack.c.l.b16 %v4714
  %v5047 = vunpack.c.h.b16 %v4714
  %v5048 = vunpack.c.l.b16 %v4715
  %v5049 = vunpack.c.h.b16 %v4715
  %v5050 = vunpack.c.l.b16 %v4716
  %v5051 = vunpack.c.h.b16 %v4716
  %v5052 = vunpack.c.l.b16 %v4717
  %v5053 = vunpack.c.h.b16 %v4717
  %v5054 = vunpack.c.l.b16 %v4718
  %v5055 = vunpack.c.h.b16 %v4718
  %v5056 = vunpack.c.l.b16 %v4719
  %v5057 = vunpack.c.h.b16 %v4719
  %v5058 = vunpack.c.l.b16 %v4720
  %v5059 = vunpack.c.h.b16 %v4720
  %v5060 = vunpack.c.l.b16 %v4721
  %v5061 = vunpack.c.h.b16 %v4721
  %v5062 = vunpack.c.l.b16 %v4722
  %v5063 = vunpack.c.h.b16 %v4722
  %v5064 = vunpack.c.l.b16 %v4723
  %v5065 = vunpack.c.h.b16 %v4723
  %v5066 = vunpack.c.l.b16 %v4724
  %v5067 = vunpack.c.h.b16 %v4724
  %v5068 = vunpack.c.l.b16 %v4725
  %v5069 = vunpack.c.h.b16 %v4725
  %v5070 = vunpack.c.l.b16 %v4726
  %v5071 = vunpack.c.h.b16 %v4726
  %v5072 = vunpack.c.l.b16 %v4727
  %v5073 = vunpack.c.h.b16 %v4727
  %v5074 = vunpack.c.l.b16 %v4728
  %v5075 = vunpack.c.h.b16 %v4728
  %v5076 = vunpack.c.l.b16 %v4729
  %v5077 = vunpack.c.h.b16 %v4729
  %v5078 = vunpack.c.l.b16 %v4730
  %v5079 = vunpack.c.h.b16 %v4730
  %v5080 = vunpack.c.l.b16 %v4731
  %v5081 = vunpack.c.h.b16 %v4731
  %v5082 = vunpack.c.l.b16 %v4732
  %v5083 = vunpack.c.h.b16 %v4732
  %v5084 = vunpack.c.l.b16 %v4733
  %v5085 = vunpack.c.h.b16 %v4733
  %v5086 = vunpack.c.l.b16 %v4734
  %v5087 = vunpack.c.h.b16 %v4734
  %v5088 = vunpack.c.l.b16 %v4735
  %v5089 = vunpack.c.h.b16 %v4735
  %v5090 = vunpack.c.l.b16 %v4736
  %v5091 = vunpack.c.h.b16 %v4736
  %v5092 = vunpack.c.l.b16 %v4737
  %v5093 = vunpack.c.h.b16 %v4737
  %v5094 = vunpack.c.l.b16 %v4738
  %v5095 = vunpack.c.h.b16 %v4738
  %v5096 = vunpack.c.l.b16 %v4739
  %v5097 = vunpack.c.h.b16 %v4739
  %v5098 = vunpack.c.l.b16 %v4740
  %v5099 = vunpack.c.h.b16 %v4740
  %v5100 = vunpack.c.l.b16 %v4741
  %v5101 = vunpack.c.h.b16 %v4741
  %v5102 = vunpack.c.l.b16 %v4742
  %v5103 = vunpack.c.h.b16 %v4742
  %v5104 = vunpack.c.l.b16 %v4743
  %v5105 = vunpack.c.h.b16 %v4743
  %v5106 = vunpack.c.l.b16 %v4744
  %v5107 = vunpack.c.h.b16 %v4744
  %v5108 = vunpack.c.l.b16 %v4745
  %v5109 = vunpack.c.h.b16 %v4745
  %v5110 = vunpack.c.l.b16 %v4746
  %v5111 = vunpack.c.h.b16 %v4746
  %v5112 = vunpack.c.l.b16 %v4747
  %v5113 = vunpack.c.h.b16 %v4747
  %v5114 = vunpack.c.l.b16 %v4748
  %v5115 = vunpack.c.h.b16 %v4748
  %v5116 = vunpack.c.l.b16 %v4749
  %v5117 = vunpack.c.h.b16 %v4749
  %v5118 = vunpack.c.l.b16 %v4750
  %v5119 = vunpack.c.h.b16 %v4750
  %v5120 = vunpack.c.l.b16 %v4751
  %v5121 = vunpack.c.h.b16 %v4751
  %v5122 = vunpack.c.l.b16 %v4752
  %v5123 = vunpack.c.h.b16 %v4752
  %v5124 = vunpack.c.l.b16 %v4753
  %v5125 = vunpack.c.h.b16 %v4753
  %v5126 = vunpack.c.l.b16 %v4754
  %v5127 = vunpack.c.h.b16 %v4754
  %v5128 = vunpack.c.l.b16 %v4755
  %v5129 = vunpack.c.h.b16 %v4755
  %v5130 = vunpack.c.l.b16 %v4756
  %v5131 = vunpack.c.h.b16 %v4756
  %v5132 = vunpack.c.l.b16 %v4757
  %v5133 = vunpack.c.h.b16 %v4757
  %v5134 = vunpack.c.l.b16 %v4758
  %v5135 = vunpack.c.h.b16 %v4758
  %v5136 = vunpack.c.l.b16 %v4759
  %v5137 = vunpack.c.h.b16 %v4759
  %v5138 = vunpack.c.l.b16 %v4760
  %v5139 = vunpack.c.h.b16 %v4760
  %v5140 = vunpack.c.l.b16 %v4761
  %v5141 = vunpack.c.h.b16 %v4761
  %v5142 = vunpack.c.l.b16 %v4762
  %v5143 = vunpack.c.h.b16 %v4762
  %v5144 = vunpack.c.l.b16 %v4763
  %v5145 = vunpack.c.h.b16 %v4763
  %v5146 = vunpack.c.l.b16 %v4764
  %v5147 = vunpack.c.h.b16 %v4764
  %v5148 = vunpack.c.l.b16 %v4765
  %v5149 = vunpack.c.h.b16 %v4765
  %v5150 = vunpack.c.l.b16 %v4766
  %v5151 = vunpack.c.h.b16 %v4766
  %v5152 = vunpack.c.l.b16 %v4767
  %v5153 = vunpack.c.h.b16 %v4767
  %v5154 = vunpack.c.l.b16 %v4768
  %v5155 = vunpack.c.h.b16 %v4768
  %v5156 = vunpack.c.l.b16 %v4769
  %v5157 = vunpack.c.h.b16 %v4769
  %v5158 = vunpack.c.l.b16 %v4770
  %v5159 = vunpack.c.h.b16 %v4770
  %v5160 = vunpack.c.l.b16 %v4771
  %v5161 = vunpack.c.h.b16 %v4771
  %v5162 = vunpack.c.l.b16 %v4772
  %v5163 = vunpack.c.h.b16 %v4772
  %v5164 = vunpack.c.l.b16 %v4773
  %v5165 = vunpack.c.h.b16 %v4773
  %v5166 = vunpack.c.l.b16 %v4774
  %v5167 = vunpack.c.h.b16 %v4774
  %v5168 = vunpack.c.l.b16 %v4775
  %v5169 = vunpack.c.h.b16 %v4775
  %v5170 = vunpack.c.l.b16 %v4776
  %v5171 = vunpack.c.h.b16 %v4776
  %v5172 = vunpack.c.l.b16 %v4777
  %v5173 = vunpack.c.h.b16 %v4777
  %v5174 = vunpack.c.l.b16 %v4778
  %v5175 = vunpack.c.h.b16 %v4778
  %v5176 = vunpack.c.l.b16 %v4779
  %v5177 = vunpack.c.h.b16 %v4779
  %v5178 = vunpack.c.l.b16 %v4780
  %v5179 = vunpack.c.h.b16 %v4780
  %v5180 = vunpack.c.l.b16 %v4781
  %v5181 = vunpack.c.h.b16 %v4781
  %v5182 = vunpack.c.l.b16 %v4782
  %v5183 = vunpack.c.h.b16 %v4782
  %v5184 = vunpack.c.l.b16 %v4783
  %v5185 = vunpack.c.h.b16 %v4783
  %v5186 = vunpack.c.l.b16 %v4784
  %v5187 = vunpack.c.h.b16 %v4784
  %v5188 = vunpack.c.l.b16 %v4785
  %v5189 = vunpack.c.h.b16 %v4785
  %v5190 = vunpack.c.l.b16 %v4786
  %v5191 = vunpack.c.h.b16 %v4786
  %v5192 = vunpack.c.l.b16 %v4787
  %v5193 = vunpack.c.h.b16 %v4787
  %v5194 = vpack.c.b16 %v4942, %v4938
  %v5195 = vpack.c.b16 %v4943, %v4939
  %v5196 = vpack.c.b16 %v4944, %v4940
  %v5197 = vpack.c.b16 %v4945, %v4941
  %v5198 = vpack.c.b16 %v4950, %v4946
  %v5199 = vpack.c.b16 %v4951, %v4947
  %v5200 = vpack.c.b16 %v4952, %v4948
  %v5201 = vpack.c.b16 %v4953, %v4949
  %v5202 = vpack.c.b16 %v4958, %v4954
  %v5203 = vpack.c.b16 %v4959, %v4955
  %v5204 = vpack.c.b16 %v4960, %v4956
  %v5205 = vpack.c.b16 %v4961, %v4957
  %v5206 = vpack.c.b16 %v4966, %v4962
  %v5207 = vpack.c.b16 %v4967, %v4963
  %v5208 = vpack.c.b16 %v4968, %v4964
  %v5209 = vpack.c.b16 %v4969, %v4965
  %v5210 = vpack.c.b16 %v4974, %v4970
  %v5211 = vpack.c.b16 %v4975, %v4971
  %v5212 = vpack.c.b16 %v4976, %v4972
  %v5213 = vpack.c.b16 %v4977, %v4973
  %v5214 = vpack.c.b16 %v4982, %v4978
  %v5215 = vpack.c.b16 %v4983, %v4979
  %v5216 = vpack.c.b16 %v4984, %v4980
  %v5217 = vpack.c.b16 %v4985, %v4981
  %v5218 = vpack.c.b16 %v4990, %v4986
  %v5219 = vpack.c.b16 %v4991, %v4987
  %v5220 = vpack.c.b16 %v4992, %v4988
  %v5221 = vpack.c.b16 %v4993, %v4989
  %v5222 = vpack.c.b16 %v4998, %v4994
  %v5223 = vpack.c.b16 %v4999, %v4995
  %v5224 = vpack.c.b16 %v5000, %v4996
  %v5225 = vpack.c.b16 %v5001, %v4997
  %v5226 = vpack.c.b16 %v5006, %v5002
  %v5227 = vpack.c.b16 %v5007, %v5003
  %v5228 = vpack.c.b16 %v5008, %v5004
  %v5229 = vpack.c.b16 %v5009, %v5005
  %v5230 = vpack.c.b16 %v5014, %v5010
  %v5231 = vpack.c.b16 %v5015, %v5011
  %v5232 = vpack.c.b16 %v5016, %v5012
  %v5233 = vpack.c.b16 %v5017, %v5013
  %v5234 = vpack.c.b16 %v5022, %v5018
  %v5235 = vpack.c.b16 %v5023, %v5019
  %v5236 = vpack.c.b16 %v5024, %v5020
  %v5237 = vpack.c.b16 %v5025, %v5021
  %v5238 = vpack.c.b16 %v5030, %v5026
  %v5239 = vpack.c.b16 %v5031, %v5027
  %v5240 = vpack.c.b16 %v5032, %v5028
  %v5241 = vpack.c.b16 %v5033, %v5029
  %v5242 = vpack.c.b16 %v5038, %v5034
  %v5243 = vpack.c.b16 %v5039, %v5035
  %v5244 = vpack.c.b16 %v5040, %v5036
  %v5245 = vpack.c.b16 %v5041, %v5037
  %v5246 = vpack.c.b16 %v5046, %v5042
  %v5247 = vpack.c.b16 %v5047, %v5043
  %v5248 = vpack.c.b16 %v5048, %v5044
  %v5249 = vpack.c.b16 %v5049, %v5045
  %v5250 = vpack.c.b16 %v5054, %v5050
  %v5251 = vpack.c.b16 %v5055, %v5051
  %v5252 = vpack.c.b16 %v5056, %v5052
  %v5253 = vpack.c.b16 %v5057, %v5053
  %v5254 = vpack.c.b16 %v5062, %v5058
  %v5255 = vpack.c.b16 %v5063, %v5059
  %v5256 = vpack.c.b16 %v5064, %v5060
  %v5257 = vpack.c.b16 %v5065, %v5061
  %v5258 = vpack.c.b16 %v5070, %v5066
  %v5259 = vpack.c.b16 %v5071, %v5067
  %v5260 = vpack.c.b16 %v5072, %v5068
  %v5261 = vpack.c.b16 %v5073, %v5069
  %v5262 = vpack.c.b16 %v5078, %v5074
  %v5263 = vpack.c.b16 %v5079, %v5075
  %v5264 = vpack.c.b16 %v5080, %v5076
  %v5265 = vpack.c.b16 %v5081, %v5077
  %v5266 = vpack.c.b16 %v5086, %v5082
  %v5267 = vpack.c.b16 %v5087, %v5083
  %v5268 = vpack.c.b16 %v5088, %v5084
  %v5269 = vpack.c.b16 %v5089, %v5085
  %v5270 = vpack.c.b16 %v5094, %v5090
  %v5271 = vpack.c.b16 %v5095, %v5091
  %v5272 = vpack.c.b16 %v5096, %v5092
  %v5273 = vpack.c.b16 %v5097, %v5093
  %v5274 = vpack.c.b16 %v5102, %v5098
  %v5275 = vpack.c.b16 %v5103, %v5099
  %v5276 = vpack.c.b16 %v5104, %v5100
  %v5277 = vpack.c.b16 %v5105, %v5101
  %v5278 = vpack.c.b16 %v5110, %v5106
  %v5279 = vpack.c.b16 %v5111, %v5107
  %v5280 = vpack.c.b16 %v5112, %v5108
  %v5281 = vpack.c.b16 %v5113, %v5109
  %v5282 = vpack.c.b16 %v5118, %v5114
  %v5283 = vpack.c.b16 %v5119, %v5115
  %v5284 = vpack.c.b16 %v5120, %v5116
  %v5285 = vpack.c.b16 %v5121, %v5117
  %v5286 = vpack.c.b16 %v5126, %v5122
  %v5287 = vpack.c.b16 %v5127, %v5123
  %v5288 = vpack.c.b16 %v5128, %v5124
  %v5289 = vpack.c.b16 %v5129, %v5125
  %v5290 = vpack.c.b16 %v5134, %v5130
  %v5291 = vpack.c.b16 %v5135, %v5131
  %v5292 = vpack.c.b16 %v5136, %v5132
  %v5293 = vpack.c.b16 %v5137, %v5133
  %v5294 = vpack.c.b16 %v5142, %v5138
  %v5295 = vpack.c.b16 %v5143, %v5139
  %v5296 = vpack.c.b16 %v5144, %v5140
  %v5297 = vpack.c.b16 %v5145, %v5141
  %v5298 = vpack.c.b16 %v5150, %v5146
  %v5299 = vpack.c.b16 %v5151, %v5147
  %v5300 = vpack.c.b16 %v5152, %v5148
  %v5301 = vpack.c.b16 %v5153, %v5149
  %v5302 = vpack.c.b16 %v5158, %v5154
  %v5303 = vpack.c.b16 %v5159, %v5155
  %v5304 = vpack.c.b16 %v5160, %v5156
  %v5305 = vpack.c.b16 %v5161, %v5157
  %v5306 = vpack.c.b16 %v5166, %v5162
  %v5307 = vpack.c.b16 %v5167, %v5163
  %v5308 = vpack.c.b16 %v5168, %v5164
  %v5309 = vpack.c.b16 %v5169, %v5165
  %v5310 = vpack.c.b16 %v5174, %v5170
  %v5311 = vpack.c.b16 %v5175, %v5171
  %v5312 = vpack.c.b16 %v5176, %v5172
  %v5313 = vpack.c.b16 %v5177, %v5173
  %v5314 = vpack.c.b16 %v5182, %v5178
  %v5315 = vpack.c.b16 %v5183, %v5179
  %v5316 = vpack.c.b16 %v5184, %v5180
  %v5317 = vpack.c.b16 %v5185, %v5181
  %v5318 = vpack.c.b16 %v5190, %v5186
  %v5319 = vpack.c.b16 %v5191, %v5187
  %v5320 = vpack.c.b16 %v5192, %v5188
  %v5321 = vpack.c.b16 %v5193, %v5189
  %5450 = vmatprep.subr.bf16.mxu0 %v5195
  %5451 = vmatpush1.bf16.msra.mxu0 %v5194
  %5452 = vmatprep.subr.bf16.mxu0 %v5199
  %5453 = vmatpush1.bf16.msra.mxu0 %v5198
  %5454 = vmatprep.subr.bf16.mxu0 %v5203
  %5455 = vmatpush1.bf16.msra.mxu0 %v5202
  %5456 = vmatprep.subr.bf16.mxu0 %v5207
  %5457 = vmatpush1.bf16.msra.mxu0 %v5206
  %5458 = vmatprep.subr.bf16.mxu0 %v5211
  %5459 = vmatpush1.bf16.msra.mxu0 %v5210
  %5460 = vmatprep.subr.bf16.mxu0 %v5215
  %5461 = vmatpush1.bf16.msra.mxu0 %v5214
  %5462 = vmatprep.subr.bf16.mxu0 %v5219
  %5463 = vmatpush1.bf16.msra.mxu0 %v5218
  %5464 = vmatprep.subr.bf16.mxu0 %v5223
  %5465 = vmatpush1.bf16.msra.mxu0 %v5222
  %5466 = vmatprep.subr.bf16.mxu0 %v5227
  %5467 = vmatpush1.bf16.msra.mxu0 %v5226
  %5468 = vmatprep.subr.bf16.mxu0 %v5231
  %5469 = vmatpush1.bf16.msra.mxu0 %v5230
  %5470 = vmatprep.subr.bf16.mxu0 %v5235
  %5471 = vmatpush1.bf16.msra.mxu0 %v5234
  %5472 = vmatprep.subr.bf16.mxu0 %v5239
  %5473 = vmatpush1.bf16.msra.mxu0 %v5238
  %5474 = vmatprep.subr.bf16.mxu0 %v5243
  %5475 = vmatpush1.bf16.msra.mxu0 %v5242
  %5476 = vmatprep.subr.bf16.mxu0 %v5247
  %5477 = vmatpush1.bf16.msra.mxu0 %v5246
  %5478 = vmatprep.subr.bf16.mxu0 %v5251
  %5479 = vmatpush1.bf16.msra.mxu0 %v5250
  %5480 = vmatprep.subr.bf16.mxu0 %v5255
  %5481 = vmatpush1.bf16.msra.mxu0 %v5254
  %5482 = vmatprep.mubr.bf16.mxu0 %v3691
  %5483 = vmatmul.mubr.bf16.gmra.mrb[0].mxu0 %v3690
  %v5484 = vpop.f32.mrb[0].mxu0
  %v5485 = vadd.f32 %v4793, %v5484
  %v5486 = vpop.f32.mrb[0].mxu0
  %v5487 = vadd.f32 %v4797, %v5486
  %v5488 = vpop.f32.mrb[0].mxu0
  %v5489 = vpop.f32.mrb[0].mxu0
  %5490 = vdwg.mxu0
  %5491 = vmatprep.subr.bf16.mxu0 %v5259
  %5492 = vmatpush1.bf16.msra.mxu0 %v5258
  %5493 = vmatprep.subr.bf16.mxu0 %v5263
  %5494 = vmatpush1.bf16.msra.mxu0 %v5262
  %5495 = vmatprep.subr.bf16.mxu0 %v5267
  %5496 = vmatpush1.bf16.msra.mxu0 %v5266
  %5497 = vmatprep.subr.bf16.mxu0 %v5271
  %5498 = vmatpush1.bf16.msra.mxu0 %v5270
  %5499 = vmatprep.subr.bf16.mxu0 %v5275
  %5500 = vmatpush1.bf16.msra.mxu0 %v5274
  %5501 = vmatprep.subr.bf16.mxu0 %v5279
  %5502 = vmatpush1.bf16.msra.mxu0 %v5278
  %5503 = vmatprep.subr.bf16.mxu0 %v5283
  %5504 = vmatpush1.bf16.msra.mxu0 %v5282
  %5505 = vmatprep.subr.bf16.mxu0 %v5287
  %5506 = vmatpush1.bf16.msra.mxu0 %v5286
  %5507 = vmatprep.subr.bf16.mxu0 %v5291
  %5508 = vmatpush1.bf16.msra.mxu0 %v5290
  %5509 = vmatprep.subr.bf16.mxu0 %v5295
  %5510 = vmatpush1.bf16.msra.mxu0 %v5294
  %5511 = vmatprep.subr.bf16.mxu0 %v5299
  %5512 = vmatpush1.bf16.msra.mxu0 %v5298
  %5513 = vmatprep.subr.bf16.mxu0 %v5303
  %5514 = vmatpush1.bf16.msra.mxu0 %v5302
  %5515 = vmatprep.subr.bf16.mxu0 %v5307
  %5516 = vmatpush1.bf16.msra.mxu0 %v5306
  %5517 = vmatprep.subr.bf16.mxu0 %v5311
  %5518 = vmatpush1.bf16.msra.mxu0 %v5310
  %5519 = vmatprep.subr.bf16.mxu0 %v5315
  %5520 = vmatpush1.bf16.msra.mxu0 %v5314
  %5521 = vmatprep.subr.bf16.mxu0 %v5319
  %5522 = vmatpush1.bf16.msra.mxu0 %v5318
  %5523 = vmatprep.mubr.bf16.mxu0 %v3693
  %5524 = vmatmul.mubr.bf16.gmra.mrb[0].mxu0 %v3692
  %v5525 = vpop.f32.mrb[0].mxu0
  %v5526 = vadd.f32 %v5485, %v5525
  %v5527 = vpop.f32.mrb[0].mxu0
  %v5528 = vadd.f32 %v5487, %v5527
  %v5529 = vpop.f32.mrb[0].mxu0
  %v5530 = vpop.f32.mrb[0].mxu0
  %5531 = vdwg.mxu0
  %5532 = vmatprep.subr.bf16.mxu0 %v5197
  %5533 = vmatpush1.bf16.msra.mxu0 %v5196
  %5534 = vmatprep.subr.bf16.mxu0 %v5201
  %5535 = vmatpush1.bf16.msra.mxu0 %v5200
  %5536 = vmatprep.subr.bf16.mxu0 %v5205
  %5537 = vmatpush1.bf16.msra.mxu0 %v5204
  %5538 = vmatprep.subr.bf16.mxu0 %v5209
  %5539 = vmatpush1.bf16.msra.mxu0 %v5208
  %5540 = vmatprep.subr.bf16.mxu0 %v5213
  %5541 = vmatpush1.bf16.msra.mxu0 %v5212
  %5542 = vmatprep.subr.bf16.mxu0 %v5217
  %5543 = vmatpush1.bf16.msra.mxu0 %v5216
  %5544 = vmatprep.subr.bf16.mxu0 %v5221
  %5545 = vmatpush1.bf16.msra.mxu0 %v5220
  %5546 = vmatprep.subr.bf16.mxu0 %v5225
  %5547 = vmatpush1.bf16.msra.mxu0 %v5224
  %5548 = vmatprep.subr.bf16.mxu0 %v5229
  %5549 = vmatpush1.bf16.msra.mxu0 %v5228
  %5550 = vmatprep.subr.bf16.mxu0 %v5233
  %5551 = vmatpush1.bf16.msra.mxu0 %v5232
  %5552 = vmatprep.subr.bf16.mxu0 %v5237
  %5553 = vmatpush1.bf16.msra.mxu0 %v5236
  %5554 = vmatprep.subr.bf16.mxu0 %v5241
  %5555 = vmatpush1.bf16.msra.mxu0 %v5240
  %5556 = vmatprep.subr.bf16.mxu0 %v5245
  %5557 = vmatpush1.bf16.msra.mxu0 %v5244
  %5558 = vmatprep.subr.bf16.mxu0 %v5249
  %5559 = vmatpush1.bf16.msra.mxu0 %v5248
  %5560 = vmatprep.subr.bf16.mxu0 %v5253
  %5561 = vmatpush1.bf16.msra.mxu0 %v5252
  %5562 = vmatprep.subr.bf16.mxu0 %v5257
  %5563 = vmatpush1.bf16.msra.mxu0 %v5256
  %5564 = vmatprep.mubr.bf16.mxu0 %v3691
  %5565 = vmatmul.mubr.bf16.gmra.mrb[0].mxu0 %v3690
  %v5566 = vpop.f32.mrb[0].mxu0
  %v5567 = vadd.f32 %v4801, %v5566
  %v5568 = vpop.f32.mrb[0].mxu0
  %v5569 = vadd.f32 %v4805, %v5568
  %v5570 = vpop.f32.mrb[0].mxu0
  %v5571 = vpop.f32.mrb[0].mxu0
  %5572 = vdwg.mxu0
  %5573 = vmatprep.subr.bf16.mxu0 %v5261
  %5574 = vmatpush1.bf16.msra.mxu0 %v5260
  %5575 = vmatprep.subr.bf16.mxu0 %v5265
  %5576 = vmatpush1.bf16.msra.mxu0 %v5264
  %5577 = vmatprep.subr.bf16.mxu0 %v5269
  %5578 = vmatpush1.bf16.msra.mxu0 %v5268
  %5579 = vmatprep.subr.bf16.mxu0 %v5273
  %5580 = vmatpush1.bf16.msra.mxu0 %v5272
  %5581 = vmatprep.subr.bf16.mxu0 %v5277
  %5582 = vmatpush1.bf16.msra.mxu0 %v5276
  %5583 = vmatprep.subr.bf16.mxu0 %v5281
  %5584 = vmatpush1.bf16.msra.mxu0 %v5280
  %5585 = vmatprep.subr.bf16.mxu0 %v5285
  %5586 = vmatpush1.bf16.msra.mxu0 %v5284
  %5587 = vmatprep.subr.bf16.mxu0 %v5289
  %5588 = vmatpush1.bf16.msra.mxu0 %v5288
  %5589 = vmatprep.subr.bf16.mxu0 %v5293
  %5590 = vmatpush1.bf16.msra.mxu0 %v5292
  %5591 = vmatprep.subr.bf16.mxu0 %v5297
  %5592 = vmatpush1.bf16.msra.mxu0 %v5296
  %5593 = vmatprep.subr.bf16.mxu0 %v5301
  %5594 = vmatpush1.bf16.msra.mxu0 %v5300
  %5595 = vmatprep.subr.bf16.mxu0 %v5305
  %5596 = vmatpush1.bf16.msra.mxu0 %v5304
  %5597 = vmatprep.subr.bf16.mxu0 %v5309
  %5598 = vmatpush1.bf16.msra.mxu0 %v5308
  %5599 = vmatprep.subr.bf16.mxu0 %v5313
  %5600 = vmatpush1.bf16.msra.mxu0 %v5312
  %5601 = vmatprep.subr.bf16.mxu0 %v5317
  %5602 = vmatpush1.bf16.msra.mxu0 %v5316
  %5603 = vmatprep.subr.bf16.mxu0 %v5321
  %5604 = vmatpush1.bf16.msra.mxu0 %v5320
  %5605 = vmatprep.mubr.bf16.mxu0 %v3693
  %5606 = vmatmul.mubr.bf16.gmra.mrb[0].mxu0 %v3692
  %v5607 = vpop.f32.mrb[0].mxu0
  %v5608 = vadd.f32 %v5567, %v5607
  %v5609 = vpop.f32.mrb[0].mxu0
  %v5610 = vadd.f32 %v5569, %v5609
  %v5611 = vpop.f32.mrb[0].mxu0
  %v5612 = vpop.f32.mrb[0].mxu0
  %5613 = vdwg.mxu0
  %v5614 = vmax.f32 %v5526, 0.0
  %v5615 = vmax.f32 %v5528, 0.0
  %v5616 = vmax.f32 %v5608, 0.0
  %v5617 = vmax.f32 %v5610, 0.0
  %v5618 = vpack.c.bf16 %v5614, %v5614
  %v5619 = vpack.c.bf16 %v5615, %v5615
  %v5620 = vpack.c.bf16 %v5616, %v5616
  %v5621 = vpack.c.bf16 %v5617, %v5617
  %v5622 = vld [vmem:[%s9] sm:$0xff]
  %v5623 = vld [vmem:[%s9 + $0x8] sm:$0xff]
  %v5624 = vld [vmem:[%s9 + $0x10] sm:$0xff]
  %v5625 = vld [vmem:[%s9 + $0x18] sm:$0xff]
  %v5626 = vld [vmem:[%s9 + $0x20] sm:$0xff]
  %v5627 = vld [vmem:[%s9 + $0x28] sm:$0xff]
  %v5628 = vld [vmem:[%s9 + $0x30] sm:$0xff]
  %v5629 = vld [vmem:[%s9 + $0x38] sm:$0xff]
  %v5630 = vld [vmem:[%s9 + $0x40] sm:$0xff]
  %v5631 = vld [vmem:[%s9 + $0x48] sm:$0xff]
  %v5632 = vld [vmem:[%s9 + $0x50] sm:$0xff]
  %v5633 = vld [vmem:[%s9 + $0x58] sm:$0xff]
  %v5634 = vld [vmem:[%s9 + $0x60] sm:$0xff]
  %v5635 = vld [vmem:[%s9 + $0x68] sm:$0xff]
  %v5636 = vld [vmem:[%s9 + $0x70] sm:$0xff]
  %v5637 = vld [vmem:[%s9 + $0x78] sm:$0xff]
  %v5638 = vld [vmem:[%s9 + $0x80] sm:$0xff]
  %v5639 = vld [vmem:[%s9 + $0x88] sm:$0xff]
  %v5640 = vld [vmem:[%s9 + $0x90] sm:$0xff]
  %v5641 = vld [vmem:[%s9 + $0x98] sm:$0xff]
  %v5642 = vld [vmem:[%s9 + $0xa0] sm:$0xff]
  %v5643 = vld [vmem:[%s9 + $0xa8] sm:$0xff]
  %v5644 = vld [vmem:[%s9 + $0xb0] sm:$0xff]
  %v5645 = vld [vmem:[%s9 + $0xb8] sm:$0xff]
  %v5646 = vld [vmem:[%s9 + $0xc0] sm:$0xff]
  %v5647 = vld [vmem:[%s9 + $0xc8] sm:$0xff]
  %v5648 = vld [vmem:[%s9 + $0xd0] sm:$0xff]
  %v5649 = vld [vmem:[%s9 + $0xd8] sm:$0xff]
  %v5650 = vld [vmem:[%s9 + $0xe0] sm:$0xff]
  %v5651 = vld [vmem:[%s9 + $0xe8] sm:$0xff]
  %v5652 = vld [vmem:[%s9 + $0xf0] sm:$0xff]
  %v5653 = vld [vmem:[%s9 + $0xf8] sm:$0xff]
  %v5654 = vld [vmem:[%s9 + $0x100] sm:$0xff]
  %v5655 = vld [vmem:[%s9 + $0x108] sm:$0xff]
  %v5656 = vld [vmem:[%s9 + $0x110] sm:$0xff]
  %v5657 = vld [vmem:[%s9 + $0x118] sm:$0xff]
  %v5658 = vld [vmem:[%s9 + $0x120] sm:$0xff]
  %v5659 = vld [vmem:[%s9 + $0x128] sm:$0xff]
  %v5660 = vld [vmem:[%s9 + $0x130] sm:$0xff]
  %v5661 = vld [vmem:[%s9 + $0x138] sm:$0xff]
  %v5662 = vld [vmem:[%s9 + $0x140] sm:$0xff]
  %v5663 = vld [vmem:[%s9 + $0x148] sm:$0xff]
  %v5664 = vld [vmem:[%s9 + $0x150] sm:$0xff]
  %v5665 = vld [vmem:[%s9 + $0x158] sm:$0xff]
  %v5666 = vld [vmem:[%s9 + $0x160] sm:$0xff]
  %v5667 = vld [vmem:[%s9 + $0x168] sm:$0xff]
  %v5668 = vld [vmem:[%s9 + $0x170] sm:$0xff]
  %v5669 = vld [vmem:[%s9 + $0x178] sm:$0xff]
  %v5670 = vld [vmem:[%s9 + $0x180] sm:$0xff]
  %v5671 = vld [vmem:[%s9 + $0x188] sm:$0xff]
  %v5672 = vld [vmem:[%s9 + $0x190] sm:$0xff]
  %v5673 = vld [vmem:[%s9 + $0x198] sm:$0xff]
  %v5674 = vld [vmem:[%s9 + $0x1a0] sm:$0xff]
  %v5675 = vld [vmem:[%s9 + $0x1a8] sm:$0xff]
  %v5676 = vld [vmem:[%s9 + $0x1b0] sm:$0xff]
  %v5677 = vld [vmem:[%s9 + $0x1b8] sm:$0xff]
  %v5678 = vld [vmem:[%s9 + $0x1c0] sm:$0xff]
  %v5679 = vld [vmem:[%s9 + $0x1c8] sm:$0xff]
  %v5680 = vld [vmem:[%s9 + $0x1d0] sm:$0xff]
  %v5681 = vld [vmem:[%s9 + $0x1d8] sm:$0xff]
  %v5682 = vld [vmem:[%s9 + $0x1e0] sm:$0xff]
  %v5683 = vld [vmem:[%s9 + $0x1e8] sm:$0xff]
  %v5684 = vld [vmem:[%s9 + $0x1f0] sm:$0xff]
  %v5685 = vld [vmem:[%s9 + $0x1f8] sm:$0xff]
  %v5686 = vld [vmem:[%s9 + $0x200] sm:$0xff]
  %v5687 = vld [vmem:[%s9 + $0x208] sm:$0xff]
  %v5688 = vld [vmem:[%s9 + $0x210] sm:$0xff]
  %v5689 = vld [vmem:[%s9 + $0x218] sm:$0xff]
  %v5690 = vld [vmem:[%s9 + $0x220] sm:$0xff]
  %v5691 = vld [vmem:[%s9 + $0x228] sm:$0xff]
  %v5692 = vld [vmem:[%s9 + $0x230] sm:$0xff]
  %v5693 = vld [vmem:[%s9 + $0x238] sm:$0xff]
  %v5694 = vld [vmem:[%s9 + $0x240] sm:$0xff]
  %v5695 = vld [vmem:[%s9 + $0x248] sm:$0xff]
  %v5696 = vld [vmem:[%s9 + $0x250] sm:$0xff]
  %v5697 = vld [vmem:[%s9 + $0x258] sm:$0xff]
  %v5698 = vld [vmem:[%s9 + $0x260] sm:$0xff]
  %v5699 = vld [vmem:[%s9 + $0x268] sm:$0xff]
  %v5700 = vld [vmem:[%s9 + $0x270] sm:$0xff]
  %v5701 = vld [vmem:[%s9 + $0x278] sm:$0xff]
  %v5702 = vld [vmem:[%s9 + $0x280] sm:$0xff]
  %v5703 = vld [vmem:[%s9 + $0x288] sm:$0xff]
  %v5704 = vld [vmem:[%s9 + $0x290] sm:$0xff]
  %v5705 = vld [vmem:[%s9 + $0x298] sm:$0xff]
  %v5706 = vld [vmem:[%s9 + $0x2a0] sm:$0xff]
  %v5707 = vld [vmem:[%s9 + $0x2a8] sm:$0xff]
  %v5708 = vld [vmem:[%s9 + $0x2b0] sm:$0xff]
  %v5709 = vld [vmem:[%s9 + $0x2b8] sm:$0xff]
  %v5710 = vld [vmem:[%s9 + $0x2c0] sm:$0xff]
  %v5711 = vld [vmem:[%s9 + $0x2c8] sm:$0xff]
  %v5712 = vld [vmem:[%s9 + $0x2d0] sm:$0xff]
  %v5713 = vld [vmem:[%s9 + $0x2d8] sm:$0xff]
  %v5714 = vld [vmem:[%s9 + $0x2e0] sm:$0xff]
  %v5715 = vld [vmem:[%s9 + $0x2e8] sm:$0xff]
  %v5716 = vld [vmem:[%s9 + $0x2f0] sm:$0xff]
  %v5717 = vld [vmem:[%s9 + $0x2f8] sm:$0xff]
  %v5718 = vld [vmem:[%s9 + $0x300] sm:$0xff]
  %v5719 = vld [vmem:[%s9 + $0x308] sm:$0xff]
  %v5720 = vld [vmem:[%s9 + $0x310] sm:$0xff]
  %v5721 = vld [vmem:[%s9 + $0x318] sm:$0xff]
  %v5722 = vld [vmem:[%s9 + $0x320] sm:$0xff]
  %v5723 = vld [vmem:[%s9 + $0x328] sm:$0xff]
  %v5724 = vld [vmem:[%s9 + $0x330] sm:$0xff]
  %v5725 = vld [vmem:[%s9 + $0x338] sm:$0xff]
  %v5726 = vld [vmem:[%s9 + $0x340] sm:$0xff]
  %v5727 = vld [vmem:[%s9 + $0x348] sm:$0xff]
  %v5728 = vld [vmem:[%s9 + $0x350] sm:$0xff]
  %v5729 = vld [vmem:[%s9 + $0x358] sm:$0xff]
  %v5730 = vld [vmem:[%s9 + $0x360] sm:$0xff]
  %v5731 = vld [vmem:[%s9 + $0x368] sm:$0xff]
  %v5732 = vld [vmem:[%s9 + $0x370] sm:$0xff]
  %v5733 = vld [vmem:[%s9 + $0x378] sm:$0xff]
  %v5734 = vld [vmem:[%s9 + $0x380] sm:$0xff]
  %v5735 = vld [vmem:[%s9 + $0x388] sm:$0xff]
  %v5736 = vld [vmem:[%s9 + $0x390] sm:$0xff]
  %v5737 = vld [vmem:[%s9 + $0x398] sm:$0xff]
  %v5738 = vld [vmem:[%s9 + $0x3a0] sm:$0xff]
  %v5739 = vld [vmem:[%s9 + $0x3a8] sm:$0xff]
  %v5740 = vld [vmem:[%s9 + $0x3b0] sm:$0xff]
  %v5741 = vld [vmem:[%s9 + $0x3b8] sm:$0xff]
  %v5742 = vld [vmem:[%s9 + $0x3c0] sm:$0xff]
  %v5743 = vld [vmem:[%s9 + $0x3c8] sm:$0xff]
  %v5744 = vld [vmem:[%s9 + $0x3d0] sm:$0xff]
  %v5745 = vld [vmem:[%s9 + $0x3d8] sm:$0xff]
  %v5746 = vld [vmem:[%s9 + $0x3e0] sm:$0xff]
  %v5747 = vld [vmem:[%s9 + $0x3e8] sm:$0xff]
  %v5748 = vld [vmem:[%s9 + $0x3f0] sm:$0xff]
  %v5749 = vld [vmem:[%s9 + $0x3f8] sm:$0xff]
  %v5750 = vld [vmem:[%s12] sm:$0xf]
  %v5752 = vlaneseq
  %v5753 = vshrl.u32 %v5752, 7
  %v5754 = vsub.s32 0, %v5753
  %v5755 = vrot.slane %v5750, %v5754
  %v5756 = vlaneseq
  %v5757 = vshrl.u32 %v5756, 7
  %v5758 = vsub.s32 1, %v5757
  %v5759 = vrot.slane %v5750, %v5758
  %v5760 = vlaneseq
  %v5761 = vshrl.u32 %v5760, 7
  %v5762 = vsub.s32 2, %v5761
  %v5763 = vrot.slane %v5750, %v5762
  %v5764 = vlaneseq
  %v5765 = vshrl.u32 %v5764, 7
  %v5766 = vsub.s32 3, %v5765
  %v5767 = vrot.slane %v5750, %v5766
  %v5900 = vunpack.c.l.b16 %v5622
  %v5901 = vunpack.c.h.b16 %v5622
  %v5902 = vunpack.c.l.b16 %v5623
  %v5903 = vunpack.c.h.b16 %v5623
  %v5904 = vunpack.c.l.b16 %v5624
  %v5905 = vunpack.c.h.b16 %v5624
  %v5906 = vunpack.c.l.b16 %v5625
  %v5907 = vunpack.c.h.b16 %v5625
  %v5908 = vunpack.c.l.b16 %v5626
  %v5909 = vunpack.c.h.b16 %v5626
  %v5910 = vunpack.c.l.b16 %v5627
  %v5911 = vunpack.c.h.b16 %v5627
  %v5912 = vunpack.c.l.b16 %v5628
  %v5913 = vunpack.c.h.b16 %v5628
  %v5914 = vunpack.c.l.b16 %v5629
  %v5915 = vunpack.c.h.b16 %v5629
  %v5916 = vunpack.c.l.b16 %v5630
  %v5917 = vunpack.c.h.b16 %v5630
  %v5918 = vunpack.c.l.b16 %v5631
  %v5919 = vunpack.c.h.b16 %v5631
  %v5920 = vunpack.c.l.b16 %v5632
  %v5921 = vunpack.c.h.b16 %v5632
  %v5922 = vunpack.c.l.b16 %v5633
  %v5923 = vunpack.c.h.b16 %v5633
  %v5924 = vunpack.c.l.b16 %v5634
  %v5925 = vunpack.c.h.b16 %v5634
  %v5926 = vunpack.c.l.b16 %v5635
  %v5927 = vunpack.c.h.b16 %v5635
  %v5928 = vunpack.c.l.b16 %v5636
  %v5929 = vunpack.c.h.b16 %v5636
  %v5930 = vunpack.c.l.b16 %v5637
  %v5931 = vunpack.c.h.b16 %v5637
  %v5932 = vunpack.c.l.b16 %v5638
  %v5933 = vunpack.c.h.b16 %v5638
  %v5934 = vunpack.c.l.b16 %v5639
  %v5935 = vunpack.c.h.b16 %v5639
  %v5936 = vunpack.c.l.b16 %v5640
  %v5937 = vunpack.c.h.b16 %v5640
  %v5938 = vunpack.c.l.b16 %v5641
  %v5939 = vunpack.c.h.b16 %v5641
  %v5940 = vunpack.c.l.b16 %v5642
  %v5941 = vunpack.c.h.b16 %v5642
  %v5942 = vunpack.c.l.b16 %v5643
  %v5943 = vunpack.c.h.b16 %v5643
  %v5944 = vunpack.c.l.b16 %v5644
  %v5945 = vunpack.c.h.b16 %v5644
  %v5946 = vunpack.c.l.b16 %v5645
  %v5947 = vunpack.c.h.b16 %v5645
  %v5948 = vunpack.c.l.b16 %v5646
  %v5949 = vunpack.c.h.b16 %v5646
  %v5950 = vunpack.c.l.b16 %v5647
  %v5951 = vunpack.c.h.b16 %v5647
  %v5952 = vunpack.c.l.b16 %v5648
  %v5953 = vunpack.c.h.b16 %v5648
  %v5954 = vunpack.c.l.b16 %v5649
  %v5955 = vunpack.c.h.b16 %v5649
  %v5956 = vunpack.c.l.b16 %v5650
  %v5957 = vunpack.c.h.b16 %v5650
  %v5958 = vunpack.c.l.b16 %v5651
  %v5959 = vunpack.c.h.b16 %v5651
  %v5960 = vunpack.c.l.b16 %v5652
  %v5961 = vunpack.c.h.b16 %v5652
  %v5962 = vunpack.c.l.b16 %v5653
  %v5963 = vunpack.c.h.b16 %v5653
  %v5964 = vunpack.c.l.b16 %v5654
  %v5965 = vunpack.c.h.b16 %v5654
  %v5966 = vunpack.c.l.b16 %v5655
  %v5967 = vunpack.c.h.b16 %v5655
  %v5968 = vunpack.c.l.b16 %v5656
  %v5969 = vunpack.c.h.b16 %v5656
  %v5970 = vunpack.c.l.b16 %v5657
  %v5971 = vunpack.c.h.b16 %v5657
  %v5972 = vunpack.c.l.b16 %v5658
  %v5973 = vunpack.c.h.b16 %v5658
  %v5974 = vunpack.c.l.b16 %v5659
  %v5975 = vunpack.c.h.b16 %v5659
  %v5976 = vunpack.c.l.b16 %v5660
  %v5977 = vunpack.c.h.b16 %v5660
  %v5978 = vunpack.c.l.b16 %v5661
  %v5979 = vunpack.c.h.b16 %v5661
  %v5980 = vunpack.c.l.b16 %v5662
  %v5981 = vunpack.c.h.b16 %v5662
  %v5982 = vunpack.c.l.b16 %v5663
  %v5983 = vunpack.c.h.b16 %v5663
  %v5984 = vunpack.c.l.b16 %v5664
  %v5985 = vunpack.c.h.b16 %v5664
  %v5986 = vunpack.c.l.b16 %v5665
  %v5987 = vunpack.c.h.b16 %v5665
  %v5988 = vunpack.c.l.b16 %v5666
  %v5989 = vunpack.c.h.b16 %v5666
  %v5990 = vunpack.c.l.b16 %v5667
  %v5991 = vunpack.c.h.b16 %v5667
  %v5992 = vunpack.c.l.b16 %v5668
  %v5993 = vunpack.c.h.b16 %v5668
  %v5994 = vunpack.c.l.b16 %v5669
  %v5995 = vunpack.c.h.b16 %v5669
  %v5996 = vunpack.c.l.b16 %v5670
  %v5997 = vunpack.c.h.b16 %v5670
  %v5998 = vunpack.c.l.b16 %v5671
  %v5999 = vunpack.c.h.b16 %v5671
  %v6000 = vunpack.c.l.b16 %v5672
  %v6001 = vunpack.c.h.b16 %v5672
  %v6002 = vunpack.c.l.b16 %v5673
  %v6003 = vunpack.c.h.b16 %v5673
  %v6004 = vunpack.c.l.b16 %v5674
  %v6005 = vunpack.c.h.b16 %v5674
  %v6006 = vunpack.c.l.b16 %v5675
  %v6007 = vunpack.c.h.b16 %v5675
  %v6008 = vunpack.c.l.b16 %v5676
  %v6009 = vunpack.c.h.b16 %v5676
  %v6010 = vunpack.c.l.b16 %v5677
  %v6011 = vunpack.c.h.b16 %v5677
  %v6012 = vunpack.c.l.b16 %v5678
  %v6013 = vunpack.c.h.b16 %v5678
  %v6014 = vunpack.c.l.b16 %v5679
  %v6015 = vunpack.c.h.b16 %v5679
  %v6016 = vunpack.c.l.b16 %v5680
  %v6017 = vunpack.c.h.b16 %v5680
  %v6018 = vunpack.c.l.b16 %v5681
  %v6019 = vunpack.c.h.b16 %v5681
  %v6020 = vunpack.c.l.b16 %v5682
  %v6021 = vunpack.c.h.b16 %v5682
  %v6022 = vunpack.c.l.b16 %v5683
  %v6023 = vunpack.c.h.b16 %v5683
  %v6024 = vunpack.c.l.b16 %v5684
  %v6025 = vunpack.c.h.b16 %v5684
  %v6026 = vunpack.c.l.b16 %v5685
  %v6027 = vunpack.c.h.b16 %v5685
  %v6028 = vunpack.c.l.b16 %v5686
  %v6029 = vunpack.c.h.b16 %v5686
  %v6030 = vunpack.c.l.b16 %v5687
  %v6031 = vunpack.c.h.b16 %v5687
  %v6032 = vunpack.c.l.b16 %v5688
  %v6033 = vunpack.c.h.b16 %v5688
  %v6034 = vunpack.c.l.b16 %v5689
  %v6035 = vunpack.c.h.b16 %v5689
  %v6036 = vunpack.c.l.b16 %v5690
  %v6037 = vunpack.c.h.b16 %v5690
  %v6038 = vunpack.c.l.b16 %v5691
  %v6039 = vunpack.c.h.b16 %v5691
  %v6040 = vunpack.c.l.b16 %v5692
  %v6041 = vunpack.c.h.b16 %v5692
  %v6042 = vunpack.c.l.b16 %v5693
  %v6043 = vunpack.c.h.b16 %v5693
  %v6044 = vunpack.c.l.b16 %v5694
  %v6045 = vunpack.c.h.b16 %v5694
  %v6046 = vunpack.c.l.b16 %v5695
  %v6047 = vunpack.c.h.b16 %v5695
  %v6048 = vunpack.c.l.b16 %v5696
  %v6049 = vunpack.c.h.b16 %v5696
  %v6050 = vunpack.c.l.b16 %v5697
  %v6051 = vunpack.c.h.b16 %v5697
  %v6052 = vunpack.c.l.b16 %v5698
  %v6053 = vunpack.c.h.b16 %v5698
  %v6054 = vunpack.c.l.b16 %v5699
  %v6055 = vunpack.c.h.b16 %v5699
  %v6056 = vunpack.c.l.b16 %v5700
  %v6057 = vunpack.c.h.b16 %v5700
  %v6058 = vunpack.c.l.b16 %v5701
  %v6059 = vunpack.c.h.b16 %v5701
  %v6060 = vunpack.c.l.b16 %v5702
  %v6061 = vunpack.c.h.b16 %v5702
  %v6062 = vunpack.c.l.b16 %v5703
  %v6063 = vunpack.c.h.b16 %v5703
  %v6064 = vunpack.c.l.b16 %v5704
  %v6065 = vunpack.c.h.b16 %v5704
  %v6066 = vunpack.c.l.b16 %v5705
  %v6067 = vunpack.c.h.b16 %v5705
  %v6068 = vunpack.c.l.b16 %v5706
  %v6069 = vunpack.c.h.b16 %v5706
  %v6070 = vunpack.c.l.b16 %v5707
  %v6071 = vunpack.c.h.b16 %v5707
  %v6072 = vunpack.c.l.b16 %v5708
  %v6073 = vunpack.c.h.b16 %v5708
  %v6074 = vunpack.c.l.b16 %v5709
  %v6075 = vunpack.c.h.b16 %v5709
  %v6076 = vunpack.c.l.b16 %v5710
  %v6077 = vunpack.c.h.b16 %v5710
  %v6078 = vunpack.c.l.b16 %v5711
  %v6079 = vunpack.c.h.b16 %v5711
  %v6080 = vunpack.c.l.b16 %v5712
  %v6081 = vunpack.c.h.b16 %v5712
  %v6082 = vunpack.c.l.b16 %v5713
  %v6083 = vunpack.c.h.b16 %v5713
  %v6084 = vunpack.c.l.b16 %v5714
  %v6085 = vunpack.c.h.b16 %v5714
  %v6086 = vunpack.c.l.b16 %v5715
  %v6087 = vunpack.c.h.b16 %v5715
  %v6088 = vunpack.c.l.b16 %v5716
  %v6089 = vunpack.c.h.b16 %v5716
  %v6090 = vunpack.c.l.b16 %v5717
  %v6091 = vunpack.c.h.b16 %v5717
  %v6092 = vunpack.c.l.b16 %v5718
  %v6093 = vunpack.c.h.b16 %v5718
  %v6094 = vunpack.c.l.b16 %v5719
  %v6095 = vunpack.c.h.b16 %v5719
  %v6096 = vunpack.c.l.b16 %v5720
  %v6097 = vunpack.c.h.b16 %v5720
  %v6098 = vunpack.c.l.b16 %v5721
  %v6099 = vunpack.c.h.b16 %v5721
  %v6100 = vunpack.c.l.b16 %v5722
  %v6101 = vunpack.c.h.b16 %v5722
  %v6102 = vunpack.c.l.b16 %v5723
  %v6103 = vunpack.c.h.b16 %v5723
  %v6104 = vunpack.c.l.b16 %v5724
  %v6105 = vunpack.c.h.b16 %v5724
  %v6106 = vunpack.c.l.b16 %v5725
  %v6107 = vunpack.c.h.b16 %v5725
  %v6108 = vunpack.c.l.b16 %v5726
  %v6109 = vunpack.c.h.b16 %v5726
  %v6110 = vunpack.c.l.b16 %v5727
  %v6111 = vunpack.c.h.b16 %v5727
  %v6112 = vunpack.c.l.b16 %v5728
  %v6113 = vunpack.c.h.b16 %v5728
  %v6114 = vunpack.c.l.b16 %v5729
  %v6115 = vunpack.c.h.b16 %v5729
  %v6116 = vunpack.c.l.b16 %v5730
  %v6117 = vunpack.c.h.b16 %v5730
  %v6118 = vunpack.c.l.b16 %v5731
  %v6119 = vunpack.c.h.b16 %v5731
  %v6120 = vunpack.c.l.b16 %v5732
  %v6121 = vunpack.c.h.b16 %v5732
  %v6122 = vunpack.c.l.b16 %v5733
  %v6123 = vunpack.c.h.b16 %v5733
  %v6124 = vunpack.c.l.b16 %v5734
  %v6125 = vunpack.c.h.b16 %v5734
  %v6126 = vunpack.c.l.b16 %v5735
  %v6127 = vunpack.c.h.b16 %v5735
  %v6128 = vunpack.c.l.b16 %v5736
  %v6129 = vunpack.c.h.b16 %v5736
  %v6130 = vunpack.c.l.b16 %v5737
  %v6131 = vunpack.c.h.b16 %v5737
  %v6132 = vunpack.c.l.b16 %v5738
  %v6133 = vunpack.c.h.b16 %v5738
  %v6134 = vunpack.c.l.b16 %v5739
  %v6135 = vunpack.c.h.b16 %v5739
  %v6136 = vunpack.c.l.b16 %v5740
  %v6137 = vunpack.c.h.b16 %v5740
  %v6138 = vunpack.c.l.b16 %v5741
  %v6139 = vunpack.c.h.b16 %v5741
  %v6140 = vunpack.c.l.b16 %v5742
  %v6141 = vunpack.c.h.b16 %v5742
  %v6142 = vunpack.c.l.b16 %v5743
  %v6143 = vunpack.c.h.b16 %v5743
  %v6144 = vunpack.c.l.b16 %v5744
  %v6145 = vunpack.c.h.b16 %v5744
  %v6146 = vunpack.c.l.b16 %v5745
  %v6147 = vunpack.c.h.b16 %v5745
  %v6148 = vunpack.c.l.b16 %v5746
  %v6149 = vunpack.c.h.b16 %v5746
  %v6150 = vunpack.c.l.b16 %v5747
  %v6151 = vunpack.c.h.b16 %v5747
  %v6152 = vunpack.c.l.b16 %v5748
  %v6153 = vunpack.c.h.b16 %v5748
  %v6154 = vunpack.c.l.b16 %v5749
  %v6155 = vunpack.c.h.b16 %v5749
  %v6156 = vpack.c.b16 %v5904, %v5900
  %v6157 = vpack.c.b16 %v5905, %v5901
  %v6158 = vpack.c.b16 %v5906, %v5902
  %v6159 = vpack.c.b16 %v5907, %v5903
  %v6160 = vpack.c.b16 %v5912, %v5908
  %v6161 = vpack.c.b16 %v5913, %v5909
  %v6162 = vpack.c.b16 %v5914, %v5910
  %v6163 = vpack.c.b16 %v5915, %v5911
  %v6164 = vpack.c.b16 %v5920, %v5916
  %v6165 = vpack.c.b16 %v5921, %v5917
  %v6166 = vpack.c.b16 %v5922, %v5918
  %v6167 = vpack.c.b16 %v5923, %v5919
  %v6168 = vpack.c.b16 %v5928, %v5924
  %v6169 = vpack.c.b16 %v5929, %v5925
  %v6170 = vpack.c.b16 %v5930, %v5926
  %v6171 = vpack.c.b16 %v5931, %v5927
  %v6172 = vpack.c.b16 %v5936, %v5932
  %v6173 = vpack.c.b16 %v5937, %v5933
  %v6174 = vpack.c.b16 %v5938, %v5934
  %v6175 = vpack.c.b16 %v5939, %v5935
  %v6176 = vpack.c.b16 %v5944, %v5940
  %v6177 = vpack.c.b16 %v5945, %v5941
  %v6178 = vpack.c.b16 %v5946, %v5942
  %v6179 = vpack.c.b16 %v5947, %v5943
  %v6180 = vpack.c.b16 %v5952, %v5948
  %v6181 = vpack.c.b16 %v5953, %v5949
  %v6182 = vpack.c.b16 %v5954, %v5950
  %v6183 = vpack.c.b16 %v5955, %v5951
  %v6184 = vpack.c.b16 %v5960, %v5956
  %v6185 = vpack.c.b16 %v5961, %v5957
  %v6186 = vpack.c.b16 %v5962, %v5958
  %v6187 = vpack.c.b16 %v5963, %v5959
  %v6188 = vpack.c.b16 %v5968, %v5964
  %v6189 = vpack.c.b16 %v5969, %v5965
  %v6190 = vpack.c.b16 %v5970, %v5966
  %v6191 = vpack.c.b16 %v5971, %v5967
  %v6192 = vpack.c.b16 %v5976, %v5972
  %v6193 = vpack.c.b16 %v5977, %v5973
  %v6194 = vpack.c.b16 %v5978, %v5974
  %v6195 = vpack.c.b16 %v5979, %v5975
  %v6196 = vpack.c.b16 %v5984, %v5980
  %v6197 = vpack.c.b16 %v5985, %v5981
  %v6198 = vpack.c.b16 %v5986, %v5982
  %v6199 = vpack.c.b16 %v5987, %v5983
  %v6200 = vpack.c.b16 %v5992, %v5988
  %v6201 = vpack.c.b16 %v5993, %v5989
  %v6202 = vpack.c.b16 %v5994, %v5990
  %v6203 = vpack.c.b16 %v5995, %v5991
  %v6204 = vpack.c.b16 %v6000, %v5996
  %v6205 = vpack.c.b16 %v6001, %v5997
  %v6206 = vpack.c.b16 %v6002, %v5998
  %v6207 = vpack.c.b16 %v6003, %v5999
  %v6208 = vpack.c.b16 %v6008, %v6004
  %v6209 = vpack.c.b16 %v6009, %v6005
  %v6210 = vpack.c.b16 %v6010, %v6006
  %v6211 = vpack.c.b16 %v6011, %v6007
  %v6212 = vpack.c.b16 %v6016, %v6012
  %v6213 = vpack.c.b16 %v6017, %v6013
  %v6214 = vpack.c.b16 %v6018, %v6014
  %v6215 = vpack.c.b16 %v6019, %v6015
  %v6216 = vpack.c.b16 %v6024, %v6020
  %v6217 = vpack.c.b16 %v6025, %v6021
  %v6218 = vpack.c.b16 %v6026, %v6022
  %v6219 = vpack.c.b16 %v6027, %v6023
  %v6220 = vpack.c.b16 %v6032, %v6028
  %v6221 = vpack.c.b16 %v6033, %v6029
  %v6222 = vpack.c.b16 %v6034, %v6030
  %v6223 = vpack.c.b16 %v6035, %v6031
  %v6224 = vpack.c.b16 %v6040, %v6036
  %v6225 = vpack.c.b16 %v6041, %v6037
  %v6226 = vpack.c.b16 %v6042, %v6038
  %v6227 = vpack.c.b16 %v6043, %v6039
  %v6228 = vpack.c.b16 %v6048, %v6044
  %v6229 = vpack.c.b16 %v6049, %v6045
  %v6230 = vpack.c.b16 %v6050, %v6046
  %v6231 = vpack.c.b16 %v6051, %v6047
  %v6232 = vpack.c.b16 %v6056, %v6052
  %v6233 = vpack.c.b16 %v6057, %v6053
  %v6234 = vpack.c.b16 %v6058, %v6054
  %v6235 = vpack.c.b16 %v6059, %v6055
  %v6236 = vpack.c.b16 %v6064, %v6060
  %v6237 = vpack.c.b16 %v6065, %v6061
  %v6238 = vpack.c.b16 %v6066, %v6062
  %v6239 = vpack.c.b16 %v6067, %v6063
  %v6240 = vpack.c.b16 %v6072, %v6068
  %v6241 = vpack.c.b16 %v6073, %v6069
  %v6242 = vpack.c.b16 %v6074, %v6070
  %v6243 = vpack.c.b16 %v6075, %v6071
  %v6244 = vpack.c.b16 %v6080, %v6076
  %v6245 = vpack.c.b16 %v6081, %v6077
  %v6246 = vpack.c.b16 %v6082, %v6078
  %v6247 = vpack.c.b16 %v6083, %v6079
  %v6248 = vpack.c.b16 %v6088, %v6084
  %v6249 = vpack.c.b16 %v6089, %v6085
  %v6250 = vpack.c.b16 %v6090, %v6086
  %v6251 = vpack.c.b16 %v6091, %v6087
  %v6252 = vpack.c.b16 %v6096, %v6092
  %v6253 = vpack.c.b16 %v6097, %v6093
  %v6254 = vpack.c.b16 %v6098, %v6094
  %v6255 = vpack.c.b16 %v6099, %v6095
  %v6256 = vpack.c.b16 %v6104, %v6100
  %v6257 = vpack.c.b16 %v6105, %v6101
  %v6258 = vpack.c.b16 %v6106, %v6102
  %v6259 = vpack.c.b16 %v6107, %v6103
  %v6260 = vpack.c.b16 %v6112, %v6108
  %v6261 = vpack.c.b16 %v6113, %v6109
  %v6262 = vpack.c.b16 %v6114, %v6110
  %v6263 = vpack.c.b16 %v6115, %v6111
  %v6264 = vpack.c.b16 %v6120, %v6116
  %v6265 = vpack.c.b16 %v6121, %v6117
  %v6266 = vpack.c.b16 %v6122, %v6118
  %v6267 = vpack.c.b16 %v6123, %v6119
  %v6268 = vpack.c.b16 %v6128, %v6124
  %v6269 = vpack.c.b16 %v6129, %v6125
  %v6270 = vpack.c.b16 %v6130, %v6126
  %v6271 = vpack.c.b16 %v6131, %v6127
  %v6272 = vpack.c.b16 %v6136, %v6132
  %v6273 = vpack.c.b16 %v6137, %v6133
  %v6274 = vpack.c.b16 %v6138, %v6134
  %v6275 = vpack.c.b16 %v6139, %v6135
  %v6276 = vpack.c.b16 %v6144, %v6140
  %v6277 = vpack.c.b16 %v6145, %v6141
  %v6278 = vpack.c.b16 %v6146, %v6142
  %v6279 = vpack.c.b16 %v6147, %v6143
  %v6280 = vpack.c.b16 %v6152, %v6148
  %v6281 = vpack.c.b16 %v6153, %v6149
  %v6282 = vpack.c.b16 %v6154, %v6150
  %v6283 = vpack.c.b16 %v6155, %v6151
  %6412 = vmatprep.subr.bf16.mxu0 %v6157
  %6413 = vmatpush1.bf16.msra.mxu0 %v6156
  %6414 = vmatprep.subr.bf16.mxu0 %v6161
  %6415 = vmatpush1.bf16.msra.mxu0 %v6160
  %6416 = vmatprep.subr.bf16.mxu0 %v6165
  %6417 = vmatpush1.bf16.msra.mxu0 %v6164
  %6418 = vmatprep.subr.bf16.mxu0 %v6169
  %6419 = vmatpush1.bf16.msra.mxu0 %v6168
  %6420 = vmatprep.subr.bf16.mxu0 %v6173
  %6421 = vmatpush1.bf16.msra.mxu0 %v6172
  %6422 = vmatprep.subr.bf16.mxu0 %v6177
  %6423 = vmatpush1.bf16.msra.mxu0 %v6176
  %6424 = vmatprep.subr.bf16.mxu0 %v6181
  %6425 = vmatpush1.bf16.msra.mxu0 %v6180
  %6426 = vmatprep.subr.bf16.mxu0 %v6185
  %6427 = vmatpush1.bf16.msra.mxu0 %v6184
  %6428 = vmatprep.subr.bf16.mxu0 %v6189
  %6429 = vmatpush1.bf16.msra.mxu0 %v6188
  %6430 = vmatprep.subr.bf16.mxu0 %v6193
  %6431 = vmatpush1.bf16.msra.mxu0 %v6192
  %6432 = vmatprep.subr.bf16.mxu0 %v6197
  %6433 = vmatpush1.bf16.msra.mxu0 %v6196
  %6434 = vmatprep.subr.bf16.mxu0 %v6201
  %6435 = vmatpush1.bf16.msra.mxu0 %v6200
  %6436 = vmatprep.subr.bf16.mxu0 %v6205
  %6437 = vmatpush1.bf16.msra.mxu0 %v6204
  %6438 = vmatprep.subr.bf16.mxu0 %v6209
  %6439 = vmatpush1.bf16.msra.mxu0 %v6208
  %6440 = vmatprep.subr.bf16.mxu0 %v6213
  %6441 = vmatpush1.bf16.msra.mxu0 %v6212
  %6442 = vmatprep.subr.bf16.mxu0 %v6217
  %6443 = vmatpush1.bf16.msra.mxu0 %v6216
  %6444 = vmatprep.mubr.bf16.mxu0 %v3695
  %6445 = vmatmul.mubr.bf16.gmra.mrb[0].mxu0 %v3694
  %v6446 = vpop.f32.mrb[0].mxu0
  %v6447 = vadd.f32 %v5755, %v6446
  %v6448 = vpop.f32.mrb[0].mxu0
  %v6449 = vadd.f32 %v5759, %v6448
  %v6450 = vpop.f32.mrb[0].mxu0
  %v6451 = vpop.f32.mrb[0].mxu0
  %6452 = vdwg.mxu0
  %6453 = vmatprep.subr.bf16.mxu0 %v6221
  %6454 = vmatpush1.bf16.msra.mxu0 %v6220
  %6455 = vmatprep.subr.bf16.mxu0 %v6225
  %6456 = vmatpush1.bf16.msra.mxu0 %v6224
  %6457 = vmatprep.subr.bf16.mxu0 %v6229
  %6458 = vmatpush1.bf16.msra.mxu0 %v6228
  %6459 = vmatprep.subr.bf16.mxu0 %v6233
  %6460 = vmatpush1.bf16.msra.mxu0 %v6232
  %6461 = vmatprep.subr.bf16.mxu0 %v6237
  %6462 = vmatpush1.bf16.msra.mxu0 %v6236
  %6463 = vmatprep.subr.bf16.mxu0 %v6241
  %6464 = vmatpush1.bf16.msra.mxu0 %v6240
  %6465 = vmatprep.subr.bf16.mxu0 %v6245
  %6466 = vmatpush1.bf16.msra.mxu0 %v6244
  %6467 = vmatprep.subr.bf16.mxu0 %v6249
  %6468 = vmatpush1.bf16.msra.mxu0 %v6248
  %6469 = vmatprep.subr.bf16.mxu0 %v6253
  %6470 = vmatpush1.bf16.msra.mxu0 %v6252
  %6471 = vmatprep.subr.bf16.mxu0 %v6257
  %6472 = vmatpush1.bf16.msra.mxu0 %v6256
  %6473 = vmatprep.subr.bf16.mxu0 %v6261
  %6474 = vmatpush1.bf16.msra.mxu0 %v6260
  %6475 = vmatprep.subr.bf16.mxu0 %v6265
  %6476 = vmatpush1.bf16.msra.mxu0 %v6264
  %6477 = vmatprep.subr.bf16.mxu0 %v6269
  %6478 = vmatpush1.bf16.msra.mxu0 %v6268
  %6479 = vmatprep.subr.bf16.mxu0 %v6273
  %6480 = vmatpush1.bf16.msra.mxu0 %v6272
  %6481 = vmatprep.subr.bf16.mxu0 %v6277
  %6482 = vmatpush1.bf16.msra.mxu0 %v6276
  %6483 = vmatprep.subr.bf16.mxu0 %v6281
  %6484 = vmatpush1.bf16.msra.mxu0 %v6280
  %6485 = vmatprep.mubr.bf16.mxu0 %v3697
  %6486 = vmatmul.mubr.bf16.gmra.mrb[0].mxu0 %v3696
  %v6487 = vpop.f32.mrb[0].mxu0
  %v6488 = vadd.f32 %v6447, %v6487
  %v6489 = vpop.f32.mrb[0].mxu0
  %v6490 = vadd.f32 %v6449, %v6489
  %v6491 = vpop.f32.mrb[0].mxu0
  %v6492 = vpop.f32.mrb[0].mxu0
  %6493 = vdwg.mxu0
  %6494 = vmatprep.subr.bf16.mxu0 %v6159
  %6495 = vmatpush1.bf16.msra.mxu0 %v6158
  %6496 = vmatprep.subr.bf16.mxu0 %v6163
  %6497 = vmatpush1.bf16.msra.mxu0 %v6162
  %6498 = vmatprep.subr.bf16.mxu0 %v6167
  %6499 = vmatpush1.bf16.msra.mxu0 %v6166
  %6500 = vmatprep.subr.bf16.mxu0 %v6171
  %6501 = vmatpush1.bf16.msra.mxu0 %v6170
  %6502 = vmatprep.subr.bf16.mxu0 %v6175
  %6503 = vmatpush1.bf16.msra.mxu0 %v6174
  %6504 = vmatprep.subr.bf16.mxu0 %v6179
  %6505 = vmatpush1.bf16.msra.mxu0 %v6178
  %6506 = vmatprep.subr.bf16.mxu0 %v6183
  %6507 = vmatpush1.bf16.msra.mxu0 %v6182
  %6508 = vmatprep.subr.bf16.mxu0 %v6187
  %6509 = vmatpush1.bf16.msra.mxu0 %v6186
  %6510 = vmatprep.subr.bf16.mxu0 %v6191
  %6511 = vmatpush1.bf16.msra.mxu0 %v6190
  %6512 = vmatprep.subr.bf16.mxu0 %v6195
  %6513 = vmatpush1.bf16.msra.mxu0 %v6194
  %6514 = vmatprep.subr.bf16.mxu0 %v6199
  %6515 = vmatpush1.bf16.msra.mxu0 %v6198
  %6516 = vmatprep.subr.bf16.mxu0 %v6203
  %6517 = vmatpush1.bf16.msra.mxu0 %v6202
  %6518 = vmatprep.subr.bf16.mxu0 %v6207
  %6519 = vmatpush1.bf16.msra.mxu0 %v6206
  %6520 = vmatprep.subr.bf16.mxu0 %v6211
  %6521 = vmatpush1.bf16.msra.mxu0 %v6210
  %6522 = vmatprep.subr.bf16.mxu0 %v6215
  %6523 = vmatpush1.bf16.msra.mxu0 %v6214
  %6524 = vmatprep.subr.bf16.mxu0 %v6219
  %6525 = vmatpush1.bf16.msra.mxu0 %v6218
  %6526 = vmatprep.mubr.bf16.mxu0 %v3695
  %6527 = vmatmul.mubr.bf16.gmra.mrb[0].mxu0 %v3694
  %v6528 = vpop.f32.mrb[0].mxu0
  %v6529 = vadd.f32 %v5763, %v6528
  %v6530 = vpop.f32.mrb[0].mxu0
  %v6531 = vadd.f32 %v5767, %v6530
  %v6532 = vpop.f32.mrb[0].mxu0
  %v6533 = vpop.f32.mrb[0].mxu0
  %6534 = vdwg.mxu0
  %6535 = vmatprep.subr.bf16.mxu0 %v6223
  %6536 = vmatpush1.bf16.msra.mxu0 %v6222
  %6537 = vmatprep.subr.bf16.mxu0 %v6227
  %6538 = vmatpush1.bf16.msra.mxu0 %v6226
  %6539 = vmatprep.subr.bf16.mxu0 %v6231
  %6540 = vmatpush1.bf16.msra.mxu0 %v6230
  %6541 = vmatprep.subr.bf16.mxu0 %v6235
  %6542 = vmatpush1.bf16.msra.mxu0 %v6234
  %6543 = vmatprep.subr.bf16.mxu0 %v6239
  %6544 = vmatpush1.bf16.msra.mxu0 %v6238
  %6545 = vmatprep.subr.bf16.mxu0 %v6243
  %6546 = vmatpush1.bf16.msra.mxu0 %v6242
  %6547 = vmatprep.subr.bf16.mxu0 %v6247
  %6548 = vmatpush1.bf16.msra.mxu0 %v6246
  %6549 = vmatprep.subr.bf16.mxu0 %v6251
  %6550 = vmatpush1.bf16.msra.mxu0 %v6250
  %6551 = vmatprep.subr.bf16.mxu0 %v6255
  %6552 = vmatpush1.bf16.msra.mxu0 %v6254
  %6553 = vmatprep.subr.bf16.mxu0 %v6259
  %6554 = vmatpush1.bf16.msra.mxu0 %v6258
  %6555 = vmatprep.subr.bf16.mxu0 %v6263
  %6556 = vmatpush1.bf16.msra.mxu0 %v6262
  %6557 = vmatprep.subr.bf16.mxu0 %v6267
  %6558 = vmatpush1.bf16.msra.mxu0 %v6266
  %6559 = vmatprep.subr.bf16.mxu0 %v6271
  %6560 = vmatpush1.bf16.msra.mxu0 %v6270
  %6561 = vmatprep.subr.bf16.mxu0 %v6275
  %6562 = vmatpush1.bf16.msra.mxu0 %v6274
  %6563 = vmatprep.subr.bf16.mxu0 %v6279
  %6564 = vmatpush1.bf16.msra.mxu0 %v6278
  %6565 = vmatprep.subr.bf16.mxu0 %v6283
  %6566 = vmatpush1.bf16.msra.mxu0 %v6282
  %6567 = vmatprep.mubr.bf16.mxu0 %v3697
  %6568 = vmatmul.mubr.bf16.gmra.mrb[0].mxu0 %v3696
  %v6569 = vpop.f32.mrb[0].mxu0
  %v6570 = vadd.f32 %v6529, %v6569
  %v6571 = vpop.f32.mrb[0].mxu0
  %v6572 = vadd.f32 %v6531, %v6571
  %v6573 = vpop.f32.mrb[0].mxu0
  %v6574 = vpop.f32.mrb[0].mxu0
  %6575 = vdwg.mxu0
  %v6576 = vmax.f32 %v6488, 0.0
  %v6577 = vmax.f32 %v6490, 0.0
  %v6578 = vmax.f32 %v6570, 0.0
  %v6579 = vmax.f32 %v6572, 0.0
  %v6580 = vpack.c.bf16 %v6576, %v6576
  %v6581 = vpack.c.bf16 %v6577, %v6577
  %v6582 = vpack.c.bf16 %v6578, %v6578
  %v6583 = vpack.c.bf16 %v6579, %v6579
  %v6584 = vld [vmem:[%s13] sm:$0xf]
  %v6585 = vld [vmem:[%s13 + $0x4] sm:$0xf]
  %v6586 = vld [vmem:[%s13 + $0x8] sm:$0xf]
  %v6587 = vld [vmem:[%s13 + $0xc] sm:$0xf]
  %v6588 = vld [vmem:[%s13 + $0x10] sm:$0xf]
  %v6589 = vld [vmem:[%s13 + $0x14] sm:$0xf]
  %v6590 = vld [vmem:[%s13 + $0x18] sm:$0xf]
  %v6591 = vld [vmem:[%s13 + $0x1c] sm:$0xf]
  %v6592 = vld [vmem:[%s13 + $0x20] sm:$0xf]
  %v6593 = vld [vmem:[%s13 + $0x24] sm:$0xf]
  %v6594 = vld [vmem:[%s13 + $0x28] sm:$0xf]
  %v6595 = vld [vmem:[%s13 + $0x2c] sm:$0xf]
  %v6596 = vld [vmem:[%s13 + $0x30] sm:$0xf]
  %v6597 = vld [vmem:[%s13 + $0x34] sm:$0xf]
  %v6598 = vld [vmem:[%s13 + $0x38] sm:$0xf]
  %v6599 = vld [vmem:[%s13 + $0x3c] sm:$0xf]
  %v6600 = vld [vmem:[%s13 + $0x40] sm:$0xf]
  %v6601 = vld [vmem:[%s13 + $0x44] sm:$0xf]
  %v6602 = vld [vmem:[%s13 + $0x48] sm:$0xf]
  %v6603 = vld [vmem:[%s13 + $0x4c] sm:$0xf]
  %v6604 = vld [vmem:[%s13 + $0x50] sm:$0xf]
  %v6605 = vld [vmem:[%s13 + $0x54] sm:$0xf]
  %v6606 = vld [vmem:[%s13 + $0x58] sm:$0xf]
  %v6607 = vld [vmem:[%s13 + $0x5c] sm:$0xf]
  %v6608 = vld [vmem:[%s13 + $0x60] sm:$0xf]
  %v6609 = vld [vmem:[%s13 + $0x64] sm:$0xf]
  %v6610 = vld [vmem:[%s13 + $0x68] sm:$0xf]
  %v6611 = vld [vmem:[%s13 + $0x6c] sm:$0xf]
  %v6612 = vld [vmem:[%s13 + $0x70] sm:$0xf]
  %v6613 = vld [vmem:[%s13 + $0x74] sm:$0xf]
  %v6614 = vld [vmem:[%s13 + $0x78] sm:$0xf]
  %v6615 = vld [vmem:[%s13 + $0x7c] sm:$0xf]
  %v6616 = vld [vmem:[%s13 + $0x80] sm:$0xf]
  %v6617 = vld [vmem:[%s13 + $0x84] sm:$0xf]
  %v6618 = vld [vmem:[%s13 + $0x88] sm:$0xf]
  %v6619 = vld [vmem:[%s13 + $0x8c] sm:$0xf]
  %v6620 = vld [vmem:[%s13 + $0x90] sm:$0xf]
  %v6621 = vld [vmem:[%s13 + $0x94] sm:$0xf]
  %v6622 = vld [vmem:[%s13 + $0x98] sm:$0xf]
  %v6623 = vld [vmem:[%s13 + $0x9c] sm:$0xf]
  %v6624 = vld [vmem:[%s13 + $0xa0] sm:$0xf]
  %v6625 = vld [vmem:[%s13 + $0xa4] sm:$0xf]
  %v6626 = vld [vmem:[%s13 + $0xa8] sm:$0xf]
  %v6627 = vld [vmem:[%s13 + $0xac] sm:$0xf]
  %v6628 = vld [vmem:[%s13 + $0xb0] sm:$0xf]
  %v6629 = vld [vmem:[%s13 + $0xb4] sm:$0xf]
  %v6630 = vld [vmem:[%s13 + $0xb8] sm:$0xf]
  %v6631 = vld [vmem:[%s13 + $0xbc] sm:$0xf]
  %v6632 = vld [vmem:[%s13 + $0xc0] sm:$0xf]
  %v6633 = vld [vmem:[%s13 + $0xc4] sm:$0xf]
  %v6634 = vld [vmem:[%s13 + $0xc8] sm:$0xf]
  %v6635 = vld [vmem:[%s13 + $0xcc] sm:$0xf]
  %v6636 = vld [vmem:[%s13 + $0xd0] sm:$0xf]
  %v6637 = vld [vmem:[%s13 + $0xd4] sm:$0xf]
  %v6638 = vld [vmem:[%s13 + $0xd8] sm:$0xf]
  %v6639 = vld [vmem:[%s13 + $0xdc] sm:$0xf]
  %v6640 = vld [vmem:[%s13 + $0xe0] sm:$0xf]
  %v6641 = vld [vmem:[%s13 + $0xe4] sm:$0xf]
  %v6642 = vld [vmem:[%s13 + $0xe8] sm:$0xf]
  %v6643 = vld [vmem:[%s13 + $0xec] sm:$0xf]
  %v6644 = vld [vmem:[%s13 + $0xf0] sm:$0xf]
  %v6645 = vld [vmem:[%s13 + $0xf4] sm:$0xf]
  %v6646 = vld [vmem:[%s13 + $0xf8] sm:$0xf]
  %v6647 = vld [vmem:[%s13 + $0xfc] sm:$0xf]
  %v6648 = vld [vmem:[%s13 + $0x100] sm:$0xf]
  %v6649 = vld [vmem:[%s13 + $0x104] sm:$0xf]
  %v6650 = vld [vmem:[%s13 + $0x108] sm:$0xf]
  %v6651 = vld [vmem:[%s13 + $0x10c] sm:$0xf]
  %v6652 = vld [vmem:[%s13 + $0x110] sm:$0xf]
  %v6653 = vld [vmem:[%s13 + $0x114] sm:$0xf]
  %v6654 = vld [vmem:[%s13 + $0x118] sm:$0xf]
  %v6655 = vld [vmem:[%s13 + $0x11c] sm:$0xf]
  %v6656 = vld [vmem:[%s13 + $0x120] sm:$0xf]
  %v6657 = vld [vmem:[%s13 + $0x124] sm:$0xf]
  %v6658 = vld [vmem:[%s13 + $0x128] sm:$0xf]
  %v6659 = vld [vmem:[%s13 + $0x12c] sm:$0xf]
  %v6660 = vld [vmem:[%s13 + $0x130] sm:$0xf]
  %v6661 = vld [vmem:[%s13 + $0x134] sm:$0xf]
  %v6662 = vld [vmem:[%s13 + $0x138] sm:$0xf]
  %v6663 = vld [vmem:[%s13 + $0x13c] sm:$0xf]
  %v6664 = vld [vmem:[%s13 + $0x140] sm:$0xf]
  %v6665 = vld [vmem:[%s13 + $0x144] sm:$0xf]
  %v6666 = vld [vmem:[%s13 + $0x148] sm:$0xf]
  %v6667 = vld [vmem:[%s13 + $0x14c] sm:$0xf]
  %v6668 = vld [vmem:[%s13 + $0x150] sm:$0xf]
  %v6669 = vld [vmem:[%s13 + $0x154] sm:$0xf]
  %v6670 = vld [vmem:[%s13 + $0x158] sm:$0xf]
  %v6671 = vld [vmem:[%s13 + $0x15c] sm:$0xf]
  %v6672 = vld [vmem:[%s13 + $0x160] sm:$0xf]
  %v6673 = vld [vmem:[%s13 + $0x164] sm:$0xf]
  %v6674 = vld [vmem:[%s13 + $0x168] sm:$0xf]
  %v6675 = vld [vmem:[%s13 + $0x16c] sm:$0xf]
  %v6676 = vld [vmem:[%s13 + $0x170] sm:$0xf]
  %v6677 = vld [vmem:[%s13 + $0x174] sm:$0xf]
  %v6678 = vld [vmem:[%s13 + $0x178] sm:$0xf]
  %v6679 = vld [vmem:[%s13 + $0x17c] sm:$0xf]
  %v6680 = vld [vmem:[%s13 + $0x180] sm:$0xf]
  %v6681 = vld [vmem:[%s13 + $0x184] sm:$0xf]
  %v6682 = vld [vmem:[%s13 + $0x188] sm:$0xf]
  %v6683 = vld [vmem:[%s13 + $0x18c] sm:$0xf]
  %v6684 = vld [vmem:[%s13 + $0x190] sm:$0xf]
  %v6685 = vld [vmem:[%s13 + $0x194] sm:$0xf]
  %v6686 = vld [vmem:[%s13 + $0x198] sm:$0xf]
  %v6687 = vld [vmem:[%s13 + $0x19c] sm:$0xf]
  %v6688 = vld [vmem:[%s13 + $0x1a0] sm:$0xf]
  %v6689 = vld [vmem:[%s13 + $0x1a4] sm:$0xf]
  %v6690 = vld [vmem:[%s13 + $0x1a8] sm:$0xf]
  %v6691 = vld [vmem:[%s13 + $0x1ac] sm:$0xf]
  %v6692 = vld [vmem:[%s13 + $0x1b0] sm:$0xf]
  %v6693 = vld [vmem:[%s13 + $0x1b4] sm:$0xf]
  %v6694 = vld [vmem:[%s13 + $0x1b8] sm:$0xf]
  %v6695 = vld [vmem:[%s13 + $0x1bc] sm:$0xf]
  %v6696 = vld [vmem:[%s13 + $0x1c0] sm:$0xf]
  %v6697 = vld [vmem:[%s13 + $0x1c4] sm:$0xf]
  %v6698 = vld [vmem:[%s13 + $0x1c8] sm:$0xf]
  %v6699 = vld [vmem:[%s13 + $0x1cc] sm:$0xf]
  %v6700 = vld [vmem:[%s13 + $0x1d0] sm:$0xf]
  %v6701 = vld [vmem:[%s13 + $0x1d4] sm:$0xf]
  %v6702 = vld [vmem:[%s13 + $0x1d8] sm:$0xf]
  %v6703 = vld [vmem:[%s13 + $0x1dc] sm:$0xf]
  %v6704 = vld [vmem:[%s13 + $0x1e0] sm:$0xf]
  %v6705 = vld [vmem:[%s13 + $0x1e4] sm:$0xf]
  %v6706 = vld [vmem:[%s13 + $0x1e8] sm:$0xf]
  %v6707 = vld [vmem:[%s13 + $0x1ec] sm:$0xf]
  %v6708 = vld [vmem:[%s13 + $0x1f0] sm:$0xf]
  %v6709 = vld [vmem:[%s13 + $0x1f4] sm:$0xf]
  %v6710 = vld [vmem:[%s13 + $0x1f8] sm:$0xf]
  %v6711 = vld [vmem:[%s13 + $0x1fc] sm:$0xf]
  %v6712 = vld [vmem:[%s13 + $0x200] sm:$0xf]
  %v6713 = vld [vmem:[%s13 + $0x204] sm:$0xf]
  %v6714 = vld [vmem:[%s13 + $0x208] sm:$0xf]
  %v6715 = vld [vmem:[%s13 + $0x20c] sm:$0xf]
  %v6716 = vld [vmem:[%s13 + $0x210] sm:$0xf]
  %v6717 = vld [vmem:[%s13 + $0x214] sm:$0xf]
  %v6718 = vld [vmem:[%s13 + $0x218] sm:$0xf]
  %v6719 = vld [vmem:[%s13 + $0x21c] sm:$0xf]
  %v6720 = vld [vmem:[%s13 + $0x220] sm:$0xf]
  %v6721 = vld [vmem:[%s13 + $0x224] sm:$0xf]
  %v6722 = vld [vmem:[%s13 + $0x228] sm:$0xf]
  %v6723 = vld [vmem:[%s13 + $0x22c] sm:$0xf]
  %v6724 = vld [vmem:[%s13 + $0x230] sm:$0xf]
  %v6725 = vld [vmem:[%s13 + $0x234] sm:$0xf]
  %v6726 = vld [vmem:[%s13 + $0x238] sm:$0xf]
  %v6727 = vld [vmem:[%s13 + $0x23c] sm:$0xf]
  %v6728 = vld [vmem:[%s13 + $0x240] sm:$0xf]
  %v6729 = vld [vmem:[%s13 + $0x244] sm:$0xf]
  %v6730 = vld [vmem:[%s13 + $0x248] sm:$0xf]
  %v6731 = vld [vmem:[%s13 + $0x24c] sm:$0xf]
  %v6732 = vld [vmem:[%s13 + $0x250] sm:$0xf]
  %v6733 = vld [vmem:[%s13 + $0x254] sm:$0xf]
  %v6734 = vld [vmem:[%s13 + $0x258] sm:$0xf]
  %v6735 = vld [vmem:[%s13 + $0x25c] sm:$0xf]
  %v6736 = vld [vmem:[%s13 + $0x260] sm:$0xf]
  %v6737 = vld [vmem:[%s13 + $0x264] sm:$0xf]
  %v6738 = vld [vmem:[%s13 + $0x268] sm:$0xf]
  %v6739 = vld [vmem:[%s13 + $0x26c] sm:$0xf]
  %v6740 = vld [vmem:[%s13 + $0x270] sm:$0xf]
  %v6741 = vld [vmem:[%s13 + $0x274] sm:$0xf]
  %v6742 = vld [vmem:[%s13 + $0x278] sm:$0xf]
  %v6743 = vld [vmem:[%s13 + $0x27c] sm:$0xf]
  %v6744 = vld [vmem:[%s13 + $0x280] sm:$0xf]
  %v6745 = vld [vmem:[%s13 + $0x284] sm:$0xf]
  %v6746 = vld [vmem:[%s13 + $0x288] sm:$0xf]
  %v6747 = vld [vmem:[%s13 + $0x28c] sm:$0xf]
  %v6748 = vld [vmem:[%s13 + $0x290] sm:$0xf]
  %v6749 = vld [vmem:[%s13 + $0x294] sm:$0xf]
  %v6750 = vld [vmem:[%s13 + $0x298] sm:$0xf]
  %v6751 = vld [vmem:[%s13 + $0x29c] sm:$0xf]
  %v6752 = vld [vmem:[%s13 + $0x2a0] sm:$0xf]
  %v6753 = vld [vmem:[%s13 + $0x2a4] sm:$0xf]
  %v6754 = vld [vmem:[%s13 + $0x2a8] sm:$0xf]
  %v6755 = vld [vmem:[%s13 + $0x2ac] sm:$0xf]
  %v6756 = vld [vmem:[%s13 + $0x2b0] sm:$0xf]
  %v6757 = vld [vmem:[%s13 + $0x2b4] sm:$0xf]
  %v6758 = vld [vmem:[%s13 + $0x2b8] sm:$0xf]
  %v6759 = vld [vmem:[%s13 + $0x2bc] sm:$0xf]
  %v6760 = vld [vmem:[%s13 + $0x2c0] sm:$0xf]
  %v6761 = vld [vmem:[%s13 + $0x2c4] sm:$0xf]
  %v6762 = vld [vmem:[%s13 + $0x2c8] sm:$0xf]
  %v6763 = vld [vmem:[%s13 + $0x2cc] sm:$0xf]
  %v6764 = vld [vmem:[%s13 + $0x2d0] sm:$0xf]
  %v6765 = vld [vmem:[%s13 + $0x2d4] sm:$0xf]
  %v6766 = vld [vmem:[%s13 + $0x2d8] sm:$0xf]
  %v6767 = vld [vmem:[%s13 + $0x2dc] sm:$0xf]
  %v6768 = vld [vmem:[%s13 + $0x2e0] sm:$0xf]
  %v6769 = vld [vmem:[%s13 + $0x2e4] sm:$0xf]
  %v6770 = vld [vmem:[%s13 + $0x2e8] sm:$0xf]
  %v6771 = vld [vmem:[%s13 + $0x2ec] sm:$0xf]
  %v6772 = vld [vmem:[%s13 + $0x2f0] sm:$0xf]
  %v6773 = vld [vmem:[%s13 + $0x2f4] sm:$0xf]
  %v6774 = vld [vmem:[%s13 + $0x2f8] sm:$0xf]
  %v6775 = vld [vmem:[%s13 + $0x2fc] sm:$0xf]
  %v6776 = vld [vmem:[%s14] sm:$0x1]
  %v6778 = vlaneseq
  %v6779 = vshrl.u32 %v6778, 7
  %v6780 = vsub.s32 0, %v6779
  %v6781 = vrot.slane %v6776, %v6780
  %v6975 = vunpack.c.l.b16 %v6584
  %v6976 = vunpack.c.l.b16 %v6585
  %v6977 = vunpack.c.l.b16 %v6586
  %v6978 = vunpack.c.l.b16 %v6587
  %v6979 = vunpack.c.l.b16 %v6588
  %v6980 = vunpack.c.l.b16 %v6589
  %v6981 = vunpack.c.l.b16 %v6590
  %v6982 = vunpack.c.l.b16 %v6591
  %v6983 = vunpack.c.l.b16 %v6592
  %v6984 = vunpack.c.l.b16 %v6593
  %v6985 = vunpack.c.l.b16 %v6594
  %v6986 = vunpack.c.l.b16 %v6595
  %v6987 = vunpack.c.l.b16 %v6596
  %v6988 = vunpack.c.l.b16 %v6597
  %v6989 = vunpack.c.l.b16 %v6598
  %v6990 = vunpack.c.l.b16 %v6599
  %v6991 = vunpack.c.l.b16 %v6600
  %v6992 = vunpack.c.l.b16 %v6601
  %v6993 = vunpack.c.l.b16 %v6602
  %v6994 = vunpack.c.l.b16 %v6603
  %v6995 = vunpack.c.l.b16 %v6604
  %v6996 = vunpack.c.l.b16 %v6605
  %v6997 = vunpack.c.l.b16 %v6606
  %v6998 = vunpack.c.l.b16 %v6607
  %v6999 = vunpack.c.l.b16 %v6608
  %v7000 = vunpack.c.l.b16 %v6609
  %v7001 = vunpack.c.l.b16 %v6610
  %v7002 = vunpack.c.l.b16 %v6611
  %v7003 = vunpack.c.l.b16 %v6612
  %v7004 = vunpack.c.l.b16 %v6613
  %v7005 = vunpack.c.l.b16 %v6614
  %v7006 = vunpack.c.l.b16 %v6615
  %v7007 = vunpack.c.l.b16 %v6616
  %v7008 = vunpack.c.l.b16 %v6617
  %v7009 = vunpack.c.l.b16 %v6618
  %v7010 = vunpack.c.l.b16 %v6619
  %v7011 = vunpack.c.l.b16 %v6620
  %v7012 = vunpack.c.l.b16 %v6621
  %v7013 = vunpack.c.l.b16 %v6622
  %v7014 = vunpack.c.l.b16 %v6623
  %v7015 = vunpack.c.l.b16 %v6624
  %v7016 = vunpack.c.l.b16 %v6625
  %v7017 = vunpack.c.l.b16 %v6626
  %v7018 = vunpack.c.l.b16 %v6627
  %v7019 = vunpack.c.l.b16 %v6628
  %v7020 = vunpack.c.l.b16 %v6629
  %v7021 = vunpack.c.l.b16 %v6630
  %v7022 = vunpack.c.l.b16 %v6631
  %v7023 = vunpack.c.l.b16 %v6632
  %v7024 = vunpack.c.l.b16 %v6633
  %v7025 = vunpack.c.l.b16 %v6634
  %v7026 = vunpack.c.l.b16 %v6635
  %v7027 = vunpack.c.l.b16 %v6636
  %v7028 = vunpack.c.l.b16 %v6637
  %v7029 = vunpack.c.l.b16 %v6638
  %v7030 = vunpack.c.l.b16 %v6639
  %v7031 = vunpack.c.l.b16 %v6640
  %v7032 = vunpack.c.l.b16 %v6641
  %v7033 = vunpack.c.l.b16 %v6642
  %v7034 = vunpack.c.l.b16 %v6643
  %v7035 = vunpack.c.l.b16 %v6644
  %v7036 = vunpack.c.l.b16 %v6645
  %v7037 = vunpack.c.l.b16 %v6646
  %v7038 = vunpack.c.l.b16 %v6647
  %v7039 = vunpack.c.l.b16 %v6648
  %v7040 = vunpack.c.l.b16 %v6649
  %v7041 = vunpack.c.l.b16 %v6650
  %v7042 = vunpack.c.l.b16 %v6651
  %v7043 = vunpack.c.l.b16 %v6652
  %v7044 = vunpack.c.l.b16 %v6653
  %v7045 = vunpack.c.l.b16 %v6654
  %v7046 = vunpack.c.l.b16 %v6655
  %v7047 = vunpack.c.l.b16 %v6656
  %v7048 = vunpack.c.l.b16 %v6657
  %v7049 = vunpack.c.l.b16 %v6658
  %v7050 = vunpack.c.l.b16 %v6659
  %v7051 = vunpack.c.l.b16 %v6660
  %v7052 = vunpack.c.l.b16 %v6661
  %v7053 = vunpack.c.l.b16 %v6662
  %v7054 = vunpack.c.l.b16 %v6663
  %v7055 = vunpack.c.l.b16 %v6664
  %v7056 = vunpack.c.l.b16 %v6665
  %v7057 = vunpack.c.l.b16 %v6666
  %v7058 = vunpack.c.l.b16 %v6667
  %v7059 = vunpack.c.l.b16 %v6668
  %v7060 = vunpack.c.l.b16 %v6669
  %v7061 = vunpack.c.l.b16 %v6670
  %v7062 = vunpack.c.l.b16 %v6671
  %v7063 = vunpack.c.l.b16 %v6672
  %v7064 = vunpack.c.l.b16 %v6673
  %v7065 = vunpack.c.l.b16 %v6674
  %v7066 = vunpack.c.l.b16 %v6675
  %v7067 = vunpack.c.l.b16 %v6676
  %v7068 = vunpack.c.l.b16 %v6677
  %v7069 = vunpack.c.l.b16 %v6678
  %v7070 = vunpack.c.l.b16 %v6679
  %v7071 = vunpack.c.l.b16 %v6680
  %v7072 = vunpack.c.l.b16 %v6681
  %v7073 = vunpack.c.l.b16 %v6682
  %v7074 = vunpack.c.l.b16 %v6683
  %v7075 = vunpack.c.l.b16 %v6684
  %v7076 = vunpack.c.l.b16 %v6685
  %v7077 = vunpack.c.l.b16 %v6686
  %v7078 = vunpack.c.l.b16 %v6687
  %v7079 = vunpack.c.l.b16 %v6688
  %v7080 = vunpack.c.l.b16 %v6689
  %v7081 = vunpack.c.l.b16 %v6690
  %v7082 = vunpack.c.l.b16 %v6691
  %v7083 = vunpack.c.l.b16 %v6692
  %v7084 = vunpack.c.l.b16 %v6693
  %v7085 = vunpack.c.l.b16 %v6694
  %v7086 = vunpack.c.l.b16 %v6695
  %v7087 = vunpack.c.l.b16 %v6696
  %v7088 = vunpack.c.l.b16 %v6697
  %v7089 = vunpack.c.l.b16 %v6698
  %v7090 = vunpack.c.l.b16 %v6699
  %v7091 = vunpack.c.l.b16 %v6700
  %v7092 = vunpack.c.l.b16 %v6701
  %v7093 = vunpack.c.l.b16 %v6702
  %v7094 = vunpack.c.l.b16 %v6703
  %v7095 = vunpack.c.l.b16 %v6704
  %v7096 = vunpack.c.l.b16 %v6705
  %v7097 = vunpack.c.l.b16 %v6706
  %v7098 = vunpack.c.l.b16 %v6707
  %v7099 = vunpack.c.l.b16 %v6708
  %v7100 = vunpack.c.l.b16 %v6709
  %v7101 = vunpack.c.l.b16 %v6710
  %v7102 = vunpack.c.l.b16 %v6711
  %v7103 = vunpack.c.l.b16 %v6712
  %v7104 = vunpack.c.l.b16 %v6713
  %v7105 = vunpack.c.l.b16 %v6714
  %v7106 = vunpack.c.l.b16 %v6715
  %v7107 = vunpack.c.l.b16 %v6716
  %v7108 = vunpack.c.l.b16 %v6717
  %v7109 = vunpack.c.l.b16 %v6718
  %v7110 = vunpack.c.l.b16 %v6719
  %v7111 = vunpack.c.l.b16 %v6720
  %v7112 = vunpack.c.l.b16 %v6721
  %v7113 = vunpack.c.l.b16 %v6722
  %v7114 = vunpack.c.l.b16 %v6723
  %v7115 = vunpack.c.l.b16 %v6724
  %v7116 = vunpack.c.l.b16 %v6725
  %v7117 = vunpack.c.l.b16 %v6726
  %v7118 = vunpack.c.l.b16 %v6727
  %v7119 = vunpack.c.l.b16 %v6728
  %v7120 = vunpack.c.l.b16 %v6729
  %v7121 = vunpack.c.l.b16 %v6730
  %v7122 = vunpack.c.l.b16 %v6731
  %v7123 = vunpack.c.l.b16 %v6732
  %v7124 = vunpack.c.l.b16 %v6733
  %v7125 = vunpack.c.l.b16 %v6734
  %v7126 = vunpack.c.l.b16 %v6735
  %v7127 = vunpack.c.l.b16 %v6736
  %v7128 = vunpack.c.l.b16 %v6737
  %v7129 = vunpack.c.l.b16 %v6738
  %v7130 = vunpack.c.l.b16 %v6739
  %v7131 = vunpack.c.l.b16 %v6740
  %v7132 = vunpack.c.l.b16 %v6741
  %v7133 = vunpack.c.l.b16 %v6742
  %v7134 = vunpack.c.l.b16 %v6743
  %v7135 = vunpack.c.l.b16 %v6744
  %v7136 = vunpack.c.l.b16 %v6745
  %v7137 = vunpack.c.l.b16 %v6746
  %v7138 = vunpack.c.l.b16 %v6747
  %v7139 = vunpack.c.l.b16 %v6748
  %v7140 = vunpack.c.l.b16 %v6749
  %v7141 = vunpack.c.l.b16 %v6750
  %v7142 = vunpack.c.l.b16 %v6751
  %v7143 = vunpack.c.l.b16 %v6752
  %v7144 = vunpack.c.l.b16 %v6753
  %v7145 = vunpack.c.l.b16 %v6754
  %v7146 = vunpack.c.l.b16 %v6755
  %v7147 = vunpack.c.l.b16 %v6756
  %v7148 = vunpack.c.l.b16 %v6757
  %v7149 = vunpack.c.l.b16 %v6758
  %v7150 = vunpack.c.l.b16 %v6759
  %v7151 = vunpack.c.l.b16 %v6760
  %v7152 = vunpack.c.l.b16 %v6761
  %v7153 = vunpack.c.l.b16 %v6762
  %v7154 = vunpack.c.l.b16 %v6763
  %v7155 = vunpack.c.l.b16 %v6764
  %v7156 = vunpack.c.l.b16 %v6765
  %v7157 = vunpack.c.l.b16 %v6766
  %v7158 = vunpack.c.l.b16 %v6767
  %v7159 = vunpack.c.l.b16 %v6768
  %v7160 = vunpack.c.l.b16 %v6769
  %v7161 = vunpack.c.l.b16 %v6770
  %v7162 = vunpack.c.l.b16 %v6771
  %v7163 = vunpack.c.l.b16 %v6772
  %v7164 = vunpack.c.l.b16 %v6773
  %v7165 = vunpack.c.l.b16 %v6774
  %v7166 = vunpack.c.l.b16 %v6775
  %v7167 = vpack.c.b16 %v6976, %v6975
  %v7168 = vpack.c.b16 %v6978, %v6977
  %v7169 = vpack.c.b16 %v6980, %v6979
  %v7170 = vpack.c.b16 %v6982, %v6981
  %v7171 = vpack.c.b16 %v6984, %v6983
  %v7172 = vpack.c.b16 %v6986, %v6985
  %v7173 = vpack.c.b16 %v6988, %v6987
  %v7174 = vpack.c.b16 %v6990, %v6989
  %v7175 = vpack.c.b16 %v6992, %v6991
  %v7176 = vpack.c.b16 %v6994, %v6993
  %v7177 = vpack.c.b16 %v6996, %v6995
  %v7178 = vpack.c.b16 %v6998, %v6997
  %v7179 = vpack.c.b16 %v7000, %v6999
  %v7180 = vpack.c.b16 %v7002, %v7001
  %v7181 = vpack.c.b16 %v7004, %v7003
  %v7182 = vpack.c.b16 %v7006, %v7005
  %v7183 = vpack.c.b16 %v7008, %v7007
  %v7184 = vpack.c.b16 %v7010, %v7009
  %v7185 = vpack.c.b16 %v7012, %v7011
  %v7186 = vpack.c.b16 %v7014, %v7013
  %v7187 = vpack.c.b16 %v7016, %v7015
  %v7188 = vpack.c.b16 %v7018, %v7017
  %v7189 = vpack.c.b16 %v7020, %v7019
  %v7190 = vpack.c.b16 %v7022, %v7021
  %v7191 = vpack.c.b16 %v7024, %v7023
  %v7192 = vpack.c.b16 %v7026, %v7025
  %v7193 = vpack.c.b16 %v7028, %v7027
  %v7194 = vpack.c.b16 %v7030, %v7029
  %v7195 = vpack.c.b16 %v7032, %v7031
  %v7196 = vpack.c.b16 %v7034, %v7033
  %v7197 = vpack.c.b16 %v7036, %v7035
  %v7198 = vpack.c.b16 %v7038, %v7037
  %v7199 = vpack.c.b16 %v7040, %v7039
  %v7200 = vpack.c.b16 %v7042, %v7041
  %v7201 = vpack.c.b16 %v7044, %v7043
  %v7202 = vpack.c.b16 %v7046, %v7045
  %v7203 = vpack.c.b16 %v7048, %v7047
  %v7204 = vpack.c.b16 %v7050, %v7049
  %v7205 = vpack.c.b16 %v7052, %v7051
  %v7206 = vpack.c.b16 %v7054, %v7053
  %v7207 = vpack.c.b16 %v7056, %v7055
  %v7208 = vpack.c.b16 %v7058, %v7057
  %v7209 = vpack.c.b16 %v7060, %v7059
  %v7210 = vpack.c.b16 %v7062, %v7061
  %v7211 = vpack.c.b16 %v7064, %v7063
  %v7212 = vpack.c.b16 %v7066, %v7065
  %v7213 = vpack.c.b16 %v7068, %v7067
  %v7214 = vpack.c.b16 %v7070, %v7069
  %v7215 = vpack.c.b16 %v7072, %v7071
  %v7216 = vpack.c.b16 %v7074, %v7073
  %v7217 = vpack.c.b16 %v7076, %v7075
  %v7218 = vpack.c.b16 %v7078, %v7077
  %v7219 = vpack.c.b16 %v7080, %v7079
  %v7220 = vpack.c.b16 %v7082, %v7081
  %v7221 = vpack.c.b16 %v7084, %v7083
  %v7222 = vpack.c.b16 %v7086, %v7085
  %v7223 = vpack.c.b16 %v7088, %v7087
  %v7224 = vpack.c.b16 %v7090, %v7089
  %v7225 = vpack.c.b16 %v7092, %v7091
  %v7226 = vpack.c.b16 %v7094, %v7093
  %v7227 = vpack.c.b16 %v7096, %v7095
  %v7228 = vpack.c.b16 %v7098, %v7097
  %v7229 = vpack.c.b16 %v7100, %v7099
  %v7230 = vpack.c.b16 %v7102, %v7101
  %v7231 = vpack.c.b16 %v7104, %v7103
  %v7232 = vpack.c.b16 %v7106, %v7105
  %v7233 = vpack.c.b16 %v7108, %v7107
  %v7234 = vpack.c.b16 %v7110, %v7109
  %v7235 = vpack.c.b16 %v7112, %v7111
  %v7236 = vpack.c.b16 %v7114, %v7113
  %v7237 = vpack.c.b16 %v7116, %v7115
  %v7238 = vpack.c.b16 %v7118, %v7117
  %v7239 = vpack.c.b16 %v7120, %v7119
  %v7240 = vpack.c.b16 %v7122, %v7121
  %v7241 = vpack.c.b16 %v7124, %v7123
  %v7242 = vpack.c.b16 %v7126, %v7125
  %v7243 = vpack.c.b16 %v7128, %v7127
  %v7244 = vpack.c.b16 %v7130, %v7129
  %v7245 = vpack.c.b16 %v7132, %v7131
  %v7246 = vpack.c.b16 %v7134, %v7133
  %v7247 = vpack.c.b16 %v7136, %v7135
  %v7248 = vpack.c.b16 %v7138, %v7137
  %v7249 = vpack.c.b16 %v7140, %v7139
  %v7250 = vpack.c.b16 %v7142, %v7141
  %v7251 = vpack.c.b16 %v7144, %v7143
  %v7252 = vpack.c.b16 %v7146, %v7145
  %v7253 = vpack.c.b16 %v7148, %v7147
  %v7254 = vpack.c.b16 %v7150, %v7149
  %v7255 = vpack.c.b16 %v7152, %v7151
  %v7256 = vpack.c.b16 %v7154, %v7153
  %v7257 = vpack.c.b16 %v7156, %v7155
  %v7258 = vpack.c.b16 %v7158, %v7157
  %v7259 = vpack.c.b16 %v7160, %v7159
  %v7260 = vpack.c.b16 %v7162, %v7161
  %v7261 = vpack.c.b16 %v7164, %v7163
  %v7262 = vpack.c.b16 %v7166, %v7165
  %7359 = vmatprep.subr.bf16.mxu0 0
  %7360 = vmatpush1.bf16.msra.mxu0 %v7167
  %7361 = vmatprep.subr.bf16.mxu0 0
  %7362 = vmatpush1.bf16.msra.mxu0 %v7168
  %7363 = vmatprep.subr.bf16.mxu0 0
  %7364 = vmatpush1.bf16.msra.mxu0 %v7169
  %7365 = vmatprep.subr.bf16.mxu0 0
  %7366 = vmatpush1.bf16.msra.mxu0 %v7170
  %7367 = vmatprep.subr.bf16.mxu0 0
  %7368 = vmatpush1.bf16.msra.mxu0 %v7171
  %7369 = vmatprep.subr.bf16.mxu0 0
  %7370 = vmatpush1.bf16.msra.mxu0 %v7172
  %7371 = vmatprep.subr.bf16.mxu0 0
  %7372 = vmatpush1.bf16.msra.mxu0 %v7173
  %7373 = vmatprep.subr.bf16.mxu0 0
  %7374 = vmatpush1.bf16.msra.mxu0 %v7174
  %7375 = vmatprep.subr.bf16.mxu0 0
  %7376 = vmatpush1.bf16.msra.mxu0 %v7175
  %7377 = vmatprep.subr.bf16.mxu0 0
  %7378 = vmatpush1.bf16.msra.mxu0 %v7176
  %7379 = vmatprep.subr.bf16.mxu0 0
  %7380 = vmatpush1.bf16.msra.mxu0 %v7177
  %7381 = vmatprep.subr.bf16.mxu0 0
  %7382 = vmatpush1.bf16.msra.mxu0 %v7178
  %7383 = vmatprep.subr.bf16.mxu0 0
  %7384 = vmatpush1.bf16.msra.mxu0 %v7179
  %7385 = vmatprep.subr.bf16.mxu0 0
  %7386 = vmatpush1.bf16.msra.mxu0 %v7180
  %7387 = vmatprep.subr.bf16.mxu0 0
  %7388 = vmatpush1.bf16.msra.mxu0 %v7181
  %7389 = vmatprep.subr.bf16.mxu0 0
  %7390 = vmatpush1.bf16.msra.mxu0 %v7182
  %7391 = vmatprep.mubr.bf16.mxu0 %v4657
  %7392 = vmatmul.mubr.bf16.gmra.mrb[0].mxu0 %v4656
  %v7393 = vpop.f32.mrb[0].mxu0
  %v7394 = vadd.f32 %v6781, %v7393
  %v7395 = vpop.f32.mrb[0].mxu0
  %v7396 = vpop.f32.mrb[0].mxu0
  %v7397 = vpop.f32.mrb[0].mxu0
  %7398 = vdwg.mxu0
  %7399 = vmatprep.subr.bf16.mxu0 0
  %7400 = vmatpush1.bf16.msra.mxu0 %v7183
  %7401 = vmatprep.subr.bf16.mxu0 0
  %7402 = vmatpush1.bf16.msra.mxu0 %v7184
  %7403 = vmatprep.subr.bf16.mxu0 0
  %7404 = vmatpush1.bf16.msra.mxu0 %v7185
  %7405 = vmatprep.subr.bf16.mxu0 0
  %7406 = vmatpush1.bf16.msra.mxu0 %v7186
  %7407 = vmatprep.subr.bf16.mxu0 0
  %7408 = vmatpush1.bf16.msra.mxu0 %v7187
  %7409 = vmatprep.subr.bf16.mxu0 0
  %7410 = vmatpush1.bf16.msra.mxu0 %v7188
  %7411 = vmatprep.subr.bf16.mxu0 0
  %7412 = vmatpush1.bf16.msra.mxu0 %v7189
  %7413 = vmatprep.subr.bf16.mxu0 0
  %7414 = vmatpush1.bf16.msra.mxu0 %v7190
  %7415 = vmatprep.subr.bf16.mxu0 0
  %7416 = vmatpush1.bf16.msra.mxu0 %v7191
  %7417 = vmatprep.subr.bf16.mxu0 0
  %7418 = vmatpush1.bf16.msra.mxu0 %v7192
  %7419 = vmatprep.subr.bf16.mxu0 0
  %7420 = vmatpush1.bf16.msra.mxu0 %v7193
  %7421 = vmatprep.subr.bf16.mxu0 0
  %7422 = vmatpush1.bf16.msra.mxu0 %v7194
  %7423 = vmatprep.subr.bf16.mxu0 0
  %7424 = vmatpush1.bf16.msra.mxu0 %v7195
  %7425 = vmatprep.subr.bf16.mxu0 0
  %7426 = vmatpush1.bf16.msra.mxu0 %v7196
  %7427 = vmatprep.subr.bf16.mxu0 0
  %7428 = vmatpush1.bf16.msra.mxu0 %v7197
  %7429 = vmatprep.subr.bf16.mxu0 0
  %7430 = vmatpush1.bf16.msra.mxu0 %v7198
  %7431 = vmatprep.mubr.bf16.mxu0 %v4659
  %7432 = vmatmul.mubr.bf16.gmra.mrb[0].mxu0 %v4658
  %v7433 = vpop.f32.mrb[0].mxu0
  %v7434 = vadd.f32 %v7394, %v7433
  %v7435 = vpop.f32.mrb[0].mxu0
  %v7436 = vpop.f32.mrb[0].mxu0
  %v7437 = vpop.f32.mrb[0].mxu0
  %7438 = vdwg.mxu0
  %7439 = vmatprep.subr.bf16.mxu0 0
  %7440 = vmatpush1.bf16.msra.mxu0 %v7199
  %7441 = vmatprep.subr.bf16.mxu0 0
  %7442 = vmatpush1.bf16.msra.mxu0 %v7200
  %7443 = vmatprep.subr.bf16.mxu0 0
  %7444 = vmatpush1.bf16.msra.mxu0 %v7201
  %7445 = vmatprep.subr.bf16.mxu0 0
  %7446 = vmatpush1.bf16.msra.mxu0 %v7202
  %7447 = vmatprep.subr.bf16.mxu0 0
  %7448 = vmatpush1.bf16.msra.mxu0 %v7203
  %7449 = vmatprep.subr.bf16.mxu0 0
  %7450 = vmatpush1.bf16.msra.mxu0 %v7204
  %7451 = vmatprep.subr.bf16.mxu0 0
  %7452 = vmatpush1.bf16.msra.mxu0 %v7205
  %7453 = vmatprep.subr.bf16.mxu0 0
  %7454 = vmatpush1.bf16.msra.mxu0 %v7206
  %7455 = vmatprep.subr.bf16.mxu0 0
  %7456 = vmatpush1.bf16.msra.mxu0 %v7207
  %7457 = vmatprep.subr.bf16.mxu0 0
  %7458 = vmatpush1.bf16.msra.mxu0 %v7208
  %7459 = vmatprep.subr.bf16.mxu0 0
  %7460 = vmatpush1.bf16.msra.mxu0 %v7209
  %7461 = vmatprep.subr.bf16.mxu0 0
  %7462 = vmatpush1.bf16.msra.mxu0 %v7210
  %7463 = vmatprep.subr.bf16.mxu0 0
  %7464 = vmatpush1.bf16.msra.mxu0 %v7211
  %7465 = vmatprep.subr.bf16.mxu0 0
  %7466 = vmatpush1.bf16.msra.mxu0 %v7212
  %7467 = vmatprep.subr.bf16.mxu0 0
  %7468 = vmatpush1.bf16.msra.mxu0 %v7213
  %7469 = vmatprep.subr.bf16.mxu0 0
  %7470 = vmatpush1.bf16.msra.mxu0 %v7214
  %7471 = vmatprep.mubr.bf16.mxu0 %v5619
  %7472 = vmatmul.mubr.bf16.gmra.mrb[0].mxu0 %v5618
  %v7473 = vpop.f32.mrb[0].mxu0
  %v7474 = vadd.f32 %v7434, %v7473
  %v7475 = vpop.f32.mrb[0].mxu0
  %v7476 = vpop.f32.mrb[0].mxu0
  %v7477 = vpop.f32.mrb[0].mxu0
  %7478 = vdwg.mxu0
  %7479 = vmatprep.subr.bf16.mxu0 0
  %7480 = vmatpush1.bf16.msra.mxu0 %v7215
  %7481 = vmatprep.subr.bf16.mxu0 0
  %7482 = vmatpush1.bf16.msra.mxu0 %v7216
  %7483 = vmatprep.subr.bf16.mxu0 0
  %7484 = vmatpush1.bf16.msra.mxu0 %v7217
  %7485 = vmatprep.subr.bf16.mxu0 0
  %7486 = vmatpush1.bf16.msra.mxu0 %v7218
  %7487 = vmatprep.subr.bf16.mxu0 0
  %7488 = vmatpush1.bf16.msra.mxu0 %v7219
  %7489 = vmatprep.subr.bf16.mxu0 0
  %7490 = vmatpush1.bf16.msra.mxu0 %v7220
  %7491 = vmatprep.subr.bf16.mxu0 0
  %7492 = vmatpush1.bf16.msra.mxu0 %v7221
  %7493 = vmatprep.subr.bf16.mxu0 0
  %7494 = vmatpush1.bf16.msra.mxu0 %v7222
  %7495 = vmatprep.subr.bf16.mxu0 0
  %7496 = vmatpush1.bf16.msra.mxu0 %v7223
  %7497 = vmatprep.subr.bf16.mxu0 0
  %7498 = vmatpush1.bf16.msra.mxu0 %v7224
  %7499 = vmatprep.subr.bf16.mxu0 0
  %7500 = vmatpush1.bf16.msra.mxu0 %v7225
  %7501 = vmatprep.subr.bf16.mxu0 0
  %7502 = vmatpush1.bf16.msra.mxu0 %v7226
  %7503 = vmatprep.subr.bf16.mxu0 0
  %7504 = vmatpush1.bf16.msra.mxu0 %v7227
  %7505 = vmatprep.subr.bf16.mxu0 0
  %7506 = vmatpush1.bf16.msra.mxu0 %v7228
  %7507 = vmatprep.subr.bf16.mxu0 0
  %7508 = vmatpush1.bf16.msra.mxu0 %v7229
  %7509 = vmatprep.subr.bf16.mxu0 0
  %7510 = vmatpush1.bf16.msra.mxu0 %v7230
  %7511 = vmatprep.mubr.bf16.mxu0 %v5621
  %7512 = vmatmul.mubr.bf16.gmra.mrb[0].mxu0 %v5620
  %v7513 = vpop.f32.mrb[0].mxu0
  %v7514 = vadd.f32 %v7474, %v7513
  %v7515 = vpop.f32.mrb[0].mxu0
  %v7516 = vpop.f32.mrb[0].mxu0
  %v7517 = vpop.f32.mrb[0].mxu0
  %7518 = vdwg.mxu0
  %7519 = vmatprep.subr.bf16.mxu0 0
  %7520 = vmatpush1.bf16.msra.mxu0 %v7231
  %7521 = vmatprep.subr.bf16.mxu0 0
  %7522 = vmatpush1.bf16.msra.mxu0 %v7232
  %7523 = vmatprep.subr.bf16.mxu0 0
  %7524 = vmatpush1.bf16.msra.mxu0 %v7233
  %7525 = vmatprep.subr.bf16.mxu0 0
  %7526 = vmatpush1.bf16.msra.mxu0 %v7234
  %7527 = vmatprep.subr.bf16.mxu0 0
  %7528 = vmatpush1.bf16.msra.mxu0 %v7235
  %7529 = vmatprep.subr.bf16.mxu0 0
  %7530 = vmatpush1.bf16.msra.mxu0 %v7236
  %7531 = vmatprep.subr.bf16.mxu0 0
  %7532 = vmatpush1.bf16.msra.mxu0 %v7237
  %7533 = vmatprep.subr.bf16.mxu0 0
  %7534 = vmatpush1.bf16.msra.mxu0 %v7238
  %7535 = vmatprep.subr.bf16.mxu0 0
  %7536 = vmatpush1.bf16.msra.mxu0 %v7239
  %7537 = vmatprep.subr.bf16.mxu0 0
  %7538 = vmatpush1.bf16.msra.mxu0 %v7240
  %7539 = vmatprep.subr.bf16.mxu0 0
  %7540 = vmatpush1.bf16.msra.mxu0 %v7241
  %7541 = vmatprep.subr.bf16.mxu0 0
  %7542 = vmatpush1.bf16.msra.mxu0 %v7242
  %7543 = vmatprep.subr.bf16.mxu0 0
  %7544 = vmatpush1.bf16.msra.mxu0 %v7243
  %7545 = vmatprep.subr.bf16.mxu0 0
  %7546 = vmatpush1.bf16.msra.mxu0 %v7244
  %7547 = vmatprep.subr.bf16.mxu0 0
  %7548 = vmatpush1.bf16.msra.mxu0 %v7245
  %7549 = vmatprep.subr.bf16.mxu0 0
  %7550 = vmatpush1.bf16.msra.mxu0 %v7246
  %7551 = vmatprep.mubr.bf16.mxu0 %v6581
  %7552 = vmatmul.mubr.bf16.gmra.mrb[0].mxu0 %v6580
  %v7553 = vpop.f32.mrb[0].mxu0
  %v7554 = vadd.f32 %v7514, %v7553
  %v7555 = vpop.f32.mrb[0].mxu0
  %v7556 = vpop.f32.mrb[0].mxu0
  %v7557 = vpop.f32.mrb[0].mxu0
  %7558 = vdwg.mxu0
  %7559 = vmatprep.subr.bf16.mxu0 0
  %7560 = vmatpush1.bf16.msra.mxu0 %v7247
  %7561 = vmatprep.subr.bf16.mxu0 0
  %7562 = vmatpush1.bf16.msra.mxu0 %v7248
  %7563 = vmatprep.subr.bf16.mxu0 0
  %7564 = vmatpush1.bf16.msra.mxu0 %v7249
  %7565 = vmatprep.subr.bf16.mxu0 0
  %7566 = vmatpush1.bf16.msra.mxu0 %v7250
  %7567 = vmatprep.subr.bf16.mxu0 0
  %7568 = vmatpush1.bf16.msra.mxu0 %v7251
  %7569 = vmatprep.subr.bf16.mxu0 0
  %7570 = vmatpush1.bf16.msra.mxu0 %v7252
  %7571 = vmatprep.subr.bf16.mxu0 0
  %7572 = vmatpush1.bf16.msra.mxu0 %v7253
  %7573 = vmatprep.subr.bf16.mxu0 0
  %7574 = vmatpush1.bf16.msra.mxu0 %v7254
  %7575 = vmatprep.subr.bf16.mxu0 0
  %7576 = vmatpush1.bf16.msra.mxu0 %v7255
  %7577 = vmatprep.subr.bf16.mxu0 0
  %7578 = vmatpush1.bf16.msra.mxu0 %v7256
  %7579 = vmatprep.subr.bf16.mxu0 0
  %7580 = vmatpush1.bf16.msra.mxu0 %v7257
  %7581 = vmatprep.subr.bf16.mxu0 0
  %7582 = vmatpush1.bf16.msra.mxu0 %v7258
  %7583 = vmatprep.subr.bf16.mxu0 0
  %7584 = vmatpush1.bf16.msra.mxu0 %v7259
  %7585 = vmatprep.subr.bf16.mxu0 0
  %7586 = vmatpush1.bf16.msra.mxu0 %v7260
  %7587 = vmatprep.subr.bf16.mxu0 0
  %7588 = vmatpush1.bf16.msra.mxu0 %v7261
  %7589 = vmatprep.subr.bf16.mxu0 0
  %7590 = vmatpush1.bf16.msra.mxu0 %v7262
  %7591 = vmatprep.mubr.bf16.mxu0 %v6583
  %7592 = vmatmul.mubr.bf16.gmra.mrb[0].mxu0 %v6582
  %v7593 = vpop.f32.mrb[0].mxu0
  %v7594 = vadd.f32 %v7554, %v7593
  %v7595 = vpop.f32.mrb[0].mxu0
  %v7596 = vpop.f32.mrb[0].mxu0
  %v7597 = vpop.f32.mrb[0].mxu0
  %7598 = vdwg.mxu0
  %v7599 = vlaneseq
  %v7600 = vand.u32 %v7599, 127
  %vm7601 = vcmp.lt.s32.totalorder %v7600, 7
  %vm7602 = vcmp.ge.s32.totalorder %v7600, 8
  %vm7603 = vcmp.lt.s32.totalorder %v7600, 15
  %vm7604 = vmand %vm7602, %vm7603
  %v7605 = vsel %vm7601, %v7594, -1e+30
  %vm7606 = vcmask 1041408
  %v7607 = vsel %vm7606, %v7605, -inf
  %7608 = vmax.xlane.f32.xlu0 %v7607
  %v7609 = vpop.xlane.xlu0 %7608
  %v7610 = vsub.f32 %v7594, %v7609
  %v7611 = vsel %vm7601, %v7610, -1e+30
  %v7612 = vmul.f32 %v7611, 1.442695
  %v7613 = vpow.pop %v7612
  %v7614 = vsel %vm7606, %v7613, 0.0
  %7615 = vadd.xlane.f32.xlu0 %v7614
  %v7616 = vpop.xlane.xlu0 %7615
  %v7617 = vlog2.pop %v7616
  %v7618 = vmul.f32 %v7617, 0.6931472
  %v7619 = vsub.f32 %v7610, %v7618
  %v7620 = vsel %vm7604, %v7594, -1e+30
  %v7621 = vsel %vm7606, %v7620, -inf
  %7622 = vmax.xlane.f32.xlu0 %v7621
  %v7623 = vpop.xlane.xlu0 %7622
  %v7624 = vsub.f32 %v7594, %v7623
  %v7625 = vsel %vm7604, %v7624, -1e+30
  %v7626 = vmul.f32 %v7625, 1.442695
  %v7627 = vpow.pop %v7626
  %v7628 = vsel %vm7606, %v7627, 0.0
  %7629 = vadd.xlane.f32.xlu0 %v7628
  %v7630 = vpop.xlane.xlu0 %7629
  %v7631 = vlog2.pop %v7630
  %v7632 = vmul.f32 %v7631, 0.6931472
  %v7633 = vsub.f32 %v7624, %v7632
  %v7634 = vsel %vm7604, %v7633, %v7594
  %v7635 = vsel %vm7601, %v7619, %v7634
  %7636 = vst [vmem:[%s15] sm:$0x3] %v7635
  // Predicated region
  $region62: #{advisor_policy_forward.1} parent=0 // pred_check
    _
  $region63: #{advisor_policy_forward.1} parent=0 // pred_check_branch
    %7638 = sbr.rel (0) target = $region65
  $region64: #{advisor_policy_forward.1} parent=0 // pred_region
    _
  $region65: #{advisor_policy_forward.1} parent=0 // pred_fallthru
    _
  // Predicated region
  $region66: #{advisor_policy_forward.1} parent=0 // pred_check
    _
  $region67: #{advisor_policy_forward.1} parent=0 // pred_check_branch
    %7640 = sbr.rel (0) target = $region69
  $region68: #{advisor_policy_forward.1} parent=0 // pred_region
    _
  $region69: #{advisor_policy_forward.1} parent=0 // pred_fallthru
    _

</llo_original>
